<compile_context>
chip_gen: v7x
topology: tpu7x:2x2x1
jax: 0.10.0
libtpu: 0.0.40
codegen_flags: <defaults>
</compile_context>

<pallas_src>
import functools

import jax
import jax.numpy as jnp
from jax.experimental import pallas as pl
from jax.experimental.pallas import tpu as pltpu


MXU_BF16 = True  # cast MXU operands to bf16 (f32 accumulation); False => f32 matmuls.


# ----------------------------- hardware / tiling helpers ---------------------

@functools.lru_cache(maxsize=1)
def _tpu_hw():
    """(vmem_capacity_bytes, is_v5e).  Conservative defaults if the query fails."""
    vmem_cap = 64 << 20
    try:
        info = pltpu.get_tpu_info()
        vmem_cap = int(getattr(info, "vmem_capacity_bytes", vmem_cap))
    except Exception:
        pass
    kind = ""
    try:
        kind = jax.devices()[0].device_kind.lower()
    except Exception:
        pass
    is_v5e = ("v5 lite" in kind) or ("v5e" in kind) or ("v5lite" in kind)
    return vmem_cap, is_v5e


def _pick_tile(dim, target, align, min_blocks=1):
    """Largest tile <= target that divides dim (aligned), preferring >= min_blocks
    grid blocks (v7x megacore); falls back to the full dim (always legal)."""
    limit = min(dim, target)
    t = (limit // align) * align
    while t >= align:
        if dim % t == 0 and dim // t >= min_blocks:
            return t
        t -= align
    t = (limit // align) * align
    while t >= align:
        if dim % t == 0:
            return t
        t -= align
    return dim


def _pick_group_block(num_groups, per_group_bytes, target_bytes, min_blocks=2):
    """Largest divisor of num_groups within target_bytes, keeping >= min_blocks
    grid steps (so both v7x TensorCores get work)."""
    cap = max(1, min(num_groups, target_bytes // max(per_group_bytes, 1)))
    if num_groups >= min_blocks:
        cap = min(cap, num_groups // min_blocks)
    cap = max(int(cap), 1)
    for d in range(cap, 0, -1):
        if num_groups % d == 0:
            return d
    return 1


def _gelu_exact(x):
    # Exact (erf-based) GELU matching torch.nn.GELU(); erf via the A&S 7.1.26 f32
    # rational approximation (|err| ~1.5e-7), exp lands on the EUP slot.
    # TODO(synk): swap to jax.lax.erf if/when Mosaic lowers it natively (v5e VALU relief).
    z = x * 0.7071067811865476
    az = jnp.abs(z)
    t = 1.0 / (1.0 + 0.3275911 * az)
    poly = ((((1.061405429 * t - 1.453152027) * t + 1.421413741) * t
             - 0.284496736) * t + 0.254829592) * t
    erf_abs = 1.0 - poly * jnp.exp(-az * az)
    erf = jnp.where(z < 0.0, -erf_abs, erf_abs)
    return 0.5 * x * (1.0 + erf)


# ----------------------------- Pallas kernels --------------------------------

def _matmul_kernel(*refs, has_bias, has_residual, has_ln, activation, use_bf16):
    # refs: x, w, [bias], [residual], [ln_gamma, ln_beta], out, acc, [xln]
    it = iter(refs)
    x_ref = next(it)
    w_ref = next(it)
    b_ref = next(it) if has_bias else None
    r_ref = next(it) if has_residual else None
    g_ref = next(it) if has_ln else None
    bb_ref = next(it) if has_ln else None
    o_ref = next(it)
    acc_ref = next(it)
    xln_ref = next(it) if has_ln else None

    j = pl.program_id(1)
    k = pl.program_id(2)

    @pl.when(k == 0)
    def _init():
        acc_ref[...] = jnp.zeros_like(acc_ref)

    if has_ln:
        # Wrapper guarantees tk == K (gk == 1) here: normalize once per row block
        # (j == 0) into persistent VMEM scratch and reuse it for every N tile.
        @pl.when(j == 0)
        def _ln():
            xv = x_ref[...].astype(jnp.float32)
            mu = jnp.mean(xv, axis=-1, keepdims=True)
            var = jnp.mean((xv - mu) ** 2, axis=-1, keepdims=True)
            xn = (xv - mu) * jax.lax.rsqrt(var + 1e-5)
            xln_ref[...] = (xn * g_ref[...].astype(jnp.float32)
                            + bb_ref[...].astype(jnp.float32))
        x = xln_ref[...]
    else:
        x = x_ref[...].astype(jnp.float32)

    cdt = jnp.bfloat16 if use_bf16 else jnp.float32
    acc_ref[...] += jnp.dot(x.astype(cdt), w_ref[...].astype(cdt),
                            preferred_element_type=jnp.float32)

    @pl.when(k == pl.num_programs(2) - 1)
    def _finish():
        y = acc_ref[...]
        if has_bias:
            y = y + b_ref[...].astype(jnp.float32)
        if activation == "gelu":
            y = _gelu_exact(y)
        if has_residual:
            y = y + r_ref[...].astype(jnp.float32)
        o_ref[...] = y.astype(o_ref.dtype)


def _layernorm_kernel(x_ref, g_ref, b_ref, o_ref):
    # PyTorch nn.LayerNorm semantics: biased variance over last dim, eps=1e-5.
    x = x_ref[...].astype(jnp.float32)
    mu = jnp.mean(x, axis=-1, keepdims=True)
    var = jnp.mean((x - mu) ** 2, axis=-1, keepdims=True)
    y = (x - mu) * jax.lax.rsqrt(var + 1e-5)
    o_ref[...] = (y * g_ref[...].astype(jnp.float32)
                  + b_ref[...].astype(jnp.float32)).astype(o_ref.dtype)


def _fd_attn_kernel(*refs, h2, dh, scale, col_off, use_bf16):
    """Batched-group attention over h2 heads; output is lane-dense (gb, L, h2*dh)."""
    if col_off is None:
        q_ref, k_ref, v_ref, o_ref = refs        # pre-sliced qkv column slabs
        q_all = q_ref[...]
        k_all = k_ref[...]
        v_all = v_ref[...]
    else:
        qkv_ref, o_ref = refs                    # fallback: full rows, slice in-kernel
        hw = h2 * dh
        qo, ko, vo = col_off
        full = qkv_ref[...]
        q_all = full[:, :, qo:qo + hw]
        k_all = full[:, :, ko:ko + hw]
        v_all = full[:, :, vo:vo + hw]

    cdt = jnp.bfloat16 if use_bf16 else jnp.float32
    for h in range(h2):                          # unrolled; h2 is small (2..8)
        sl = slice(h * dh, (h + 1) * dh)
        qh = (q_all[:, :, sl] * scale).astype(cdt)
        kh = k_all[:, :, sl].astype(cdt)
        vh = v_all[:, :, sl].astype(cdt)
        # NOTE: contraction over the lane-minor dh may cost an in-VMEM (XLU) transpose
        # of kh; that replaces the HBM transposes of the previous layout.
        s = jnp.einsum('gid,gjd->gij', qh, kh, preferred_element_type=jnp.float32)
        m = jnp.max(s, axis=-1, keepdims=True)
        e = jnp.exp(s - m)
        denom = jnp.sum(e, axis=-1, keepdims=True)
        p = e * pl.reciprocal(denom, approx=True)        # divide -> EUP slot
        oh = jnp.einsum('gij,gjd->gid', p.astype(cdt), vh,
                        preferred_element_type=jnp.float32)
        o_ref[:, :, sl] = oh.astype(o_ref.dtype)


# ---------------------------- kernel wrappers ---------------------------------

def layernorm_pallas(x, gamma, beta, tm_target=512):
    """x:(M,D), gamma/beta:(D,) -> (M,D).  Row-tiled, 'parallel' grid."""
    M, D = x.shape
    tm = _pick_tile(M, tm_target, 8, min_blocks=2)
    return pl.pallas_call(
        _layernorm_kernel,
        out_shape=jax.ShapeDtypeStruct((M, D), x.dtype),
        grid=(M // tm,),
        in_specs=[
            pl.BlockSpec((tm, D), lambda i: (i, 0)),
            pl.BlockSpec((1, D), lambda i: (0, 0)),
            pl.BlockSpec((1, D), lambda i: (0, 0)),
        ],
        out_specs=pl.BlockSpec((tm, D), lambda i: (i, 0)),
        compiler_params=pltpu.CompilerParams(dimension_semantics=("parallel",)),
    )(x, gamma.reshape(1, D), beta.reshape(1, D))


def linear_pallas(x, w, bias=None, residual=None, activation=None, ln=None):
    """Fused y = [gelu](LN?(x) @ w + bias) + residual.

    x:(M,K), w:(K,N).  ln=(gamma,beta) fuses PreNorm into the matmul (only when the
    K tile spans full K; otherwise a separate tiled LN runs first).  Tiled
    (M//tm, N//tn, K//tk) grid, f32 VMEM accumulator, bf16 MXU operands (MXU_BF16).
    """
    M, K = x.shape
    N = w.shape[1]
    vmem_cap, is_v5e = _tpu_hw()
    vmem_limit = int(min(max(vmem_cap // 2, 16 << 20), 64 << 20))
    tm_t, tn_t, tk_t = (256, 128, 256) if is_v5e else (512, 256, 512)

    def pick(f):
        return (_pick_tile(M, max(tm_t // f, 8), 8, min_blocks=2),
                _pick_tile(N, max(tn_t // f, 128), 128),
                _pick_tile(K, max(tk_t // f, 128), 128))

    def footprint(tm, tn, tk):
        byt = 4 * 2 * (tm * tk + tk * tn + tm * tn)      # double-buffered x, w, out
        if residual is not None:
            byt += 4 * 2 * tm * tn
        byt += 4 * tm * tn                               # f32 accumulator
        if ln is not None:
            byt += 4 * tm * K                            # LN scratch (tk == K path)
        return byt

    budget = vmem_limit // 2
    tm, tn, tk = pick(1)
    f = 1
    while footprint(tm, tn, tk) > budget and f < 64:
        f *= 2
        tm, tn, tk = pick(f)
    # TODO(synk): pathological non-divisible M/N/K still fall back to full-dim tiles;
    # padding + pl.when masking would bound VMEM for those (mainly a v7x concern).

    if ln is not None and tk != K:
        # K tiled -> per-tile LN would be wrong; normalize in a separate kernel.
        x = layernorm_pallas(x, ln[0], ln[1])
        ln = None

    gm, gn, gk = M // tm, N // tn, K // tk

    in_specs = [
        pl.BlockSpec((tm, tk), lambda i, j, k: (i, k)),
        pl.BlockSpec((tk, tn), lambda i, j, k: (k, j)),
    ]
    args = [x, w]
    if bias is not None:
        in_specs.append(pl.BlockSpec((1, tn), lambda i, j, k: (0, j)))
        args.append(bias.reshape(1, N))
    if residual is not None:
        in_specs.append(pl.BlockSpec((tm, tn), lambda i, j, k: (i, j)))
        args.append(residual)
    if ln is not None:
        in_specs.append(pl.BlockSpec((1, K), lambda i, j, k: (0, 0)))
        args.append(ln[0].reshape(1, K))
        in_specs.append(pl.BlockSpec((1, K), lambda i, j, k: (0, 0)))
        args.append(ln[1].reshape(1, K))

    scratch = [pltpu.VMEM((tm, tn), jnp.float32)]
    if ln is not None:
        scratch.append(pltpu.VMEM((tm, K), jnp.float32))

    # The LN scratch is written at j == 0 and reused for j > 0, so the j axis must
    # stay on one core ('arbitrary'); the i axis still feeds both v7x TensorCores.
    dims = (("parallel", "arbitrary", "arbitrary") if ln is not None
            else ("parallel", "parallel", "arbitrary"))

    kern = functools.partial(
        _matmul_kernel,
        has_bias=bias is not None,
        has_residual=residual is not None,
        has_ln=ln is not None,
        activation=activation,
        use_bf16=MXU_BF16)

    return pl.pallas_call(
        kern,
        out_shape=jax.ShapeDtypeStruct((M, N), x.dtype),
        grid=(gm, gn, gk),
        in_specs=in_specs,
        out_specs=pl.BlockSpec((tm, tn), lambda i, j, k: (i, j)),
        scratch_shapes=scratch,
        compiler_params=pltpu.CompilerParams(
            dimension_semantics=dims, vmem_limit_bytes=vmem_limit),
    )(*args)


def fd_attention_pallas(qkv3, qo, ko, vo, h2, dh, scale):
    """qkv3: (G, L, 3*inner) with rows already grouped; returns (G, L, h2*dh).

    q/k/v head slabs are read straight out of the fused QKV matmul output via
    column-slab BlockSpecs (no XLA head-split transpose); the h2 heads stay inside
    the kernel so the output store is lane-dense (last dim = h2*dh)."""
    G, L, C = qkv3.shape
    hw = h2 * dh
    use_slabs = (hw % 128 == 0 and qo % hw == 0 and ko % hw == 0
                 and vo % hw == 0 and C % hw == 0)
    in_width = 3 * hw if use_slabs else C
    # Real footprint: q,k,v inputs + output + per-head LxL score/exp intermediates.
    per_group = 4 * (L * in_width + L * hw + 2 * h2 * L * L)
    gb = _pick_group_block(G, per_group, target_bytes=2 << 20, min_blocks=2)

    out_spec = pl.BlockSpec((gb, L, hw), lambda g: (g, 0, 0))
    if use_slabs:
        in_specs = [pl.BlockSpec((gb, L, hw), lambda g, c=off // hw: (g, 0, c))
                    for off in (qo, ko, vo)]
        args = (qkv3, qkv3, qkv3)
        col_off = None
    else:
        # TODO(synk): unaligned head width -> load full qkv rows and slice in-kernel
        # (extra read traffic); only hit when (heads//2)*dim_head % 128 != 0.
        in_specs = [pl.BlockSpec((gb, L, C), lambda g: (g, 0, 0))]
        args = (qkv3,)
        col_off = (qo, ko, vo)

    kern = functools.partial(_fd_attn_kernel, h2=h2, dh=dh, scale=scale,
                             col_off=col_off, use_bf16=MXU_BF16)
    return pl.pallas_call(
        kern,
        out_shape=jax.ShapeDtypeStruct((G, L, hw), qkv3.dtype),
        grid=(G // gb,),
        in_specs=in_specs,
        out_specs=out_spec,
        compiler_params=pltpu.CompilerParams(dimension_semantics=("parallel",)),
    )(*args)


# ------------------------------ model pieces ---------------------------------

def tubelet_embed(x, params, cfg):
    # 'b c (t pt) (h ph) (w pw) -> b t (h w) (pt ph pw c)' then Linear(tubelet_dim, dim)
    b, c, T, H, W = x.shape
    pt, ph, pw = cfg['patch_t'], cfg['patch_h'], cfg['patch_w']
    nt, nh, nw = T // pt, H // ph, W // pw
    # TODO(synk): tubelet rearrange / token-mean / positional add are layout glue left
    # to XLA; no dedicated Pallas kernel.
    x = x.reshape(b, c, nt, pt, nh, ph, nw, pw)
    x = x.transpose(0, 2, 4, 6, 3, 5, 7, 1)            # b, t, h, w, pt, ph, pw, c
    x = x.reshape(b * nt * nh * nw, pt * ph * pw * c)
    tok = linear_pallas(x, params['W_embed'], bias=params['b_embed'])
    return tok.reshape(b, nt, nh * nw, -1)


def fd_attention(x, lp, cfg):
    """PreNorm + Factorized dot-product attention + residual (all fused into kernels)."""
    b, n, d = x.shape
    heads, dh = cfg['heads'], cfg['dim_head']
    nt, nhw = cfg['nt'], cfg['nh'] * cfg['nw']
    inner = heads * dh
    h2 = heads // 2
    hw = h2 * dh
    scale = dh ** (-0.5)

    # to_qkv (bias=False) with the PreNorm LayerNorm fused into the matmul.
    qkv = linear_pallas(x.reshape(b * n, d), lp['Wqkv'],
                        ln=(lp['ln1_g'], lp['ln1_b']))            # (b*n, 3*inner)

    # Spatial heads (0..h2-1): each group is one (batch, time) slice of nhw tokens.
    spo = fd_attention_pallas(qkv.reshape(b * nt, nhw, 3 * inner),
                              qo=0, ko=inner, vo=2 * inner,
                              h2=h2, dh=dh, scale=scale)
    spo = spo.reshape(b * n, hw)

    # Temporal heads (h2..heads-1): the reference's raw .view groups consecutive
    # nt-token chunks of the time-major (t s) axis — replicated intentionally.
    tpo = fd_attention_pallas(qkv.reshape(b * nhw, nt, 3 * inner),
                              qo=hw, ko=inner + hw, vo=2 * inner + hw,
                              h2=h2, dh=dh, scale=scale)
    tpo = tpo.reshape(b * n, hw)

    # to_out split over the concatenated head axis:
    #   [spo | tpo] @ Wout + bout + x == spo @ Wout[:hw] + bout + x, then + tpo @ Wout[hw:]
    # (no concat materialized; residual/bias fused into the matmul epilogues).
    y = linear_pallas(spo, lp['Wout'][:hw], bias=lp['bout'],
                      residual=x.reshape(b * n, d))
    y = linear_pallas(tpo, lp['Wout'][hw:], residual=y)
    return y.reshape(b, n, d)


def feed_forward(x, lp):
    """PreNorm + Linear + GELU + Linear + residual (LN/GELU/residual fused into matmuls)."""
    b, n, d = x.shape
    h = linear_pallas(x.reshape(b * n, d), lp['Wff1'], bias=lp['bff1'],
                      activation='gelu', ln=(lp['ln2_g'], lp['ln2_b']))
    out = linear_pallas(h, lp['Wff2'], bias=lp['bff2'],
                        residual=x.reshape(b * n, d))
    return out.reshape(b, n, d)


def vivit_forward(params, x, cfg):
    b = x.shape[0]
    tokens = tubelet_embed(x, params, cfg)                  # (b, nt, nhw, dim)
    tokens = tokens + params['pos']                         # == repeat over nt + add
    # emb_dropout = 0.0 -> identity
    nt, nhw, dim = tokens.shape[1], tokens.shape[2], tokens.shape[3]
    x = tokens.reshape(b, nt * nhw, dim)                    # 'b t s d -> b (t s) d'

    for lp in params['layers']:
        x = fd_attention(x, lp, cfg)                        # PreNorm+attn+residual
        x = feed_forward(x, lp)                             # PreNorm+FFN+residual

    x = jnp.mean(x, axis=1)                                 # token mean (tiny glue)
    # mlp_head: LayerNorm fused into the classifier matmul.
    return linear_pallas(x, params['W_head'], bias=params['b_head'],
                         ln=(params['head_ln_g'], params['head_ln_b']))


# ------------------------------ params ----------------------------------------

def init_params(key, cfg):
    dim, depth = cfg['dim'], cfg['depth']
    heads, dh = cfg['heads'], cfg['dim_head']
    inner = heads * dh
    mlp, nclass = cfg['mlp_dim'], cfg['num_classes']
    tubelet_dim = cfg['patch_t'] * cfg['patch_h'] * cfg['patch_w'] * cfg['channels']
    nhw = cfg['nh'] * cfg['nw']

    keys = iter(jax.random.split(key, 4 + depth * 4))

    def nrm(shape, s=0.02):
        return jax.random.normal(next(keys), shape, jnp.float32) * s

    params = {
        'W_embed': nrm((tubelet_dim, dim)),
        'b_embed': jnp.zeros((dim,), jnp.float32),
        'pos': jax.random.normal(next(keys), (1, 1, nhw, dim), jnp.float32),
        'head_ln_g': jnp.ones((dim,), jnp.float32),
        'head_ln_b': jnp.zeros((dim,), jnp.float32),
        'W_head': nrm((dim, nclass)),
        'b_head': jnp.zeros((nclass,), jnp.float32),
        'layers': [],
    }
    for _ in range(depth):
        params['layers'].append({
            'ln1_g': jnp.ones((dim,), jnp.float32),
            'ln1_b': jnp.zeros((dim,), jnp.float32),
            'Wqkv': nrm((dim, 3 * inner)),
            'Wout': nrm((inner, dim)),
            'bout': jnp.zeros((dim,), jnp.float32),
            'ln2_g': jnp.ones((dim,), jnp.float32),
            'ln2_b': jnp.zeros((dim,), jnp.float32),
            'Wff1': nrm((dim, mlp)),
            'bff1': jnp.zeros((mlp,), jnp.float32),
            'Wff2': nrm((mlp, dim)),
            'bff2': jnp.zeros((dim,), jnp.float32),
        })
    return params


# -------------------------------- main -----------------------------------------

if __name__ == "__main__":
    cfg = dict(
        t=4, h=16, w=16,
        patch_t=2, patch_h=4, patch_w=4,
        channels=3, num_classes=10,
        dim=128, depth=2, heads=4, dim_head=64, mlp_dim=256,
    )
    cfg['nt'] = cfg['t'] // cfg['patch_t']
    cfg['nh'] = cfg['h'] // cfg['patch_h']
    cfg['nw'] = cfg['w'] // cfg['patch_w']

    key = jax.random.PRNGKey(0)
    pkey, xkey = jax.random.split(key)
    params = init_params(pkey, cfg)

    # video: (b, C, T, H, W)
    x = jax.random.normal(
        xkey, (2, cfg['channels'], cfg['t'], cfg['h'], cfg['w']), jnp.float32)

    fwd = jax.jit(functools.partial(vivit_forward, cfg=cfg))
    out = fwd(params, x)
    jax.block_until_ready(out)
    assert out.shape == (2, cfg['num_classes']), out.shape

    print("KERNEL_OK")
</pallas_src>

<mosaic_0001>
module attributes {stable_mosaic.version = 11 : i64} {
  func.func @_matmul_kernel(%arg0: i32, %arg1: i32, %arg2: i32, %arg3: memref<32x96xf32, #tpu.memory_space<vmem>>, %arg4: memref<96x128xf32, #tpu.memory_space<vmem>>, %arg5: memref<1x128xf32, #tpu.memory_space<vmem>>, %arg6: memref<32x128xf32, #tpu.memory_space<vmem>>, %arg7: memref<32x128xf32, #tpu.memory_space<vmem>>) attributes {dimension_semantics = [#tpu.dimension_semantics<parallel>, #tpu.dimension_semantics<parallel>, #tpu.dimension_semantics<arbitrary>], iteration_bounds = array<i64: 2, 1, 1>, scalar_prefetch = 0 : i64, scratch_operands = 1 : i64, tpu.core_type = #tpu.core_type<tc>, window_params = [{transform_indices = @transform_0, window_bounds = array<i64: 32, 96>}, {transform_indices = @transform_1, window_bounds = array<i64: 96, 128>}, {transform_indices = @transform_2, window_bounds = array<i64: 1, 128>}, {transform_indices = @transform_3, window_bounds = array<i64: 32, 128>}]} {
    %c0_i32 = arith.constant 0 : i32
    %0 = arith.cmpi eq, %arg2, %c0_i32 : i32
    %1 = arith.extui %0 : i1 to i32
    %c0_i32_0 = arith.constant 0 : i32
    %2 = arith.cmpi ne, %1, %c0_i32_0 : i32
    scf.if %2 {
      %cst_10 = arith.constant 0.000000e+00 : f32
      %14 = vector.broadcast %cst_10 : f32 to vector<32x128xf32>
      %c0_11 = arith.constant 0 : index
      %c0_12 = arith.constant 0 : index
      %15 = vector.load %arg7[%c0_11, %c0_12] : memref<32x128xf32, #tpu.memory_space<vmem>>, vector<32x128xf32>
      tpu.vector_store %arg7[%c0_11, %c0_12], %14 {strides = array<i32>} : memref<32x128xf32, #tpu.memory_space<vmem>>, vector<32x128xf32>,
    } else {
    }
    %c0 = arith.constant 0 : index
    %c0_1 = arith.constant 0 : index
    %3 = vector.load %arg3[%c0, %c0_1] : memref<32x96xf32, #tpu.memory_space<vmem>>, vector<32x96xf32>
    %c0_2 = arith.constant 0 : index
    %c0_3 = arith.constant 0 : index
    %4 = vector.load %arg7[%c0_2, %c0_3] : memref<32x128xf32, #tpu.memory_space<vmem>>, vector<32x128xf32>
    %5 = arith.truncf %3 : vector<32x96xf32> to vector<32x96xbf16>
    %c0_4 = arith.constant 0 : index
    %c0_5 = arith.constant 0 : index
    %6 = vector.load %arg4[%c0_4, %c0_5] : memref<96x128xf32, #tpu.memory_space<vmem>>, vector<96x128xf32>
    %7 = arith.truncf %6 : vector<96x128xf32> to vector<96x128xbf16>
    %cst = arith.constant dense<0.000000e+00> : vector<32x128xf32>
    %8 = tpu.matmul %5, %7, %cst {dimension_numbers = #tpu.dot_dimension_numbers<[1], [0], [0], [1], [0, 0, 1, 1], [], []>} : vector<32x96xbf16>, vector<96x128xbf16>, vector<32x128xf32> -> vector<32x128xf32>
    %9 = arith.addf %4, %8 : vector<32x128xf32>
    %c0_6 = arith.constant 0 : index
    %c0_7 = arith.constant 0 : index
    %10 = vector.load %arg7[%c0_6, %c0_7] : memref<32x128xf32, #tpu.memory_space<vmem>>, vector<32x128xf32>
    tpu.vector_store %arg7[%c0_6, %c0_7], %9 {strides = array<i32>} : memref<32x128xf32, #tpu.memory_space<vmem>>, vector<32x128xf32>,
    %c0_i32_8 = arith.constant 0 : i32
    %11 = arith.cmpi eq, %arg2, %c0_i32_8 : i32
    %12 = arith.extui %11 : i1 to i32
    %c0_i32_9 = arith.constant 0 : i32
    %13 = arith.cmpi ne, %12, %c0_i32_9 : i32
    scf.if %13 {
      %c0_10 = arith.constant 0 : index
      %c0_11 = arith.constant 0 : index
      %14 = vector.load %arg7[%c0_10, %c0_11] : memref<32x128xf32, #tpu.memory_space<vmem>>, vector<32x128xf32>
      %c0_12 = arith.constant 0 : index
      %c0_13 = arith.constant 0 : index
      %15 = vector.load %arg5[%c0_12, %c0_13] : memref<1x128xf32, #tpu.memory_space<vmem>>, vector<1x128xf32>
      %16 = vector.broadcast %15 : vector<1x128xf32> to vector<32x128xf32>
      %17 = arith.addf %14, %16 : vector<32x128xf32>
      %c0_14 = arith.constant 0 : index
      %c0_15 = arith.constant 0 : index
      %18 = vector.load %arg6[%c0_14, %c0_15] : memref<32x128xf32, #tpu.memory_space<vmem>>, vector<32x128xf32>
      tpu.vector_store %arg6[%c0_14, %c0_15], %17 {strides = array<i32>} : memref<32x128xf32, #tpu.memory_space<vmem>>, vector<32x128xf32>,
    } else {
    }
    return
  }
  func.func @transform_0(%arg0: i32, %arg1: i32, %arg2: i32) -> (i32, i32) {
    %c0_i32 = arith.constant 0 : i32
    return %arg0, %arg2 : i32, i32
  }
  func.func @transform_1(%arg0: i32, %arg1: i32, %arg2: i32) -> (i32, i32) {
    %c0_i32 = arith.constant 0 : i32
    return %arg2, %arg1 : i32, i32
  }
  func.func @transform_2(%arg0: i32, %arg1: i32, %arg2: i32) -> (i32, i32) {
    %c0_i32 = arith.constant 0 : i32
    %c0_i32_0 = arith.constant 0 : i32
    return %c0_i32, %arg1 : i32, i32
  }
  func.func @transform_3(%arg0: i32, %arg1: i32, %arg2: i32) -> (i32, i32) {
    %c0_i32 = arith.constant 0 : i32
    return %arg0, %arg1 : i32, i32
  }
}

module attributes {stable_mosaic.version = 11 : i64} {
  func.func @_matmul_kernel(%arg0: i32, %arg1: i32, %arg2: i32, %arg3: memref<32x128xf32, #tpu.memory_space<vmem>>, %arg4: memref<128x256xf32, #tpu.memory_space<vmem>>, %arg5: memref<1x128xf32, #tpu.memory_space<vmem>>, %arg6: memref<1x128xf32, #tpu.memory_space<vmem>>, %arg7: memref<32x256xf32, #tpu.memory_space<vmem>>, %arg8: memref<32x256xf32, #tpu.memory_space<vmem>>, %arg9: memref<32x128xf32, #tpu.memory_space<vmem>>) attributes {dimension_semantics = [#tpu.dimension_semantics<parallel>, #tpu.dimension_semantics<arbitrary>, #tpu.dimension_semantics<arbitrary>], iteration_bounds = array<i64: 2, 3, 1>, scalar_prefetch = 0 : i64, scratch_operands = 2 : i64, tpu.core_type = #tpu.core_type<tc>, window_params = [{transform_indices = @transform_0, window_bounds = array<i64: 32, 128>}, {transform_indices = @transform_1, window_bounds = array<i64: 128, 256>}, {pipeline_mode = #tpu.pipeline_mode<synchronous>, transform_indices = @transform_2, window_bounds = array<i64: 1, 128>}, {pipeline_mode = #tpu.pipeline_mode<synchronous>, transform_indices = @transform_3, window_bounds = array<i64: 1, 128>}, {transform_indices = @transform_4, window_bounds = array<i64: 32, 256>}]} {
    %c0_i32 = arith.constant 0 : i32
    %0 = arith.cmpi eq, %arg2, %c0_i32 : i32
    %1 = arith.extui %0 : i1 to i32
    %c0_i32_0 = arith.constant 0 : i32
    %2 = arith.cmpi ne, %1, %c0_i32_0 : i32
    scf.if %2 {
      %cst_12 = arith.constant 0.000000e+00 : f32
      %17 = vector.broadcast %cst_12 : f32 to vector<32x256xf32>
      %c0_13 = arith.constant 0 : index
      %c0_14 = arith.constant 0 : index
      %18 = vector.load %arg8[%c0_13, %c0_14] : memref<32x256xf32, #tpu.memory_space<vmem>>, vector<32x256xf32>
      tpu.vector_store %arg8[%c0_13, %c0_14], %17 {strides = array<i32>} : memref<32x256xf32, #tpu.memory_space<vmem>>, vector<32x256xf32>,
    } else {
    }
    %c0_i32_1 = arith.constant 0 : i32
    %3 = arith.cmpi eq, %arg1, %c0_i32_1 : i32
    %4 = arith.extui %3 : i1 to i32
    %c0_i32_2 = arith.constant 0 : i32
    %5 = arith.cmpi ne, %4, %c0_i32_2 : i32
    scf.if %5 {
      %c0_12 = arith.constant 0 : index
      %c0_13 = arith.constant 0 : index
      %17 = vector.load %arg3[%c0_12, %c0_13] : memref<32x128xf32, #tpu.memory_space<vmem>>, vector<32x128xf32>
      %cst_14 = arith.constant dense<0.000000e+00> : vector<32xf32>
      %18 = vector.multi_reduction <add>, %17, %cst_14 [1] : vector<32x128xf32> to vector<32xf32>
      %19 = vector.shape_cast %18 : vector<32xf32> to vector<32x1xf32>
      %cst_15 = arith.constant 1.280000e+02 : f32
      %20 = vector.broadcast %cst_15 : f32 to vector<32x1xf32>
      %21 = arith.divf %19, %20 : vector<32x1xf32>
      %22 = vector.broadcast %21 : vector<32x1xf32> to vector<32x128xf32>
      %23 = arith.subf %17, %22 : vector<32x128xf32>
      %24 = arith.mulf %23, %23 : vector<32x128xf32>
      %cst_16 = arith.constant dense<0.000000e+00> : vector<32xf32>
      %25 = vector.multi_reduction <add>, %24, %cst_16 [1] : vector<32x128xf32> to vector<32xf32>
      %26 = vector.shape_cast %25 : vector<32xf32> to vector<32x1xf32>
      %cst_17 = arith.constant 1.280000e+02 : f32
      %27 = vector.broadcast %cst_17 : f32 to vector<32x1xf32>
      %28 = arith.divf %26, %27 : vector<32x1xf32>
      %29 = vector.broadcast %21 : vector<32x1xf32> to vector<32x128xf32>
      %30 = arith.subf %17, %29 : vector<32x128xf32>
      %cst_18 = arith.constant 9.99999974E-6 : f32
      %31 = vector.broadcast %cst_18 : f32 to vector<32x1xf32>
      %32 = arith.addf %28, %31 : vector<32x1xf32>
      %33 = math.rsqrt %32 : vector<32x1xf32>
      %34 = vector.broadcast %33 : vector<32x1xf32> to vector<32x128xf32>
      %35 = arith.mulf %30, %34 : vector<32x128xf32>
      %c0_19 = arith.constant 0 : index
      %c0_20 = arith.constant 0 : index
      %36 = vector.load %arg5[%c0_19, %c0_20] : memref<1x128xf32, #tpu.memory_space<vmem>>, vector<1x128xf32>
      %37 = vector.broadcast %36 : vector<1x128xf32> to vector<32x128xf32>
      %38 = arith.mulf %35, %37 : vector<32x128xf32>
      %c0_21 = arith.constant 0 : index
      %c0_22 = arith.constant 0 : index
      %39 = vector.load %arg6[%c0_21, %c0_22] : memref<1x128xf32, #tpu.memory_space<vmem>>, vector<1x128xf32>
      %40 = vector.broadcast %39 : vector<1x128xf32> to vector<32x128xf32>
      %41 = arith.addf %38, %40 : vector<32x128xf32>
      %c0_23 = arith.constant 0 : index
      %c0_24 = arith.constant 0 : index
      %42 = vector.load %arg9[%c0_23, %c0_24] : memref<32x128xf32, #tpu.memory_space<vmem>>, vector<32x128xf32>
      tpu.vector_store %arg9[%c0_23, %c0_24], %41 {strides = array<i32>} : memref<32x128xf32, #tpu.memory_space<vmem>>, vector<32x128xf32>,
    } else {
    }
    %c0 = arith.constant 0 : index
    %c0_3 = arith.constant 0 : index
    %6 = vector.load %arg9[%c0, %c0_3] : memref<32x128xf32, #tpu.memory_space<vmem>>, vector<32x128xf32>
    %c0_4 = arith.constant 0 : index
    %c0_5 = arith.constant 0 : index
    %7 = vector.load %arg8[%c0_4, %c0_5] : memref<32x256xf32, #tpu.memory_space<vmem>>, vector<32x256xf32>
    %8 = arith.truncf %6 : vector<32x128xf32> to vector<32x128xbf16>
    %c0_6 = arith.constant 0 : index
    %c0_7 = arith.constant 0 : index
    %9 = vector.load %arg4[%c0_6, %c0_7] : memref<128x256xf32, #tpu.memory_space<vmem>>, vector<128x256xf32>
    %10 = arith.truncf %9 : vector<128x256xf32> to vector<128x256xbf16>
    %cst = arith.constant dense<0.000000e+00> : vector<32x256xf32>
    %11 = tpu.matmul %8, %10, %cst {dimension_numbers = #tpu.dot_dimension_numbers<[1], [0], [0], [1], [0, 0, 1, 1], [], []>} : vector<32x128xbf16>, vector<128x256xbf16>, vector<32x256xf32> -> vector<32x256xf32>
    %12 = arith.addf %7, %11 : vector<32x256xf32>
    %c0_8 = arith.constant 0 : index
    %c0_9 = arith.constant 0 : index
    %13 = vector.load %arg8[%c0_8, %c0_9] : memref<32x256xf32, #tpu.memory_space<vmem>>, vector<32x256xf32>
    tpu.vector_store %arg8[%c0_8, %c0_9], %12 {strides = array<i32>} : memref<32x256xf32, #tpu.memory_space<vmem>>, vector<32x256xf32>,
    %c0_i32_10 = arith.constant 0 : i32
    %14 = arith.cmpi eq, %arg2, %c0_i32_10 : i32
    %15 = arith.extui %14 : i1 to i32
    %c0_i32_11 = arith.constant 0 : i32
    %16 = arith.cmpi ne, %15, %c0_i32_11 : i32
    scf.if %16 {
      %c0_12 = arith.constant 0 : index
      %c0_13 = arith.constant 0 : index
      %17 = vector.load %arg8[%c0_12, %c0_13] : memref<32x256xf32, #tpu.memory_space<vmem>>, vector<32x256xf32>
      %c0_14 = arith.constant 0 : index
      %c0_15 = arith.constant 0 : index
      %18 = vector.load %arg7[%c0_14, %c0_15] : memref<32x256xf32, #tpu.memory_space<vmem>>, vector<32x256xf32>
      tpu.vector_store %arg7[%c0_14, %c0_15], %17 {strides = array<i32>} : memref<32x256xf32, #tpu.memory_space<vmem>>, vector<32x256xf32>,
    } else {
    }
    return
  }
  func.func @transform_0(%arg0: i32, %arg1: i32, %arg2: i32) -> (i32, i32) {
    %c0_i32 = arith.constant 0 : i32
    return %arg0, %arg2 : i32, i32
  }
  func.func @transform_1(%arg0: i32, %arg1: i32, %arg2: i32) -> (i32, i32) {
    %c0_i32 = arith.constant 0 : i32
    return %arg2, %arg1 : i32, i32
  }
  func.func @transform_2(%arg0: i32, %arg1: i32, %arg2: i32) -> (i32, i32) {
    %c0_i32 = arith.constant 0 : i32
    %c0_i32_0 = arith.constant 0 : i32
    %c0_i32_1 = arith.constant 0 : i32
    return %c0_i32, %c0_i32_0 : i32, i32
  }
  func.func @transform_3(%arg0: i32, %arg1: i32, %arg2: i32) -> (i32, i32) {
    %c0_i32 = arith.constant 0 : i32
    %c0_i32_0 = arith.constant 0 : i32
    %c0_i32_1 = arith.constant 0 : i32
    return %c0_i32, %c0_i32_0 : i32, i32
  }
  func.func @transform_4(%arg0: i32, %arg1: i32, %arg2: i32) -> (i32, i32) {
    %c0_i32 = arith.constant 0 : i32
    return %arg0, %arg1 : i32, i32
  }
}

module attributes {stable_mosaic.version = 11 : i64} {
  func.func @_fd_attn_kernel(%arg0: i32, %arg1: memref<2x16x128xf32, #tpu.memory_space<vmem>>, %arg2: memref<2x16x128xf32, #tpu.memory_space<vmem>>, %arg3: memref<2x16x128xf32, #tpu.memory_space<vmem>>, %arg4: memref<2x16x128xf32, #tpu.memory_space<vmem>>) attributes {dimension_semantics = [#tpu.dimension_semantics<parallel>], iteration_bounds = array<i64: 2>, scalar_prefetch = 0 : i64, scratch_operands = 0 : i64, tpu.core_type = #tpu.core_type<tc>, window_params = [{transform_indices = @transform_0, window_bounds = array<i64: 2, 16, 128>}, {transform_indices = @transform_1, window_bounds = array<i64: 2, 16, 128>}, {transform_indices = @transform_2, window_bounds = array<i64: 2, 16, 128>}, {transform_indices = @transform_3, window_bounds = array<i64: 2, 16, 128>}]} {
    %c0 = arith.constant 0 : index
    %c0_0 = arith.constant 0 : index
    %c0_1 = arith.constant 0 : index
    %0 = vector.load %arg1[%c0, %c0_0, %c0_1] : memref<2x16x128xf32, #tpu.memory_space<vmem>>, vector<2x16x128xf32>
    %c0_2 = arith.constant 0 : index
    %c0_3 = arith.constant 0 : index
    %c0_4 = arith.constant 0 : index
    %1 = vector.load %arg2[%c0_2, %c0_3, %c0_4] : memref<2x16x128xf32, #tpu.memory_space<vmem>>, vector<2x16x128xf32>
    %c0_5 = arith.constant 0 : index
    %c0_6 = arith.constant 0 : index
    %c0_7 = arith.constant 0 : index
    %2 = vector.load %arg3[%c0_5, %c0_6, %c0_7] : memref<2x16x128xf32, #tpu.memory_space<vmem>>, vector<2x16x128xf32>
    %3 = vector.extract_strided_slice %0 {offsets = [0, 0, 0], sizes = [2, 16, 64], strides = [1, 1, 1]} : vector<2x16x128xf32> to vector<2x16x64xf32>
    %cst = arith.constant 1.250000e-01 : f32
    %4 = vector.broadcast %cst : f32 to vector<2x16x64xf32>
    %5 = arith.mulf %3, %4 : vector<2x16x64xf32>
    %6 = arith.truncf %5 : vector<2x16x64xf32> to vector<2x16x64xbf16>
    %7 = vector.extract_strided_slice %1 {offsets = [0, 0, 0], sizes = [2, 16, 64], strides = [1, 1, 1]} : vector<2x16x128xf32> to vector<2x16x64xf32>
    %8 = arith.truncf %7 : vector<2x16x64xf32> to vector<2x16x64xbf16>
    %9 = vector.extract_strided_slice %2 {offsets = [0, 0, 0], sizes = [2, 16, 64], strides = [1, 1, 1]} : vector<2x16x128xf32> to vector<2x16x64xf32>
    %10 = arith.truncf %9 : vector<2x16x64xf32> to vector<2x16x64xbf16>
    "tpu.trace_start"() <{level = 10 : i32, message = "gid,gjd->gij"}> : () -> ()
    %cst_8 = arith.constant dense<0.000000e+00> : vector<2x16x16xf32>
    %11 = tpu.matmul %6, %8, %cst_8 {dimension_numbers = #tpu.dot_dimension_numbers<[2], [2], [1], [1], [0, 0, 0, 1, 1, 1], [0], [0]>} : vector<2x16x64xbf16>, vector<2x16x64xbf16>, vector<2x16x16xf32> -> vector<2x16x16xf32>
    "tpu.trace_stop"() : () -> ()
    %cst_9 = arith.constant dense<0xFF800000> : vector<2x16xf32>
    %12 = vector.multi_reduction <maximumf>, %11, %cst_9 [2] : vector<2x16x16xf32> to vector<2x16xf32>
    %13 = vector.shape_cast %12 : vector<2x16xf32> to vector<2x16x1xf32>
    %14 = vector.broadcast %13 : vector<2x16x1xf32> to vector<2x16x16xf32>
    %15 = arith.subf %11, %14 : vector<2x16x16xf32>
    %16 = math.exp %15 : vector<2x16x16xf32>
    %cst_10 = arith.constant dense<0.000000e+00> : vector<2x16xf32>
    %17 = vector.multi_reduction <add>, %16, %cst_10 [2] : vector<2x16x16xf32> to vector<2x16xf32>
    %18 = vector.shape_cast %17 : vector<2x16xf32> to vector<2x16x1xf32>
    %19 = tpu.reciprocal %18 {approx = true} : vector<2x16x1xf32> -> vector<2x16x1xf32>
    %20 = vector.broadcast %19 : vector<2x16x1xf32> to vector<2x16x16xf32>
    %21 = arith.mulf %16, %20 : vector<2x16x16xf32>
    %22 = arith.truncf %21 : vector<2x16x16xf32> to vector<2x16x16xbf16>
    "tpu.trace_start"() <{level = 10 : i32, message = "gij,gjd->gid"}> : () -> ()
    %cst_11 = arith.constant dense<0.000000e+00> : vector<2x16x64xf32>
    %23 = tpu.matmul %22, %10, %cst_11 {dimension_numbers = #tpu.dot_dimension_numbers<[2], [1], [1], [2], [0, 0, 0, 1, 1, 2], [0], [0]>} : vector<2x16x16xbf16>, vector<2x16x64xbf16>, vector<2x16x64xf32> -> vector<2x16x64xf32>
    "tpu.trace_stop"() : () -> ()
    %c0_12 = arith.constant 0 : index
    %c0_13 = arith.constant 0 : index
    %c0_14 = arith.constant 0 : index
    %24 = vector.load %arg4[%c0_12, %c0_13, %c0_14] : memref<2x16x128xf32, #tpu.memory_space<vmem>>, vector<2x16x64xf32>
    tpu.vector_store %arg4[%c0_12, %c0_13, %c0_14], %23 {strides = array<i32>} : memref<2x16x128xf32, #tpu.memory_space<vmem>>, vector<2x16x64xf32>,
    %25 = vector.extract_strided_slice %0 {offsets = [0, 0, 64], sizes = [2, 16, 64], strides = [1, 1, 1]} : vector<2x16x128xf32> to vector<2x16x64xf32>
    %cst_15 = arith.constant 1.250000e-01 : f32
    %26 = vector.broadcast %cst_15 : f32 to vector<2x16x64xf32>
    %27 = arith.mulf %25, %26 : vector<2x16x64xf32>
    %28 = arith.truncf %27 : vector<2x16x64xf32> to vector<2x16x64xbf16>
    %29 = vector.extract_strided_slice %1 {offsets = [0, 0, 64], sizes = [2, 16, 64], strides = [1, 1, 1]} : vector<2x16x128xf32> to vector<2x16x64xf32>
    %30 = arith.truncf %29 : vector<2x16x64xf32> to vector<2x16x64xbf16>
    %31 = vector.extract_strided_slice %2 {offsets = [0, 0, 64], sizes = [2, 16, 64], strides = [1, 1, 1]} : vector<2x16x128xf32> to vector<2x16x64xf32>
    %32 = arith.truncf %31 : vector<2x16x64xf32> to vector<2x16x64xbf16>
    "tpu.trace_start"() <{level = 10 : i32, message = "gid,gjd->gij"}> : () -> ()
    %cst_16 = arith.constant dense<0.000000e+00> : vector<2x16x16xf32>
    %33 = tpu.matmul %28, %30, %cst_16 {dimension_numbers = #tpu.dot_dimension_numbers<[2], [2], [1], [1], [0, 0, 0, 1, 1, 1], [0], [0]>} : vector<2x16x64xbf16>, vector<2x16x64xbf16>, vector<2x16x16xf32> -> vector<2x16x16xf32>
    "tpu.trace_stop"() : () -> ()
    %cst_17 = arith.constant dense<0xFF800000> : vector<2x16xf32>
    %34 = vector.multi_reduction <maximumf>, %33, %cst_17 [2] : vector<2x16x16xf32> to vector<2x16xf32>
    %35 = vector.shape_cast %34 : vector<2x16xf32> to vector<2x16x1xf32>
    %36 = vector.broadcast %35 : vector<2x16x1xf32> to vector<2x16x16xf32>
    %37 = arith.subf %33, %36 : vector<2x16x16xf32>
    %38 = math.exp %37 : vector<2x16x16xf32>
    %cst_18 = arith.constant dense<0.000000e+00> : vector<2x16xf32>
    %39 = vector.multi_reduction <add>, %38, %cst_18 [2] : vector<2x16x16xf32> to vector<2x16xf32>
    %40 = vector.shape_cast %39 : vector<2x16xf32> to vector<2x16x1xf32>
    %41 = tpu.reciprocal %40 {approx = true} : vector<2x16x1xf32> -> vector<2x16x1xf32>
    %42 = vector.broadcast %41 : vector<2x16x1xf32> to vector<2x16x16xf32>
    %43 = arith.mulf %38, %42 : vector<2x16x16xf32>
    %44 = arith.truncf %43 : vector<2x16x16xf32> to vector<2x16x16xbf16>
    "tpu.trace_start"() <{level = 10 : i32, message = "gij,gjd->gid"}> : () -> ()
    %cst_19 = arith.constant dense<0.000000e+00> : vector<2x16x64xf32>
    %45 = tpu.matmul %44, %32, %cst_19 {dimension_numbers = #tpu.dot_dimension_numbers<[2], [1], [1], [2], [0, 0, 0, 1, 1, 2], [0], [0]>} : vector<2x16x16xbf16>, vector<2x16x64xbf16>, vector<2x16x64xf32> -> vector<2x16x64xf32>
    "tpu.trace_stop"() : () -> ()
    %c0_20 = arith.constant 0 : index
    %c0_21 = arith.constant 0 : index
    %c64 = arith.constant 64 : index
    %46 = vector.load %arg4[%c0_20, %c0_21, %c64] : memref<2x16x128xf32, #tpu.memory_space<vmem>>, vector<2x16x64xf32>
    tpu.vector_store %arg4[%c0_20, %c0_21, %c64], %45 {strides = array<i32>} : memref<2x16x128xf32, #tpu.memory_space<vmem>>, vector<2x16x64xf32>,
    return
  }
  func.func @transform_0(%arg0: i32) -> (i32, i32, i32) {
    %c0_i32 = arith.constant 0 : i32
    %c0_i32_0 = arith.constant 0 : i32
    %c0_i32_1 = arith.constant 0 : i32
    return %arg0, %c0_i32, %c0_i32_0 : i32, i32, i32
  }
  func.func @transform_1(%arg0: i32) -> (i32, i32, i32) {
    %c0_i32 = arith.constant 0 : i32
    %c2_i32 = arith.constant 2 : i32
    %c0_i32_0 = arith.constant 0 : i32
    return %arg0, %c0_i32, %c2_i32 : i32, i32, i32
  }
  func.func @transform_2(%arg0: i32) -> (i32, i32, i32) {
    %c0_i32 = arith.constant 0 : i32
    %c4_i32 = arith.constant 4 : i32
    %c0_i32_0 = arith.constant 0 : i32
    return %arg0, %c0_i32, %c4_i32 : i32, i32, i32
  }
  func.func @transform_3(%arg0: i32) -> (i32, i32, i32) {
    %c0_i32 = arith.constant 0 : i32
    %c0_i32_0 = arith.constant 0 : i32
    %c0_i32_1 = arith.constant 0 : i32
    return %arg0, %c0_i32, %c0_i32_0 : i32, i32, i32
  }
}

module attributes {stable_mosaic.version = 11 : i64} {
  func.func @_matmul_kernel(%arg0: i32, %arg1: i32, %arg2: i32, %arg3: memref<32x128xf32, #tpu.memory_space<vmem>>, %arg4: memref<128x128xf32, #tpu.memory_space<vmem>>, %arg5: memref<1x128xf32, #tpu.memory_space<vmem>>, %arg6: memref<32x128xf32, #tpu.memory_space<vmem>>, %arg7: memref<32x128xf32, #tpu.memory_space<vmem>>, %arg8: memref<32x128xf32, #tpu.memory_space<vmem>>) attributes {dimension_semantics = [#tpu.dimension_semantics<parallel>, #tpu.dimension_semantics<parallel>, #tpu.dimension_semantics<arbitrary>], iteration_bounds = array<i64: 2, 1, 1>, scalar_prefetch = 0 : i64, scratch_operands = 1 : i64, tpu.core_type = #tpu.core_type<tc>, window_params = [{transform_indices = @transform_0, window_bounds = array<i64: 32, 128>}, {transform_indices = @transform_1, window_bounds = array<i64: 128, 128>}, {transform_indices = @transform_2, window_bounds = array<i64: 1, 128>}, {transform_indices = @transform_3, window_bounds = array<i64: 32, 128>}, {transform_indices = @transform_4, window_bounds = array<i64: 32, 128>}]} {
    %c0_i32 = arith.constant 0 : i32
    %0 = arith.cmpi eq, %arg2, %c0_i32 : i32
    %1 = arith.extui %0 : i1 to i32
    %c0_i32_0 = arith.constant 0 : i32
    %2 = arith.cmpi ne, %1, %c0_i32_0 : i32
    scf.if %2 {
      %cst_10 = arith.constant 0.000000e+00 : f32
      %14 = vector.broadcast %cst_10 : f32 to vector<32x128xf32>
      %c0_11 = arith.constant 0 : index
      %c0_12 = arith.constant 0 : index
      %15 = vector.load %arg8[%c0_11, %c0_12] : memref<32x128xf32, #tpu.memory_space<vmem>>, vector<32x128xf32>
      tpu.vector_store %arg8[%c0_11, %c0_12], %14 {strides = array<i32>} : memref<32x128xf32, #tpu.memory_space<vmem>>, vector<32x128xf32>,
    } else {
    }
    %c0 = arith.constant 0 : index
    %c0_1 = arith.constant 0 : index
    %3 = vector.load %arg3[%c0, %c0_1] : memref<32x128xf32, #tpu.memory_space<vmem>>, vector<32x128xf32>
    %c0_2 = arith.constant 0 : index
    %c0_3 = arith.constant 0 : index
    %4 = vector.load %arg8[%c0_2, %c0_3] : memref<32x128xf32, #tpu.memory_space<vmem>>, vector<32x128xf32>
    %5 = arith.truncf %3 : vector<32x128xf32> to vector<32x128xbf16>
    %c0_4 = arith.constant 0 : index
    %c0_5 = arith.constant 0 : index
    %6 = vector.load %arg4[%c0_4, %c0_5] : memref<128x128xf32, #tpu.memory_space<vmem>>, vector<128x128xf32>
    %7 = arith.truncf %6 : vector<128x128xf32> to vector<128x128xbf16>
    %cst = arith.constant dense<0.000000e+00> : vector<32x128xf32>
    %8 = tpu.matmul %5, %7, %cst {dimension_numbers = #tpu.dot_dimension_numbers<[1], [0], [0], [1], [0, 0, 1, 1], [], []>} : vector<32x128xbf16>, vector<128x128xbf16>, vector<32x128xf32> -> vector<32x128xf32>
    %9 = arith.addf %4, %8 : vector<32x128xf32>
    %c0_6 = arith.constant 0 : index
    %c0_7 = arith.constant 0 : index
    %10 = vector.load %arg8[%c0_6, %c0_7] : memref<32x128xf32, #tpu.memory_space<vmem>>, vector<32x128xf32>
    tpu.vector_store %arg8[%c0_6, %c0_7], %9 {strides = array<i32>} : memref<32x128xf32, #tpu.memory_space<vmem>>, vector<32x128xf32>,
    %c0_i32_8 = arith.constant 0 : i32
    %11 = arith.cmpi eq, %arg2, %c0_i32_8 : i32
    %12 = arith.extui %11 : i1 to i32
    %c0_i32_9 = arith.constant 0 : i32
    %13 = arith.cmpi ne, %12, %c0_i32_9 : i32
    scf.if %13 {
      %c0_10 = arith.constant 0 : index
      %c0_11 = arith.constant 0 : index
      %14 = vector.load %arg8[%c0_10, %c0_11] : memref<32x128xf32, #tpu.memory_space<vmem>>, vector<32x128xf32>
      %c0_12 = arith.constant 0 : index
      %c0_13 = arith.constant 0 : index
      %15 = vector.load %arg5[%c0_12, %c0_13] : memref<1x128xf32, #tpu.memory_space<vmem>>, vector<1x128xf32>
      %16 = vector.broadcast %15 : vector<1x128xf32> to vector<32x128xf32>
      %17 = arith.addf %14, %16 : vector<32x128xf32>
      %c0_14 = arith.constant 0 : index
      %c0_15 = arith.constant 0 : index
      %18 = vector.load %arg6[%c0_14, %c0_15] : memref<32x128xf32, #tpu.memory_space<vmem>>, vector<32x128xf32>
      %19 = arith.addf %17, %18 : vector<32x128xf32>
      %c0_16 = arith.constant 0 : index
      %c0_17 = arith.constant 0 : index
      %20 = vector.load %arg7[%c0_16, %c0_17] : memref<32x128xf32, #tpu.memory_space<vmem>>, vector<32x128xf32>
      tpu.vector_store %arg7[%c0_16, %c0_17], %19 {strides = array<i32>} : memref<32x128xf32, #tpu.memory_space<vmem>>, vector<32x128xf32>,
    } else {
    }
    return
  }
  func.func @transform_0(%arg0: i32, %arg1: i32, %arg2: i32) -> (i32, i32) {
    %c0_i32 = arith.constant 0 : i32
    return %arg0, %arg2 : i32, i32
  }
  func.func @transform_1(%arg0: i32, %arg1: i32, %arg2: i32) -> (i32, i32) {
    %c0_i32 = arith.constant 0 : i32
    return %arg2, %arg1 : i32, i32
  }
  func.func @transform_2(%arg0: i32, %arg1: i32, %arg2: i32) -> (i32, i32) {
    %c0_i32 = arith.constant 0 : i32
    %c0_i32_0 = arith.constant 0 : i32
    return %c0_i32, %arg1 : i32, i32
  }
  func.func @transform_3(%arg0: i32, %arg1: i32, %arg2: i32) -> (i32, i32) {
    %c0_i32 = arith.constant 0 : i32
    return %arg0, %arg1 : i32, i32
  }
  func.func @transform_4(%arg0: i32, %arg1: i32, %arg2: i32) -> (i32, i32) {
    %c0_i32 = arith.constant 0 : i32
    return %arg0, %arg1 : i32, i32
  }
}

module attributes {stable_mosaic.version = 11 : i64} {
  func.func @_fd_attn_kernel(%arg0: i32, %arg1: memref<16x2x128xf32, #tpu.memory_space<vmem>>, %arg2: memref<16x2x128xf32, #tpu.memory_space<vmem>>, %arg3: memref<16x2x128xf32, #tpu.memory_space<vmem>>, %arg4: memref<16x2x128xf32, #tpu.memory_space<vmem>>) attributes {dimension_semantics = [#tpu.dimension_semantics<parallel>], iteration_bounds = array<i64: 2>, scalar_prefetch = 0 : i64, scratch_operands = 0 : i64, tpu.core_type = #tpu.core_type<tc>, window_params = [{transform_indices = @transform_0, window_bounds = array<i64: 16, 2, 128>}, {transform_indices = @transform_1, window_bounds = array<i64: 16, 2, 128>}, {transform_indices = @transform_2, window_bounds = array<i64: 16, 2, 128>}, {transform_indices = @transform_3, window_bounds = array<i64: 16, 2, 128>}]} {
    %c0 = arith.constant 0 : index
    %c0_0 = arith.constant 0 : index
    %c0_1 = arith.constant 0 : index
    %0 = vector.load %arg1[%c0, %c0_0, %c0_1] : memref<16x2x128xf32, #tpu.memory_space<vmem>>, vector<16x2x128xf32>
    %c0_2 = arith.constant 0 : index
    %c0_3 = arith.constant 0 : index
    %c0_4 = arith.constant 0 : index
    %1 = vector.load %arg2[%c0_2, %c0_3, %c0_4] : memref<16x2x128xf32, #tpu.memory_space<vmem>>, vector<16x2x128xf32>
    %c0_5 = arith.constant 0 : index
    %c0_6 = arith.constant 0 : index
    %c0_7 = arith.constant 0 : index
    %2 = vector.load %arg3[%c0_5, %c0_6, %c0_7] : memref<16x2x128xf32, #tpu.memory_space<vmem>>, vector<16x2x128xf32>
    %3 = vector.extract_strided_slice %0 {offsets = [0, 0, 0], sizes = [16, 2, 64], strides = [1, 1, 1]} : vector<16x2x128xf32> to vector<16x2x64xf32>
    %cst = arith.constant 1.250000e-01 : f32
    %4 = vector.broadcast %cst : f32 to vector<16x2x64xf32>
    %5 = arith.mulf %3, %4 : vector<16x2x64xf32>
    %6 = arith.truncf %5 : vector<16x2x64xf32> to vector<16x2x64xbf16>
    %7 = vector.extract_strided_slice %1 {offsets = [0, 0, 0], sizes = [16, 2, 64], strides = [1, 1, 1]} : vector<16x2x128xf32> to vector<16x2x64xf32>
    %8 = arith.truncf %7 : vector<16x2x64xf32> to vector<16x2x64xbf16>
    %9 = vector.extract_strided_slice %2 {offsets = [0, 0, 0], sizes = [16, 2, 64], strides = [1, 1, 1]} : vector<16x2x128xf32> to vector<16x2x64xf32>
    %10 = arith.truncf %9 : vector<16x2x64xf32> to vector<16x2x64xbf16>
    "tpu.trace_start"() <{level = 10 : i32, message = "gid,gjd->gij"}> : () -> ()
    %cst_8 = arith.constant dense<0.000000e+00> : vector<16x2x2xf32>
    %11 = tpu.matmul %6, %8, %cst_8 {dimension_numbers = #tpu.dot_dimension_numbers<[2], [2], [1], [1], [0, 0, 0, 1, 1, 1], [0], [0]>} : vector<16x2x64xbf16>, vector<16x2x64xbf16>, vector<16x2x2xf32> -> vector<16x2x2xf32>
    "tpu.trace_stop"() : () -> ()
    %cst_9 = arith.constant dense<0xFF800000> : vector<16x2xf32>
    %12 = vector.multi_reduction <maximumf>, %11, %cst_9 [2] : vector<16x2x2xf32> to vector<16x2xf32>
    %13 = vector.shape_cast %12 : vector<16x2xf32> to vector<16x2x1xf32>
    %14 = vector.broadcast %13 : vector<16x2x1xf32> to vector<16x2x2xf32>
    %15 = arith.subf %11, %14 : vector<16x2x2xf32>
    %16 = math.exp %15 : vector<16x2x2xf32>
    %cst_10 = arith.constant dense<0.000000e+00> : vector<16x2xf32>
    %17 = vector.multi_reduction <add>, %16, %cst_10 [2] : vector<16x2x2xf32> to vector<16x2xf32>
    %18 = vector.shape_cast %17 : vector<16x2xf32> to vector<16x2x1xf32>
    %19 = tpu.reciprocal %18 {approx = true} : vector<16x2x1xf32> -> vector<16x2x1xf32>
    %20 = vector.broadcast %19 : vector<16x2x1xf32> to vector<16x2x2xf32>
    %21 = arith.mulf %16, %20 : vector<16x2x2xf32>
    %22 = arith.truncf %21 : vector<16x2x2xf32> to vector<16x2x2xbf16>
    "tpu.trace_start"() <{level = 10 : i32, message = "gij,gjd->gid"}> : () -> ()
    %cst_11 = arith.constant dense<0.000000e+00> : vector<16x2x64xf32>
    %23 = tpu.matmul %22, %10, %cst_11 {dimension_numbers = #tpu.dot_dimension_numbers<[2], [1], [1], [2], [0, 0, 0, 1, 1, 2], [0], [0]>} : vector<16x2x2xbf16>, vector<16x2x64xbf16>, vector<16x2x64xf32> -> vector<16x2x64xf32>
    "tpu.trace_stop"() : () -> ()
    %c0_12 = arith.constant 0 : index
    %c0_13 = arith.constant 0 : index
    %c0_14 = arith.constant 0 : index
    %24 = vector.load %arg4[%c0_12, %c0_13, %c0_14] : memref<16x2x128xf32, #tpu.memory_space<vmem>>, vector<16x2x64xf32>
    tpu.vector_store %arg4[%c0_12, %c0_13, %c0_14], %23 {strides = array<i32>} : memref<16x2x128xf32, #tpu.memory_space<vmem>>, vector<16x2x64xf32>,
    %25 = vector.extract_strided_slice %0 {offsets = [0, 0, 64], sizes = [16, 2, 64], strides = [1, 1, 1]} : vector<16x2x128xf32> to vector<16x2x64xf32>
    %cst_15 = arith.constant 1.250000e-01 : f32
    %26 = vector.broadcast %cst_15 : f32 to vector<16x2x64xf32>
    %27 = arith.mulf %25, %26 : vector<16x2x64xf32>
    %28 = arith.truncf %27 : vector<16x2x64xf32> to vector<16x2x64xbf16>
    %29 = vector.extract_strided_slice %1 {offsets = [0, 0, 64], sizes = [16, 2, 64], strides = [1, 1, 1]} : vector<16x2x128xf32> to vector<16x2x64xf32>
    %30 = arith.truncf %29 : vector<16x2x64xf32> to vector<16x2x64xbf16>
    %31 = vector.extract_strided_slice %2 {offsets = [0, 0, 64], sizes = [16, 2, 64], strides = [1, 1, 1]} : vector<16x2x128xf32> to vector<16x2x64xf32>
    %32 = arith.truncf %31 : vector<16x2x64xf32> to vector<16x2x64xbf16>
    "tpu.trace_start"() <{level = 10 : i32, message = "gid,gjd->gij"}> : () -> ()
    %cst_16 = arith.constant dense<0.000000e+00> : vector<16x2x2xf32>
    %33 = tpu.matmul %28, %30, %cst_16 {dimension_numbers = #tpu.dot_dimension_numbers<[2], [2], [1], [1], [0, 0, 0, 1, 1, 1], [0], [0]>} : vector<16x2x64xbf16>, vector<16x2x64xbf16>, vector<16x2x2xf32> -> vector<16x2x2xf32>
    "tpu.trace_stop"() : () -> ()
    %cst_17 = arith.constant dense<0xFF800000> : vector<16x2xf32>
    %34 = vector.multi_reduction <maximumf>, %33, %cst_17 [2] : vector<16x2x2xf32> to vector<16x2xf32>
    %35 = vector.shape_cast %34 : vector<16x2xf32> to vector<16x2x1xf32>
    %36 = vector.broadcast %35 : vector<16x2x1xf32> to vector<16x2x2xf32>
    %37 = arith.subf %33, %36 : vector<16x2x2xf32>
    %38 = math.exp %37 : vector<16x2x2xf32>
    %cst_18 = arith.constant dense<0.000000e+00> : vector<16x2xf32>
    %39 = vector.multi_reduction <add>, %38, %cst_18 [2] : vector<16x2x2xf32> to vector<16x2xf32>
    %40 = vector.shape_cast %39 : vector<16x2xf32> to vector<16x2x1xf32>
    %41 = tpu.reciprocal %40 {approx = true} : vector<16x2x1xf32> -> vector<16x2x1xf32>
    %42 = vector.broadcast %41 : vector<16x2x1xf32> to vector<16x2x2xf32>
    %43 = arith.mulf %38, %42 : vector<16x2x2xf32>
    %44 = arith.truncf %43 : vector<16x2x2xf32> to vector<16x2x2xbf16>
    "tpu.trace_start"() <{level = 10 : i32, message = "gij,gjd->gid"}> : () -> ()
    %cst_19 = arith.constant dense<0.000000e+00> : vector<16x2x64xf32>
    %45 = tpu.matmul %44, %32, %cst_19 {dimension_numbers = #tpu.dot_dimension_numbers<[2], [1], [1], [2], [0, 0, 0, 1, 1, 2], [0], [0]>} : vector<16x2x2xbf16>, vector<16x2x64xbf16>, vector<16x2x64xf32> -> vector<16x2x64xf32>
    "tpu.trace_stop"() : () -> ()
    %c0_20 = arith.constant 0 : index
    %c0_21 = arith.constant 0 : index
    %c64 = arith.constant 64 : index
    %46 = vector.load %arg4[%c0_20, %c0_21, %c64] : memref<16x2x128xf32, #tpu.memory_space<vmem>>, vector<16x2x64xf32>
    tpu.vector_store %arg4[%c0_20, %c0_21, %c64], %45 {strides = array<i32>} : memref<16x2x128xf32, #tpu.memory_space<vmem>>, vector<16x2x64xf32>,
    return
  }
  func.func @transform_0(%arg0: i32) -> (i32, i32, i32) {
    %c0_i32 = arith.constant 0 : i32
    %c1_i32 = arith.constant 1 : i32
    %c0_i32_0 = arith.constant 0 : i32
    return %arg0, %c0_i32, %c1_i32 : i32, i32, i32
  }
  func.func @transform_1(%arg0: i32) -> (i32, i32, i32) {
    %c0_i32 = arith.constant 0 : i32
    %c3_i32 = arith.constant 3 : i32
    %c0_i32_0 = arith.constant 0 : i32
    return %arg0, %c0_i32, %c3_i32 : i32, i32, i32
  }
  func.func @transform_2(%arg0: i32) -> (i32, i32, i32) {
    %c0_i32 = arith.constant 0 : i32
    %c5_i32 = arith.constant 5 : i32
    %c0_i32_0 = arith.constant 0 : i32
    return %arg0, %c0_i32, %c5_i32 : i32, i32, i32
  }
  func.func @transform_3(%arg0: i32) -> (i32, i32, i32) {
    %c0_i32 = arith.constant 0 : i32
    %c0_i32_0 = arith.constant 0 : i32
    %c0_i32_1 = arith.constant 0 : i32
    return %arg0, %c0_i32, %c0_i32_0 : i32, i32, i32
  }
}

module attributes {stable_mosaic.version = 11 : i64} {
  func.func @_matmul_kernel(%arg0: i32, %arg1: i32, %arg2: i32, %arg3: memref<32x128xf32, #tpu.memory_space<vmem>>, %arg4: memref<128x128xf32, #tpu.memory_space<vmem>>, %arg5: memref<32x128xf32, #tpu.memory_space<vmem>>, %arg6: memref<32x128xf32, #tpu.memory_space<vmem>>, %arg7: memref<32x128xf32, #tpu.memory_space<vmem>>) attributes {dimension_semantics = [#tpu.dimension_semantics<parallel>, #tpu.dimension_semantics<parallel>, #tpu.dimension_semantics<arbitrary>], iteration_bounds = array<i64: 2, 1, 1>, scalar_prefetch = 0 : i64, scratch_operands = 1 : i64, tpu.core_type = #tpu.core_type<tc>, window_params = [{transform_indices = @transform_0, window_bounds = array<i64: 32, 128>}, {transform_indices = @transform_1, window_bounds = array<i64: 128, 128>}, {transform_indices = @transform_2, window_bounds = array<i64: 32, 128>}, {transform_indices = @transform_3, window_bounds = array<i64: 32, 128>}]} {
    %c0_i32 = arith.constant 0 : i32
    %0 = arith.cmpi eq, %arg2, %c0_i32 : i32
    %1 = arith.extui %0 : i1 to i32
    %c0_i32_0 = arith.constant 0 : i32
    %2 = arith.cmpi ne, %1, %c0_i32_0 : i32
    scf.if %2 {
      %cst_10 = arith.constant 0.000000e+00 : f32
      %14 = vector.broadcast %cst_10 : f32 to vector<32x128xf32>
      %c0_11 = arith.constant 0 : index
      %c0_12 = arith.constant 0 : index
      %15 = vector.load %arg7[%c0_11, %c0_12] : memref<32x128xf32, #tpu.memory_space<vmem>>, vector<32x128xf32>
      tpu.vector_store %arg7[%c0_11, %c0_12], %14 {strides = array<i32>} : memref<32x128xf32, #tpu.memory_space<vmem>>, vector<32x128xf32>,
    } else {
    }
    %c0 = arith.constant 0 : index
    %c0_1 = arith.constant 0 : index
    %3 = vector.load %arg3[%c0, %c0_1] : memref<32x128xf32, #tpu.memory_space<vmem>>, vector<32x128xf32>
    %c0_2 = arith.constant 0 : index
    %c0_3 = arith.constant 0 : index
    %4 = vector.load %arg7[%c0_2, %c0_3] : memref<32x128xf32, #tpu.memory_space<vmem>>, vector<32x128xf32>
    %5 = arith.truncf %3 : vector<32x128xf32> to vector<32x128xbf16>
    %c0_4 = arith.constant 0 : index
    %c0_5 = arith.constant 0 : index
    %6 = vector.load %arg4[%c0_4, %c0_5] : memref<128x128xf32, #tpu.memory_space<vmem>>, vector<128x128xf32>
    %7 = arith.truncf %6 : vector<128x128xf32> to vector<128x128xbf16>
    %cst = arith.constant dense<0.000000e+00> : vector<32x128xf32>
    %8 = tpu.matmul %5, %7, %cst {dimension_numbers = #tpu.dot_dimension_numbers<[1], [0], [0], [1], [0, 0, 1, 1], [], []>} : vector<32x128xbf16>, vector<128x128xbf16>, vector<32x128xf32> -> vector<32x128xf32>
    %9 = arith.addf %4, %8 : vector<32x128xf32>
    %c0_6 = arith.constant 0 : index
    %c0_7 = arith.constant 0 : index
    %10 = vector.load %arg7[%c0_6, %c0_7] : memref<32x128xf32, #tpu.memory_space<vmem>>, vector<32x128xf32>
    tpu.vector_store %arg7[%c0_6, %c0_7], %9 {strides = array<i32>} : memref<32x128xf32, #tpu.memory_space<vmem>>, vector<32x128xf32>,
    %c0_i32_8 = arith.constant 0 : i32
    %11 = arith.cmpi eq, %arg2, %c0_i32_8 : i32
    %12 = arith.extui %11 : i1 to i32
    %c0_i32_9 = arith.constant 0 : i32
    %13 = arith.cmpi ne, %12, %c0_i32_9 : i32
    scf.if %13 {
      %c0_10 = arith.constant 0 : index
      %c0_11 = arith.constant 0 : index
      %14 = vector.load %arg7[%c0_10, %c0_11] : memref<32x128xf32, #tpu.memory_space<vmem>>, vector<32x128xf32>
      %c0_12 = arith.constant 0 : index
      %c0_13 = arith.constant 0 : index
      %15 = vector.load %arg5[%c0_12, %c0_13] : memref<32x128xf32, #tpu.memory_space<vmem>>, vector<32x128xf32>
      %16 = arith.addf %14, %15 : vector<32x128xf32>
      %c0_14 = arith.constant 0 : index
      %c0_15 = arith.constant 0 : index
      %17 = vector.load %arg6[%c0_14, %c0_15] : memref<32x128xf32, #tpu.memory_space<vmem>>, vector<32x128xf32>
      tpu.vector_store %arg6[%c0_14, %c0_15], %16 {strides = array<i32>} : memref<32x128xf32, #tpu.memory_space<vmem>>, vector<32x128xf32>,
    } else {
    }
    return
  }
  func.func @transform_0(%arg0: i32, %arg1: i32, %arg2: i32) -> (i32, i32) {
    %c0_i32 = arith.constant 0 : i32
    return %arg0, %arg2 : i32, i32
  }
  func.func @transform_1(%arg0: i32, %arg1: i32, %arg2: i32) -> (i32, i32) {
    %c0_i32 = arith.constant 0 : i32
    return %arg2, %arg1 : i32, i32
  }
  func.func @transform_2(%arg0: i32, %arg1: i32, %arg2: i32) -> (i32, i32) {
    %c0_i32 = arith.constant 0 : i32
    return %arg0, %arg1 : i32, i32
  }
  func.func @transform_3(%arg0: i32, %arg1: i32, %arg2: i32) -> (i32, i32) {
    %c0_i32 = arith.constant 0 : i32
    return %arg0, %arg1 : i32, i32
  }
}

module attributes {stable_mosaic.version = 11 : i64} {
  func.func @_matmul_kernel(%arg0: i32, %arg1: i32, %arg2: i32, %arg3: memref<32x128xf32, #tpu.memory_space<vmem>>, %arg4: memref<128x256xf32, #tpu.memory_space<vmem>>, %arg5: memref<1x256xf32, #tpu.memory_space<vmem>>, %arg6: memref<1x128xf32, #tpu.memory_space<vmem>>, %arg7: memref<1x128xf32, #tpu.memory_space<vmem>>, %arg8: memref<32x256xf32, #tpu.memory_space<vmem>>, %arg9: memref<32x256xf32, #tpu.memory_space<vmem>>, %arg10: memref<32x128xf32, #tpu.memory_space<vmem>>) attributes {dimension_semantics = [#tpu.dimension_semantics<parallel>, #tpu.dimension_semantics<arbitrary>, #tpu.dimension_semantics<arbitrary>], iteration_bounds = array<i64: 2, 1, 1>, scalar_prefetch = 0 : i64, scratch_operands = 2 : i64, tpu.core_type = #tpu.core_type<tc>, window_params = [{transform_indices = @transform_0, window_bounds = array<i64: 32, 128>}, {transform_indices = @transform_1, window_bounds = array<i64: 128, 256>}, {transform_indices = @transform_2, window_bounds = array<i64: 1, 256>}, {pipeline_mode = #tpu.pipeline_mode<synchronous>, transform_indices = @transform_3, window_bounds = array<i64: 1, 128>}, {pipeline_mode = #tpu.pipeline_mode<synchronous>, transform_indices = @transform_4, window_bounds = array<i64: 1, 128>}, {transform_indices = @transform_5, window_bounds = array<i64: 32, 256>}]} {
    %c0_i32 = arith.constant 0 : i32
    %0 = arith.cmpi eq, %arg2, %c0_i32 : i32
    %1 = arith.extui %0 : i1 to i32
    %c0_i32_0 = arith.constant 0 : i32
    %2 = arith.cmpi ne, %1, %c0_i32_0 : i32
    scf.if %2 {
      %cst_12 = arith.constant 0.000000e+00 : f32
      %17 = vector.broadcast %cst_12 : f32 to vector<32x256xf32>
      %c0_13 = arith.constant 0 : index
      %c0_14 = arith.constant 0 : index
      %18 = vector.load %arg9[%c0_13, %c0_14] : memref<32x256xf32, #tpu.memory_space<vmem>>, vector<32x256xf32>
      tpu.vector_store %arg9[%c0_13, %c0_14], %17 {strides = array<i32>} : memref<32x256xf32, #tpu.memory_space<vmem>>, vector<32x256xf32>,
    } else {
    }
    %c0_i32_1 = arith.constant 0 : i32
    %3 = arith.cmpi eq, %arg1, %c0_i32_1 : i32
    %4 = arith.extui %3 : i1 to i32
    %c0_i32_2 = arith.constant 0 : i32
    %5 = arith.cmpi ne, %4, %c0_i32_2 : i32
    scf.if %5 {
      %c0_12 = arith.constant 0 : index
      %c0_13 = arith.constant 0 : index
      %17 = vector.load %arg3[%c0_12, %c0_13] : memref<32x128xf32, #tpu.memory_space<vmem>>, vector<32x128xf32>
      %cst_14 = arith.constant dense<0.000000e+00> : vector<32xf32>
      %18 = vector.multi_reduction <add>, %17, %cst_14 [1] : vector<32x128xf32> to vector<32xf32>
      %19 = vector.shape_cast %18 : vector<32xf32> to vector<32x1xf32>
      %cst_15 = arith.constant 1.280000e+02 : f32
      %20 = vector.broadcast %cst_15 : f32 to vector<32x1xf32>
      %21 = arith.divf %19, %20 : vector<32x1xf32>
      %22 = vector.broadcast %21 : vector<32x1xf32> to vector<32x128xf32>
      %23 = arith.subf %17, %22 : vector<32x128xf32>
      %24 = arith.mulf %23, %23 : vector<32x128xf32>
      %cst_16 = arith.constant dense<0.000000e+00> : vector<32xf32>
      %25 = vector.multi_reduction <add>, %24, %cst_16 [1] : vector<32x128xf32> to vector<32xf32>
      %26 = vector.shape_cast %25 : vector<32xf32> to vector<32x1xf32>
      %cst_17 = arith.constant 1.280000e+02 : f32
      %27 = vector.broadcast %cst_17 : f32 to vector<32x1xf32>
      %28 = arith.divf %26, %27 : vector<32x1xf32>
      %29 = vector.broadcast %21 : vector<32x1xf32> to vector<32x128xf32>
      %30 = arith.subf %17, %29 : vector<32x128xf32>
      %cst_18 = arith.constant 9.99999974E-6 : f32
      %31 = vector.broadcast %cst_18 : f32 to vector<32x1xf32>
      %32 = arith.addf %28, %31 : vector<32x1xf32>
      %33 = math.rsqrt %32 : vector<32x1xf32>
      %34 = vector.broadcast %33 : vector<32x1xf32> to vector<32x128xf32>
      %35 = arith.mulf %30, %34 : vector<32x128xf32>
      %c0_19 = arith.constant 0 : index
      %c0_20 = arith.constant 0 : index
      %36 = vector.load %arg6[%c0_19, %c0_20] : memref<1x128xf32, #tpu.memory_space<vmem>>, vector<1x128xf32>
      %37 = vector.broadcast %36 : vector<1x128xf32> to vector<32x128xf32>
      %38 = arith.mulf %35, %37 : vector<32x128xf32>
      %c0_21 = arith.constant 0 : index
      %c0_22 = arith.constant 0 : index
      %39 = vector.load %arg7[%c0_21, %c0_22] : memref<1x128xf32, #tpu.memory_space<vmem>>, vector<1x128xf32>
      %40 = vector.broadcast %39 : vector<1x128xf32> to vector<32x128xf32>
      %41 = arith.addf %38, %40 : vector<32x128xf32>
      %c0_23 = arith.constant 0 : index
      %c0_24 = arith.constant 0 : index
      %42 = vector.load %arg10[%c0_23, %c0_24] : memref<32x128xf32, #tpu.memory_space<vmem>>, vector<32x128xf32>
      tpu.vector_store %arg10[%c0_23, %c0_24], %41 {strides = array<i32>} : memref<32x128xf32, #tpu.memory_space<vmem>>, vector<32x128xf32>,
    } else {
    }
    %c0 = arith.constant 0 : index
    %c0_3 = arith.constant 0 : index
    %6 = vector.load %arg10[%c0, %c0_3] : memref<32x128xf32, #tpu.memory_space<vmem>>, vector<32x128xf32>
    %c0_4 = arith.constant 0 : index
    %c0_5 = arith.constant 0 : index
    %7 = vector.load %arg9[%c0_4, %c0_5] : memref<32x256xf32, #tpu.memory_space<vmem>>, vector<32x256xf32>
    %8 = arith.truncf %6 : vector<32x128xf32> to vector<32x128xbf16>
    %c0_6 = arith.constant 0 : index
    %c0_7 = arith.constant 0 : index
    %9 = vector.load %arg4[%c0_6, %c0_7] : memref<128x256xf32, #tpu.memory_space<vmem>>, vector<128x256xf32>
    %10 = arith.truncf %9 : vector<128x256xf32> to vector<128x256xbf16>
    %cst = arith.constant dense<0.000000e+00> : vector<32x256xf32>
    %11 = tpu.matmul %8, %10, %cst {dimension_numbers = #tpu.dot_dimension_numbers<[1], [0], [0], [1], [0, 0, 1, 1], [], []>} : vector<32x128xbf16>, vector<128x256xbf16>, vector<32x256xf32> -> vector<32x256xf32>
    %12 = arith.addf %7, %11 : vector<32x256xf32>
    %c0_8 = arith.constant 0 : index
    %c0_9 = arith.constant 0 : index
    %13 = vector.load %arg9[%c0_8, %c0_9] : memref<32x256xf32, #tpu.memory_space<vmem>>, vector<32x256xf32>
    tpu.vector_store %arg9[%c0_8, %c0_9], %12 {strides = array<i32>} : memref<32x256xf32, #tpu.memory_space<vmem>>, vector<32x256xf32>,
    %c0_i32_10 = arith.constant 0 : i32
    %14 = arith.cmpi eq, %arg2, %c0_i32_10 : i32
    %15 = arith.extui %14 : i1 to i32
    %c0_i32_11 = arith.constant 0 : i32
    %16 = arith.cmpi ne, %15, %c0_i32_11 : i32
    scf.if %16 {
      %c0_12 = arith.constant 0 : index
      %c0_13 = arith.constant 0 : index
      %17 = vector.load %arg9[%c0_12, %c0_13] : memref<32x256xf32, #tpu.memory_space<vmem>>, vector<32x256xf32>
      %c0_14 = arith.constant 0 : index
      %c0_15 = arith.constant 0 : index
      %18 = vector.load %arg5[%c0_14, %c0_15] : memref<1x256xf32, #tpu.memory_space<vmem>>, vector<1x256xf32>
      %19 = vector.broadcast %18 : vector<1x256xf32> to vector<32x256xf32>
      %20 = arith.addf %17, %19 : vector<32x256xf32>
      %cst_16 = arith.constant 0.707106769 : f32
      %21 = vector.broadcast %cst_16 : f32 to vector<32x256xf32>
      %22 = arith.mulf %20, %21 : vector<32x256xf32>
      %23 = math.absf %22 : vector<32x256xf32>
      %cst_17 = arith.constant 0.327591091 : f32
      %24 = vector.broadcast %cst_17 : f32 to vector<32x256xf32>
      %25 = arith.mulf %24, %23 : vector<32x256xf32>
      %cst_18 = arith.constant 1.000000e+00 : f32
      %26 = vector.broadcast %cst_18 : f32 to vector<32x256xf32>
      %27 = arith.addf %26, %25 : vector<32x256xf32>
      %cst_19 = arith.constant 1.000000e+00 : f32
      %28 = vector.broadcast %cst_19 : f32 to vector<32x256xf32>
      %29 = arith.divf %28, %27 : vector<32x256xf32>
      %cst_20 = arith.constant 1.06140542 : f32
      %30 = vector.broadcast %cst_20 : f32 to vector<32x256xf32>
      %31 = arith.mulf %30, %29 : vector<32x256xf32>
      %cst_21 = arith.constant 1.45315206 : f32
      %32 = vector.broadcast %cst_21 : f32 to vector<32x256xf32>
      %33 = arith.subf %31, %32 : vector<32x256xf32>
      %34 = arith.mulf %33, %29 : vector<32x256xf32>
      %cst_22 = arith.constant 1.42141378 : f32
      %35 = vector.broadcast %cst_22 : f32 to vector<32x256xf32>
      %36 = arith.addf %34, %35 : vector<32x256xf32>
      %37 = arith.mulf %36, %29 : vector<32x256xf32>
      %cst_23 = arith.constant 0.284496725 : f32
      %38 = vector.broadcast %cst_23 : f32 to vector<32x256xf32>
      %39 = arith.subf %37, %38 : vector<32x256xf32>
      %40 = arith.mulf %39, %29 : vector<32x256xf32>
      %cst_24 = arith.constant 0.254829586 : f32
      %41 = vector.broadcast %cst_24 : f32 to vector<32x256xf32>
      %42 = arith.addf %40, %41 : vector<32x256xf32>
      %43 = arith.mulf %42, %29 : vector<32x256xf32>
      %cst_25 = arith.constant 0.000000e+00 : f32
      %44 = vector.broadcast %cst_25 : f32 to vector<32x256xf32>
      %45 = arith.subf %44, %23 : vector<32x256xf32>
      %46 = arith.mulf %45, %23 : vector<32x256xf32>
      %47 = math.exp %46 : vector<32x256xf32>
      %48 = arith.mulf %43, %47 : vector<32x256xf32>
      %cst_26 = arith.constant 1.000000e+00 : f32
      %49 = vector.broadcast %cst_26 : f32 to vector<32x256xf32>
      %50 = arith.subf %49, %48 : vector<32x256xf32>
      %cst_27 = arith.constant 0.000000e+00 : f32
      %51 = vector.broadcast %cst_27 : f32 to vector<32x256xf32>
      %52 = arith.cmpf olt, %22, %51 : vector<32x256xf32>
      %cst_28 = arith.constant 0.000000e+00 : f32
      %53 = vector.broadcast %cst_28 : f32 to vector<32x256xf32>
      %54 = arith.subf %53, %50 : vector<32x256xf32>
      %55 = arith.select %52, %54, %50 : vector<32x256xi1>, vector<32x256xf32>
      %cst_29 = arith.constant 5.000000e-01 : f32
      %56 = vector.broadcast %cst_29 : f32 to vector<32x256xf32>
      %57 = arith.mulf %56, %20 : vector<32x256xf32>
      %cst_30 = arith.constant 1.000000e+00 : f32
      %58 = vector.broadcast %cst_30 : f32 to vector<32x256xf32>
      %59 = arith.addf %58, %55 : vector<32x256xf32>
      %60 = arith.mulf %57, %59 : vector<32x256xf32>
      %c0_31 = arith.constant 0 : index
      %c0_32 = arith.constant 0 : index
      %61 = vector.load %arg8[%c0_31, %c0_32] : memref<32x256xf32, #tpu.memory_space<vmem>>, vector<32x256xf32>
      tpu.vector_store %arg8[%c0_31, %c0_32], %60 {strides = array<i32>} : memref<32x256xf32, #tpu.memory_space<vmem>>, vector<32x256xf32>,
    } else {
    }
    return
  }
  func.func @transform_0(%arg0: i32, %arg1: i32, %arg2: i32) -> (i32, i32) {
    %c0_i32 = arith.constant 0 : i32
    return %arg0, %arg2 : i32, i32
  }
  func.func @transform_1(%arg0: i32, %arg1: i32, %arg2: i32) -> (i32, i32) {
    %c0_i32 = arith.constant 0 : i32
    return %arg2, %arg1 : i32, i32
  }
  func.func @transform_2(%arg0: i32, %arg1: i32, %arg2: i32) -> (i32, i32) {
    %c0_i32 = arith.constant 0 : i32
    %c0_i32_0 = arith.constant 0 : i32
    return %c0_i32, %arg1 : i32, i32
  }
  func.func @transform_3(%arg0: i32, %arg1: i32, %arg2: i32) -> (i32, i32) {
    %c0_i32 = arith.constant 0 : i32
    %c0_i32_0 = arith.constant 0 : i32
    %c0_i32_1 = arith.constant 0 : i32
    return %c0_i32, %c0_i32_0 : i32, i32
  }
  func.func @transform_4(%arg0: i32, %arg1: i32, %arg2: i32) -> (i32, i32) {
    %c0_i32 = arith.constant 0 : i32
    %c0_i32_0 = arith.constant 0 : i32
    %c0_i32_1 = arith.constant 0 : i32
    return %c0_i32, %c0_i32_0 : i32, i32
  }
  func.func @transform_5(%arg0: i32, %arg1: i32, %arg2: i32) -> (i32, i32) {
    %c0_i32 = arith.constant 0 : i32
    return %arg0, %arg1 : i32, i32
  }
}

module attributes {stable_mosaic.version = 11 : i64} {
  func.func @_matmul_kernel(%arg0: i32, %arg1: i32, %arg2: i32, %arg3: memref<32x256xf32, #tpu.memory_space<vmem>>, %arg4: memref<256x128xf32, #tpu.memory_space<vmem>>, %arg5: memref<1x128xf32, #tpu.memory_space<vmem>>, %arg6: memref<32x128xf32, #tpu.memory_space<vmem>>, %arg7: memref<32x128xf32, #tpu.memory_space<vmem>>, %arg8: memref<32x128xf32, #tpu.memory_space<vmem>>) attributes {dimension_semantics = [#tpu.dimension_semantics<parallel>, #tpu.dimension_semantics<parallel>, #tpu.dimension_semantics<arbitrary>], iteration_bounds = array<i64: 2, 1, 1>, scalar_prefetch = 0 : i64, scratch_operands = 1 : i64, tpu.core_type = #tpu.core_type<tc>, window_params = [{transform_indices = @transform_0, window_bounds = array<i64: 32, 256>}, {transform_indices = @transform_1, window_bounds = array<i64: 256, 128>}, {transform_indices = @transform_2, window_bounds = array<i64: 1, 128>}, {transform_indices = @transform_3, window_bounds = array<i64: 32, 128>}, {transform_indices = @transform_4, window_bounds = array<i64: 32, 128>}]} {
    %c0_i32 = arith.constant 0 : i32
    %0 = arith.cmpi eq, %arg2, %c0_i32 : i32
    %1 = arith.extui %0 : i1 to i32
    %c0_i32_0 = arith.constant 0 : i32
    %2 = arith.cmpi ne, %1, %c0_i32_0 : i32
    scf.if %2 {
      %cst_10 = arith.constant 0.000000e+00 : f32
      %14 = vector.broadcast %cst_10 : f32 to vector<32x128xf32>
      %c0_11 = arith.constant 0 : index
      %c0_12 = arith.constant 0 : index
      %15 = vector.load %arg8[%c0_11, %c0_12] : memref<32x128xf32, #tpu.memory_space<vmem>>, vector<32x128xf32>
      tpu.vector_store %arg8[%c0_11, %c0_12], %14 {strides = array<i32>} : memref<32x128xf32, #tpu.memory_space<vmem>>, vector<32x128xf32>,
    } else {
    }
    %c0 = arith.constant 0 : index
    %c0_1 = arith.constant 0 : index
    %3 = vector.load %arg3[%c0, %c0_1] : memref<32x256xf32, #tpu.memory_space<vmem>>, vector<32x256xf32>
    %c0_2 = arith.constant 0 : index
    %c0_3 = arith.constant 0 : index
    %4 = vector.load %arg8[%c0_2, %c0_3] : memref<32x128xf32, #tpu.memory_space<vmem>>, vector<32x128xf32>
    %5 = arith.truncf %3 : vector<32x256xf32> to vector<32x256xbf16>
    %c0_4 = arith.constant 0 : index
    %c0_5 = arith.constant 0 : index
    %6 = vector.load %arg4[%c0_4, %c0_5] : memref<256x128xf32, #tpu.memory_space<vmem>>, vector<256x128xf32>
    %7 = arith.truncf %6 : vector<256x128xf32> to vector<256x128xbf16>
    %cst = arith.constant dense<0.000000e+00> : vector<32x128xf32>
    %8 = tpu.matmul %5, %7, %cst {dimension_numbers = #tpu.dot_dimension_numbers<[1], [0], [0], [1], [0, 0, 1, 1], [], []>} : vector<32x256xbf16>, vector<256x128xbf16>, vector<32x128xf32> -> vector<32x128xf32>
    %9 = arith.addf %4, %8 : vector<32x128xf32>
    %c0_6 = arith.constant 0 : index
    %c0_7 = arith.constant 0 : index
    %10 = vector.load %arg8[%c0_6, %c0_7] : memref<32x128xf32, #tpu.memory_space<vmem>>, vector<32x128xf32>
    tpu.vector_store %arg8[%c0_6, %c0_7], %9 {strides = array<i32>} : memref<32x128xf32, #tpu.memory_space<vmem>>, vector<32x128xf32>,
    %c0_i32_8 = arith.constant 0 : i32
    %11 = arith.cmpi eq, %arg2, %c0_i32_8 : i32
    %12 = arith.extui %11 : i1 to i32
    %c0_i32_9 = arith.constant 0 : i32
    %13 = arith.cmpi ne, %12, %c0_i32_9 : i32
    scf.if %13 {
      %c0_10 = arith.constant 0 : index
      %c0_11 = arith.constant 0 : index
      %14 = vector.load %arg8[%c0_10, %c0_11] : memref<32x128xf32, #tpu.memory_space<vmem>>, vector<32x128xf32>
      %c0_12 = arith.constant 0 : index
      %c0_13 = arith.constant 0 : index
      %15 = vector.load %arg5[%c0_12, %c0_13] : memref<1x128xf32, #tpu.memory_space<vmem>>, vector<1x128xf32>
      %16 = vector.broadcast %15 : vector<1x128xf32> to vector<32x128xf32>
      %17 = arith.addf %14, %16 : vector<32x128xf32>
      %c0_14 = arith.constant 0 : index
      %c0_15 = arith.constant 0 : index
      %18 = vector.load %arg6[%c0_14, %c0_15] : memref<32x128xf32, #tpu.memory_space<vmem>>, vector<32x128xf32>
      %19 = arith.addf %17, %18 : vector<32x128xf32>
      %c0_16 = arith.constant 0 : index
      %c0_17 = arith.constant 0 : index
      %20 = vector.load %arg7[%c0_16, %c0_17] : memref<32x128xf32, #tpu.memory_space<vmem>>, vector<32x128xf32>
      tpu.vector_store %arg7[%c0_16, %c0_17], %19 {strides = array<i32>} : memref<32x128xf32, #tpu.memory_space<vmem>>, vector<32x128xf32>,
    } else {
    }
    return
  }
  func.func @transform_0(%arg0: i32, %arg1: i32, %arg2: i32) -> (i32, i32) {
    %c0_i32 = arith.constant 0 : i32
    return %arg0, %arg2 : i32, i32
  }
  func.func @transform_1(%arg0: i32, %arg1: i32, %arg2: i32) -> (i32, i32) {
    %c0_i32 = arith.constant 0 : i32
    return %arg2, %arg1 : i32, i32
  }
  func.func @transform_2(%arg0: i32, %arg1: i32, %arg2: i32) -> (i32, i32) {
    %c0_i32 = arith.constant 0 : i32
    %c0_i32_0 = arith.constant 0 : i32
    return %c0_i32, %arg1 : i32, i32
  }
  func.func @transform_3(%arg0: i32, %arg1: i32, %arg2: i32) -> (i32, i32) {
    %c0_i32 = arith.constant 0 : i32
    return %arg0, %arg1 : i32, i32
  }
  func.func @transform_4(%arg0: i32, %arg1: i32, %arg2: i32) -> (i32, i32) {
    %c0_i32 = arith.constant 0 : i32
    return %arg0, %arg1 : i32, i32
  }
}

module attributes {stable_mosaic.version = 11 : i64} {
  func.func @_matmul_kernel(%arg0: i32, %arg1: i32, %arg2: i32, %arg3: memref<2x128xf32, #tpu.memory_space<vmem>>, %arg4: memref<128x10xf32, #tpu.memory_space<vmem>>, %arg5: memref<1x10xf32, #tpu.memory_space<vmem>>, %arg6: memref<1x128xf32, #tpu.memory_space<vmem>>, %arg7: memref<1x128xf32, #tpu.memory_space<vmem>>, %arg8: memref<2x10xf32, #tpu.memory_space<vmem>>, %arg9: memref<2x10xf32, #tpu.memory_space<vmem>>, %arg10: memref<2x128xf32, #tpu.memory_space<vmem>>) attributes {dimension_semantics = [#tpu.dimension_semantics<parallel>, #tpu.dimension_semantics<arbitrary>, #tpu.dimension_semantics<arbitrary>], iteration_bounds = array<i64: 1, 1, 1>, scalar_prefetch = 0 : i64, scratch_operands = 2 : i64, tpu.core_type = #tpu.core_type<tc>, window_params = [{transform_indices = @transform_0, window_bounds = array<i64: 2, 128>}, {transform_indices = @transform_1, window_bounds = array<i64: 128, 10>}, {transform_indices = @transform_2, window_bounds = array<i64: 1, 10>}, {pipeline_mode = #tpu.pipeline_mode<synchronous>, transform_indices = @transform_3, window_bounds = array<i64: 1, 128>}, {pipeline_mode = #tpu.pipeline_mode<synchronous>, transform_indices = @transform_4, window_bounds = array<i64: 1, 128>}, {transform_indices = @transform_5, window_bounds = array<i64: 2, 10>}]} {
    %c0_i32 = arith.constant 0 : i32
    %0 = arith.cmpi eq, %arg2, %c0_i32 : i32
    %1 = arith.extui %0 : i1 to i32
    %c0_i32_0 = arith.constant 0 : i32
    %2 = arith.cmpi ne, %1, %c0_i32_0 : i32
    scf.if %2 {
      %cst_12 = arith.constant 0.000000e+00 : f32
      %17 = vector.broadcast %cst_12 : f32 to vector<2x10xf32>
      %c0_13 = arith.constant 0 : index
      %c0_14 = arith.constant 0 : index
      %18 = vector.load %arg9[%c0_13, %c0_14] : memref<2x10xf32, #tpu.memory_space<vmem>>, vector<2x10xf32>
      tpu.vector_store %arg9[%c0_13, %c0_14], %17 {strides = array<i32>} : memref<2x10xf32, #tpu.memory_space<vmem>>, vector<2x10xf32>,
    } else {
    }
    %c0_i32_1 = arith.constant 0 : i32
    %3 = arith.cmpi eq, %arg1, %c0_i32_1 : i32
    %4 = arith.extui %3 : i1 to i32
    %c0_i32_2 = arith.constant 0 : i32
    %5 = arith.cmpi ne, %4, %c0_i32_2 : i32
    scf.if %5 {
      %c0_12 = arith.constant 0 : index
      %c0_13 = arith.constant 0 : index
      %17 = vector.load %arg3[%c0_12, %c0_13] : memref<2x128xf32, #tpu.memory_space<vmem>>, vector<2x128xf32>
      %cst_14 = arith.constant dense<0.000000e+00> : vector<2xf32>
      %18 = vector.multi_reduction <add>, %17, %cst_14 [1] : vector<2x128xf32> to vector<2xf32>
      %19 = vector.shape_cast %18 : vector<2xf32> to vector<2x1xf32>
      %cst_15 = arith.constant 1.280000e+02 : f32
      %20 = vector.broadcast %cst_15 : f32 to vector<2x1xf32>
      %21 = arith.divf %19, %20 : vector<2x1xf32>
      %22 = vector.broadcast %21 : vector<2x1xf32> to vector<2x128xf32>
      %23 = arith.subf %17, %22 : vector<2x128xf32>
      %24 = arith.mulf %23, %23 : vector<2x128xf32>
      %cst_16 = arith.constant dense<0.000000e+00> : vector<2xf32>
      %25 = vector.multi_reduction <add>, %24, %cst_16 [1] : vector<2x128xf32> to vector<2xf32>
      %26 = vector.shape_cast %25 : vector<2xf32> to vector<2x1xf32>
      %cst_17 = arith.constant 1.280000e+02 : f32
      %27 = vector.broadcast %cst_17 : f32 to vector<2x1xf32>
      %28 = arith.divf %26, %27 : vector<2x1xf32>
      %29 = vector.broadcast %21 : vector<2x1xf32> to vector<2x128xf32>
      %30 = arith.subf %17, %29 : vector<2x128xf32>
      %cst_18 = arith.constant 9.99999974E-6 : f32
      %31 = vector.broadcast %cst_18 : f32 to vector<2x1xf32>
      %32 = arith.addf %28, %31 : vector<2x1xf32>
      %33 = math.rsqrt %32 : vector<2x1xf32>
      %34 = vector.broadcast %33 : vector<2x1xf32> to vector<2x128xf32>
      %35 = arith.mulf %30, %34 : vector<2x128xf32>
      %c0_19 = arith.constant 0 : index
      %c0_20 = arith.constant 0 : index
      %36 = vector.load %arg6[%c0_19, %c0_20] : memref<1x128xf32, #tpu.memory_space<vmem>>, vector<1x128xf32>
      %37 = vector.broadcast %36 : vector<1x128xf32> to vector<2x128xf32>
      %38 = arith.mulf %35, %37 : vector<2x128xf32>
      %c0_21 = arith.constant 0 : index
      %c0_22 = arith.constant 0 : index
      %39 = vector.load %arg7[%c0_21, %c0_22] : memref<1x128xf32, #tpu.memory_space<vmem>>, vector<1x128xf32>
      %40 = vector.broadcast %39 : vector<1x128xf32> to vector<2x128xf32>
      %41 = arith.addf %38, %40 : vector<2x128xf32>
      %c0_23 = arith.constant 0 : index
      %c0_24 = arith.constant 0 : index
      %42 = vector.load %arg10[%c0_23, %c0_24] : memref<2x128xf32, #tpu.memory_space<vmem>>, vector<2x128xf32>
      tpu.vector_store %arg10[%c0_23, %c0_24], %41 {strides = array<i32>} : memref<2x128xf32, #tpu.memory_space<vmem>>, vector<2x128xf32>,
    } else {
    }
    %c0 = arith.constant 0 : index
    %c0_3 = arith.constant 0 : index
    %6 = vector.load %arg10[%c0, %c0_3] : memref<2x128xf32, #tpu.memory_space<vmem>>, vector<2x128xf32>
    %c0_4 = arith.constant 0 : index
    %c0_5 = arith.constant 0 : index
    %7 = vector.load %arg9[%c0_4, %c0_5] : memref<2x10xf32, #tpu.memory_space<vmem>>, vector<2x10xf32>
    %8 = arith.truncf %6 : vector<2x128xf32> to vector<2x128xbf16>
    %c0_6 = arith.constant 0 : index
    %c0_7 = arith.constant 0 : index
    %9 = vector.load %arg4[%c0_6, %c0_7] : memref<128x10xf32, #tpu.memory_space<vmem>>, vector<128x10xf32>
    %10 = arith.truncf %9 : vector<128x10xf32> to vector<128x10xbf16>
    %cst = arith.constant dense<0.000000e+00> : vector<2x10xf32>
    %11 = tpu.matmul %8, %10, %cst {dimension_numbers = #tpu.dot_dimension_numbers<[1], [0], [0], [1], [0, 0, 1, 1], [], []>} : vector<2x128xbf16>, vector<128x10xbf16>, vector<2x10xf32> -> vector<2x10xf32>
    %12 = arith.addf %7, %11 : vector<2x10xf32>
    %c0_8 = arith.constant 0 : index
    %c0_9 = arith.constant 0 : index
    %13 = vector.load %arg9[%c0_8, %c0_9] : memref<2x10xf32, #tpu.memory_space<vmem>>, vector<2x10xf32>
    tpu.vector_store %arg9[%c0_8, %c0_9], %12 {strides = array<i32>} : memref<2x10xf32, #tpu.memory_space<vmem>>, vector<2x10xf32>,
    %c0_i32_10 = arith.constant 0 : i32
    %14 = arith.cmpi eq, %arg2, %c0_i32_10 : i32
    %15 = arith.extui %14 : i1 to i32
    %c0_i32_11 = arith.constant 0 : i32
    %16 = arith.cmpi ne, %15, %c0_i32_11 : i32
    scf.if %16 {
      %c0_12 = arith.constant 0 : index
      %c0_13 = arith.constant 0 : index
      %17 = vector.load %arg9[%c0_12, %c0_13] : memref<2x10xf32, #tpu.memory_space<vmem>>, vector<2x10xf32>
      %c0_14 = arith.constant 0 : index
      %c0_15 = arith.constant 0 : index
      %18 = vector.load %arg5[%c0_14, %c0_15] : memref<1x10xf32, #tpu.memory_space<vmem>>, vector<1x10xf32>
      %19 = vector.broadcast %18 : vector<1x10xf32> to vector<2x10xf32>
      %20 = arith.addf %17, %19 : vector<2x10xf32>
      %c0_16 = arith.constant 0 : index
      %c0_17 = arith.constant 0 : index
      %21 = vector.load %arg8[%c0_16, %c0_17] : memref<2x10xf32, #tpu.memory_space<vmem>>, vector<2x10xf32>
      tpu.vector_store %arg8[%c0_16, %c0_17], %20 {strides = array<i32>} : memref<2x10xf32, #tpu.memory_space<vmem>>, vector<2x10xf32>,
    } else {
    }
    return
  }
  func.func @transform_0(%arg0: i32, %arg1: i32, %arg2: i32) -> (i32, i32) {
    %c0_i32 = arith.constant 0 : i32
    return %arg0, %arg2 : i32, i32
  }
  func.func @transform_1(%arg0: i32, %arg1: i32, %arg2: i32) -> (i32, i32) {
    %c0_i32 = arith.constant 0 : i32
    return %arg2, %arg1 : i32, i32
  }
  func.func @transform_2(%arg0: i32, %arg1: i32, %arg2: i32) -> (i32, i32) {
    %c0_i32 = arith.constant 0 : i32
    %c0_i32_0 = arith.constant 0 : i32
    return %c0_i32, %arg1 : i32, i32
  }
  func.func @transform_3(%arg0: i32, %arg1: i32, %arg2: i32) -> (i32, i32) {
    %c0_i32 = arith.constant 0 : i32
    %c0_i32_0 = arith.constant 0 : i32
    %c0_i32_1 = arith.constant 0 : i32
    return %c0_i32, %c0_i32_0 : i32, i32
  }
  func.func @transform_4(%arg0: i32, %arg1: i32, %arg2: i32) -> (i32, i32) {
    %c0_i32 = arith.constant 0 : i32
    %c0_i32_0 = arith.constant 0 : i32
    %c0_i32_1 = arith.constant 0 : i32
    return %c0_i32, %c0_i32_0 : i32, i32
  }
  func.func @transform_5(%arg0: i32, %arg1: i32, %arg2: i32) -> (i32, i32) {
    %c0_i32 = arith.constant 0 : i32
    return %arg0, %arg1 : i32, i32
  }
}

</mosaic_0001>

<llo_original>
// kernel: vivit_forward.16
$region0: #{vivit_forward.16}
  #allocation0 [shape = 'u32[]', space=smem, size = 0x4, offset = 0x4, fixed_abs, tag = 'smem constant byte address 0x4 - core index']
  #allocation1 [shape = 'u32[144,128]{1,0:T(1,128)}', space=vmem, size = 0x12000, scoped, tag = 'internal scratch']
  #allocation2 [shape = 'f32[32,128]{1,0:T(8,128)}', space=vmem, size = 0x4000, scoped, tag = 'scratch operand']
  %s0 = inlined_call_operand.vmem [shape: f32[64,96], index: 0, kind: input, shape index: {}]
  %s1 = inlined_call_operand.vmem [shape: f32[96,128], index: 1, kind: input, shape index: {}]
  %s2 = inlined_call_operand.vmem [shape: f32[1,128], index: 2, kind: input, shape index: {}]
  %s3 = inlined_call_operand.vmem [shape: f32[64,128], index: 3, kind: output, shape index: {}]
  %s4 = sld [smem:[#allocation0]]
  $region53: #{vivit_forward.16} parent=0
    _
  %s6 = ssub.s32 1, %s4
  %s7 = scalar_select 0, %s6, %s4
  loop: start=0, step=1, limit=4
  $region2: #{vivit_forward.16} parent=0 // loop_pre_header
    _
  $region3: #{vivit_forward.16} parent=0 // loop_header
    %s9 = sphi 0, %s13
    %p10 = scmp.ge.s32.totalorder %s9, 4
    %s16 = sphi 0, %s35
    %s17 = sphi 0, %s31
    %s18 = sphi 0, %s27
    %s19 = sphi 0, %s16
    %s20 = sphi 0, %s17
    %s21 = sphi 0, %s18
    %s22 = sphi 0, %s19
    %s23 = sphi 0, %s20
    %s24 = sphi 0, %s21
    %s40 = sphi 0, %s42
    %s43 = sphi 0, %s40
    %s44 = sphi 0, %s43
    %s60 = sphi 0, %s44
    %s68 = sphi 0, %s70
    %s71 = sphi 0, %s68
    %s72 = sphi 0, %s71
    %s88 = sphi 0, %s72
    %s94 = sphi 0, %s96
    %s97 = sphi 0, %s94
    %s98 = sphi 0, %s97
    %s114 = sphi 0, %s98
    %s122 = sphi 0, %s124
    %s125 = sphi 0, %s122
    %s126 = sphi 0, %s125
    %s142 = sphi 0, %s126
  $region4: #{vivit_forward.16} parent=0 // loop_header_branch
    %12 = sbr.rel (%p10) target = $region8
  $region5: #{vivit_forward.16} parent=0 // loop_body
    %s14 = ssub.s32 %s9, 1
    %s15 = ssub.s32 %s9, 2
    %s25 = sadd.s32 1, %s18
    %p26 = scmp.ge.s32.totalorder %s25, 1
    %s27 = scalar_select %p26, 0, %s25
    %s28 = sadd.s32 1, %s17
    %s29 = scalar_select %p26, %s28, %s17
    %p30 = scmp.ge.s32.totalorder %s29, 1
    %s31 = scalar_select %p30, 0, %s29
    %s32 = sadd.s32 1, %s16
    %s33 = scalar_select %p30, %s32, %s16
    %p34 = scmp.ge.s32.totalorder %s33, 2
    %s35 = scalar_select %p34, 0, %s33
    %s36 = ssub.s32 %s16, %s35
    %s37 = ssub.s32 %s18, %s27
    %s38 = sor.u32 %s36, %s37
    %p39 = scmp.eq.s32.totalorder %s38, 0
    %s41 = sadd.s32 %s40, 1
    %s42 = scalar_select %p39, %s40, %s41
    %p45 = pneg %p39
    %p46 = scmp.eq.s32.totalorder %s9, 1
    %p47 = por %p45, %p46
    %p48 = scmp.ne.s32.totalorder %s40, %s43
    %p49 = scmp.eq.s32.totalorder %s9, 0
    %p50 = por %p48, %p49
    %p51 = scmp.ne.s32.totalorder %s40, %s43
    %p52 = scmp.eq.s32.totalorder %s14, 1
    %p53 = por %p51, %p52
    %p54 = scmp.ne.s32.totalorder %s43, %s44
    %p55 = scmp.eq.s32.totalorder %s14, 0
    %p56 = por %p54, %p55
    %p57 = scmp.ne.s32.totalorder %s43, %s44
    %p58 = scmp.eq.s32.totalorder %s15, 1
    %p59 = por %p57, %p58
    %p61 = scmp.ne.s32.totalorder %s44, %s60
    %p62 = scmp.eq.s32.totalorder %s15, 0
    %p63 = por %p61, %p62
    %s64 = ssub.s32 %s18, %s27
    %s65 = ssub.s32 %s17, %s31
    %s66 = sor.u32 %s64, %s65
    %p67 = scmp.eq.s32.totalorder %s66, 0
    %s69 = sadd.s32 %s68, 1
    %s70 = scalar_select %p67, %s68, %s69
    %p73 = pneg %p67
    %p74 = scmp.eq.s32.totalorder %s9, 1
    %p75 = por %p73, %p74
    %p76 = scmp.ne.s32.totalorder %s68, %s71
    %p77 = scmp.eq.s32.totalorder %s9, 0
    %p78 = por %p76, %p77
    %p79 = scmp.ne.s32.totalorder %s68, %s71
    %p80 = scmp.eq.s32.totalorder %s14, 1
    %p81 = por %p79, %p80
    %p82 = scmp.ne.s32.totalorder %s71, %s72
    %p83 = scmp.eq.s32.totalorder %s14, 0
    %p84 = por %p82, %p83
    %p85 = scmp.ne.s32.totalorder %s71, %s72
    %p86 = scmp.eq.s32.totalorder %s15, 1
    %p87 = por %p85, %p86
    %p89 = scmp.ne.s32.totalorder %s72, %s88
    %p90 = scmp.eq.s32.totalorder %s15, 0
    %p91 = por %p89, %p90
    %s92 = ssub.s32 %s17, %s31
    %p93 = scmp.eq.s32.totalorder %s92, 0
    %s95 = sadd.s32 %s94, 1
    %s96 = scalar_select %p93, %s94, %s95
    %p99 = pneg %p93
    %p100 = scmp.eq.s32.totalorder %s9, 1
    %p101 = por %p99, %p100
    %p102 = scmp.ne.s32.totalorder %s94, %s97
    %p103 = scmp.eq.s32.totalorder %s9, 0
    %p104 = por %p102, %p103
    %p105 = scmp.ne.s32.totalorder %s94, %s97
    %p106 = scmp.eq.s32.totalorder %s14, 1
    %p107 = por %p105, %p106
    %p108 = scmp.ne.s32.totalorder %s97, %s98
    %p109 = scmp.eq.s32.totalorder %s14, 0
    %p110 = por %p108, %p109
    %p111 = scmp.ne.s32.totalorder %s97, %s98
    %p112 = scmp.eq.s32.totalorder %s15, 1
    %p113 = por %p111, %p112
    %p115 = scmp.ne.s32.totalorder %s98, %s114
    %p116 = scmp.eq.s32.totalorder %s15, 0
    %p117 = por %p115, %p116
    %s118 = ssub.s32 %s16, %s35
    %s119 = ssub.s32 %s17, %s31
    %s120 = sor.u32 %s118, %s119
    %p121 = scmp.eq.s32.totalorder %s120, 0
    %s123 = sadd.s32 %s122, 1
    %s124 = scalar_select %p121, %s122, %s123
    %p127 = pneg %p121
    %p128 = scmp.eq.s32.totalorder %s9, 1
    %p129 = por %p127, %p128
    %p130 = scmp.ne.s32.totalorder %s122, %s125
    %p131 = scmp.eq.s32.totalorder %s9, 0
    %p132 = por %p130, %p131
    %p133 = scmp.ne.s32.totalorder %s122, %s125
    %p134 = scmp.eq.s32.totalorder %s14, 1
    %p135 = por %p133, %p134
    %p136 = scmp.ne.s32.totalorder %s125, %s126
    %p137 = scmp.eq.s32.totalorder %s14, 0
    %p138 = por %p136, %p137
    %p139 = scmp.ne.s32.totalorder %s125, %s126
    %p140 = scmp.eq.s32.totalorder %s15, 1
    %p141 = por %p139, %p140
    %p143 = scmp.ne.s32.totalorder %s126, %s142
    %p144 = scmp.eq.s32.totalorder %s15, 0
    %p145 = por %p143, %p144
    %p146 = scmp.le.s32.totalorder 1, %s9
    %p147 = scmp.lt.s32.totalorder %s9, 3
    %p148 = pnand %p146, %p147
    %p149 = pneg %p148
    // Predicated region
    $region9: #{vivit_forward.16} parent=5 // pred_check
      _
    $region10: #{vivit_forward.16} parent=5 // pred_check_branch
      %151 = sbr.rel (%p148) target = $region12
    $region11: #{vivit_forward.16} parent=5 // pred_region
      %s152 = ssub.s32 %s9, 1
      // Predicated region
      $region13: #{vivit_forward.16} parent=11 // pred_check
        %p153 = pneg %p84
      $region14: #{vivit_forward.16} parent=11 // pred_check_branch
        %155 = sbr.rel (%p153) target = $region16
      $region15: #{vivit_forward.16} parent=11 // pred_region
        %s156 = smul.u32 12, %s21
        %p157 = scmp.lt.s32.totalorder %s156, 11
        %s158 = scalar_select %p157, %s156, 11
        %p159 = scmp.lt.s32.totalorder %s20, 0
        %s160 = scalar_select %p159, %s20, 0
        %s161 = sadd.s32 %s160, %s158
        %s162 = smul.addr %s161, 8
        %s163 = scalar_lea.vmem %s1, %s162
        %s164 = smul.u32 12, %s21
      $region16: #{vivit_forward.16} parent=11 // pred_fallthru
        _
      // Predicated region
      $region17: #{vivit_forward.16} parent=11 // pred_check
        %p165 = pneg %p110
      $region18: #{vivit_forward.16} parent=11 // pred_check_branch
        %167 = sbr.rel (%p165) target = $region20
      $region19: #{vivit_forward.16} parent=11 // pred_region
        %p168 = scmp.lt.s32.totalorder %s20, 0
        %s169 = scalar_select %p168, %s20, 0
        %s170 = scalar_lea.vmem %s2, %s169
      $region20: #{vivit_forward.16} parent=11 // pred_fallthru
        _
    $region12: #{vivit_forward.16} parent=5 // pred_fallthru
      _
    %p171 = scmp.lt.s32.totalorder %s9, 2
    // Predicated region
    $region21: #{vivit_forward.16} parent=5 // pred_check
      %p172 = pneg %p171
    $region22: #{vivit_forward.16} parent=5 // pred_check_branch
      %174 = sbr.rel (%p172) target = $region24
    $region23: #{vivit_forward.16} parent=5 // pred_region
      // Predicated region
      $region25: #{vivit_forward.16} parent=23 // pred_check
        %p175 = pneg %p50
      $region26: #{vivit_forward.16} parent=23 // pred_check_branch
        %177 = sbr.rel (%p175) target = $region28
      $region27: #{vivit_forward.16} parent=23 // pred_region
        %s178 = smul.u32 4, %s16
        %p179 = scmp.lt.s32.totalorder %s178, 7
        %s180 = scalar_select %p179, %s178, 7
        %p181 = scmp.lt.s32.totalorder %s18, 0
        %s182 = scalar_select %p181, %s18, 0
        %s183 = sadd.s32 %s182, %s180
        %s184 = smul.addr %s183, 8
        %s185 = scalar_lea.vmem %s0, %s184
        %s186 = smul.u32 4, %s16
      $region28: #{vivit_forward.16} parent=23 // pred_fallthru
        _
    $region24: #{vivit_forward.16} parent=5 // pred_fallthru
      _
    %p187 = scmp.le.s32.totalorder 1, %s9
    %p188 = scmp.lt.s32.totalorder %s9, 3
    %p189 = pnand %p187, %p188
    %p190 = pneg %p189
    // Predicated region
    $region29: #{vivit_forward.16} parent=5 // pred_check
      _
    $region30: #{vivit_forward.16} parent=5 // pred_check_branch
      %192 = sbr.rel (%p189) target = $region32
    $region31: #{vivit_forward.16} parent=5 // pred_region
      %s193 = ssub.s32 %s9, 1
      %s194 = smul.u32 4, %s19
      %p195 = scmp.lt.s32.totalorder %s194, 7
      %s196 = scalar_select %p195, %s194, 7
      %p197 = scmp.lt.s32.totalorder %s21, 0
      %s198 = scalar_select %p197, %s21, 0
      %s199 = sadd.s32 %s198, %s196
      %s200 = smul.addr %s199, 8
      %s201 = scalar_lea.vmem %s0, %s200
      %p202 = pneg %p56
      %p203 = pneg %p53
      %s204 = smul.u32 12, %s21
      %p205 = scmp.lt.s32.totalorder %s204, 11
      %s206 = scalar_select %p205, %s204, 11
      %p207 = scmp.lt.s32.totalorder %s20, 0
      %s208 = scalar_select %p207, %s20, 0
      %s209 = sadd.s32 %s208, %s206
      %s210 = smul.addr %s209, 8
      %s211 = scalar_lea.vmem %s1, %s210
      %p212 = pneg %p84
      %p213 = pneg %p81
      %p214 = scmp.lt.s32.totalorder %s20, 0
      %s215 = scalar_select %p214, %s20, 0
      %s216 = scalar_lea.vmem %s2, %s215
      %p217 = pneg %p110
      %p218 = pneg %p107
      %p219 = pneg %p138
      %p220 = pneg %p135
      %s221 = smul.u32 4, %s19
      %p222 = scmp.lt.s32.totalorder %s221, 7
      %s223 = scalar_select %p222, %s221, 7
      %p224 = scmp.lt.s32.totalorder %s20, 0
      %s225 = scalar_select %p224, %s20, 0
      %s226 = sadd.s32 %s225, %s223
      %s227 = smul.addr %s226, 8
      %s228 = scalar_lea.vmem %s3, %s227
      %s229 = smul.u32 4, %s19
      %p230 = scmp.lt.s32.totalorder %s229, 7
      %s231 = scalar_select %p230, %s229, 7
      %p232 = scmp.lt.s32.totalorder %s21, 0
      %s233 = scalar_select %p232, %s21, 0
      %s234 = sadd.s32 %s233, %s231
      %s235 = smul.addr %s234, 8
      %s236 = scalar_lea.vmem %s0, %s235
      %s237 = smul.u32 4, %s19
      %s238 = smul.u32 12, %s21
      %p239 = scmp.lt.s32.totalorder %s238, 11
      %s240 = scalar_select %p239, %s238, 11
      %p241 = scmp.lt.s32.totalorder %s20, 0
      %s242 = scalar_select %p241, %s20, 0
      %s243 = sadd.s32 %s242, %s240
      %s244 = smul.addr %s243, 8
      %s245 = scalar_lea.vmem %s1, %s244
      %s246 = smul.u32 12, %s21
      %p247 = scmp.lt.s32.totalorder %s20, 0
      %s248 = scalar_select %p247, %s20, 0
      %s249 = scalar_lea.vmem %s2, %s248
      %s250 = smul.u32 4, %s19
      %p251 = scmp.lt.s32.totalorder %s250, 7
      %s252 = scalar_select %p251, %s250, 7
      %p253 = scmp.lt.s32.totalorder %s20, 0
      %s254 = scalar_select %p253, %s20, 0
      %s255 = sadd.s32 %s254, %s252
      %s256 = smul.addr %s255, 8
      %s257 = scalar_lea.vmem %s3, %s256
      %s258 = smul.u32 4, %s19
      %p260 = scmp.eq.s32.totalorder %s21, 0
      // Predicated region
      $region33: #{vivit_forward.16} parent=31 // pred_check
        %p261 = pneg %p260
      $region34: #{vivit_forward.16} parent=31 // pred_check_branch
        %263 = sbr.rel (%p261) target = $region36
      $region35: #{vivit_forward.16} parent=31 // pred_region
        %264 = vst [vmem:[#allocation2] sm:$0xff] 0.0
        %265 = vst [vmem:[#allocation2 + $0x8] sm:$0xff] 0.0
        %266 = vst [vmem:[#allocation2 + $0x10] sm:$0xff] 0.0
        %267 = vst [vmem:[#allocation2 + $0x18] sm:$0xff] 0.0
      $region36: #{vivit_forward.16} parent=31 // pred_fallthru
        _
      %v268 = vld [vmem:[%s236] sm:$0xff]
      %v269 = vld [vmem:[%s236 + $0x8] sm:$0xff]
      %v270 = vld [vmem:[%s236 + $0x10] sm:$0xff]
      %v271 = vld [vmem:[%s236 + $0x18] sm:$0xff]
      %v272 = vld [vmem:[#allocation2] sm:$0xff]
      %v273 = vld [vmem:[#allocation2 + $0x8] sm:$0xff]
      %v274 = vld [vmem:[#allocation2 + $0x10] sm:$0xff]
      %v275 = vld [vmem:[#allocation2 + $0x18] sm:$0xff]
      %v276 = vpack.c.bf16 %v269, %v268
      %v277 = vpack.c.bf16 %v271, %v270
      %v278 = vld [vmem:[%s245] sm:$0xff]
      %v279 = vld [vmem:[%s245 + $0x8] sm:$0xff]
      %v280 = vld [vmem:[%s245 + $0x10] sm:$0xff]
      %v281 = vld [vmem:[%s245 + $0x18] sm:$0xff]
      %v282 = vld [vmem:[%s245 + $0x20] sm:$0xff]
      %v283 = vld [vmem:[%s245 + $0x28] sm:$0xff]
      %v284 = vld [vmem:[%s245 + $0x30] sm:$0xff]
      %v285 = vld [vmem:[%s245 + $0x38] sm:$0xff]
      %v286 = vld [vmem:[%s245 + $0x40] sm:$0xff]
      %v287 = vld [vmem:[%s245 + $0x48] sm:$0xff]
      %v288 = vld [vmem:[%s245 + $0x50] sm:$0xff]
      %v289 = vld [vmem:[%s245 + $0x58] sm:$0xff]
      %v290 = vpack.c.bf16 %v279, %v278
      %v291 = vpack.c.bf16 %v281, %v280
      %v292 = vpack.c.bf16 %v283, %v282
      %v293 = vpack.c.bf16 %v285, %v284
      %v294 = vpack.c.bf16 %v287, %v286
      %v295 = vpack.c.bf16 %v289, %v288
      %vm296 = vcmask 785408
      %v298 = vsel %vm296, %v276, 0
      %v301 = vsel %vm296, %v277, 0
      %303 = vmatprep.subr.bf16.mxu0 0
      %304 = vmatpush1.bf16.msra.mxu0 %v290
      %305 = vmatprep.subr.bf16.mxu0 0
      %306 = vmatpush1.bf16.msra.mxu0 %v291
      %307 = vmatprep.subr.bf16.mxu0 0
      %308 = vmatpush1.bf16.msra.mxu0 %v292
      %309 = vmatprep.subr.bf16.mxu0 0
      %310 = vmatpush1.bf16.msra.mxu0 %v293
      %311 = vmatprep.subr.bf16.mxu0 0
      %312 = vmatpush1.bf16.msra.mxu0 %v294
      %313 = vmatprep.subr.bf16.mxu0 0
      %314 = vmatpush1.bf16.msra.mxu0 %v295
      %315 = vmatprep.subr.bf16.mxu0 0
      %316 = vmatpush1.bf16.msra.mxu0 0
      %317 = vmatprep.subr.bf16.mxu0 0
      %318 = vmatpush1.bf16.msra.mxu0 0
      %319 = vmatprep.subr.bf16.mxu0 0
      %320 = vmatpush1.bf16.msra.mxu0 0
      %321 = vmatprep.subr.bf16.mxu0 0
      %322 = vmatpush1.bf16.msra.mxu0 0
      %323 = vmatprep.subr.bf16.mxu0 0
      %324 = vmatpush1.bf16.msra.mxu0 0
      %325 = vmatprep.subr.bf16.mxu0 0
      %326 = vmatpush1.bf16.msra.mxu0 0
      %327 = vmatprep.subr.bf16.mxu0 0
      %328 = vmatpush1.bf16.msra.mxu0 0
      %329 = vmatprep.subr.bf16.mxu0 0
      %330 = vmatpush1.bf16.msra.mxu0 0
      %331 = vmatprep.subr.bf16.mxu0 0
      %332 = vmatpush1.bf16.msra.mxu0 0
      %333 = vmatprep.subr.bf16.mxu0 0
      %334 = vmatpush1.bf16.msra.mxu0 0
      %335 = vmatprep.mubr.bf16.mxu0 0
      %336 = vmatmul.mubr.bf16.gmra.mrb[0].mxu0 %v298
      %v337 = vpop.f32.mrb[0].mxu0
      %v338 = vadd.f32 0.0, %v337
      %v339 = vpop.f32.mrb[0].mxu0
      %v340 = vpop.f32.mrb[0].mxu0
      %v341 = vadd.f32 0.0, %v340
      %v342 = vpop.f32.mrb[0].mxu0
      %343 = vmatprep.mubr.bf16.mxu0 0
      %344 = vmatmul.mubr.bf16.gmra.mrb[0].mxu0 %v301
      %v345 = vpop.f32.mrb[0].mxu0
      %v346 = vadd.f32 0.0, %v345
      %v347 = vpop.f32.mrb[0].mxu0
      %v348 = vpop.f32.mrb[0].mxu0
      %v349 = vadd.f32 0.0, %v348
      %v350 = vpop.f32.mrb[0].mxu0
      %351 = vdwg.mxu0
      %v352 = vadd.f32 %v272, %v338
      %v353 = vadd.f32 %v273, %v341
      %v354 = vadd.f32 %v274, %v346
      %v355 = vadd.f32 %v275, %v349
      %356 = vst [vmem:[#allocation2] sm:$0xff] %v352
      %357 = vst [vmem:[#allocation2 + $0x8] sm:$0xff] %v353
      %358 = vst [vmem:[#allocation2 + $0x10] sm:$0xff] %v354
      %359 = vst [vmem:[#allocation2 + $0x18] sm:$0xff] %v355
      // Predicated region
      $region37: #{vivit_forward.16} parent=31 // pred_check
        %p360 = pneg %p260
      $region38: #{vivit_forward.16} parent=31 // pred_check_branch
        %362 = sbr.rel (%p360) target = $region40
      $region39: #{vivit_forward.16} parent=31 // pred_region
        %v363 = vld [vmem:[#allocation2] sm:$0xff]
        %v364 = vld [vmem:[#allocation2 + $0x8] sm:$0xff]
        %v365 = vld [vmem:[#allocation2 + $0x10] sm:$0xff]
        %v366 = vld [vmem:[#allocation2 + $0x18] sm:$0xff]
        %v367 = vld [vmem:[%s249] sm:$0x1]
        %v369 = vlaneseq
        %v370 = vshrl.u32 %v369, 7
        %v371 = vsub.s32 0, %v370
        %v372 = vrot.slane %v367, %v371
        %v374 = vadd.f32 %v363, %v372
        %v375 = vadd.f32 %v364, %v372
        %v376 = vadd.f32 %v365, %v372
        %v377 = vadd.f32 %v366, %v372
        %378 = vst [vmem:[%s257] sm:$0xff] %v374
        %379 = vst [vmem:[%s257 + $0x8] sm:$0xff] %v375
        %380 = vst [vmem:[%s257 + $0x10] sm:$0xff] %v376
        %381 = vst [vmem:[%s257 + $0x18] sm:$0xff] %v377
      $region40: #{vivit_forward.16} parent=31 // pred_fallthru
        _
      %s382 = smul.u32 4, %s19
      %p383 = scmp.lt.s32.totalorder %s382, 7
      %s384 = scalar_select %p383, %s382, 7
      %p385 = scmp.lt.s32.totalorder %s20, 0
      %s386 = scalar_select %p385, %s20, 0
      %s387 = sadd.s32 %s386, %s384
      %s388 = smul.addr %s387, 8
      %s389 = scalar_lea.vmem %s3, %s388
      // Predicated region
      $region41: #{vivit_forward.16} parent=31 // pred_check
        %p390 = pneg %p135
      $region42: #{vivit_forward.16} parent=31 // pred_check_branch
        %392 = sbr.rel (%p390) target = $region44
      $region43: #{vivit_forward.16} parent=31 // pred_region
        %s393 = smul.u32 4, %s19
      $region44: #{vivit_forward.16} parent=31 // pred_fallthru
        _
    $region32: #{vivit_forward.16} parent=5 // pred_fallthru
      _
    %p394 = scmp.le.s32.totalorder 2, %s9
    // Predicated region
    $region45: #{vivit_forward.16} parent=5 // pred_check
      %p395 = pneg %p394
    $region46: #{vivit_forward.16} parent=5 // pred_check_branch
      %397 = sbr.rel (%p395) target = $region48
    $region47: #{vivit_forward.16} parent=5 // pred_region
      %s398 = ssub.s32 %s9, 2
      // Predicated region
      $region49: #{vivit_forward.16} parent=47 // pred_check
        %p399 = pneg %p141
      $region50: #{vivit_forward.16} parent=47 // pred_check_branch
        %401 = sbr.rel (%p399) target = $region52
      $region51: #{vivit_forward.16} parent=47 // pred_region
        %s402 = smul.u32 4, %s22
        %p403 = scmp.lt.s32.totalorder %s402, 7
        %s404 = scalar_select %p403, %s402, 7
        %p405 = scmp.lt.s32.totalorder %s23, 0
        %s406 = scalar_select %p405, %s23, 0
        %s407 = sadd.s32 %s406, %s404
        %s408 = smul.addr %s407, 8
        %s409 = scalar_lea.vmem %s3, %s408
      $region52: #{vivit_forward.16} parent=47 // pred_fallthru
        _
    $region48: #{vivit_forward.16} parent=5 // pred_fallthru
      _
  $region6: #{vivit_forward.16} parent=0 // loop_footer
    %s13 = sadd.s32 1, %s9
  $region7: #{vivit_forward.16} parent=0 // loop_footer_branch
    %8 = sbr.rel target = $region3
  $region8: #{vivit_forward.16} parent=0 // loop_exit
    _

// kernel: vivit_forward.17
$region0: #{vivit_forward.17}
  #allocation0 [shape = 'u32[]', space=smem, size = 0x4, offset = 0x4, fixed_abs, tag = 'smem constant byte address 0x4 - core index']
  #allocation1 [shape = 'u32[144,128]{1,0:T(1,128)}', space=vmem, size = 0x12000, scoped, tag = 'internal scratch']
  #allocation2 [shape = 'f32[32,256]{1,0:T(8,128)}', space=vmem, size = 0x8000, scoped, tag = 'scratch operand']
  #allocation3 [shape = 'f32[32,128]{1,0:T(8,128)}', space=vmem, size = 0x4000, scoped, tag = 'scratch operand']
  %s0 = inlined_call_operand.vmem [shape: f32[64,128], index: 0, kind: input, shape index: {}]
  %s1 = inlined_call_operand.vmem [shape: f32[128,768], index: 1, kind: input, shape index: {}]
  %s2 = inlined_call_operand.vmem [shape: f32[1,128], index: 2, kind: input, shape index: {}]
  %s3 = inlined_call_operand.vmem [shape: f32[1,128], index: 3, kind: input, shape index: {}]
  %s4 = inlined_call_operand.vmem [shape: f32[64,768], index: 4, kind: output, shape index: {}]
  %s5 = sld [smem:[#allocation0]]
  $region103: #{vivit_forward.17} parent=0
    _
  %s7 = ssub.s32 1, %s5
  %s8 = scalar_select 0, %s7, %s5
  $region1: #{vivit_forward.17} parent=0
    #allocation4 [shape = 'u8[262144]{0}', space=vmem, size = 0x40000, scoped, tag = 'input window, operand 1']
    #allocation5 [shape = 'u8[65536]{0}', space=vmem, size = 0x10000, scoped, tag = 'output window, operand 0']
    loop: start=0, step=1, limit=8
    $region2: #{vivit_forward.17} parent=1 // loop_pre_header
      _
    $region3: #{vivit_forward.17} parent=1 // loop_header
      %s10 = sphi 0, %s14
      %p11 = scmp.ge.s32.totalorder %s10, 8
      %s17 = sphi 0, %s36
      %s18 = sphi 0, %s32
      %s19 = sphi 0, %s28
      %s20 = sphi 0, %s17
      %s21 = sphi 0, %s18
      %s22 = sphi 0, %s19
      %s23 = sphi 0, %s20
      %s24 = sphi 0, %s21
      %s25 = sphi 0, %s22
      %s41 = sphi 0, %s43
      %s44 = sphi 0, %s41
      %s45 = sphi 0, %s44
      %s61 = sphi 0, %s45
      %s69 = sphi 0, %s71
      %s72 = sphi 0, %s69
      %s73 = sphi 0, %s72
      %s89 = sphi 0, %s73
      %s93 = sphi 0, %s93
      %s95 = sphi 0, %s93
      %s96 = sphi 0, %s95
      %s110 = sphi 0, %s96
      %s114 = sphi 0, %s114
      %s116 = sphi 0, %s114
      %s117 = sphi 0, %s116
      %s131 = sphi 0, %s117
      %s139 = sphi 0, %s141
      %s142 = sphi 0, %s139
      %s143 = sphi 0, %s142
      %s159 = sphi 0, %s143
    $region4: #{vivit_forward.17} parent=1 // loop_header_branch
      %13 = sbr.rel (%p11) target = $region8
    $region5: #{vivit_forward.17} parent=1 // loop_body
      %s15 = ssub.s32 %s10, 1
      %s16 = ssub.s32 %s10, 2
      %s26 = sadd.s32 1, %s19
      %p27 = scmp.ge.s32.totalorder %s26, 1
      %s28 = scalar_select %p27, 0, %s26
      %s29 = sadd.s32 1, %s18
      %s30 = scalar_select %p27, %s29, %s18
      %p31 = scmp.ge.s32.totalorder %s30, 3
      %s32 = scalar_select %p31, 0, %s30
      %s33 = sadd.s32 1, %s17
      %s34 = scalar_select %p31, %s33, %s17
      %p35 = scmp.ge.s32.totalorder %s34, 2
      %s36 = scalar_select %p35, 0, %s34
      %s37 = ssub.s32 %s17, %s36
      %s38 = ssub.s32 %s19, %s28
      %s39 = sor.u32 %s37, %s38
      %p40 = scmp.eq.s32.totalorder %s39, 0
      %s42 = sadd.s32 %s41, 1
      %s43 = scalar_select %p40, %s41, %s42
      %p46 = pneg %p40
      %p47 = scmp.eq.s32.totalorder %s10, 5
      %p48 = por %p46, %p47
      %p49 = scmp.ne.s32.totalorder %s41, %s44
      %p50 = scmp.eq.s32.totalorder %s10, 0
      %p51 = por %p49, %p50
      %p52 = scmp.ne.s32.totalorder %s41, %s44
      %p53 = scmp.eq.s32.totalorder %s15, 5
      %p54 = por %p52, %p53
      %p55 = scmp.ne.s32.totalorder %s44, %s45
      %p56 = scmp.eq.s32.totalorder %s15, 0
      %p57 = por %p55, %p56
      %p58 = scmp.ne.s32.totalorder %s44, %s45
      %p59 = scmp.eq.s32.totalorder %s16, 5
      %p60 = por %p58, %p59
      %p62 = scmp.ne.s32.totalorder %s45, %s61
      %p63 = scmp.eq.s32.totalorder %s16, 0
      %p64 = por %p62, %p63
      %s65 = ssub.s32 %s19, %s28
      %s66 = ssub.s32 %s18, %s32
      %s67 = sor.u32 %s65, %s66
      %p68 = scmp.eq.s32.totalorder %s67, 0
      %s70 = sadd.s32 %s69, 1
      %s71 = scalar_select %p68, %s69, %s70
      %p74 = pneg %p68
      %p75 = scmp.eq.s32.totalorder %s10, 5
      %p76 = por %p74, %p75
      %p77 = scmp.ne.s32.totalorder %s69, %s72
      %p78 = scmp.eq.s32.totalorder %s10, 0
      %p79 = por %p77, %p78
      %p80 = scmp.ne.s32.totalorder %s69, %s72
      %p81 = scmp.eq.s32.totalorder %s15, 5
      %p82 = por %p80, %p81
      %p83 = scmp.ne.s32.totalorder %s72, %s73
      %p84 = scmp.eq.s32.totalorder %s15, 0
      %p85 = por %p83, %p84
      %p86 = scmp.ne.s32.totalorder %s72, %s73
      %p87 = scmp.eq.s32.totalorder %s16, 5
      %p88 = por %p86, %p87
      %p90 = scmp.ne.s32.totalorder %s73, %s89
      %p91 = scmp.eq.s32.totalorder %s16, 0
      %p92 = por %p90, %p91
      %s94 = sadd.s32 %s93, 1
      %p97 = scmp.eq.s32.totalorder %s10, 5
      %p98 = scmp.ne.s32.totalorder %s93, %s95
      %p99 = scmp.eq.s32.totalorder %s10, 0
      %p100 = por %p98, %p99
      %p101 = scmp.ne.s32.totalorder %s93, %s95
      %p102 = scmp.eq.s32.totalorder %s15, 5
      %p103 = por %p101, %p102
      %p104 = scmp.ne.s32.totalorder %s95, %s96
      %p105 = scmp.eq.s32.totalorder %s15, 0
      %p106 = por %p104, %p105
      %p107 = scmp.ne.s32.totalorder %s95, %s96
      %p108 = scmp.eq.s32.totalorder %s16, 5
      %p109 = por %p107, %p108
      %p111 = scmp.ne.s32.totalorder %s96, %s110
      %p112 = scmp.eq.s32.totalorder %s16, 0
      %p113 = por %p111, %p112
      %s115 = sadd.s32 %s114, 1
      %p118 = scmp.eq.s32.totalorder %s10, 5
      %p119 = scmp.ne.s32.totalorder %s114, %s116
      %p120 = scmp.eq.s32.totalorder %s10, 0
      %p121 = por %p119, %p120
      %p122 = scmp.ne.s32.totalorder %s114, %s116
      %p123 = scmp.eq.s32.totalorder %s15, 5
      %p124 = por %p122, %p123
      %p125 = scmp.ne.s32.totalorder %s116, %s117
      %p126 = scmp.eq.s32.totalorder %s15, 0
      %p127 = por %p125, %p126
      %p128 = scmp.ne.s32.totalorder %s116, %s117
      %p129 = scmp.eq.s32.totalorder %s16, 5
      %p130 = por %p128, %p129
      %p132 = scmp.ne.s32.totalorder %s117, %s131
      %p133 = scmp.eq.s32.totalorder %s16, 0
      %p134 = por %p132, %p133
      %s135 = ssub.s32 %s17, %s36
      %s136 = ssub.s32 %s18, %s32
      %s137 = sor.u32 %s135, %s136
      %p138 = scmp.eq.s32.totalorder %s137, 0
      %s140 = sadd.s32 %s139, 1
      %s141 = scalar_select %p138, %s139, %s140
      %p144 = pneg %p138
      %p145 = scmp.eq.s32.totalorder %s10, 5
      %p146 = por %p144, %p145
      %p147 = scmp.ne.s32.totalorder %s139, %s142
      %p148 = scmp.eq.s32.totalorder %s10, 0
      %p149 = por %p147, %p148
      %p150 = scmp.ne.s32.totalorder %s139, %s142
      %p151 = scmp.eq.s32.totalorder %s15, 5
      %p152 = por %p150, %p151
      %p153 = scmp.ne.s32.totalorder %s142, %s143
      %p154 = scmp.eq.s32.totalorder %s15, 0
      %p155 = por %p153, %p154
      %p156 = scmp.ne.s32.totalorder %s142, %s143
      %p157 = scmp.eq.s32.totalorder %s16, 5
      %p158 = por %p156, %p157
      %p160 = scmp.ne.s32.totalorder %s143, %s159
      %p161 = scmp.eq.s32.totalorder %s16, 0
      %p162 = por %p160, %p161
      %p163 = scmp.le.s32.totalorder 1, %s10
      %p164 = scmp.lt.s32.totalorder %s10, 7
      %p165 = pnand %p163, %p164
      %p166 = pneg %p165
      // Predicated region
      $region9: #{vivit_forward.17} parent=5 // pred_check
        _
      $region10: #{vivit_forward.17} parent=5 // pred_check_branch
        %168 = sbr.rel (%p165) target = $region12
      $region11: #{vivit_forward.17} parent=5 // pred_region
        %s169 = ssub.s32 %s10, 1
        // Predicated region
        $region13: #{vivit_forward.17} parent=11 // pred_check
          %p170 = pneg %p106
        $region14: #{vivit_forward.17} parent=11 // pred_check_branch
          %172 = sbr.rel (%p170) target = $region16
        $region15: #{vivit_forward.17} parent=11 // pred_region
          _
        $region16: #{vivit_forward.17} parent=11 // pred_fallthru
          _
        // Predicated region
        $region17: #{vivit_forward.17} parent=11 // pred_check
          %p173 = pneg %p127
        $region18: #{vivit_forward.17} parent=11 // pred_check_branch
          %175 = sbr.rel (%p173) target = $region20
        $region19: #{vivit_forward.17} parent=11 // pred_region
          _
        $region20: #{vivit_forward.17} parent=11 // pred_fallthru
          _
      $region12: #{vivit_forward.17} parent=5 // pred_fallthru
        _
      %p176 = scmp.lt.s32.totalorder %s10, 6
      // Predicated region
      $region21: #{vivit_forward.17} parent=5 // pred_check
        %p177 = pneg %p176
      $region22: #{vivit_forward.17} parent=5 // pred_check_branch
        %179 = sbr.rel (%p177) target = $region24
      $region23: #{vivit_forward.17} parent=5 // pred_region
        // Predicated region
        $region25: #{vivit_forward.17} parent=23 // pred_check
          %p180 = pneg %p51
        $region26: #{vivit_forward.17} parent=23 // pred_check_branch
          %182 = sbr.rel (%p180) target = $region28
        $region27: #{vivit_forward.17} parent=23 // pred_region
          %s183 = smul.u32 4, %s17
          %p184 = scmp.lt.s32.totalorder %s183, 7
          %s185 = scalar_select %p184, %s183, 7
          %p186 = scmp.lt.s32.totalorder %s19, 0
          %s187 = scalar_select %p186, %s19, 0
          %s188 = sadd.s32 %s187, %s185
          %s189 = smul.addr %s188, 8
          %s190 = scalar_lea.vmem %s0, %s189
          %s191 = smul.u32 4, %s17
        $region28: #{vivit_forward.17} parent=23 // pred_fallthru
          _
        // Predicated region
        $region29: #{vivit_forward.17} parent=23 // pred_check
          %p192 = pneg %p79
        $region30: #{vivit_forward.17} parent=23 // pred_check_branch
          %194 = sbr.rel (%p192) target = $region32
        $region31: #{vivit_forward.17} parent=23 // pred_region
          %s195 = sand.u32 %s69, 1
          %s196 = sand.u32 %s69, 1
          %s197 = smul.addr %s196, 256
          %s198 = scalar_lea.vmem [#allocation4], %s197
          %s199 = smul.u32 16, %s19
          %s200 = smul.u32 2, %s18
          %s201 = smul.addr %s199, 6
          %s202 = sadd.s32 %s200, %s201
          %s203 = smul.addr %s202, 8
          %s204 = scalar_lea.vmem %s1, %s203
          // Predicated region
          $region33: #{vivit_forward.17} parent=31 // pred_check
            _
          $region34: #{vivit_forward.17} parent=31 // pred_check_branch
            %206 = sbr.rel (0) target = $region36
          $region35: #{vivit_forward.17} parent=31 // pred_region
            // Predicated region
            $region37: #{vivit_forward.17} parent=35 // pred_check
              _
            $region38: #{vivit_forward.17} parent=35 // pred_check_branch
              %208 = sbr.rel (0) target = $region40
            $region39: #{vivit_forward.17} parent=35 // pred_region
              loop: start=0, step=1, limit=1
              $region41: #{vivit_forward.17} parent=39 // loop_pre_header
                _
              $region42: #{vivit_forward.17} parent=39 // loop_header
                %s210 = sphi 0, %s214
                %p211 = scmp.ge.s32.totalorder %s210, 1
                %s215 = sphi %s204, %s204
                %s216 = sphi %s198, %s198
              $region43: #{vivit_forward.17} parent=39 // loop_header_branch
                %213 = sbr.rel (%p211) target = $region47
              $region44: #{vivit_forward.17} parent=39 // loop_body
                %v217 = vld [vmem:[%s215] sm:$0xff]
                %218 = vst [vmem:[%s216] sm:$0xff] %v217
                %v219 = vld [vmem:[%s215 + $0x8] sm:$0xff]
                %220 = vst [vmem:[%s216 + $0x8] sm:$0xff] %v219
                %v221 = vld [vmem:[%s215 + $0x30] sm:$0xff]
                %222 = vst [vmem:[%s216 + $0x10] sm:$0xff] %v221
                %v223 = vld [vmem:[%s215 + $0x38] sm:$0xff]
                %224 = vst [vmem:[%s216 + $0x18] sm:$0xff] %v223
                %v225 = vld [vmem:[%s215 + $0x60] sm:$0xff]
                %226 = vst [vmem:[%s216 + $0x20] sm:$0xff] %v225
                %v227 = vld [vmem:[%s215 + $0x68] sm:$0xff]
                %228 = vst [vmem:[%s216 + $0x28] sm:$0xff] %v227
                %v229 = vld [vmem:[%s215 + $0x90] sm:$0xff]
                %230 = vst [vmem:[%s216 + $0x30] sm:$0xff] %v229
                %v231 = vld [vmem:[%s215 + $0x98] sm:$0xff]
                %232 = vst [vmem:[%s216 + $0x38] sm:$0xff] %v231
                %v233 = vld [vmem:[%s215 + $0xc0] sm:$0xff]
                %234 = vst [vmem:[%s216 + $0x40] sm:$0xff] %v233
                %v235 = vld [vmem:[%s215 + $0xc8] sm:$0xff]
                %236 = vst [vmem:[%s216 + $0x48] sm:$0xff] %v235
                %v237 = vld [vmem:[%s215 + $0xf0] sm:$0xff]
                %238 = vst [vmem:[%s216 + $0x50] sm:$0xff] %v237
                %v239 = vld [vmem:[%s215 + $0xf8] sm:$0xff]
                %240 = vst [vmem:[%s216 + $0x58] sm:$0xff] %v239
                %v241 = vld [vmem:[%s215 + $0x120] sm:$0xff]
                %242 = vst [vmem:[%s216 + $0x60] sm:$0xff] %v241
                %v243 = vld [vmem:[%s215 + $0x128] sm:$0xff]
                %244 = vst [vmem:[%s216 + $0x68] sm:$0xff] %v243
                %v245 = vld [vmem:[%s215 + $0x150] sm:$0xff]
                %246 = vst [vmem:[%s216 + $0x70] sm:$0xff] %v245
                %v247 = vld [vmem:[%s215 + $0x158] sm:$0xff]
                %248 = vst [vmem:[%s216 + $0x78] sm:$0xff] %v247
                %v249 = vld [vmem:[%s215 + $0x180] sm:$0xff]
                %250 = vst [vmem:[%s216 + $0x80] sm:$0xff] %v249
                %v251 = vld [vmem:[%s215 + $0x188] sm:$0xff]
                %252 = vst [vmem:[%s216 + $0x88] sm:$0xff] %v251
                %v253 = vld [vmem:[%s215 + $0x1b0] sm:$0xff]
                %254 = vst [vmem:[%s216 + $0x90] sm:$0xff] %v253
                %v255 = vld [vmem:[%s215 + $0x1b8] sm:$0xff]
                %256 = vst [vmem:[%s216 + $0x98] sm:$0xff] %v255
                %v257 = vld [vmem:[%s215 + $0x1e0] sm:$0xff]
                %258 = vst [vmem:[%s216 + $0xa0] sm:$0xff] %v257
                %v259 = vld [vmem:[%s215 + $0x1e8] sm:$0xff]
                %260 = vst [vmem:[%s216 + $0xa8] sm:$0xff] %v259
                %v261 = vld [vmem:[%s215 + $0x210] sm:$0xff]
                %262 = vst [vmem:[%s216 + $0xb0] sm:$0xff] %v261
                %v263 = vld [vmem:[%s215 + $0x218] sm:$0xff]
                %264 = vst [vmem:[%s216 + $0xb8] sm:$0xff] %v263
                %v265 = vld [vmem:[%s215 + $0x240] sm:$0xff]
                %266 = vst [vmem:[%s216 + $0xc0] sm:$0xff] %v265
                %v267 = vld [vmem:[%s215 + $0x248] sm:$0xff]
                %268 = vst [vmem:[%s216 + $0xc8] sm:$0xff] %v267
                %v269 = vld [vmem:[%s215 + $0x270] sm:$0xff]
                %270 = vst [vmem:[%s216 + $0xd0] sm:$0xff] %v269
                %v271 = vld [vmem:[%s215 + $0x278] sm:$0xff]
                %272 = vst [vmem:[%s216 + $0xd8] sm:$0xff] %v271
                %v273 = vld [vmem:[%s215 + $0x2a0] sm:$0xff]
                %274 = vst [vmem:[%s216 + $0xe0] sm:$0xff] %v273
                %v275 = vld [vmem:[%s215 + $0x2a8] sm:$0xff]
                %276 = vst [vmem:[%s216 + $0xe8] sm:$0xff] %v275
                %v277 = vld [vmem:[%s215 + $0x2d0] sm:$0xff]
                %278 = vst [vmem:[%s216 + $0xf0] sm:$0xff] %v277
                %v279 = vld [vmem:[%s215 + $0x2d8] sm:$0xff]
                %280 = vst [vmem:[%s216 + $0xf8] sm:$0xff] %v279
              $region45: #{vivit_forward.17} parent=39 // loop_footer
                %s214 = sadd.s32 1, %s210
              $region46: #{vivit_forward.17} parent=39 // loop_footer_branch
                %209 = sbr.rel target = $region42
              $region47: #{vivit_forward.17} parent=39 // loop_exit
                _
            $region40: #{vivit_forward.17} parent=35 // pred_fallthru
              _
            // Predicated region
            $region48: #{vivit_forward.17} parent=35 // pred_check
              _
            $region49: #{vivit_forward.17} parent=35 // pred_check_branch
              %282 = sbr.rel target = $region51
            $region50: #{vivit_forward.17} parent=35 // pred_region
              _
            $region51: #{vivit_forward.17} parent=35 // pred_fallthru
              _
          $region36: #{vivit_forward.17} parent=31 // pred_fallthru
            _
          %283 = vnop
        $region32: #{vivit_forward.17} parent=23 // pred_fallthru
          _
      $region24: #{vivit_forward.17} parent=5 // pred_fallthru
        _
      %p284 = scmp.le.s32.totalorder 1, %s10
      %p285 = scmp.lt.s32.totalorder %s10, 7
      %p286 = pnand %p284, %p285
      %p287 = pneg %p286
      // Predicated region
      $region52: #{vivit_forward.17} parent=5 // pred_check
        _
      $region53: #{vivit_forward.17} parent=5 // pred_check_branch
        %289 = sbr.rel (%p286) target = $region55
      $region54: #{vivit_forward.17} parent=5 // pred_region
        %s290 = ssub.s32 %s10, 1
        %s291 = sand.u32 %s72, 1
        %s292 = sand.u32 %s72, 1
        %s293 = smul.addr %s292, 256
        %s294 = scalar_lea.vmem [#allocation4], %s293
        // Predicated region
        $region56: #{vivit_forward.17} parent=54 // pred_check
          %p295 = pneg %p85
        $region57: #{vivit_forward.17} parent=54 // pred_check_branch
          %297 = sbr.rel (%p295) target = $region59
        $region58: #{vivit_forward.17} parent=54 // pred_region
          _
        $region59: #{vivit_forward.17} parent=54 // pred_fallthru
          _
        %s298 = smul.u32 4, %s20
        %p299 = scmp.lt.s32.totalorder %s298, 7
        %s300 = scalar_select %p299, %s298, 7
        %p301 = scmp.lt.s32.totalorder %s22, 0
        %s302 = scalar_select %p301, %s22, 0
        %s303 = sadd.s32 %s302, %s300
        %s304 = smul.addr %s303, 8
        %s305 = scalar_lea.vmem %s0, %s304
        %p306 = pneg %p57
        %p307 = pneg %p54
        %s308 = sand.u32 %s72, 1
        %s309 = sand.u32 %s72, 1
        %s310 = smul.addr %s309, 256
        %s311 = scalar_lea.vmem [#allocation4], %s310
        %p312 = pneg %p85
        %p313 = pneg %p82
        %p314 = pneg %p106
        %p315 = pneg %p103
        %p316 = pneg %p127
        %p317 = pneg %p124
        %p318 = pneg %p155
        %p319 = pneg %p152
        %s320 = sand.u32 %s142, 1
        %s321 = sand.u32 %s142, 1
        %s322 = smul.addr %s321, 64
        %s323 = scalar_lea.vmem [#allocation5], %s322
        %s324 = smul.u32 4, %s20
        %p325 = scmp.lt.s32.totalorder %s324, 7
        %s326 = scalar_select %p325, %s324, 7
        %p327 = scmp.lt.s32.totalorder %s22, 0
        %s328 = scalar_select %p327, %s22, 0
        %s329 = sadd.s32 %s328, %s326
        %s330 = smul.addr %s329, 8
        %s331 = scalar_lea.vmem %s0, %s330
        %s332 = smul.u32 4, %s20
        %s333 = smul.u32 16, %s22
        %s334 = smul.u32 2, %s21
        %s335 = smul.u32 4, %s20
        %s336 = smul.u32 2, %s21
        %p338 = scmp.eq.s32.totalorder %s22, 0
        // Predicated region
        $region60: #{vivit_forward.17} parent=54 // pred_check
          %p339 = pneg %p338
        $region61: #{vivit_forward.17} parent=54 // pred_check_branch
          %341 = sbr.rel (%p339) target = $region63
        $region62: #{vivit_forward.17} parent=54 // pred_region
          %342 = vst [vmem:[#allocation2] sm:$0xff] 0.0
          %343 = vst [vmem:[#allocation2 + $0x8] sm:$0xff] 0.0
          %344 = vst [vmem:[#allocation2 + $0x10] sm:$0xff] 0.0
          %345 = vst [vmem:[#allocation2 + $0x18] sm:$0xff] 0.0
          %346 = vst [vmem:[#allocation2 + $0x20] sm:$0xff] 0.0
          %347 = vst [vmem:[#allocation2 + $0x28] sm:$0xff] 0.0
          %348 = vst [vmem:[#allocation2 + $0x30] sm:$0xff] 0.0
          %349 = vst [vmem:[#allocation2 + $0x38] sm:$0xff] 0.0
        $region63: #{vivit_forward.17} parent=54 // pred_fallthru
          _
        %p350 = scmp.eq.s32.totalorder %s21, 0
        // Predicated region
        $region64: #{vivit_forward.17} parent=54 // pred_check
          %p351 = pneg %p350
        $region65: #{vivit_forward.17} parent=54 // pred_check_branch
          %353 = sbr.rel (%p351) target = $region67
        $region66: #{vivit_forward.17} parent=54 // pred_region
          %v354 = vld [vmem:[%s331] sm:$0xff]
          %v355 = vld [vmem:[%s331 + $0x8] sm:$0xff]
          %v356 = vld [vmem:[%s331 + $0x10] sm:$0xff]
          %v357 = vld [vmem:[%s331 + $0x18] sm:$0xff]
          %358 = vadd.xlane.f32.xlu0 %v354
          %v359 = vpop.xlane.xlu0 %358
          %360 = vadd.xlane.f32.xlu0 %v355
          %v361 = vpop.xlane.xlu0 %360
          %362 = vadd.xlane.f32.xlu0 %v356
          %v363 = vpop.xlane.xlu0 %362
          %364 = vadd.xlane.f32.xlu0 %v357
          %v365 = vpop.xlane.xlu0 %364
          %v366 = vrcp.pop 128.0
          %v367 = vmul.f32 %v359, %v366
          %v368 = vmul.f32 %v361, %v366
          %v369 = vmul.f32 %v363, %v366
          %v370 = vmul.f32 %v365, %v366
          %v371 = vsub.f32 %v354, %v367
          %v372 = vsub.f32 %v355, %v368
          %v373 = vsub.f32 %v356, %v369
          %v374 = vsub.f32 %v357, %v370
          %v375 = vmul.f32 %v371, %v371
          %v376 = vmul.f32 %v372, %v372
          %v377 = vmul.f32 %v373, %v373
          %v378 = vmul.f32 %v374, %v374
          %379 = vadd.xlane.f32.xlu0 %v375
          %v380 = vpop.xlane.xlu0 %379
          %381 = vadd.xlane.f32.xlu0 %v376
          %v382 = vpop.xlane.xlu0 %381
          %383 = vadd.xlane.f32.xlu0 %v377
          %v384 = vpop.xlane.xlu0 %383
          %385 = vadd.xlane.f32.xlu0 %v378
          %v386 = vpop.xlane.xlu0 %385
          %v387 = vmul.f32 %v380, %v366
          %v388 = vmul.f32 %v382, %v366
          %v389 = vmul.f32 %v384, %v366
          %v390 = vmul.f32 %v386, %v366
          %v391 = vadd.f32 %v387, 1e-05
          %v392 = vadd.f32 %v388, 1e-05
          %v393 = vadd.f32 %v389, 1e-05
          %v394 = vadd.f32 %v390, 1e-05
          %v395 = vrsqrt.pop %v391
          %v396 = vrsqrt.pop %v392
          %v397 = vrsqrt.pop %v393
          %v398 = vrsqrt.pop %v394
          %v399 = vmul.f32 %v371, %v395
          %v400 = vmul.f32 %v372, %v396
          %v401 = vmul.f32 %v373, %v397
          %v402 = vmul.f32 %v374, %v398
          %v403 = vld [vmem:[%s2] sm:$0x1]
          %v405 = vlaneseq
          %v406 = vshrl.u32 %v405, 7
          %v407 = vsub.s32 0, %v406
          %v408 = vrot.slane %v403, %v407
          %v410 = vmul.f32 %v399, %v408
          %v411 = vmul.f32 %v400, %v408
          %v412 = vmul.f32 %v401, %v408
          %v413 = vmul.f32 %v402, %v408
          %v414 = vld [vmem:[%s3] sm:$0x1]
          %v416 = vlaneseq
          %v417 = vshrl.u32 %v416, 7
          %v418 = vsub.s32 0, %v417
          %v419 = vrot.slane %v414, %v418
          %v421 = vadd.f32 %v410, %v419
          %v422 = vadd.f32 %v411, %v419
          %v423 = vadd.f32 %v412, %v419
          %v424 = vadd.f32 %v413, %v419
          %425 = vst [vmem:[#allocation3] sm:$0xff] %v421
          %426 = vst [vmem:[#allocation3 + $0x8] sm:$0xff] %v422
          %427 = vst [vmem:[#allocation3 + $0x10] sm:$0xff] %v423
          %428 = vst [vmem:[#allocation3 + $0x18] sm:$0xff] %v424
        $region67: #{vivit_forward.17} parent=54 // pred_fallthru
          _
        %v429 = vld [vmem:[#allocation3] sm:$0xff]
        %v430 = vld [vmem:[#allocation3 + $0x8] sm:$0xff]
        %v431 = vld [vmem:[#allocation3 + $0x10] sm:$0xff]
        %v432 = vld [vmem:[#allocation3 + $0x18] sm:$0xff]
        %v433 = vld [vmem:[#allocation2] sm:$0xff]
        %v434 = vld [vmem:[#allocation2 + $0x8] sm:$0xff]
        %v435 = vld [vmem:[#allocation2 + $0x10] sm:$0xff]
        %v436 = vld [vmem:[#allocation2 + $0x18] sm:$0xff]
        %v437 = vld [vmem:[#allocation2 + $0x20] sm:$0xff]
        %v438 = vld [vmem:[#allocation2 + $0x28] sm:$0xff]
        %v439 = vld [vmem:[#allocation2 + $0x30] sm:$0xff]
        %v440 = vld [vmem:[#allocation2 + $0x38] sm:$0xff]
        %v441 = vpack.c.bf16 %v430, %v429
        %v442 = vpack.c.bf16 %v432, %v431
        %v443 = vld [vmem:[%s294] sm:$0xff]
        %v444 = vld [vmem:[%s294 + $0x8] sm:$0xff]
        %v445 = vld [vmem:[%s294 + $0x10] sm:$0xff]
        %v446 = vld [vmem:[%s294 + $0x18] sm:$0xff]
        %v447 = vld [vmem:[%s294 + $0x20] sm:$0xff]
        %v448 = vld [vmem:[%s294 + $0x28] sm:$0xff]
        %v449 = vld [vmem:[%s294 + $0x30] sm:$0xff]
        %v450 = vld [vmem:[%s294 + $0x38] sm:$0xff]
        %v451 = vld [vmem:[%s294 + $0x40] sm:$0xff]
        %v452 = vld [vmem:[%s294 + $0x48] sm:$0xff]
        %v453 = vld [vmem:[%s294 + $0x50] sm:$0xff]
        %v454 = vld [vmem:[%s294 + $0x58] sm:$0xff]
        %v455 = vld [vmem:[%s294 + $0x60] sm:$0xff]
        %v456 = vld [vmem:[%s294 + $0x68] sm:$0xff]
        %v457 = vld [vmem:[%s294 + $0x70] sm:$0xff]
        %v458 = vld [vmem:[%s294 + $0x78] sm:$0xff]
        %v459 = vld [vmem:[%s294 + $0x80] sm:$0xff]
        %v460 = vld [vmem:[%s294 + $0x88] sm:$0xff]
        %v461 = vld [vmem:[%s294 + $0x90] sm:$0xff]
        %v462 = vld [vmem:[%s294 + $0x98] sm:$0xff]
        %v463 = vld [vmem:[%s294 + $0xa0] sm:$0xff]
        %v464 = vld [vmem:[%s294 + $0xa8] sm:$0xff]
        %v465 = vld [vmem:[%s294 + $0xb0] sm:$0xff]
        %v466 = vld [vmem:[%s294 + $0xb8] sm:$0xff]
        %v467 = vld [vmem:[%s294 + $0xc0] sm:$0xff]
        %v468 = vld [vmem:[%s294 + $0xc8] sm:$0xff]
        %v469 = vld [vmem:[%s294 + $0xd0] sm:$0xff]
        %v470 = vld [vmem:[%s294 + $0xd8] sm:$0xff]
        %v471 = vld [vmem:[%s294 + $0xe0] sm:$0xff]
        %v472 = vld [vmem:[%s294 + $0xe8] sm:$0xff]
        %v473 = vld [vmem:[%s294 + $0xf0] sm:$0xff]
        %v474 = vld [vmem:[%s294 + $0xf8] sm:$0xff]
        %v475 = vpack.c.bf16 %v445, %v443
        %v476 = vpack.c.bf16 %v446, %v444
        %v477 = vpack.c.bf16 %v449, %v447
        %v478 = vpack.c.bf16 %v450, %v448
        %v479 = vpack.c.bf16 %v453, %v451
        %v480 = vpack.c.bf16 %v454, %v452
        %v481 = vpack.c.bf16 %v457, %v455
        %v482 = vpack.c.bf16 %v458, %v456
        %v483 = vpack.c.bf16 %v461, %v459
        %v484 = vpack.c.bf16 %v462, %v460
        %v485 = vpack.c.bf16 %v465, %v463
        %v486 = vpack.c.bf16 %v466, %v464
        %v487 = vpack.c.bf16 %v469, %v467
        %v488 = vpack.c.bf16 %v470, %v468
        %v489 = vpack.c.bf16 %v473, %v471
        %v490 = vpack.c.bf16 %v474, %v472
        %491 = vmatprep.subr.bf16.mxu0 %v476
        %492 = vmatpush1.bf16.msra.mxu0 %v475
        %493 = vmatprep.subr.bf16.mxu0 %v478
        %494 = vmatpush1.bf16.msra.mxu0 %v477
        %495 = vmatprep.subr.bf16.mxu0 %v480
        %496 = vmatpush1.bf16.msra.mxu0 %v479
        %497 = vmatprep.subr.bf16.mxu0 %v482
        %498 = vmatpush1.bf16.msra.mxu0 %v481
        %499 = vmatprep.subr.bf16.mxu0 %v484
        %500 = vmatpush1.bf16.msra.mxu0 %v483
        %501 = vmatprep.subr.bf16.mxu0 %v486
        %502 = vmatpush1.bf16.msra.mxu0 %v485
        %503 = vmatprep.subr.bf16.mxu0 %v488
        %504 = vmatpush1.bf16.msra.mxu0 %v487
        %505 = vmatprep.subr.bf16.mxu0 %v490
        %506 = vmatpush1.bf16.msra.mxu0 %v489
        %507 = vmatprep.subr.bf16.mxu0 0
        %508 = vmatpush1.bf16.msra.mxu0 0
        %509 = vmatprep.subr.bf16.mxu0 0
        %510 = vmatpush1.bf16.msra.mxu0 0
        %511 = vmatprep.subr.bf16.mxu0 0
        %512 = vmatpush1.bf16.msra.mxu0 0
        %513 = vmatprep.subr.bf16.mxu0 0
        %514 = vmatpush1.bf16.msra.mxu0 0
        %515 = vmatprep.subr.bf16.mxu0 0
        %516 = vmatpush1.bf16.msra.mxu0 0
        %517 = vmatprep.subr.bf16.mxu0 0
        %518 = vmatpush1.bf16.msra.mxu0 0
        %519 = vmatprep.subr.bf16.mxu0 0
        %520 = vmatpush1.bf16.msra.mxu0 0
        %521 = vmatprep.subr.bf16.mxu0 0
        %522 = vmatpush1.bf16.msra.mxu0 0
        %523 = vmatprep.mubr.bf16.mxu0 0
        %524 = vmatmul.mubr.bf16.gmra.mrb[0].mxu0 %v441
        %v525 = vpop.f32.mrb[0].mxu0
        %v526 = vadd.f32 0.0, %v525
        %v527 = vpop.f32.mrb[0].mxu0
        %v528 = vadd.f32 0.0, %v527
        %v529 = vpop.f32.mrb[0].mxu0
        %v530 = vadd.f32 0.0, %v529
        %v531 = vpop.f32.mrb[0].mxu0
        %v532 = vadd.f32 0.0, %v531
        %533 = vmatprep.mubr.bf16.mxu0 0
        %534 = vmatmul.mubr.bf16.gmra.mrb[0].mxu0 %v442
        %v535 = vpop.f32.mrb[0].mxu0
        %v536 = vadd.f32 0.0, %v535
        %v537 = vpop.f32.mrb[0].mxu0
        %v538 = vadd.f32 0.0, %v537
        %v539 = vpop.f32.mrb[0].mxu0
        %v540 = vadd.f32 0.0, %v539
        %v541 = vpop.f32.mrb[0].mxu0
        %v542 = vadd.f32 0.0, %v541
        %543 = vdwg.mxu0
        %v544 = vadd.f32 %v433, %v526
        %v545 = vadd.f32 %v434, %v528
        %v546 = vadd.f32 %v435, %v530
        %v547 = vadd.f32 %v436, %v532
        %v548 = vadd.f32 %v437, %v536
        %v549 = vadd.f32 %v438, %v538
        %v550 = vadd.f32 %v439, %v540
        %v551 = vadd.f32 %v440, %v542
        %552 = vst [vmem:[#allocation2] sm:$0xff] %v544
        %553 = vst [vmem:[#allocation2 + $0x8] sm:$0xff] %v545
        %554 = vst [vmem:[#allocation2 + $0x10] sm:$0xff] %v546
        %555 = vst [vmem:[#allocation2 + $0x18] sm:$0xff] %v547
        %556 = vst [vmem:[#allocation2 + $0x20] sm:$0xff] %v548
        %557 = vst [vmem:[#allocation2 + $0x28] sm:$0xff] %v549
        %558 = vst [vmem:[#allocation2 + $0x30] sm:$0xff] %v550
        %559 = vst [vmem:[#allocation2 + $0x38] sm:$0xff] %v551
        // Predicated region
        $region68: #{vivit_forward.17} parent=54 // pred_check
          %p560 = pneg %p338
        $region69: #{vivit_forward.17} parent=54 // pred_check_branch
          %562 = sbr.rel (%p560) target = $region71
        $region70: #{vivit_forward.17} parent=54 // pred_region
          %v563 = vld [vmem:[#allocation2] sm:$0xff]
          %v564 = vld [vmem:[#allocation2 + $0x8] sm:$0xff]
          %v565 = vld [vmem:[#allocation2 + $0x10] sm:$0xff]
          %v566 = vld [vmem:[#allocation2 + $0x18] sm:$0xff]
          %v567 = vld [vmem:[#allocation2 + $0x20] sm:$0xff]
          %v568 = vld [vmem:[#allocation2 + $0x28] sm:$0xff]
          %v569 = vld [vmem:[#allocation2 + $0x30] sm:$0xff]
          %v570 = vld [vmem:[#allocation2 + $0x38] sm:$0xff]
          %571 = vst [vmem:[%s323] sm:$0xff] %v563
          %572 = vst [vmem:[%s323 + $0x8] sm:$0xff] %v564
          %573 = vst [vmem:[%s323 + $0x10] sm:$0xff] %v565
          %574 = vst [vmem:[%s323 + $0x18] sm:$0xff] %v566
          %575 = vst [vmem:[%s323 + $0x20] sm:$0xff] %v567
          %576 = vst [vmem:[%s323 + $0x28] sm:$0xff] %v568
          %577 = vst [vmem:[%s323 + $0x30] sm:$0xff] %v569
          %578 = vst [vmem:[%s323 + $0x38] sm:$0xff] %v570
        $region71: #{vivit_forward.17} parent=54 // pred_fallthru
          _
        %s579 = sand.u32 %s142, 1
        %s580 = sand.u32 %s142, 1
        %s581 = smul.addr %s580, 64
        %s582 = scalar_lea.vmem [#allocation5], %s581
        // Predicated region
        $region72: #{vivit_forward.17} parent=54 // pred_check
          %p583 = pneg %p152
        $region73: #{vivit_forward.17} parent=54 // pred_check_branch
          %585 = sbr.rel (%p583) target = $region75
        $region74: #{vivit_forward.17} parent=54 // pred_region
          %s586 = smul.u32 4, %s20
          %s587 = smul.u32 2, %s21
          %s588 = smul.addr %s586, 6
          %s589 = sadd.s32 %s587, %s588
          %s590 = smul.addr %s589, 8
          %s591 = scalar_lea.vmem %s4, %s590
          // Predicated region
          $region76: #{vivit_forward.17} parent=74 // pred_check
            _
          $region77: #{vivit_forward.17} parent=74 // pred_check_branch
            %593 = sbr.rel (0) target = $region79
          $region78: #{vivit_forward.17} parent=74 // pred_region
            // Predicated region
            $region80: #{vivit_forward.17} parent=78 // pred_check
              _
            $region81: #{vivit_forward.17} parent=78 // pred_check_branch
              %595 = sbr.rel (0) target = $region83
            $region82: #{vivit_forward.17} parent=78 // pred_region
              loop: start=0, step=1, limit=1
              $region84: #{vivit_forward.17} parent=82 // loop_pre_header
                _
              $region85: #{vivit_forward.17} parent=82 // loop_header
                %s597 = sphi 0, %s601
                %p598 = scmp.ge.s32.totalorder %s597, 1
                %s602 = sphi %s582, %s582
                %s603 = sphi %s591, %s591
              $region86: #{vivit_forward.17} parent=82 // loop_header_branch
                %600 = sbr.rel (%p598) target = $region90
              $region87: #{vivit_forward.17} parent=82 // loop_body
                %v604 = vld [vmem:[%s602] sm:$0xff]
                %605 = vst [vmem:[%s603] sm:$0xff] %v604
                %v606 = vld [vmem:[%s602 + $0x8] sm:$0xff]
                %607 = vst [vmem:[%s603 + $0x8] sm:$0xff] %v606
                %v608 = vld [vmem:[%s602 + $0x10] sm:$0xff]
                %609 = vst [vmem:[%s603 + $0x30] sm:$0xff] %v608
                %v610 = vld [vmem:[%s602 + $0x18] sm:$0xff]
                %611 = vst [vmem:[%s603 + $0x38] sm:$0xff] %v610
                %v612 = vld [vmem:[%s602 + $0x20] sm:$0xff]
                %613 = vst [vmem:[%s603 + $0x60] sm:$0xff] %v612
                %v614 = vld [vmem:[%s602 + $0x28] sm:$0xff]
                %615 = vst [vmem:[%s603 + $0x68] sm:$0xff] %v614
                %v616 = vld [vmem:[%s602 + $0x30] sm:$0xff]
                %617 = vst [vmem:[%s603 + $0x90] sm:$0xff] %v616
                %v618 = vld [vmem:[%s602 + $0x38] sm:$0xff]
                %619 = vst [vmem:[%s603 + $0x98] sm:$0xff] %v618
              $region88: #{vivit_forward.17} parent=82 // loop_footer
                %s601 = sadd.s32 1, %s597
              $region89: #{vivit_forward.17} parent=82 // loop_footer_branch
                %596 = sbr.rel target = $region85
              $region90: #{vivit_forward.17} parent=82 // loop_exit
                _
            $region83: #{vivit_forward.17} parent=78 // pred_fallthru
              _
            // Predicated region
            $region91: #{vivit_forward.17} parent=78 // pred_check
              _
            $region92: #{vivit_forward.17} parent=78 // pred_check_branch
              %621 = sbr.rel target = $region94
            $region93: #{vivit_forward.17} parent=78 // pred_region
              _
            $region94: #{vivit_forward.17} parent=78 // pred_fallthru
              _
          $region79: #{vivit_forward.17} parent=74 // pred_fallthru
            _
          %622 = vnop
        $region75: #{vivit_forward.17} parent=54 // pred_fallthru
          _
      $region55: #{vivit_forward.17} parent=5 // pred_fallthru
        _
      %p623 = scmp.le.s32.totalorder 2, %s10
      // Predicated region
      $region95: #{vivit_forward.17} parent=5 // pred_check
        %p624 = pneg %p623
      $region96: #{vivit_forward.17} parent=5 // pred_check_branch
        %626 = sbr.rel (%p624) target = $region98
      $region97: #{vivit_forward.17} parent=5 // pred_region
        %s627 = ssub.s32 %s10, 2
        // Predicated region
        $region99: #{vivit_forward.17} parent=97 // pred_check
          %p628 = pneg %p158
        $region100: #{vivit_forward.17} parent=97 // pred_check_branch
          %630 = sbr.rel (%p628) target = $region102
        $region101: #{vivit_forward.17} parent=97 // pred_region
          %s631 = sand.u32 %s143, 1
          %s632 = sand.u32 %s143, 1
          %s633 = smul.addr %s632, 64
          %s634 = scalar_lea.vmem [#allocation5], %s633
        $region102: #{vivit_forward.17} parent=97 // pred_fallthru
          _
      $region98: #{vivit_forward.17} parent=5 // pred_fallthru
        _
    $region6: #{vivit_forward.17} parent=1 // loop_footer
      %s14 = sadd.s32 1, %s10
    $region7: #{vivit_forward.17} parent=1 // loop_footer_branch
      %9 = sbr.rel target = $region3
    $region8: #{vivit_forward.17} parent=1 // loop_exit
      _

// kernel: vivit_forward.18
$region0: #{vivit_forward.18}
  #allocation0 [shape = 'u32[]', space=smem, size = 0x4, offset = 0x4, fixed_abs, tag = 'smem constant byte address 0x4 - core index']
  #allocation1 [shape = 'u32[144,128]{1,0:T(1,128)}', space=vmem, size = 0x12000, scoped, tag = 'internal scratch']
  %s0 = inlined_call_operand.vmem [shape: f32[4,16,768], index: 0, kind: input, shape index: {}, may-alias: {0,1,2}]
  %s1 = inlined_call_operand.vmem [shape: f32[4,16,768], index: 1, kind: input, shape index: {}, may-alias: {0,1,2}]
  %s2 = inlined_call_operand.vmem [shape: f32[4,16,768], index: 2, kind: input, shape index: {}, may-alias: {0,1,2}]
  %s3 = inlined_call_operand.vmem [shape: f32[4,16,128], index: 3, kind: output, shape index: {}]
  %s4 = sld [smem:[#allocation0]]
  $region159: #{vivit_forward.18} parent=0
    _
  %s6 = ssub.s32 1, %s4
  %s7 = scalar_select 0, %s6, %s4
  $region1: #{vivit_forward.18} parent=0
    #allocation2 [shape = 'u8[32768]{0}', space=vmem, size = 0x8000, scoped, tag = 'input window, operand 0']
    #allocation3 [shape = 'u8[32768]{0}', space=vmem, size = 0x8000, scoped, tag = 'input window, operand 1']
    #allocation4 [shape = 'u8[32768]{0}', space=vmem, size = 0x8000, scoped, tag = 'input window, operand 2']
    loop: start=0, step=1, limit=4
    $region2: #{vivit_forward.18} parent=1 // loop_pre_header
      _
    $region3: #{vivit_forward.18} parent=1 // loop_header
      %s9 = sphi 0, %s13
      %p10 = scmp.ge.s32.totalorder %s9, 4
      %s19 = sphi 0, %s21
      %s22 = sphi 0, %s19
      %s23 = sphi 0, %s22
      %s39 = sphi 0, %s23
      %s45 = sphi 0, %s47
      %s48 = sphi 0, %s45
      %s49 = sphi 0, %s48
      %s65 = sphi 0, %s49
      %s71 = sphi 0, %s73
      %s74 = sphi 0, %s71
      %s75 = sphi 0, %s74
      %s91 = sphi 0, %s75
      %s97 = sphi 0, %s99
      %s100 = sphi 0, %s97
      %s101 = sphi 0, %s100
      %s117 = sphi 0, %s101
    $region4: #{vivit_forward.18} parent=1 // loop_header_branch
      %12 = sbr.rel (%p10) target = $region8
    $region5: #{vivit_forward.18} parent=1 // loop_body
      %s14 = ssub.s32 %s9, 1
      %s15 = ssub.s32 %s9, 2
      %s16 = sadd.s32 %s9, 1
      %s17 = ssub.s32 %s9, %s16
      %p18 = scmp.eq.s32.totalorder %s17, 0
      %s20 = sadd.s32 %s19, 1
      %s21 = scalar_select %p18, %s19, %s20
      %p24 = pneg %p18
      %p25 = scmp.eq.s32.totalorder %s9, 1
      %p26 = por %p24, %p25
      %p27 = scmp.ne.s32.totalorder %s19, %s22
      %p28 = scmp.eq.s32.totalorder %s9, 0
      %p29 = por %p27, %p28
      %p30 = scmp.ne.s32.totalorder %s19, %s22
      %p31 = scmp.eq.s32.totalorder %s14, 1
      %p32 = por %p30, %p31
      %p33 = scmp.ne.s32.totalorder %s22, %s23
      %p34 = scmp.eq.s32.totalorder %s14, 0
      %p35 = por %p33, %p34
      %p36 = scmp.ne.s32.totalorder %s22, %s23
      %p37 = scmp.eq.s32.totalorder %s15, 1
      %p38 = por %p36, %p37
      %p40 = scmp.ne.s32.totalorder %s23, %s39
      %p41 = scmp.eq.s32.totalorder %s15, 0
      %p42 = por %p40, %p41
      %s43 = ssub.s32 %s9, %s16
      %p44 = scmp.eq.s32.totalorder %s43, 0
      %s46 = sadd.s32 %s45, 1
      %s47 = scalar_select %p44, %s45, %s46
      %p50 = pneg %p44
      %p51 = scmp.eq.s32.totalorder %s9, 1
      %p52 = por %p50, %p51
      %p53 = scmp.ne.s32.totalorder %s45, %s48
      %p54 = scmp.eq.s32.totalorder %s9, 0
      %p55 = por %p53, %p54
      %p56 = scmp.ne.s32.totalorder %s45, %s48
      %p57 = scmp.eq.s32.totalorder %s14, 1
      %p58 = por %p56, %p57
      %p59 = scmp.ne.s32.totalorder %s48, %s49
      %p60 = scmp.eq.s32.totalorder %s14, 0
      %p61 = por %p59, %p60
      %p62 = scmp.ne.s32.totalorder %s48, %s49
      %p63 = scmp.eq.s32.totalorder %s15, 1
      %p64 = por %p62, %p63
      %p66 = scmp.ne.s32.totalorder %s49, %s65
      %p67 = scmp.eq.s32.totalorder %s15, 0
      %p68 = por %p66, %p67
      %s69 = ssub.s32 %s9, %s16
      %p70 = scmp.eq.s32.totalorder %s69, 0
      %s72 = sadd.s32 %s71, 1
      %s73 = scalar_select %p70, %s71, %s72
      %p76 = pneg %p70
      %p77 = scmp.eq.s32.totalorder %s9, 1
      %p78 = por %p76, %p77
      %p79 = scmp.ne.s32.totalorder %s71, %s74
      %p80 = scmp.eq.s32.totalorder %s9, 0
      %p81 = por %p79, %p80
      %p82 = scmp.ne.s32.totalorder %s71, %s74
      %p83 = scmp.eq.s32.totalorder %s14, 1
      %p84 = por %p82, %p83
      %p85 = scmp.ne.s32.totalorder %s74, %s75
      %p86 = scmp.eq.s32.totalorder %s14, 0
      %p87 = por %p85, %p86
      %p88 = scmp.ne.s32.totalorder %s74, %s75
      %p89 = scmp.eq.s32.totalorder %s15, 1
      %p90 = por %p88, %p89
      %p92 = scmp.ne.s32.totalorder %s75, %s91
      %p93 = scmp.eq.s32.totalorder %s15, 0
      %p94 = por %p92, %p93
      %s95 = ssub.s32 %s9, %s16
      %p96 = scmp.eq.s32.totalorder %s95, 0
      %s98 = sadd.s32 %s97, 1
      %s99 = scalar_select %p96, %s97, %s98
      %p102 = pneg %p96
      %p103 = scmp.eq.s32.totalorder %s9, 1
      %p104 = por %p102, %p103
      %p105 = scmp.ne.s32.totalorder %s97, %s100
      %p106 = scmp.eq.s32.totalorder %s9, 0
      %p107 = por %p105, %p106
      %p108 = scmp.ne.s32.totalorder %s97, %s100
      %p109 = scmp.eq.s32.totalorder %s14, 1
      %p110 = por %p108, %p109
      %p111 = scmp.ne.s32.totalorder %s100, %s101
      %p112 = scmp.eq.s32.totalorder %s14, 0
      %p113 = por %p111, %p112
      %p114 = scmp.ne.s32.totalorder %s100, %s101
      %p115 = scmp.eq.s32.totalorder %s15, 1
      %p116 = por %p114, %p115
      %p118 = scmp.ne.s32.totalorder %s101, %s117
      %p119 = scmp.eq.s32.totalorder %s15, 0
      %p120 = por %p118, %p119
      %p121 = scmp.le.s32.totalorder 1, %s9
      %p122 = scmp.lt.s32.totalorder %s9, 3
      %p123 = pnand %p121, %p122
      %p124 = pneg %p123
      // Predicated region
      $region9: #{vivit_forward.18} parent=5 // pred_check
        _
      $region10: #{vivit_forward.18} parent=5 // pred_check_branch
        %126 = sbr.rel (%p123) target = $region12
      $region11: #{vivit_forward.18} parent=5 // pred_region
        %s127 = ssub.s32 %s9, 1
      $region12: #{vivit_forward.18} parent=5 // pred_fallthru
        _
      %p128 = scmp.lt.s32.totalorder %s9, 2
      // Predicated region
      $region13: #{vivit_forward.18} parent=5 // pred_check
        %p129 = pneg %p128
      $region14: #{vivit_forward.18} parent=5 // pred_check_branch
        %131 = sbr.rel (%p129) target = $region16
      $region15: #{vivit_forward.18} parent=5 // pred_region
        // Predicated region
        $region17: #{vivit_forward.18} parent=15 // pred_check
          %p132 = pneg %p29
        $region18: #{vivit_forward.18} parent=15 // pred_check_branch
          %134 = sbr.rel (%p132) target = $region20
        $region19: #{vivit_forward.18} parent=15 // pred_region
          %s135 = sand.u32 %s19, 1
          %s136 = sand.u32 %s19, 1
          %s137 = smul.addr %s136, 32
          %s138 = scalar_lea.vmem [#allocation2], %s137
          %s139 = smul.u32 2, %s9
          %s140 = smul.addr %s139, 12
          %s141 = smul.addr %s140, 8
          %s142 = scalar_lea.vmem %s0, %s141
          // Predicated region
          $region21: #{vivit_forward.18} parent=19 // pred_check
            _
          $region22: #{vivit_forward.18} parent=19 // pred_check_branch
            %144 = sbr.rel (0) target = $region24
          $region23: #{vivit_forward.18} parent=19 // pred_region
            // Predicated region
            $region25: #{vivit_forward.18} parent=23 // pred_check
              _
            $region26: #{vivit_forward.18} parent=23 // pred_check_branch
              %146 = sbr.rel (0) target = $region28
            $region27: #{vivit_forward.18} parent=23 // pred_region
              // Predicated region
              $region40: #{vivit_forward.18} parent=27 // pred_check
                _
              $region41: #{vivit_forward.18} parent=27 // pred_check_branch
                %167 = sbr.rel (0) target = $region43
              $region42: #{vivit_forward.18} parent=27 // pred_region
                loop: start=0, step=1, limit=1
                $region44: #{vivit_forward.18} parent=42 // loop_pre_header
                  _
                $region45: #{vivit_forward.18} parent=42 // loop_header
                  %s169 = sphi 0, %s173
                  %p170 = scmp.ge.s32.totalorder %s169, 1
                  %s174 = sphi %s142, %s142
                  %s175 = sphi %s138, %s138
                $region46: #{vivit_forward.18} parent=42 // loop_header_branch
                  %172 = sbr.rel (%p170) target = $region50
                $region47: #{vivit_forward.18} parent=42 // loop_body
                  %v176 = vld [vmem:[%s174] sm:$0xff]
                  %177 = vst [vmem:[%s175] sm:$0xff] %v176
                  %v178 = vld [vmem:[%s174 + $0x30] sm:$0xff]
                  %179 = vst [vmem:[%s175 + $0x8] sm:$0xff] %v178
                  %v180 = vld [vmem:[%s174 + $0x60] sm:$0xff]
                  %181 = vst [vmem:[%s175 + $0x10] sm:$0xff] %v180
                  %v182 = vld [vmem:[%s174 + $0x90] sm:$0xff]
                  %183 = vst [vmem:[%s175 + $0x18] sm:$0xff] %v182
                $region48: #{vivit_forward.18} parent=42 // loop_footer
                  %s173 = sadd.s32 1, %s169
                $region49: #{vivit_forward.18} parent=42 // loop_footer_branch
                  %168 = sbr.rel target = $region45
                $region50: #{vivit_forward.18} parent=42 // loop_exit
                  _
              $region43: #{vivit_forward.18} parent=27 // pred_fallthru
                _
              // Predicated region
              $region51: #{vivit_forward.18} parent=27 // pred_check
                _
              $region52: #{vivit_forward.18} parent=27 // pred_check_branch
                %185 = sbr.rel target = $region54
              $region53: #{vivit_forward.18} parent=27 // pred_region
                _
              $region54: #{vivit_forward.18} parent=27 // pred_fallthru
                _
            $region28: #{vivit_forward.18} parent=23 // pred_fallthru
              _
            // Predicated region
            $region29: #{vivit_forward.18} parent=23 // pred_check
              _
            $region30: #{vivit_forward.18} parent=23 // pred_check_branch
              %148 = sbr.rel target = $region32
            $region31: #{vivit_forward.18} parent=23 // pred_region
              loop: start=0, step=1, limit=1
              $region33: #{vivit_forward.18} parent=31 // loop_pre_header
                _
              $region34: #{vivit_forward.18} parent=31 // loop_header
                %s151 = sphi 0, %s155
                %p152 = scmp.ge.s32.totalorder %s151, 1
                %s156 = sphi %s142, %s142
                %s157 = sphi %s138, %s138
              $region35: #{vivit_forward.18} parent=31 // loop_header_branch
                %154 = sbr.rel (%p152) target = $region39
              $region36: #{vivit_forward.18} parent=31 // loop_body
                %v158 = vld [vmem:[%s156] sm:$0xff]
                %159 = vst [vmem:[%s157] sm:$0xff] %v158
                %v160 = vld [vmem:[%s156 + $0x30] sm:$0xff]
                %161 = vst [vmem:[%s157 + $0x8] sm:$0xff] %v160
                %v162 = vld [vmem:[%s156 + $0x60] sm:$0xff]
                %163 = vst [vmem:[%s157 + $0x10] sm:$0xff] %v162
                %v164 = vld [vmem:[%s156 + $0x90] sm:$0xff]
                %165 = vst [vmem:[%s157 + $0x18] sm:$0xff] %v164
              $region37: #{vivit_forward.18} parent=31 // loop_footer
                %s155 = sadd.s32 1, %s151
              $region38: #{vivit_forward.18} parent=31 // loop_footer_branch
                %150 = sbr.rel target = $region34
              $region39: #{vivit_forward.18} parent=31 // loop_exit
                _
            $region32: #{vivit_forward.18} parent=23 // pred_fallthru
              _
          $region24: #{vivit_forward.18} parent=19 // pred_fallthru
            _
          %186 = vnop
        $region20: #{vivit_forward.18} parent=15 // pred_fallthru
          _
        // Predicated region
        $region55: #{vivit_forward.18} parent=15 // pred_check
          %p187 = pneg %p55
        $region56: #{vivit_forward.18} parent=15 // pred_check_branch
          %189 = sbr.rel (%p187) target = $region58
        $region57: #{vivit_forward.18} parent=15 // pred_region
          %s190 = sand.u32 %s45, 1
          %s191 = sand.u32 %s45, 1
          %s192 = smul.addr %s191, 32
          %s193 = scalar_lea.vmem [#allocation3], %s192
          %s194 = smul.u32 2, %s9
          %s195 = smul.addr %s194, 12
          %s196 = sadd.s32 2, %s195
          %s197 = smul.addr %s196, 8
          %s198 = scalar_lea.vmem %s1, %s197
          // Predicated region
          $region59: #{vivit_forward.18} parent=57 // pred_check
            _
          $region60: #{vivit_forward.18} parent=57 // pred_check_branch
            %200 = sbr.rel (0) target = $region62
          $region61: #{vivit_forward.18} parent=57 // pred_region
            // Predicated region
            $region63: #{vivit_forward.18} parent=61 // pred_check
              _
            $region64: #{vivit_forward.18} parent=61 // pred_check_branch
              %202 = sbr.rel (0) target = $region66
            $region65: #{vivit_forward.18} parent=61 // pred_region
              // Predicated region
              $region78: #{vivit_forward.18} parent=65 // pred_check
                _
              $region79: #{vivit_forward.18} parent=65 // pred_check_branch
                %223 = sbr.rel (0) target = $region81
              $region80: #{vivit_forward.18} parent=65 // pred_region
                loop: start=0, step=1, limit=1
                $region82: #{vivit_forward.18} parent=80 // loop_pre_header
                  _
                $region83: #{vivit_forward.18} parent=80 // loop_header
                  %s225 = sphi 0, %s229
                  %p226 = scmp.ge.s32.totalorder %s225, 1
                  %s230 = sphi %s198, %s198
                  %s231 = sphi %s193, %s193
                $region84: #{vivit_forward.18} parent=80 // loop_header_branch
                  %228 = sbr.rel (%p226) target = $region88
                $region85: #{vivit_forward.18} parent=80 // loop_body
                  %v232 = vld [vmem:[%s230] sm:$0xff]
                  %233 = vst [vmem:[%s231] sm:$0xff] %v232
                  %v234 = vld [vmem:[%s230 + $0x30] sm:$0xff]
                  %235 = vst [vmem:[%s231 + $0x8] sm:$0xff] %v234
                  %v236 = vld [vmem:[%s230 + $0x60] sm:$0xff]
                  %237 = vst [vmem:[%s231 + $0x10] sm:$0xff] %v236
                  %v238 = vld [vmem:[%s230 + $0x90] sm:$0xff]
                  %239 = vst [vmem:[%s231 + $0x18] sm:$0xff] %v238
                $region86: #{vivit_forward.18} parent=80 // loop_footer
                  %s229 = sadd.s32 1, %s225
                $region87: #{vivit_forward.18} parent=80 // loop_footer_branch
                  %224 = sbr.rel target = $region83
                $region88: #{vivit_forward.18} parent=80 // loop_exit
                  _
              $region81: #{vivit_forward.18} parent=65 // pred_fallthru
                _
              // Predicated region
              $region89: #{vivit_forward.18} parent=65 // pred_check
                _
              $region90: #{vivit_forward.18} parent=65 // pred_check_branch
                %241 = sbr.rel target = $region92
              $region91: #{vivit_forward.18} parent=65 // pred_region
                _
              $region92: #{vivit_forward.18} parent=65 // pred_fallthru
                _
            $region66: #{vivit_forward.18} parent=61 // pred_fallthru
              _
            // Predicated region
            $region67: #{vivit_forward.18} parent=61 // pred_check
              _
            $region68: #{vivit_forward.18} parent=61 // pred_check_branch
              %204 = sbr.rel target = $region70
            $region69: #{vivit_forward.18} parent=61 // pred_region
              loop: start=0, step=1, limit=1
              $region71: #{vivit_forward.18} parent=69 // loop_pre_header
                _
              $region72: #{vivit_forward.18} parent=69 // loop_header
                %s207 = sphi 0, %s211
                %p208 = scmp.ge.s32.totalorder %s207, 1
                %s212 = sphi %s198, %s198
                %s213 = sphi %s193, %s193
              $region73: #{vivit_forward.18} parent=69 // loop_header_branch
                %210 = sbr.rel (%p208) target = $region77
              $region74: #{vivit_forward.18} parent=69 // loop_body
                %v214 = vld [vmem:[%s212] sm:$0xff]
                %215 = vst [vmem:[%s213] sm:$0xff] %v214
                %v216 = vld [vmem:[%s212 + $0x30] sm:$0xff]
                %217 = vst [vmem:[%s213 + $0x8] sm:$0xff] %v216
                %v218 = vld [vmem:[%s212 + $0x60] sm:$0xff]
                %219 = vst [vmem:[%s213 + $0x10] sm:$0xff] %v218
                %v220 = vld [vmem:[%s212 + $0x90] sm:$0xff]
                %221 = vst [vmem:[%s213 + $0x18] sm:$0xff] %v220
              $region75: #{vivit_forward.18} parent=69 // loop_footer
                %s211 = sadd.s32 1, %s207
              $region76: #{vivit_forward.18} parent=69 // loop_footer_branch
                %206 = sbr.rel target = $region72
              $region77: #{vivit_forward.18} parent=69 // loop_exit
                _
            $region70: #{vivit_forward.18} parent=61 // pred_fallthru
              _
          $region62: #{vivit_forward.18} parent=57 // pred_fallthru
            _
          %242 = vnop
        $region58: #{vivit_forward.18} parent=15 // pred_fallthru
          _
        // Predicated region
        $region93: #{vivit_forward.18} parent=15 // pred_check
          %p243 = pneg %p81
        $region94: #{vivit_forward.18} parent=15 // pred_check_branch
          %245 = sbr.rel (%p243) target = $region96
        $region95: #{vivit_forward.18} parent=15 // pred_region
          %s246 = sand.u32 %s71, 1
          %s247 = sand.u32 %s71, 1
          %s248 = smul.addr %s247, 32
          %s249 = scalar_lea.vmem [#allocation4], %s248
          %s250 = smul.u32 2, %s9
          %s251 = smul.addr %s250, 12
          %s252 = sadd.s32 4, %s251
          %s253 = smul.addr %s252, 8
          %s254 = scalar_lea.vmem %s2, %s253
          // Predicated region
          $region97: #{vivit_forward.18} parent=95 // pred_check
            _
          $region98: #{vivit_forward.18} parent=95 // pred_check_branch
            %256 = sbr.rel (0) target = $region100
          $region99: #{vivit_forward.18} parent=95 // pred_region
            // Predicated region
            $region101: #{vivit_forward.18} parent=99 // pred_check
              _
            $region102: #{vivit_forward.18} parent=99 // pred_check_branch
              %258 = sbr.rel (0) target = $region104
            $region103: #{vivit_forward.18} parent=99 // pred_region
              // Predicated region
              $region116: #{vivit_forward.18} parent=103 // pred_check
                _
              $region117: #{vivit_forward.18} parent=103 // pred_check_branch
                %279 = sbr.rel (0) target = $region119
              $region118: #{vivit_forward.18} parent=103 // pred_region
                loop: start=0, step=1, limit=1
                $region120: #{vivit_forward.18} parent=118 // loop_pre_header
                  _
                $region121: #{vivit_forward.18} parent=118 // loop_header
                  %s281 = sphi 0, %s285
                  %p282 = scmp.ge.s32.totalorder %s281, 1
                  %s286 = sphi %s254, %s254
                  %s287 = sphi %s249, %s249
                $region122: #{vivit_forward.18} parent=118 // loop_header_branch
                  %284 = sbr.rel (%p282) target = $region126
                $region123: #{vivit_forward.18} parent=118 // loop_body
                  %v288 = vld [vmem:[%s286] sm:$0xff]
                  %289 = vst [vmem:[%s287] sm:$0xff] %v288
                  %v290 = vld [vmem:[%s286 + $0x30] sm:$0xff]
                  %291 = vst [vmem:[%s287 + $0x8] sm:$0xff] %v290
                  %v292 = vld [vmem:[%s286 + $0x60] sm:$0xff]
                  %293 = vst [vmem:[%s287 + $0x10] sm:$0xff] %v292
                  %v294 = vld [vmem:[%s286 + $0x90] sm:$0xff]
                  %295 = vst [vmem:[%s287 + $0x18] sm:$0xff] %v294
                $region124: #{vivit_forward.18} parent=118 // loop_footer
                  %s285 = sadd.s32 1, %s281
                $region125: #{vivit_forward.18} parent=118 // loop_footer_branch
                  %280 = sbr.rel target = $region121
                $region126: #{vivit_forward.18} parent=118 // loop_exit
                  _
              $region119: #{vivit_forward.18} parent=103 // pred_fallthru
                _
              // Predicated region
              $region127: #{vivit_forward.18} parent=103 // pred_check
                _
              $region128: #{vivit_forward.18} parent=103 // pred_check_branch
                %297 = sbr.rel target = $region130
              $region129: #{vivit_forward.18} parent=103 // pred_region
                _
              $region130: #{vivit_forward.18} parent=103 // pred_fallthru
                _
            $region104: #{vivit_forward.18} parent=99 // pred_fallthru
              _
            // Predicated region
            $region105: #{vivit_forward.18} parent=99 // pred_check
              _
            $region106: #{vivit_forward.18} parent=99 // pred_check_branch
              %260 = sbr.rel target = $region108
            $region107: #{vivit_forward.18} parent=99 // pred_region
              loop: start=0, step=1, limit=1
              $region109: #{vivit_forward.18} parent=107 // loop_pre_header
                _
              $region110: #{vivit_forward.18} parent=107 // loop_header
                %s263 = sphi 0, %s267
                %p264 = scmp.ge.s32.totalorder %s263, 1
                %s268 = sphi %s254, %s254
                %s269 = sphi %s249, %s249
              $region111: #{vivit_forward.18} parent=107 // loop_header_branch
                %266 = sbr.rel (%p264) target = $region115
              $region112: #{vivit_forward.18} parent=107 // loop_body
                %v270 = vld [vmem:[%s268] sm:$0xff]
                %271 = vst [vmem:[%s269] sm:$0xff] %v270
                %v272 = vld [vmem:[%s268 + $0x30] sm:$0xff]
                %273 = vst [vmem:[%s269 + $0x8] sm:$0xff] %v272
                %v274 = vld [vmem:[%s268 + $0x60] sm:$0xff]
                %275 = vst [vmem:[%s269 + $0x10] sm:$0xff] %v274
                %v276 = vld [vmem:[%s268 + $0x90] sm:$0xff]
                %277 = vst [vmem:[%s269 + $0x18] sm:$0xff] %v276
              $region113: #{vivit_forward.18} parent=107 // loop_footer
                %s267 = sadd.s32 1, %s263
              $region114: #{vivit_forward.18} parent=107 // loop_footer_branch
                %262 = sbr.rel target = $region110
              $region115: #{vivit_forward.18} parent=107 // loop_exit
                _
            $region108: #{vivit_forward.18} parent=99 // pred_fallthru
              _
          $region100: #{vivit_forward.18} parent=95 // pred_fallthru
            _
          %298 = vnop
        $region96: #{vivit_forward.18} parent=15 // pred_fallthru
          _
      $region16: #{vivit_forward.18} parent=5 // pred_fallthru
        _
      %p299 = scmp.le.s32.totalorder 1, %s9
      %p300 = scmp.lt.s32.totalorder %s9, 3
      %p301 = pnand %p299, %p300
      %p302 = pneg %p301
      // Predicated region
      $region131: #{vivit_forward.18} parent=5 // pred_check
        _
      $region132: #{vivit_forward.18} parent=5 // pred_check_branch
        %304 = sbr.rel (%p301) target = $region134
      $region133: #{vivit_forward.18} parent=5 // pred_region
        %s305 = ssub.s32 %s9, 1
        %s306 = sand.u32 %s22, 1
        %s307 = sand.u32 %s22, 1
        %s308 = smul.addr %s307, 32
        %s309 = scalar_lea.vmem [#allocation2], %s308
        // Predicated region
        $region135: #{vivit_forward.18} parent=133 // pred_check
          %p310 = pneg %p35
        $region136: #{vivit_forward.18} parent=133 // pred_check_branch
          %312 = sbr.rel (%p310) target = $region138
        $region137: #{vivit_forward.18} parent=133 // pred_region
          _
        $region138: #{vivit_forward.18} parent=133 // pred_fallthru
          _
        %s313 = sand.u32 %s48, 1
        %s314 = sand.u32 %s48, 1
        %s315 = smul.addr %s314, 32
        %s316 = scalar_lea.vmem [#allocation3], %s315
        // Predicated region
        $region139: #{vivit_forward.18} parent=133 // pred_check
          %p317 = pneg %p61
        $region140: #{vivit_forward.18} parent=133 // pred_check_branch
          %319 = sbr.rel (%p317) target = $region142
        $region141: #{vivit_forward.18} parent=133 // pred_region
          _
        $region142: #{vivit_forward.18} parent=133 // pred_fallthru
          _
        %s320 = sand.u32 %s74, 1
        %s321 = sand.u32 %s74, 1
        %s322 = smul.addr %s321, 32
        %s323 = scalar_lea.vmem [#allocation4], %s322
        // Predicated region
        $region143: #{vivit_forward.18} parent=133 // pred_check
          %p324 = pneg %p87
        $region144: #{vivit_forward.18} parent=133 // pred_check_branch
          %326 = sbr.rel (%p324) target = $region146
        $region145: #{vivit_forward.18} parent=133 // pred_region
          _
        $region146: #{vivit_forward.18} parent=133 // pred_fallthru
          _
        %s327 = sand.u32 %s22, 1
        %s328 = sand.u32 %s22, 1
        %s329 = smul.addr %s328, 32
        %s330 = scalar_lea.vmem [#allocation2], %s329
        %p331 = pneg %p35
        %p332 = pneg %p32
        %s333 = sand.u32 %s48, 1
        %s334 = sand.u32 %s48, 1
        %s335 = smul.addr %s334, 32
        %s336 = scalar_lea.vmem [#allocation3], %s335
        %p337 = pneg %p61
        %p338 = pneg %p58
        %s339 = sand.u32 %s74, 1
        %s340 = sand.u32 %s74, 1
        %s341 = smul.addr %s340, 32
        %s342 = scalar_lea.vmem [#allocation4], %s341
        %p343 = pneg %p87
        %p344 = pneg %p84
        %p345 = pneg %p113
        %p346 = pneg %p110
        %s347 = smul.u32 2, %s14
        %p348 = scmp.lt.s32.totalorder %s347, 3
        %s349 = scalar_select %p348, %s347, 3
        %s350 = smul.addr %s349, 2
        %s351 = smul.addr %s350, 8
        %s352 = scalar_lea.vmem %s3, %s351
        %s353 = smul.u32 2, %s14
        %s354 = smul.u32 2, %s14
        %s355 = smul.u32 2, %s14
        %s356 = smul.u32 2, %s14
        %p357 = scmp.lt.s32.totalorder %s356, 3
        %s358 = scalar_select %p357, %s356, 3
        %s359 = smul.addr %s358, 2
        %s360 = smul.addr %s359, 8
        %s361 = scalar_lea.vmem %s3, %s360
        %s362 = smul.u32 2, %s14
        %v364 = vld [vmem:[%s309] sm:$0xff]
        %v365 = vld [vmem:[%s309 + $0x8] sm:$0xff]
        %v366 = vld [vmem:[%s309 + $0x10] sm:$0xff]
        %v367 = vld [vmem:[%s309 + $0x18] sm:$0xff]
        %v368 = vld [vmem:[%s316] sm:$0xff]
        %v369 = vld [vmem:[%s316 + $0x8] sm:$0xff]
        %v370 = vld [vmem:[%s316 + $0x10] sm:$0xff]
        %v371 = vld [vmem:[%s316 + $0x18] sm:$0xff]
        %v372 = vld [vmem:[%s323] sm:$0xff]
        %v373 = vld [vmem:[%s323 + $0x8] sm:$0xff]
        %v374 = vld [vmem:[%s323 + $0x10] sm:$0xff]
        %v375 = vld [vmem:[%s323 + $0x18] sm:$0xff]
        %v376 = vmul.f32 %v364, 0.125
        %v377 = vmul.f32 %v365, 0.125
        %v378 = vmul.f32 %v366, 0.125
        %v379 = vmul.f32 %v367, 0.125
        %v380 = vpack.c.bf16 %v377, %v376
        %v381 = vpack.c.bf16 %v379, %v378
        %v382 = vpack.c.bf16 %v369, %v368
        %v383 = vpack.c.bf16 %v371, %v370
        %v384 = vpack.c.bf16 %v373, %v372
        %v385 = vpack.c.bf16 %v375, %v374
        %vm386 = vcmask 523264
        %v388 = vsel %vm386, %v380, 0
        %v391 = vsel %vm386, %v382, 0
        %393 = vmatprep.subr.bf16.mxu0 0
        %394 = vmatpush1.bf16.xpose.msra.mxu0 %v391
        %395 = vmatprep.subr.bf16.mxu0 0
        %396 = vmatpush1.bf16.xpose.msra.mxu0 0
        %397 = vmatprep.subr.bf16.mxu0 0
        %398 = vmatpush1.bf16.xpose.msra.mxu0 0
        %399 = vmatprep.subr.bf16.mxu0 0
        %400 = vmatpush1.bf16.xpose.msra.mxu0 0
        %401 = vmatprep.subr.bf16.mxu0 0
        %402 = vmatpush1.bf16.xpose.msra.mxu0 0
        %403 = vmatprep.subr.bf16.mxu0 0
        %404 = vmatpush1.bf16.xpose.msra.mxu0 0
        %405 = vmatprep.subr.bf16.mxu0 0
        %406 = vmatpush1.bf16.xpose.msra.mxu0 0
        %407 = vmatprep.subr.bf16.mxu0 0
        %408 = vmatpush1.bf16.xpose.msra.mxu0 0
        %409 = vmatprep.subr.bf16.mxu0 0
        %410 = vmatpush1.bf16.xpose.msra.mxu0 0
        %411 = vmatprep.subr.bf16.mxu0 0
        %412 = vmatpush1.bf16.xpose.msra.mxu0 0
        %413 = vmatprep.subr.bf16.mxu0 0
        %414 = vmatpush1.bf16.xpose.msra.mxu0 0
        %415 = vmatprep.subr.bf16.mxu0 0
        %416 = vmatpush1.bf16.xpose.msra.mxu0 0
        %417 = vmatprep.subr.bf16.mxu0 0
        %418 = vmatpush1.bf16.xpose.msra.mxu0 0
        %419 = vmatprep.subr.bf16.mxu0 0
        %420 = vmatpush1.bf16.xpose.msra.mxu0 0
        %421 = vmatprep.subr.bf16.mxu0 0
        %422 = vmatpush1.bf16.xpose.msra.mxu0 0
        %423 = vmatprep.subr.bf16.mxu0 0
        %424 = vmatpush1.bf16.xpose.msra.mxu0 0
        %425 = vmatprep.mubr.bf16.mxu0 0
        %426 = vmatmul.mubr.bf16.gmra.mrb[0].mxu0 %v388
        %v427 = vpop.f32.mrb[0].mxu0
        %v428 = vadd.f32 0.0, %v427
        %v429 = vpop.f32.mrb[0].mxu0
        %v430 = vpop.f32.mrb[0].mxu0
        %v431 = vadd.f32 0.0, %v430
        %v432 = vpop.f32.mrb[0].mxu0
        %433 = vdwg.mxu0
        %v435 = vsel %vm386, %v381, 0
        %v438 = vsel %vm386, %v383, 0
        %440 = vmatprep.subr.bf16.mxu0 0
        %441 = vmatpush1.bf16.xpose.msra.mxu0 %v438
        %442 = vmatprep.subr.bf16.mxu0 0
        %443 = vmatpush1.bf16.xpose.msra.mxu0 0
        %444 = vmatprep.subr.bf16.mxu0 0
        %445 = vmatpush1.bf16.xpose.msra.mxu0 0
        %446 = vmatprep.subr.bf16.mxu0 0
        %447 = vmatpush1.bf16.xpose.msra.mxu0 0
        %448 = vmatprep.subr.bf16.mxu0 0
        %449 = vmatpush1.bf16.xpose.msra.mxu0 0
        %450 = vmatprep.subr.bf16.mxu0 0
        %451 = vmatpush1.bf16.xpose.msra.mxu0 0
        %452 = vmatprep.subr.bf16.mxu0 0
        %453 = vmatpush1.bf16.xpose.msra.mxu0 0
        %454 = vmatprep.subr.bf16.mxu0 0
        %455 = vmatpush1.bf16.xpose.msra.mxu0 0
        %456 = vmatprep.subr.bf16.mxu0 0
        %457 = vmatpush1.bf16.xpose.msra.mxu0 0
        %458 = vmatprep.subr.bf16.mxu0 0
        %459 = vmatpush1.bf16.xpose.msra.mxu0 0
        %460 = vmatprep.subr.bf16.mxu0 0
        %461 = vmatpush1.bf16.xpose.msra.mxu0 0
        %462 = vmatprep.subr.bf16.mxu0 0
        %463 = vmatpush1.bf16.xpose.msra.mxu0 0
        %464 = vmatprep.subr.bf16.mxu0 0
        %465 = vmatpush1.bf16.xpose.msra.mxu0 0
        %466 = vmatprep.subr.bf16.mxu0 0
        %467 = vmatpush1.bf16.xpose.msra.mxu0 0
        %468 = vmatprep.subr.bf16.mxu0 0
        %469 = vmatpush1.bf16.xpose.msra.mxu0 0
        %470 = vmatprep.subr.bf16.mxu0 0
        %471 = vmatpush1.bf16.xpose.msra.mxu0 0
        %472 = vmatprep.mubr.bf16.mxu0 0
        %473 = vmatmul.mubr.bf16.gmra.mrb[0].mxu0 %v435
        %v474 = vpop.f32.mrb[0].mxu0
        %v475 = vadd.f32 0.0, %v474
        %v476 = vpop.f32.mrb[0].mxu0
        %v477 = vpop.f32.mrb[0].mxu0
        %v478 = vadd.f32 0.0, %v477
        %v479 = vpop.f32.mrb[0].mxu0
        %480 = vdwg.mxu0
        %vm481 = vcmask 130048
        %v482 = vsel %vm481, %v428, -inf
        %483 = vmax.xlane.f32.xlu0 %v482
        %v484 = vpop.xlane.xlu0 %483
        %v485 = vsel %vm481, %v431, -inf
        %486 = vmax.xlane.f32.xlu0 %v485
        %v487 = vpop.xlane.xlu0 %486
        %v488 = vsel %vm481, %v475, -inf
        %489 = vmax.xlane.f32.xlu0 %v488
        %v490 = vpop.xlane.xlu0 %489
        %v491 = vsel %vm481, %v478, -inf
        %492 = vmax.xlane.f32.xlu0 %v491
        %v493 = vpop.xlane.xlu0 %492
        %v494 = vsub.f32 %v428, %v484
        %v495 = vsub.f32 %v431, %v487
        %v496 = vsub.f32 %v475, %v490
        %v497 = vsub.f32 %v478, %v493
        %v498 = vmul.f32 %v494, 1.442695
        %v499 = vpow.pop %v498
        %v500 = vmul.f32 %v495, 1.442695
        %v501 = vpow.pop %v500
        %v502 = vmul.f32 %v496, 1.442695
        %v503 = vpow.pop %v502
        %v504 = vmul.f32 %v497, 1.442695
        %v505 = vpow.pop %v504
        %v506 = vsel %vm481, %v499, 0.0
        %507 = vadd.xlane.f32.xlu0 %v506
        %v508 = vpop.xlane.xlu0 %507
        %v509 = vsel %vm481, %v501, 0.0
        %510 = vadd.xlane.f32.xlu0 %v509
        %v511 = vpop.xlane.xlu0 %510
        %v512 = vsel %vm481, %v503, 0.0
        %513 = vadd.xlane.f32.xlu0 %v512
        %v514 = vpop.xlane.xlu0 %513
        %v515 = vsel %vm481, %v505, 0.0
        %516 = vadd.xlane.f32.xlu0 %v515
        %v517 = vpop.xlane.xlu0 %516
        %v518 = vrcp.pop %v508
        %v519 = vrcp.pop %v511
        %v520 = vrcp.pop %v514
        %v521 = vrcp.pop %v517
        %v522 = vmul.f32 %v499, %v518
        %v523 = vmul.f32 %v501, %v519
        %v524 = vmul.f32 %v503, %v520
        %v525 = vmul.f32 %v505, %v521
        %v526 = vpack.c.bf16 %v523, %v522
        %v527 = vpack.c.bf16 %v525, %v524
        %v529 = vsel %vm481, %v526, 0
        %531 = vmatprep.subr.bf16.mxu0 0
        %532 = vmatpush1.bf16.msra.mxu0 %v384
        %533 = vmatprep.subr.bf16.mxu0 0
        %534 = vmatpush1.bf16.msra.mxu0 0
        %535 = vmatprep.subr.bf16.mxu0 0
        %536 = vmatpush1.bf16.msra.mxu0 0
        %537 = vmatprep.subr.bf16.mxu0 0
        %538 = vmatpush1.bf16.msra.mxu0 0
        %539 = vmatprep.subr.bf16.mxu0 0
        %540 = vmatpush1.bf16.msra.mxu0 0
        %541 = vmatprep.subr.bf16.mxu0 0
        %542 = vmatpush1.bf16.msra.mxu0 0
        %543 = vmatprep.subr.bf16.mxu0 0
        %544 = vmatpush1.bf16.msra.mxu0 0
        %545 = vmatprep.subr.bf16.mxu0 0
        %546 = vmatpush1.bf16.msra.mxu0 0
        %547 = vmatprep.subr.bf16.mxu0 0
        %548 = vmatpush1.bf16.msra.mxu0 0
        %549 = vmatprep.subr.bf16.mxu0 0
        %550 = vmatpush1.bf16.msra.mxu0 0
        %551 = vmatprep.subr.bf16.mxu0 0
        %552 = vmatpush1.bf16.msra.mxu0 0
        %553 = vmatprep.subr.bf16.mxu0 0
        %554 = vmatpush1.bf16.msra.mxu0 0
        %555 = vmatprep.subr.bf16.mxu0 0
        %556 = vmatpush1.bf16.msra.mxu0 0
        %557 = vmatprep.subr.bf16.mxu0 0
        %558 = vmatpush1.bf16.msra.mxu0 0
        %559 = vmatprep.subr.bf16.mxu0 0
        %560 = vmatpush1.bf16.msra.mxu0 0
        %561 = vmatprep.subr.bf16.mxu0 0
        %562 = vmatpush1.bf16.msra.mxu0 0
        %563 = vmatprep.mubr.bf16.mxu0 0
        %564 = vmatmul.mubr.bf16.gmra.mrb[0].mxu0 %v529
        %v565 = vpop.f32.mrb[0].mxu0
        %v566 = vadd.f32 0.0, %v565
        %v567 = vpop.f32.mrb[0].mxu0
        %v568 = vpop.f32.mrb[0].mxu0
        %v569 = vadd.f32 0.0, %v568
        %v570 = vpop.f32.mrb[0].mxu0
        %571 = vdwg.mxu0
        %v573 = vsel %vm481, %v527, 0
        %575 = vmatprep.subr.bf16.mxu0 0
        %576 = vmatpush1.bf16.msra.mxu0 %v385
        %577 = vmatprep.subr.bf16.mxu0 0
        %578 = vmatpush1.bf16.msra.mxu0 0
        %579 = vmatprep.subr.bf16.mxu0 0
        %580 = vmatpush1.bf16.msra.mxu0 0
        %581 = vmatprep.subr.bf16.mxu0 0
        %582 = vmatpush1.bf16.msra.mxu0 0
        %583 = vmatprep.subr.bf16.mxu0 0
        %584 = vmatpush1.bf16.msra.mxu0 0
        %585 = vmatprep.subr.bf16.mxu0 0
        %586 = vmatpush1.bf16.msra.mxu0 0
        %587 = vmatprep.subr.bf16.mxu0 0
        %588 = vmatpush1.bf16.msra.mxu0 0
        %589 = vmatprep.subr.bf16.mxu0 0
        %590 = vmatpush1.bf16.msra.mxu0 0
        %591 = vmatprep.subr.bf16.mxu0 0
        %592 = vmatpush1.bf16.msra.mxu0 0
        %593 = vmatprep.subr.bf16.mxu0 0
        %594 = vmatpush1.bf16.msra.mxu0 0
        %595 = vmatprep.subr.bf16.mxu0 0
        %596 = vmatpush1.bf16.msra.mxu0 0
        %597 = vmatprep.subr.bf16.mxu0 0
        %598 = vmatpush1.bf16.msra.mxu0 0
        %599 = vmatprep.subr.bf16.mxu0 0
        %600 = vmatpush1.bf16.msra.mxu0 0
        %601 = vmatprep.subr.bf16.mxu0 0
        %602 = vmatpush1.bf16.msra.mxu0 0
        %603 = vmatprep.subr.bf16.mxu0 0
        %604 = vmatpush1.bf16.msra.mxu0 0
        %605 = vmatprep.subr.bf16.mxu0 0
        %606 = vmatpush1.bf16.msra.mxu0 0
        %607 = vmatprep.mubr.bf16.mxu0 0
        %608 = vmatmul.mubr.bf16.gmra.mrb[0].mxu0 %v573
        %v609 = vpop.f32.mrb[0].mxu0
        %v610 = vadd.f32 0.0, %v609
        %v611 = vpop.f32.mrb[0].mxu0
        %v612 = vpop.f32.mrb[0].mxu0
        %v613 = vadd.f32 0.0, %v612
        %v614 = vpop.f32.mrb[0].mxu0
        %615 = vdwg.mxu0
        %616 = vst.msk [vmem:[%s361] sm:$0xff] %vm386, %v566
        %617 = vst.msk [vmem:[%s361 + $0x8] sm:$0xff] %vm386, %v569
        %618 = vst.msk [vmem:[%s361 + $0x10] sm:$0xff] %vm386, %v610
        %619 = vst.msk [vmem:[%s361 + $0x18] sm:$0xff] %vm386, %v613
        %621 = vrot.lane.b32.xlu0 %v380, 64
        %v622 = vpop.permute.xlu0 %621
        %624 = vrot.lane.b32.xlu0 %v382, 64
        %v625 = vpop.permute.xlu0 %624
        %v627 = vsel %vm386, %v622, 0
        %v630 = vsel %vm386, %v625, 0
        %632 = vmatprep.subr.bf16.mxu0 0
        %633 = vmatpush1.bf16.xpose.msra.mxu0 %v630
        %634 = vmatprep.subr.bf16.mxu0 0
        %635 = vmatpush1.bf16.xpose.msra.mxu0 0
        %636 = vmatprep.subr.bf16.mxu0 0
        %637 = vmatpush1.bf16.xpose.msra.mxu0 0
        %638 = vmatprep.subr.bf16.mxu0 0
        %639 = vmatpush1.bf16.xpose.msra.mxu0 0
        %640 = vmatprep.subr.bf16.mxu0 0
        %641 = vmatpush1.bf16.xpose.msra.mxu0 0
        %642 = vmatprep.subr.bf16.mxu0 0
        %643 = vmatpush1.bf16.xpose.msra.mxu0 0
        %644 = vmatprep.subr.bf16.mxu0 0
        %645 = vmatpush1.bf16.xpose.msra.mxu0 0
        %646 = vmatprep.subr.bf16.mxu0 0
        %647 = vmatpush1.bf16.xpose.msra.mxu0 0
        %648 = vmatprep.subr.bf16.mxu0 0
        %649 = vmatpush1.bf16.xpose.msra.mxu0 0
        %650 = vmatprep.subr.bf16.mxu0 0
        %651 = vmatpush1.bf16.xpose.msra.mxu0 0
        %652 = vmatprep.subr.bf16.mxu0 0
        %653 = vmatpush1.bf16.xpose.msra.mxu0 0
        %654 = vmatprep.subr.bf16.mxu0 0
        %655 = vmatpush1.bf16.xpose.msra.mxu0 0
        %656 = vmatprep.subr.bf16.mxu0 0
        %657 = vmatpush1.bf16.xpose.msra.mxu0 0
        %658 = vmatprep.subr.bf16.mxu0 0
        %659 = vmatpush1.bf16.xpose.msra.mxu0 0
        %660 = vmatprep.subr.bf16.mxu0 0
        %661 = vmatpush1.bf16.xpose.msra.mxu0 0
        %662 = vmatprep.subr.bf16.mxu0 0
        %663 = vmatpush1.bf16.xpose.msra.mxu0 0
        %664 = vmatprep.mubr.bf16.mxu0 0
        %665 = vmatmul.mubr.bf16.gmra.mrb[0].mxu0 %v627
        %v666 = vpop.f32.mrb[0].mxu0
        %v667 = vadd.f32 0.0, %v666
        %v668 = vpop.f32.mrb[0].mxu0
        %v669 = vpop.f32.mrb[0].mxu0
        %v670 = vadd.f32 0.0, %v669
        %v671 = vpop.f32.mrb[0].mxu0
        %672 = vdwg.mxu0
        %674 = vrot.lane.b32.xlu0 %v381, 64
        %v675 = vpop.permute.xlu0 %674
        %677 = vrot.lane.b32.xlu0 %v383, 64
        %v678 = vpop.permute.xlu0 %677
        %v680 = vsel %vm386, %v675, 0
        %v683 = vsel %vm386, %v678, 0
        %685 = vmatprep.subr.bf16.mxu0 0
        %686 = vmatpush1.bf16.xpose.msra.mxu0 %v683
        %687 = vmatprep.subr.bf16.mxu0 0
        %688 = vmatpush1.bf16.xpose.msra.mxu0 0
        %689 = vmatprep.subr.bf16.mxu0 0
        %690 = vmatpush1.bf16.xpose.msra.mxu0 0
        %691 = vmatprep.subr.bf16.mxu0 0
        %692 = vmatpush1.bf16.xpose.msra.mxu0 0
        %693 = vmatprep.subr.bf16.mxu0 0
        %694 = vmatpush1.bf16.xpose.msra.mxu0 0
        %695 = vmatprep.subr.bf16.mxu0 0
        %696 = vmatpush1.bf16.xpose.msra.mxu0 0
        %697 = vmatprep.subr.bf16.mxu0 0
        %698 = vmatpush1.bf16.xpose.msra.mxu0 0
        %699 = vmatprep.subr.bf16.mxu0 0
        %700 = vmatpush1.bf16.xpose.msra.mxu0 0
        %701 = vmatprep.subr.bf16.mxu0 0
        %702 = vmatpush1.bf16.xpose.msra.mxu0 0
        %703 = vmatprep.subr.bf16.mxu0 0
        %704 = vmatpush1.bf16.xpose.msra.mxu0 0
        %705 = vmatprep.subr.bf16.mxu0 0
        %706 = vmatpush1.bf16.xpose.msra.mxu0 0
        %707 = vmatprep.subr.bf16.mxu0 0
        %708 = vmatpush1.bf16.xpose.msra.mxu0 0
        %709 = vmatprep.subr.bf16.mxu0 0
        %710 = vmatpush1.bf16.xpose.msra.mxu0 0
        %711 = vmatprep.subr.bf16.mxu0 0
        %712 = vmatpush1.bf16.xpose.msra.mxu0 0
        %713 = vmatprep.subr.bf16.mxu0 0
        %714 = vmatpush1.bf16.xpose.msra.mxu0 0
        %715 = vmatprep.subr.bf16.mxu0 0
        %716 = vmatpush1.bf16.xpose.msra.mxu0 0
        %717 = vmatprep.mubr.bf16.mxu0 0
        %718 = vmatmul.mubr.bf16.gmra.mrb[0].mxu0 %v680
        %v719 = vpop.f32.mrb[0].mxu0
        %v720 = vadd.f32 0.0, %v719
        %v721 = vpop.f32.mrb[0].mxu0
        %v722 = vpop.f32.mrb[0].mxu0
        %v723 = vadd.f32 0.0, %v722
        %v724 = vpop.f32.mrb[0].mxu0
        %725 = vdwg.mxu0
        %v726 = vsel %vm481, %v667, -inf
        %727 = vmax.xlane.f32.xlu0 %v726
        %v728 = vpop.xlane.xlu0 %727
        %v729 = vsel %vm481, %v670, -inf
        %730 = vmax.xlane.f32.xlu0 %v729
        %v731 = vpop.xlane.xlu0 %730
        %v732 = vsel %vm481, %v720, -inf
        %733 = vmax.xlane.f32.xlu0 %v732
        %v734 = vpop.xlane.xlu0 %733
        %v735 = vsel %vm481, %v723, -inf
        %736 = vmax.xlane.f32.xlu0 %v735
        %v737 = vpop.xlane.xlu0 %736
        %v738 = vsub.f32 %v667, %v728
        %v739 = vsub.f32 %v670, %v731
        %v740 = vsub.f32 %v720, %v734
        %v741 = vsub.f32 %v723, %v737
        %v742 = vmul.f32 %v738, 1.442695
        %v743 = vpow.pop %v742
        %v744 = vmul.f32 %v739, 1.442695
        %v745 = vpow.pop %v744
        %v746 = vmul.f32 %v740, 1.442695
        %v747 = vpow.pop %v746
        %v748 = vmul.f32 %v741, 1.442695
        %v749 = vpow.pop %v748
        %v750 = vsel %vm481, %v743, 0.0
        %751 = vadd.xlane.f32.xlu0 %v750
        %v752 = vpop.xlane.xlu0 %751
        %v753 = vsel %vm481, %v745, 0.0
        %754 = vadd.xlane.f32.xlu0 %v753
        %v755 = vpop.xlane.xlu0 %754
        %v756 = vsel %vm481, %v747, 0.0
        %757 = vadd.xlane.f32.xlu0 %v756
        %v758 = vpop.xlane.xlu0 %757
        %v759 = vsel %vm481, %v749, 0.0
        %760 = vadd.xlane.f32.xlu0 %v759
        %v761 = vpop.xlane.xlu0 %760
        %v762 = vrcp.pop %v752
        %v763 = vrcp.pop %v755
        %v764 = vrcp.pop %v758
        %v765 = vrcp.pop %v761
        %v766 = vmul.f32 %v743, %v762
        %v767 = vmul.f32 %v745, %v763
        %v768 = vmul.f32 %v747, %v764
        %v769 = vmul.f32 %v749, %v765
        %v770 = vpack.c.bf16 %v767, %v766
        %v771 = vpack.c.bf16 %v769, %v768
        %773 = vrot.lane.b32.xlu0 %v384, 64
        %v774 = vpop.permute.xlu0 %773
        %v777 = vsel %vm481, %v770, 0
        %779 = vmatprep.subr.bf16.mxu0 0
        %780 = vmatpush1.bf16.msra.mxu0 %v774
        %781 = vmatprep.subr.bf16.mxu0 0
        %782 = vmatpush1.bf16.msra.mxu0 0
        %783 = vmatprep.subr.bf16.mxu0 0
        %784 = vmatpush1.bf16.msra.mxu0 0
        %785 = vmatprep.subr.bf16.mxu0 0
        %786 = vmatpush1.bf16.msra.mxu0 0
        %787 = vmatprep.subr.bf16.mxu0 0
        %788 = vmatpush1.bf16.msra.mxu0 0
        %789 = vmatprep.subr.bf16.mxu0 0
        %790 = vmatpush1.bf16.msra.mxu0 0
        %791 = vmatprep.subr.bf16.mxu0 0
        %792 = vmatpush1.bf16.msra.mxu0 0
        %793 = vmatprep.subr.bf16.mxu0 0
        %794 = vmatpush1.bf16.msra.mxu0 0
        %795 = vmatprep.subr.bf16.mxu0 0
        %796 = vmatpush1.bf16.msra.mxu0 0
        %797 = vmatprep.subr.bf16.mxu0 0
        %798 = vmatpush1.bf16.msra.mxu0 0
        %799 = vmatprep.subr.bf16.mxu0 0
        %800 = vmatpush1.bf16.msra.mxu0 0
        %801 = vmatprep.subr.bf16.mxu0 0
        %802 = vmatpush1.bf16.msra.mxu0 0
        %803 = vmatprep.subr.bf16.mxu0 0
        %804 = vmatpush1.bf16.msra.mxu0 0
        %805 = vmatprep.subr.bf16.mxu0 0
        %806 = vmatpush1.bf16.msra.mxu0 0
        %807 = vmatprep.subr.bf16.mxu0 0
        %808 = vmatpush1.bf16.msra.mxu0 0
        %809 = vmatprep.subr.bf16.mxu0 0
        %810 = vmatpush1.bf16.msra.mxu0 0
        %811 = vmatprep.mubr.bf16.mxu0 0
        %812 = vmatmul.mubr.bf16.gmra.mrb[0].mxu0 %v777
        %v813 = vpop.f32.mrb[0].mxu0
        %v814 = vadd.f32 0.0, %v813
        %v815 = vpop.f32.mrb[0].mxu0
        %v816 = vpop.f32.mrb[0].mxu0
        %v817 = vadd.f32 0.0, %v816
        %v818 = vpop.f32.mrb[0].mxu0
        %819 = vdwg.mxu0
        %821 = vrot.lane.b32.xlu0 %v385, 64
        %v822 = vpop.permute.xlu0 %821
        %v825 = vsel %vm481, %v771, 0
        %827 = vmatprep.subr.bf16.mxu0 0
        %828 = vmatpush1.bf16.msra.mxu0 %v822
        %829 = vmatprep.subr.bf16.mxu0 0
        %830 = vmatpush1.bf16.msra.mxu0 0
        %831 = vmatprep.subr.bf16.mxu0 0
        %832 = vmatpush1.bf16.msra.mxu0 0
        %833 = vmatprep.subr.bf16.mxu0 0
        %834 = vmatpush1.bf16.msra.mxu0 0
        %835 = vmatprep.subr.bf16.mxu0 0
        %836 = vmatpush1.bf16.msra.mxu0 0
        %837 = vmatprep.subr.bf16.mxu0 0
        %838 = vmatpush1.bf16.msra.mxu0 0
        %839 = vmatprep.subr.bf16.mxu0 0
        %840 = vmatpush1.bf16.msra.mxu0 0
        %841 = vmatprep.subr.bf16.mxu0 0
        %842 = vmatpush1.bf16.msra.mxu0 0
        %843 = vmatprep.subr.bf16.mxu0 0
        %844 = vmatpush1.bf16.msra.mxu0 0
        %845 = vmatprep.subr.bf16.mxu0 0
        %846 = vmatpush1.bf16.msra.mxu0 0
        %847 = vmatprep.subr.bf16.mxu0 0
        %848 = vmatpush1.bf16.msra.mxu0 0
        %849 = vmatprep.subr.bf16.mxu0 0
        %850 = vmatpush1.bf16.msra.mxu0 0
        %851 = vmatprep.subr.bf16.mxu0 0
        %852 = vmatpush1.bf16.msra.mxu0 0
        %853 = vmatprep.subr.bf16.mxu0 0
        %854 = vmatpush1.bf16.msra.mxu0 0
        %855 = vmatprep.subr.bf16.mxu0 0
        %856 = vmatpush1.bf16.msra.mxu0 0
        %857 = vmatprep.subr.bf16.mxu0 0
        %858 = vmatpush1.bf16.msra.mxu0 0
        %859 = vmatprep.mubr.bf16.mxu0 0
        %860 = vmatmul.mubr.bf16.gmra.mrb[0].mxu0 %v825
        %v861 = vpop.f32.mrb[0].mxu0
        %v862 = vadd.f32 0.0, %v861
        %v863 = vpop.f32.mrb[0].mxu0
        %v864 = vpop.f32.mrb[0].mxu0
        %v865 = vadd.f32 0.0, %v864
        %v866 = vpop.f32.mrb[0].mxu0
        %867 = vdwg.mxu0
        %872 = vrot.lane.b32.xlu0 %v814, 64
        %v873 = vpop.permute.xlu0 %872
        %874 = vrot.lane.b32.xlu0 %v817, 64
        %v875 = vpop.permute.xlu0 %874
        %876 = vrot.lane.b32.xlu0 %v862, 64
        %v877 = vpop.permute.xlu0 %876
        %878 = vrot.lane.b32.xlu0 %v865, 64
        %v879 = vpop.permute.xlu0 %878
        %vm884 = vcmask 1048064
        %885 = vst.msk [vmem:[%s361] sm:$0xff] %vm884, %v873
        %886 = vst.msk [vmem:[%s361 + $0x8] sm:$0xff] %vm884, %v875
        %887 = vst.msk [vmem:[%s361 + $0x10] sm:$0xff] %vm884, %v877
        %888 = vst.msk [vmem:[%s361 + $0x18] sm:$0xff] %vm884, %v879
        %s889 = smul.u32 2, %s14
        %p890 = scmp.lt.s32.totalorder %s889, 3
        %s891 = scalar_select %p890, %s889, 3
        %s892 = smul.addr %s891, 2
        %s893 = smul.addr %s892, 8
        %s894 = scalar_lea.vmem %s3, %s893
        // Predicated region
        $region147: #{vivit_forward.18} parent=133 // pred_check
          %p895 = pneg %p110
        $region148: #{vivit_forward.18} parent=133 // pred_check_branch
          %897 = sbr.rel (%p895) target = $region150
        $region149: #{vivit_forward.18} parent=133 // pred_region
          %s898 = smul.u32 2, %s14
        $region150: #{vivit_forward.18} parent=133 // pred_fallthru
          _
      $region134: #{vivit_forward.18} parent=5 // pred_fallthru
        _
      %p899 = scmp.le.s32.totalorder 2, %s9
      // Predicated region
      $region151: #{vivit_forward.18} parent=5 // pred_check
        %p900 = pneg %p899
      $region152: #{vivit_forward.18} parent=5 // pred_check_branch
        %902 = sbr.rel (%p900) target = $region154
      $region153: #{vivit_forward.18} parent=5 // pred_region
        %s903 = ssub.s32 %s9, 2
        // Predicated region
        $region155: #{vivit_forward.18} parent=153 // pred_check
          %p904 = pneg %p116
        $region156: #{vivit_forward.18} parent=153 // pred_check_branch
          %906 = sbr.rel (%p904) target = $region158
        $region157: #{vivit_forward.18} parent=153 // pred_region
          %s907 = smul.u32 2, %s15
          %p908 = scmp.lt.s32.totalorder %s907, 3
          %s909 = scalar_select %p908, %s907, 3
          %s910 = smul.addr %s909, 2
          %s911 = smul.addr %s910, 8
          %s912 = scalar_lea.vmem %s3, %s911
        $region158: #{vivit_forward.18} parent=153 // pred_fallthru
          _
      $region154: #{vivit_forward.18} parent=5 // pred_fallthru
        _
    $region6: #{vivit_forward.18} parent=1 // loop_footer
      %s13 = sadd.s32 1, %s9
    $region7: #{vivit_forward.18} parent=1 // loop_footer_branch
      %8 = sbr.rel target = $region3
    $region8: #{vivit_forward.18} parent=1 // loop_exit
      _

// kernel: vivit_forward.20
$region0: #{vivit_forward.20}
  #allocation0 [shape = 'u32[]', space=smem, size = 0x4, offset = 0x4, fixed_abs, tag = 'smem constant byte address 0x4 - core index']
  #allocation1 [shape = 'u32[144,128]{1,0:T(1,128)}', space=vmem, size = 0x12000, scoped, tag = 'internal scratch']
  #allocation2 [shape = 'f32[32,128]{1,0:T(8,128)}', space=vmem, size = 0x4000, scoped, tag = 'scratch operand']
  %s0 = inlined_call_operand.vmem [shape: f32[64,128], index: 0, kind: input, shape index: {}]
  %s1 = inlined_call_operand.vmem [shape: f32[128,128], index: 1, kind: input, shape index: {}]
  %s2 = inlined_call_operand.vmem [shape: f32[1,128], index: 2, kind: input, shape index: {}]
  %s3 = inlined_call_operand.vmem [shape: f32[64,128], index: 3, kind: input, shape index: {}]
  %s4 = inlined_call_operand.vmem [shape: f32[64,128], index: 4, kind: output, shape index: {}]
  %s5 = sld [smem:[#allocation0]]
  $region57: #{vivit_forward.20} parent=0
    _
  %s7 = ssub.s32 1, %s5
  %s8 = scalar_select 0, %s7, %s5
  loop: start=0, step=1, limit=4
  $region2: #{vivit_forward.20} parent=0 // loop_pre_header
    _
  $region3: #{vivit_forward.20} parent=0 // loop_header
    %s10 = sphi 0, %s14
    %p11 = scmp.ge.s32.totalorder %s10, 4
    %s17 = sphi 0, %s36
    %s18 = sphi 0, %s32
    %s19 = sphi 0, %s28
    %s20 = sphi 0, %s17
    %s21 = sphi 0, %s18
    %s22 = sphi 0, %s19
    %s23 = sphi 0, %s20
    %s24 = sphi 0, %s21
    %s25 = sphi 0, %s22
    %s41 = sphi 0, %s43
    %s44 = sphi 0, %s41
    %s45 = sphi 0, %s44
    %s61 = sphi 0, %s45
    %s69 = sphi 0, %s71
    %s72 = sphi 0, %s69
    %s73 = sphi 0, %s72
    %s89 = sphi 0, %s73
    %s95 = sphi 0, %s97
    %s98 = sphi 0, %s95
    %s99 = sphi 0, %s98
    %s115 = sphi 0, %s99
    %s123 = sphi 0, %s125
    %s126 = sphi 0, %s123
    %s127 = sphi 0, %s126
    %s143 = sphi 0, %s127
    %s151 = sphi 0, %s153
    %s154 = sphi 0, %s151
    %s155 = sphi 0, %s154
    %s171 = sphi 0, %s155
  $region4: #{vivit_forward.20} parent=0 // loop_header_branch
    %13 = sbr.rel (%p11) target = $region8
  $region5: #{vivit_forward.20} parent=0 // loop_body
    %s15 = ssub.s32 %s10, 1
    %s16 = ssub.s32 %s10, 2
    %s26 = sadd.s32 1, %s19
    %p27 = scmp.ge.s32.totalorder %s26, 1
    %s28 = scalar_select %p27, 0, %s26
    %s29 = sadd.s32 1, %s18
    %s30 = scalar_select %p27, %s29, %s18
    %p31 = scmp.ge.s32.totalorder %s30, 1
    %s32 = scalar_select %p31, 0, %s30
    %s33 = sadd.s32 1, %s17
    %s34 = scalar_select %p31, %s33, %s17
    %p35 = scmp.ge.s32.totalorder %s34, 2
    %s36 = scalar_select %p35, 0, %s34
    %s37 = ssub.s32 %s17, %s36
    %s38 = ssub.s32 %s19, %s28
    %s39 = sor.u32 %s37, %s38
    %p40 = scmp.eq.s32.totalorder %s39, 0
    %s42 = sadd.s32 %s41, 1
    %s43 = scalar_select %p40, %s41, %s42
    %p46 = pneg %p40
    %p47 = scmp.eq.s32.totalorder %s10, 1
    %p48 = por %p46, %p47
    %p49 = scmp.ne.s32.totalorder %s41, %s44
    %p50 = scmp.eq.s32.totalorder %s10, 0
    %p51 = por %p49, %p50
    %p52 = scmp.ne.s32.totalorder %s41, %s44
    %p53 = scmp.eq.s32.totalorder %s15, 1
    %p54 = por %p52, %p53
    %p55 = scmp.ne.s32.totalorder %s44, %s45
    %p56 = scmp.eq.s32.totalorder %s15, 0
    %p57 = por %p55, %p56
    %p58 = scmp.ne.s32.totalorder %s44, %s45
    %p59 = scmp.eq.s32.totalorder %s16, 1
    %p60 = por %p58, %p59
    %p62 = scmp.ne.s32.totalorder %s45, %s61
    %p63 = scmp.eq.s32.totalorder %s16, 0
    %p64 = por %p62, %p63
    %s65 = ssub.s32 %s19, %s28
    %s66 = ssub.s32 %s18, %s32
    %s67 = sor.u32 %s65, %s66
    %p68 = scmp.eq.s32.totalorder %s67, 0
    %s70 = sadd.s32 %s69, 1
    %s71 = scalar_select %p68, %s69, %s70
    %p74 = pneg %p68
    %p75 = scmp.eq.s32.totalorder %s10, 1
    %p76 = por %p74, %p75
    %p77 = scmp.ne.s32.totalorder %s69, %s72
    %p78 = scmp.eq.s32.totalorder %s10, 0
    %p79 = por %p77, %p78
    %p80 = scmp.ne.s32.totalorder %s69, %s72
    %p81 = scmp.eq.s32.totalorder %s15, 1
    %p82 = por %p80, %p81
    %p83 = scmp.ne.s32.totalorder %s72, %s73
    %p84 = scmp.eq.s32.totalorder %s15, 0
    %p85 = por %p83, %p84
    %p86 = scmp.ne.s32.totalorder %s72, %s73
    %p87 = scmp.eq.s32.totalorder %s16, 1
    %p88 = por %p86, %p87
    %p90 = scmp.ne.s32.totalorder %s73, %s89
    %p91 = scmp.eq.s32.totalorder %s16, 0
    %p92 = por %p90, %p91
    %s93 = ssub.s32 %s18, %s32
    %p94 = scmp.eq.s32.totalorder %s93, 0
    %s96 = sadd.s32 %s95, 1
    %s97 = scalar_select %p94, %s95, %s96
    %p100 = pneg %p94
    %p101 = scmp.eq.s32.totalorder %s10, 1
    %p102 = por %p100, %p101
    %p103 = scmp.ne.s32.totalorder %s95, %s98
    %p104 = scmp.eq.s32.totalorder %s10, 0
    %p105 = por %p103, %p104
    %p106 = scmp.ne.s32.totalorder %s95, %s98
    %p107 = scmp.eq.s32.totalorder %s15, 1
    %p108 = por %p106, %p107
    %p109 = scmp.ne.s32.totalorder %s98, %s99
    %p110 = scmp.eq.s32.totalorder %s15, 0
    %p111 = por %p109, %p110
    %p112 = scmp.ne.s32.totalorder %s98, %s99
    %p113 = scmp.eq.s32.totalorder %s16, 1
    %p114 = por %p112, %p113
    %p116 = scmp.ne.s32.totalorder %s99, %s115
    %p117 = scmp.eq.s32.totalorder %s16, 0
    %p118 = por %p116, %p117
    %s119 = ssub.s32 %s17, %s36
    %s120 = ssub.s32 %s18, %s32
    %s121 = sor.u32 %s119, %s120
    %p122 = scmp.eq.s32.totalorder %s121, 0
    %s124 = sadd.s32 %s123, 1
    %s125 = scalar_select %p122, %s123, %s124
    %p128 = pneg %p122
    %p129 = scmp.eq.s32.totalorder %s10, 1
    %p130 = por %p128, %p129
    %p131 = scmp.ne.s32.totalorder %s123, %s126
    %p132 = scmp.eq.s32.totalorder %s10, 0
    %p133 = por %p131, %p132
    %p134 = scmp.ne.s32.totalorder %s123, %s126
    %p135 = scmp.eq.s32.totalorder %s15, 1
    %p136 = por %p134, %p135
    %p137 = scmp.ne.s32.totalorder %s126, %s127
    %p138 = scmp.eq.s32.totalorder %s15, 0
    %p139 = por %p137, %p138
    %p140 = scmp.ne.s32.totalorder %s126, %s127
    %p141 = scmp.eq.s32.totalorder %s16, 1
    %p142 = por %p140, %p141
    %p144 = scmp.ne.s32.totalorder %s127, %s143
    %p145 = scmp.eq.s32.totalorder %s16, 0
    %p146 = por %p144, %p145
    %s147 = ssub.s32 %s17, %s36
    %s148 = ssub.s32 %s18, %s32
    %s149 = sor.u32 %s147, %s148
    %p150 = scmp.eq.s32.totalorder %s149, 0
    %s152 = sadd.s32 %s151, 1
    %s153 = scalar_select %p150, %s151, %s152
    %p156 = pneg %p150
    %p157 = scmp.eq.s32.totalorder %s10, 1
    %p158 = por %p156, %p157
    %p159 = scmp.ne.s32.totalorder %s151, %s154
    %p160 = scmp.eq.s32.totalorder %s10, 0
    %p161 = por %p159, %p160
    %p162 = scmp.ne.s32.totalorder %s151, %s154
    %p163 = scmp.eq.s32.totalorder %s15, 1
    %p164 = por %p162, %p163
    %p165 = scmp.ne.s32.totalorder %s154, %s155
    %p166 = scmp.eq.s32.totalorder %s15, 0
    %p167 = por %p165, %p166
    %p168 = scmp.ne.s32.totalorder %s154, %s155
    %p169 = scmp.eq.s32.totalorder %s16, 1
    %p170 = por %p168, %p169
    %p172 = scmp.ne.s32.totalorder %s155, %s171
    %p173 = scmp.eq.s32.totalorder %s16, 0
    %p174 = por %p172, %p173
    %p175 = scmp.le.s32.totalorder 1, %s10
    %p176 = scmp.lt.s32.totalorder %s10, 3
    %p177 = pnand %p175, %p176
    %p178 = pneg %p177
    // Predicated region
    $region9: #{vivit_forward.20} parent=5 // pred_check
      _
    $region10: #{vivit_forward.20} parent=5 // pred_check_branch
      %180 = sbr.rel (%p177) target = $region12
    $region11: #{vivit_forward.20} parent=5 // pred_region
      %s181 = ssub.s32 %s10, 1
      // Predicated region
      $region13: #{vivit_forward.20} parent=11 // pred_check
        %p182 = pneg %p85
      $region14: #{vivit_forward.20} parent=11 // pred_check_branch
        %184 = sbr.rel (%p182) target = $region16
      $region15: #{vivit_forward.20} parent=11 // pred_region
        %s185 = smul.u32 16, %s22
        %p186 = scmp.lt.s32.totalorder %s185, 15
        %s187 = scalar_select %p186, %s185, 15
        %p188 = scmp.lt.s32.totalorder %s21, 0
        %s189 = scalar_select %p188, %s21, 0
        %s190 = sadd.s32 %s189, %s187
        %s191 = smul.addr %s190, 8
        %s192 = scalar_lea.vmem %s1, %s191
        %s193 = smul.u32 16, %s22
      $region16: #{vivit_forward.20} parent=11 // pred_fallthru
        _
      // Predicated region
      $region17: #{vivit_forward.20} parent=11 // pred_check
        %p194 = pneg %p111
      $region18: #{vivit_forward.20} parent=11 // pred_check_branch
        %196 = sbr.rel (%p194) target = $region20
      $region19: #{vivit_forward.20} parent=11 // pred_region
        %p197 = scmp.lt.s32.totalorder %s21, 0
        %s198 = scalar_select %p197, %s21, 0
        %s199 = scalar_lea.vmem %s2, %s198
      $region20: #{vivit_forward.20} parent=11 // pred_fallthru
        _
    $region12: #{vivit_forward.20} parent=5 // pred_fallthru
      _
    %p200 = scmp.lt.s32.totalorder %s10, 2
    // Predicated region
    $region21: #{vivit_forward.20} parent=5 // pred_check
      %p201 = pneg %p200
    $region22: #{vivit_forward.20} parent=5 // pred_check_branch
      %203 = sbr.rel (%p201) target = $region24
    $region23: #{vivit_forward.20} parent=5 // pred_region
      // Predicated region
      $region25: #{vivit_forward.20} parent=23 // pred_check
        %p204 = pneg %p51
      $region26: #{vivit_forward.20} parent=23 // pred_check_branch
        %206 = sbr.rel (%p204) target = $region28
      $region27: #{vivit_forward.20} parent=23 // pred_region
        %s207 = smul.u32 4, %s17
        %p208 = scmp.lt.s32.totalorder %s207, 7
        %s209 = scalar_select %p208, %s207, 7
        %p210 = scmp.lt.s32.totalorder %s19, 0
        %s211 = scalar_select %p210, %s19, 0
        %s212 = sadd.s32 %s211, %s209
        %s213 = smul.addr %s212, 8
        %s214 = scalar_lea.vmem %s0, %s213
        %s215 = smul.u32 4, %s17
      $region28: #{vivit_forward.20} parent=23 // pred_fallthru
        _
      // Predicated region
      $region29: #{vivit_forward.20} parent=23 // pred_check
        %p216 = pneg %p133
      $region30: #{vivit_forward.20} parent=23 // pred_check_branch
        %218 = sbr.rel (%p216) target = $region32
      $region31: #{vivit_forward.20} parent=23 // pred_region
        %s219 = smul.u32 4, %s17
        %p220 = scmp.lt.s32.totalorder %s219, 7
        %s221 = scalar_select %p220, %s219, 7
        %p222 = scmp.lt.s32.totalorder %s18, 0
        %s223 = scalar_select %p222, %s18, 0
        %s224 = sadd.s32 %s223, %s221
        %s225 = smul.addr %s224, 8
        %s226 = scalar_lea.vmem %s3, %s225
        %s227 = smul.u32 4, %s17
      $region32: #{vivit_forward.20} parent=23 // pred_fallthru
        _
    $region24: #{vivit_forward.20} parent=5 // pred_fallthru
      _
    %p228 = scmp.le.s32.totalorder 1, %s10
    %p229 = scmp.lt.s32.totalorder %s10, 3
    %p230 = pnand %p228, %p229
    %p231 = pneg %p230
    // Predicated region
    $region33: #{vivit_forward.20} parent=5 // pred_check
      _
    $region34: #{vivit_forward.20} parent=5 // pred_check_branch
      %233 = sbr.rel (%p230) target = $region36
    $region35: #{vivit_forward.20} parent=5 // pred_region
      %s234 = ssub.s32 %s10, 1
      %s235 = smul.u32 4, %s20
      %p236 = scmp.lt.s32.totalorder %s235, 7
      %s237 = scalar_select %p236, %s235, 7
      %p238 = scmp.lt.s32.totalorder %s22, 0
      %s239 = scalar_select %p238, %s22, 0
      %s240 = sadd.s32 %s239, %s237
      %s241 = smul.addr %s240, 8
      %s242 = scalar_lea.vmem %s0, %s241
      %p243 = pneg %p57
      %p244 = pneg %p54
      %s245 = smul.u32 16, %s22
      %p246 = scmp.lt.s32.totalorder %s245, 15
      %s247 = scalar_select %p246, %s245, 15
      %p248 = scmp.lt.s32.totalorder %s21, 0
      %s249 = scalar_select %p248, %s21, 0
      %s250 = sadd.s32 %s249, %s247
      %s251 = smul.addr %s250, 8
      %s252 = scalar_lea.vmem %s1, %s251
      %p253 = pneg %p85
      %p254 = pneg %p82
      %p255 = scmp.lt.s32.totalorder %s21, 0
      %s256 = scalar_select %p255, %s21, 0
      %s257 = scalar_lea.vmem %s2, %s256
      %p258 = pneg %p111
      %p259 = pneg %p108
      %s260 = smul.u32 4, %s20
      %p261 = scmp.lt.s32.totalorder %s260, 7
      %s262 = scalar_select %p261, %s260, 7
      %p263 = scmp.lt.s32.totalorder %s21, 0
      %s264 = scalar_select %p263, %s21, 0
      %s265 = sadd.s32 %s264, %s262
      %s266 = smul.addr %s265, 8
      %s267 = scalar_lea.vmem %s3, %s266
      %p268 = pneg %p139
      %p269 = pneg %p136
      %p270 = pneg %p167
      %p271 = pneg %p164
      %s272 = smul.u32 4, %s20
      %p273 = scmp.lt.s32.totalorder %s272, 7
      %s274 = scalar_select %p273, %s272, 7
      %p275 = scmp.lt.s32.totalorder %s21, 0
      %s276 = scalar_select %p275, %s21, 0
      %s277 = sadd.s32 %s276, %s274
      %s278 = smul.addr %s277, 8
      %s279 = scalar_lea.vmem %s4, %s278
      %s280 = smul.u32 4, %s20
      %p281 = scmp.lt.s32.totalorder %s280, 7
      %s282 = scalar_select %p281, %s280, 7
      %p283 = scmp.lt.s32.totalorder %s22, 0
      %s284 = scalar_select %p283, %s22, 0
      %s285 = sadd.s32 %s284, %s282
      %s286 = smul.addr %s285, 8
      %s287 = scalar_lea.vmem %s0, %s286
      %s288 = smul.u32 4, %s20
      %s289 = smul.u32 16, %s22
      %p290 = scmp.lt.s32.totalorder %s289, 15
      %s291 = scalar_select %p290, %s289, 15
      %p292 = scmp.lt.s32.totalorder %s21, 0
      %s293 = scalar_select %p292, %s21, 0
      %s294 = sadd.s32 %s293, %s291
      %s295 = smul.addr %s294, 8
      %s296 = scalar_lea.vmem %s1, %s295
      %s297 = smul.u32 16, %s22
      %p298 = scmp.lt.s32.totalorder %s21, 0
      %s299 = scalar_select %p298, %s21, 0
      %s300 = scalar_lea.vmem %s2, %s299
      %s301 = smul.u32 4, %s20
      %p302 = scmp.lt.s32.totalorder %s301, 7
      %s303 = scalar_select %p302, %s301, 7
      %p304 = scmp.lt.s32.totalorder %s21, 0
      %s305 = scalar_select %p304, %s21, 0
      %s306 = sadd.s32 %s305, %s303
      %s307 = smul.addr %s306, 8
      %s308 = scalar_lea.vmem %s3, %s307
      %s309 = smul.u32 4, %s20
      %s310 = smul.u32 4, %s20
      %p311 = scmp.lt.s32.totalorder %s310, 7
      %s312 = scalar_select %p311, %s310, 7
      %p313 = scmp.lt.s32.totalorder %s21, 0
      %s314 = scalar_select %p313, %s21, 0
      %s315 = sadd.s32 %s314, %s312
      %s316 = smul.addr %s315, 8
      %s317 = scalar_lea.vmem %s4, %s316
      %s318 = smul.u32 4, %s20
      %p320 = scmp.eq.s32.totalorder %s22, 0
      // Predicated region
      $region37: #{vivit_forward.20} parent=35 // pred_check
        %p321 = pneg %p320
      $region38: #{vivit_forward.20} parent=35 // pred_check_branch
        %323 = sbr.rel (%p321) target = $region40
      $region39: #{vivit_forward.20} parent=35 // pred_region
        %324 = vst [vmem:[#allocation2] sm:$0xff] 0.0
        %325 = vst [vmem:[#allocation2 + $0x8] sm:$0xff] 0.0
        %326 = vst [vmem:[#allocation2 + $0x10] sm:$0xff] 0.0
        %327 = vst [vmem:[#allocation2 + $0x18] sm:$0xff] 0.0
      $region40: #{vivit_forward.20} parent=35 // pred_fallthru
        _
      %v328 = vld [vmem:[%s287] sm:$0xff]
      %v329 = vld [vmem:[%s287 + $0x8] sm:$0xff]
      %v330 = vld [vmem:[%s287 + $0x10] sm:$0xff]
      %v331 = vld [vmem:[%s287 + $0x18] sm:$0xff]
      %v332 = vld [vmem:[#allocation2] sm:$0xff]
      %v333 = vld [vmem:[#allocation2 + $0x8] sm:$0xff]
      %v334 = vld [vmem:[#allocation2 + $0x10] sm:$0xff]
      %v335 = vld [vmem:[#allocation2 + $0x18] sm:$0xff]
      %v336 = vpack.c.bf16 %v329, %v328
      %v337 = vpack.c.bf16 %v331, %v330
      %v338 = vld [vmem:[%s296] sm:$0xff]
      %v339 = vld [vmem:[%s296 + $0x8] sm:$0xff]
      %v340 = vld [vmem:[%s296 + $0x10] sm:$0xff]
      %v341 = vld [vmem:[%s296 + $0x18] sm:$0xff]
      %v342 = vld [vmem:[%s296 + $0x20] sm:$0xff]
      %v343 = vld [vmem:[%s296 + $0x28] sm:$0xff]
      %v344 = vld [vmem:[%s296 + $0x30] sm:$0xff]
      %v345 = vld [vmem:[%s296 + $0x38] sm:$0xff]
      %v346 = vld [vmem:[%s296 + $0x40] sm:$0xff]
      %v347 = vld [vmem:[%s296 + $0x48] sm:$0xff]
      %v348 = vld [vmem:[%s296 + $0x50] sm:$0xff]
      %v349 = vld [vmem:[%s296 + $0x58] sm:$0xff]
      %v350 = vld [vmem:[%s296 + $0x60] sm:$0xff]
      %v351 = vld [vmem:[%s296 + $0x68] sm:$0xff]
      %v352 = vld [vmem:[%s296 + $0x70] sm:$0xff]
      %v353 = vld [vmem:[%s296 + $0x78] sm:$0xff]
      %v354 = vpack.c.bf16 %v339, %v338
      %v355 = vpack.c.bf16 %v341, %v340
      %v356 = vpack.c.bf16 %v343, %v342
      %v357 = vpack.c.bf16 %v345, %v344
      %v358 = vpack.c.bf16 %v347, %v346
      %v359 = vpack.c.bf16 %v349, %v348
      %v360 = vpack.c.bf16 %v351, %v350
      %v361 = vpack.c.bf16 %v353, %v352
      %362 = vmatprep.subr.bf16.mxu0 0
      %363 = vmatpush1.bf16.msra.mxu0 %v354
      %364 = vmatprep.subr.bf16.mxu0 0
      %365 = vmatpush1.bf16.msra.mxu0 %v355
      %366 = vmatprep.subr.bf16.mxu0 0
      %367 = vmatpush1.bf16.msra.mxu0 %v356
      %368 = vmatprep.subr.bf16.mxu0 0
      %369 = vmatpush1.bf16.msra.mxu0 %v357
      %370 = vmatprep.subr.bf16.mxu0 0
      %371 = vmatpush1.bf16.msra.mxu0 %v358
      %372 = vmatprep.subr.bf16.mxu0 0
      %373 = vmatpush1.bf16.msra.mxu0 %v359
      %374 = vmatprep.subr.bf16.mxu0 0
      %375 = vmatpush1.bf16.msra.mxu0 %v360
      %376 = vmatprep.subr.bf16.mxu0 0
      %377 = vmatpush1.bf16.msra.mxu0 %v361
      %378 = vmatprep.subr.bf16.mxu0 0
      %379 = vmatpush1.bf16.msra.mxu0 0
      %380 = vmatprep.subr.bf16.mxu0 0
      %381 = vmatpush1.bf16.msra.mxu0 0
      %382 = vmatprep.subr.bf16.mxu0 0
      %383 = vmatpush1.bf16.msra.mxu0 0
      %384 = vmatprep.subr.bf16.mxu0 0
      %385 = vmatpush1.bf16.msra.mxu0 0
      %386 = vmatprep.subr.bf16.mxu0 0
      %387 = vmatpush1.bf16.msra.mxu0 0
      %388 = vmatprep.subr.bf16.mxu0 0
      %389 = vmatpush1.bf16.msra.mxu0 0
      %390 = vmatprep.subr.bf16.mxu0 0
      %391 = vmatpush1.bf16.msra.mxu0 0
      %392 = vmatprep.subr.bf16.mxu0 0
      %393 = vmatpush1.bf16.msra.mxu0 0
      %394 = vmatprep.mubr.bf16.mxu0 0
      %395 = vmatmul.mubr.bf16.gmra.mrb[0].mxu0 %v336
      %v396 = vpop.f32.mrb[0].mxu0
      %v397 = vadd.f32 0.0, %v396
      %v398 = vpop.f32.mrb[0].mxu0
      %v399 = vpop.f32.mrb[0].mxu0
      %v400 = vadd.f32 0.0, %v399
      %v401 = vpop.f32.mrb[0].mxu0
      %402 = vmatprep.mubr.bf16.mxu0 0
      %403 = vmatmul.mubr.bf16.gmra.mrb[0].mxu0 %v337
      %v404 = vpop.f32.mrb[0].mxu0
      %v405 = vadd.f32 0.0, %v404
      %v406 = vpop.f32.mrb[0].mxu0
      %v407 = vpop.f32.mrb[0].mxu0
      %v408 = vadd.f32 0.0, %v407
      %v409 = vpop.f32.mrb[0].mxu0
      %410 = vdwg.mxu0
      %v411 = vadd.f32 %v332, %v397
      %v412 = vadd.f32 %v333, %v400
      %v413 = vadd.f32 %v334, %v405
      %v414 = vadd.f32 %v335, %v408
      %415 = vst [vmem:[#allocation2] sm:$0xff] %v411
      %416 = vst [vmem:[#allocation2 + $0x8] sm:$0xff] %v412
      %417 = vst [vmem:[#allocation2 + $0x10] sm:$0xff] %v413
      %418 = vst [vmem:[#allocation2 + $0x18] sm:$0xff] %v414
      // Predicated region
      $region41: #{vivit_forward.20} parent=35 // pred_check
        %p419 = pneg %p320
      $region42: #{vivit_forward.20} parent=35 // pred_check_branch
        %421 = sbr.rel (%p419) target = $region44
      $region43: #{vivit_forward.20} parent=35 // pred_region
        %v422 = vld [vmem:[#allocation2] sm:$0xff]
        %v423 = vld [vmem:[#allocation2 + $0x8] sm:$0xff]
        %v424 = vld [vmem:[#allocation2 + $0x10] sm:$0xff]
        %v425 = vld [vmem:[#allocation2 + $0x18] sm:$0xff]
        %v426 = vld [vmem:[%s300] sm:$0x1]
        %v428 = vlaneseq
        %v429 = vshrl.u32 %v428, 7
        %v430 = vsub.s32 0, %v429
        %v431 = vrot.slane %v426, %v430
        %v433 = vadd.f32 %v422, %v431
        %v434 = vadd.f32 %v423, %v431
        %v435 = vadd.f32 %v424, %v431
        %v436 = vadd.f32 %v425, %v431
        %v437 = vld [vmem:[%s308] sm:$0xff]
        %v438 = vld [vmem:[%s308 + $0x8] sm:$0xff]
        %v439 = vld [vmem:[%s308 + $0x10] sm:$0xff]
        %v440 = vld [vmem:[%s308 + $0x18] sm:$0xff]
        %v441 = vadd.f32 %v433, %v437
        %v442 = vadd.f32 %v434, %v438
        %v443 = vadd.f32 %v435, %v439
        %v444 = vadd.f32 %v436, %v440
        %445 = vst [vmem:[%s317] sm:$0xff] %v441
        %446 = vst [vmem:[%s317 + $0x8] sm:$0xff] %v442
        %447 = vst [vmem:[%s317 + $0x10] sm:$0xff] %v443
        %448 = vst [vmem:[%s317 + $0x18] sm:$0xff] %v444
      $region44: #{vivit_forward.20} parent=35 // pred_fallthru
        _
      %s449 = smul.u32 4, %s20
      %p450 = scmp.lt.s32.totalorder %s449, 7
      %s451 = scalar_select %p450, %s449, 7
      %p452 = scmp.lt.s32.totalorder %s21, 0
      %s453 = scalar_select %p452, %s21, 0
      %s454 = sadd.s32 %s453, %s451
      %s455 = smul.addr %s454, 8
      %s456 = scalar_lea.vmem %s4, %s455
      // Predicated region
      $region45: #{vivit_forward.20} parent=35 // pred_check
        %p457 = pneg %p164
      $region46: #{vivit_forward.20} parent=35 // pred_check_branch
        %459 = sbr.rel (%p457) target = $region48
      $region47: #{vivit_forward.20} parent=35 // pred_region
        %s460 = smul.u32 4, %s20
      $region48: #{vivit_forward.20} parent=35 // pred_fallthru
        _
    $region36: #{vivit_forward.20} parent=5 // pred_fallthru
      _
    %p461 = scmp.le.s32.totalorder 2, %s10
    // Predicated region
    $region49: #{vivit_forward.20} parent=5 // pred_check
      %p462 = pneg %p461
    $region50: #{vivit_forward.20} parent=5 // pred_check_branch
      %464 = sbr.rel (%p462) target = $region52
    $region51: #{vivit_forward.20} parent=5 // pred_region
      %s465 = ssub.s32 %s10, 2
      // Predicated region
      $region53: #{vivit_forward.20} parent=51 // pred_check
        %p466 = pneg %p170
      $region54: #{vivit_forward.20} parent=51 // pred_check_branch
        %468 = sbr.rel (%p466) target = $region56
      $region55: #{vivit_forward.20} parent=51 // pred_region
        %s469 = smul.u32 4, %s23
        %p470 = scmp.lt.s32.totalorder %s469, 7
        %s471 = scalar_select %p470, %s469, 7
        %p472 = scmp.lt.s32.totalorder %s24, 0
        %s473 = scalar_select %p472, %s24, 0
        %s474 = sadd.s32 %s473, %s471
        %s475 = smul.addr %s474, 8
        %s476 = scalar_lea.vmem %s4, %s475
      $region56: #{vivit_forward.20} parent=51 // pred_fallthru
        _
    $region52: #{vivit_forward.20} parent=5 // pred_fallthru
      _
  $region6: #{vivit_forward.20} parent=0 // loop_footer
    %s14 = sadd.s32 1, %s10
  $region7: #{vivit_forward.20} parent=0 // loop_footer_branch
    %9 = sbr.rel target = $region3
  $region8: #{vivit_forward.20} parent=0 // loop_exit
    _

// kernel: vivit_forward.21
$region0: #{vivit_forward.21}
  #allocation0 [shape = 'u32[]', space=smem, size = 0x4, offset = 0x4, fixed_abs, tag = 'smem constant byte address 0x4 - core index']
  #allocation1 [shape = 'u32[144,128]{1,0:T(1,128)}', space=vmem, size = 0x12000, scoped, tag = 'internal scratch']
  #allocation2 [shape = 'f32[32,128]{1,0:T(8,128)}', space=vmem, size = 0x4000, scoped, tag = 'scratch operand']
  %s0 = inlined_call_operand.vmem [shape: f32[64,128], index: 0, kind: input, shape index: {}]
  %s1 = inlined_call_operand.vmem [shape: f32[128,128], index: 1, kind: input, shape index: {}]
  %s2 = inlined_call_operand.vmem [shape: f32[64,128], index: 2, kind: input, shape index: {}]
  %s3 = inlined_call_operand.vmem [shape: f32[64,128], index: 3, kind: output, shape index: {}]
  %s4 = sld [smem:[#allocation0]]
  $region53: #{vivit_forward.21} parent=0
    _
  %s6 = ssub.s32 1, %s4
  %s7 = scalar_select 0, %s6, %s4
  loop: start=0, step=1, limit=4
  $region2: #{vivit_forward.21} parent=0 // loop_pre_header
    _
  $region3: #{vivit_forward.21} parent=0 // loop_header
    %s9 = sphi 0, %s13
    %p10 = scmp.ge.s32.totalorder %s9, 4
    %s16 = sphi 0, %s35
    %s17 = sphi 0, %s31
    %s18 = sphi 0, %s27
    %s19 = sphi 0, %s16
    %s20 = sphi 0, %s17
    %s21 = sphi 0, %s18
    %s22 = sphi 0, %s19
    %s23 = sphi 0, %s20
    %s24 = sphi 0, %s21
    %s40 = sphi 0, %s42
    %s43 = sphi 0, %s40
    %s44 = sphi 0, %s43
    %s60 = sphi 0, %s44
    %s68 = sphi 0, %s70
    %s71 = sphi 0, %s68
    %s72 = sphi 0, %s71
    %s88 = sphi 0, %s72
    %s96 = sphi 0, %s98
    %s99 = sphi 0, %s96
    %s100 = sphi 0, %s99
    %s116 = sphi 0, %s100
    %s124 = sphi 0, %s126
    %s127 = sphi 0, %s124
    %s128 = sphi 0, %s127
    %s144 = sphi 0, %s128
  $region4: #{vivit_forward.21} parent=0 // loop_header_branch
    %12 = sbr.rel (%p10) target = $region8
  $region5: #{vivit_forward.21} parent=0 // loop_body
    %s14 = ssub.s32 %s9, 1
    %s15 = ssub.s32 %s9, 2
    %s25 = sadd.s32 1, %s18
    %p26 = scmp.ge.s32.totalorder %s25, 1
    %s27 = scalar_select %p26, 0, %s25
    %s28 = sadd.s32 1, %s17
    %s29 = scalar_select %p26, %s28, %s17
    %p30 = scmp.ge.s32.totalorder %s29, 1
    %s31 = scalar_select %p30, 0, %s29
    %s32 = sadd.s32 1, %s16
    %s33 = scalar_select %p30, %s32, %s16
    %p34 = scmp.ge.s32.totalorder %s33, 2
    %s35 = scalar_select %p34, 0, %s33
    %s36 = ssub.s32 %s16, %s35
    %s37 = ssub.s32 %s18, %s27
    %s38 = sor.u32 %s36, %s37
    %p39 = scmp.eq.s32.totalorder %s38, 0
    %s41 = sadd.s32 %s40, 1
    %s42 = scalar_select %p39, %s40, %s41
    %p45 = pneg %p39
    %p46 = scmp.eq.s32.totalorder %s9, 1
    %p47 = por %p45, %p46
    %p48 = scmp.ne.s32.totalorder %s40, %s43
    %p49 = scmp.eq.s32.totalorder %s9, 0
    %p50 = por %p48, %p49
    %p51 = scmp.ne.s32.totalorder %s40, %s43
    %p52 = scmp.eq.s32.totalorder %s14, 1
    %p53 = por %p51, %p52
    %p54 = scmp.ne.s32.totalorder %s43, %s44
    %p55 = scmp.eq.s32.totalorder %s14, 0
    %p56 = por %p54, %p55
    %p57 = scmp.ne.s32.totalorder %s43, %s44
    %p58 = scmp.eq.s32.totalorder %s15, 1
    %p59 = por %p57, %p58
    %p61 = scmp.ne.s32.totalorder %s44, %s60
    %p62 = scmp.eq.s32.totalorder %s15, 0
    %p63 = por %p61, %p62
    %s64 = ssub.s32 %s18, %s27
    %s65 = ssub.s32 %s17, %s31
    %s66 = sor.u32 %s64, %s65
    %p67 = scmp.eq.s32.totalorder %s66, 0
    %s69 = sadd.s32 %s68, 1
    %s70 = scalar_select %p67, %s68, %s69
    %p73 = pneg %p67
    %p74 = scmp.eq.s32.totalorder %s9, 1
    %p75 = por %p73, %p74
    %p76 = scmp.ne.s32.totalorder %s68, %s71
    %p77 = scmp.eq.s32.totalorder %s9, 0
    %p78 = por %p76, %p77
    %p79 = scmp.ne.s32.totalorder %s68, %s71
    %p80 = scmp.eq.s32.totalorder %s14, 1
    %p81 = por %p79, %p80
    %p82 = scmp.ne.s32.totalorder %s71, %s72
    %p83 = scmp.eq.s32.totalorder %s14, 0
    %p84 = por %p82, %p83
    %p85 = scmp.ne.s32.totalorder %s71, %s72
    %p86 = scmp.eq.s32.totalorder %s15, 1
    %p87 = por %p85, %p86
    %p89 = scmp.ne.s32.totalorder %s72, %s88
    %p90 = scmp.eq.s32.totalorder %s15, 0
    %p91 = por %p89, %p90
    %s92 = ssub.s32 %s16, %s35
    %s93 = ssub.s32 %s17, %s31
    %s94 = sor.u32 %s92, %s93
    %p95 = scmp.eq.s32.totalorder %s94, 0
    %s97 = sadd.s32 %s96, 1
    %s98 = scalar_select %p95, %s96, %s97
    %p101 = pneg %p95
    %p102 = scmp.eq.s32.totalorder %s9, 1
    %p103 = por %p101, %p102
    %p104 = scmp.ne.s32.totalorder %s96, %s99
    %p105 = scmp.eq.s32.totalorder %s9, 0
    %p106 = por %p104, %p105
    %p107 = scmp.ne.s32.totalorder %s96, %s99
    %p108 = scmp.eq.s32.totalorder %s14, 1
    %p109 = por %p107, %p108
    %p110 = scmp.ne.s32.totalorder %s99, %s100
    %p111 = scmp.eq.s32.totalorder %s14, 0
    %p112 = por %p110, %p111
    %p113 = scmp.ne.s32.totalorder %s99, %s100
    %p114 = scmp.eq.s32.totalorder %s15, 1
    %p115 = por %p113, %p114
    %p117 = scmp.ne.s32.totalorder %s100, %s116
    %p118 = scmp.eq.s32.totalorder %s15, 0
    %p119 = por %p117, %p118
    %s120 = ssub.s32 %s16, %s35
    %s121 = ssub.s32 %s17, %s31
    %s122 = sor.u32 %s120, %s121
    %p123 = scmp.eq.s32.totalorder %s122, 0
    %s125 = sadd.s32 %s124, 1
    %s126 = scalar_select %p123, %s124, %s125
    %p129 = pneg %p123
    %p130 = scmp.eq.s32.totalorder %s9, 1
    %p131 = por %p129, %p130
    %p132 = scmp.ne.s32.totalorder %s124, %s127
    %p133 = scmp.eq.s32.totalorder %s9, 0
    %p134 = por %p132, %p133
    %p135 = scmp.ne.s32.totalorder %s124, %s127
    %p136 = scmp.eq.s32.totalorder %s14, 1
    %p137 = por %p135, %p136
    %p138 = scmp.ne.s32.totalorder %s127, %s128
    %p139 = scmp.eq.s32.totalorder %s14, 0
    %p140 = por %p138, %p139
    %p141 = scmp.ne.s32.totalorder %s127, %s128
    %p142 = scmp.eq.s32.totalorder %s15, 1
    %p143 = por %p141, %p142
    %p145 = scmp.ne.s32.totalorder %s128, %s144
    %p146 = scmp.eq.s32.totalorder %s15, 0
    %p147 = por %p145, %p146
    %p148 = scmp.le.s32.totalorder 1, %s9
    %p149 = scmp.lt.s32.totalorder %s9, 3
    %p150 = pnand %p148, %p149
    %p151 = pneg %p150
    // Predicated region
    $region9: #{vivit_forward.21} parent=5 // pred_check
      _
    $region10: #{vivit_forward.21} parent=5 // pred_check_branch
      %153 = sbr.rel (%p150) target = $region12
    $region11: #{vivit_forward.21} parent=5 // pred_region
      %s154 = ssub.s32 %s9, 1
      // Predicated region
      $region13: #{vivit_forward.21} parent=11 // pred_check
        %p155 = pneg %p84
      $region14: #{vivit_forward.21} parent=11 // pred_check_branch
        %157 = sbr.rel (%p155) target = $region16
      $region15: #{vivit_forward.21} parent=11 // pred_region
        %s158 = smul.u32 16, %s21
        %p159 = scmp.lt.s32.totalorder %s158, 15
        %s160 = scalar_select %p159, %s158, 15
        %p161 = scmp.lt.s32.totalorder %s20, 0
        %s162 = scalar_select %p161, %s20, 0
        %s163 = sadd.s32 %s162, %s160
        %s164 = smul.addr %s163, 8
        %s165 = scalar_lea.vmem %s1, %s164
        %s166 = smul.u32 16, %s21
      $region16: #{vivit_forward.21} parent=11 // pred_fallthru
        _
    $region12: #{vivit_forward.21} parent=5 // pred_fallthru
      _
    %p167 = scmp.lt.s32.totalorder %s9, 2
    // Predicated region
    $region17: #{vivit_forward.21} parent=5 // pred_check
      %p168 = pneg %p167
    $region18: #{vivit_forward.21} parent=5 // pred_check_branch
      %170 = sbr.rel (%p168) target = $region20
    $region19: #{vivit_forward.21} parent=5 // pred_region
      // Predicated region
      $region21: #{vivit_forward.21} parent=19 // pred_check
        %p171 = pneg %p50
      $region22: #{vivit_forward.21} parent=19 // pred_check_branch
        %173 = sbr.rel (%p171) target = $region24
      $region23: #{vivit_forward.21} parent=19 // pred_region
        %s174 = smul.u32 4, %s16
        %p175 = scmp.lt.s32.totalorder %s174, 7
        %s176 = scalar_select %p175, %s174, 7
        %p177 = scmp.lt.s32.totalorder %s18, 0
        %s178 = scalar_select %p177, %s18, 0
        %s179 = sadd.s32 %s178, %s176
        %s180 = smul.addr %s179, 8
        %s181 = scalar_lea.vmem %s0, %s180
        %s182 = smul.u32 4, %s16
      $region24: #{vivit_forward.21} parent=19 // pred_fallthru
        _
      // Predicated region
      $region25: #{vivit_forward.21} parent=19 // pred_check
        %p183 = pneg %p106
      $region26: #{vivit_forward.21} parent=19 // pred_check_branch
        %185 = sbr.rel (%p183) target = $region28
      $region27: #{vivit_forward.21} parent=19 // pred_region
        %s186 = smul.u32 4, %s16
        %p187 = scmp.lt.s32.totalorder %s186, 7
        %s188 = scalar_select %p187, %s186, 7
        %p189 = scmp.lt.s32.totalorder %s17, 0
        %s190 = scalar_select %p189, %s17, 0
        %s191 = sadd.s32 %s190, %s188
        %s192 = smul.addr %s191, 8
        %s193 = scalar_lea.vmem %s2, %s192
        %s194 = smul.u32 4, %s16
      $region28: #{vivit_forward.21} parent=19 // pred_fallthru
        _
    $region20: #{vivit_forward.21} parent=5 // pred_fallthru
      _
    %p195 = scmp.le.s32.totalorder 1, %s9
    %p196 = scmp.lt.s32.totalorder %s9, 3
    %p197 = pnand %p195, %p196
    %p198 = pneg %p197
    // Predicated region
    $region29: #{vivit_forward.21} parent=5 // pred_check
      _
    $region30: #{vivit_forward.21} parent=5 // pred_check_branch
      %200 = sbr.rel (%p197) target = $region32
    $region31: #{vivit_forward.21} parent=5 // pred_region
      %s201 = ssub.s32 %s9, 1
      %s202 = smul.u32 4, %s19
      %p203 = scmp.lt.s32.totalorder %s202, 7
      %s204 = scalar_select %p203, %s202, 7
      %p205 = scmp.lt.s32.totalorder %s21, 0
      %s206 = scalar_select %p205, %s21, 0
      %s207 = sadd.s32 %s206, %s204
      %s208 = smul.addr %s207, 8
      %s209 = scalar_lea.vmem %s0, %s208
      %p210 = pneg %p56
      %p211 = pneg %p53
      %s212 = smul.u32 16, %s21
      %p213 = scmp.lt.s32.totalorder %s212, 15
      %s214 = scalar_select %p213, %s212, 15
      %p215 = scmp.lt.s32.totalorder %s20, 0
      %s216 = scalar_select %p215, %s20, 0
      %s217 = sadd.s32 %s216, %s214
      %s218 = smul.addr %s217, 8
      %s219 = scalar_lea.vmem %s1, %s218
      %p220 = pneg %p84
      %p221 = pneg %p81
      %s222 = smul.u32 4, %s19
      %p223 = scmp.lt.s32.totalorder %s222, 7
      %s224 = scalar_select %p223, %s222, 7
      %p225 = scmp.lt.s32.totalorder %s20, 0
      %s226 = scalar_select %p225, %s20, 0
      %s227 = sadd.s32 %s226, %s224
      %s228 = smul.addr %s227, 8
      %s229 = scalar_lea.vmem %s2, %s228
      %p230 = pneg %p112
      %p231 = pneg %p109
      %p232 = pneg %p140
      %p233 = pneg %p137
      %s234 = smul.u32 4, %s19
      %p235 = scmp.lt.s32.totalorder %s234, 7
      %s236 = scalar_select %p235, %s234, 7
      %p237 = scmp.lt.s32.totalorder %s20, 0
      %s238 = scalar_select %p237, %s20, 0
      %s239 = sadd.s32 %s238, %s236
      %s240 = smul.addr %s239, 8
      %s241 = scalar_lea.vmem %s3, %s240
      %s242 = smul.u32 4, %s19
      %p243 = scmp.lt.s32.totalorder %s242, 7
      %s244 = scalar_select %p243, %s242, 7
      %p245 = scmp.lt.s32.totalorder %s21, 0
      %s246 = scalar_select %p245, %s21, 0
      %s247 = sadd.s32 %s246, %s244
      %s248 = smul.addr %s247, 8
      %s249 = scalar_lea.vmem %s0, %s248
      %s250 = smul.u32 4, %s19
      %s251 = smul.u32 16, %s21
      %p252 = scmp.lt.s32.totalorder %s251, 15
      %s253 = scalar_select %p252, %s251, 15
      %p254 = scmp.lt.s32.totalorder %s20, 0
      %s255 = scalar_select %p254, %s20, 0
      %s256 = sadd.s32 %s255, %s253
      %s257 = smul.addr %s256, 8
      %s258 = scalar_lea.vmem %s1, %s257
      %s259 = smul.u32 16, %s21
      %s260 = smul.u32 4, %s19
      %p261 = scmp.lt.s32.totalorder %s260, 7
      %s262 = scalar_select %p261, %s260, 7
      %p263 = scmp.lt.s32.totalorder %s20, 0
      %s264 = scalar_select %p263, %s20, 0
      %s265 = sadd.s32 %s264, %s262
      %s266 = smul.addr %s265, 8
      %s267 = scalar_lea.vmem %s2, %s266
      %s268 = smul.u32 4, %s19
      %s269 = smul.u32 4, %s19
      %p270 = scmp.lt.s32.totalorder %s269, 7
      %s271 = scalar_select %p270, %s269, 7
      %p272 = scmp.lt.s32.totalorder %s20, 0
      %s273 = scalar_select %p272, %s20, 0
      %s274 = sadd.s32 %s273, %s271
      %s275 = smul.addr %s274, 8
      %s276 = scalar_lea.vmem %s3, %s275
      %s277 = smul.u32 4, %s19
      %p279 = scmp.eq.s32.totalorder %s21, 0
      // Predicated region
      $region33: #{vivit_forward.21} parent=31 // pred_check
        %p280 = pneg %p279
      $region34: #{vivit_forward.21} parent=31 // pred_check_branch
        %282 = sbr.rel (%p280) target = $region36
      $region35: #{vivit_forward.21} parent=31 // pred_region
        %283 = vst [vmem:[#allocation2] sm:$0xff] 0.0
        %284 = vst [vmem:[#allocation2 + $0x8] sm:$0xff] 0.0
        %285 = vst [vmem:[#allocation2 + $0x10] sm:$0xff] 0.0
        %286 = vst [vmem:[#allocation2 + $0x18] sm:$0xff] 0.0
      $region36: #{vivit_forward.21} parent=31 // pred_fallthru
        _
      %v287 = vld [vmem:[%s249] sm:$0xff]
      %v288 = vld [vmem:[%s249 + $0x8] sm:$0xff]
      %v289 = vld [vmem:[%s249 + $0x10] sm:$0xff]
      %v290 = vld [vmem:[%s249 + $0x18] sm:$0xff]
      %v291 = vld [vmem:[#allocation2] sm:$0xff]
      %v292 = vld [vmem:[#allocation2 + $0x8] sm:$0xff]
      %v293 = vld [vmem:[#allocation2 + $0x10] sm:$0xff]
      %v294 = vld [vmem:[#allocation2 + $0x18] sm:$0xff]
      %v295 = vpack.c.bf16 %v288, %v287
      %v296 = vpack.c.bf16 %v290, %v289
      %v297 = vld [vmem:[%s258] sm:$0xff]
      %v298 = vld [vmem:[%s258 + $0x8] sm:$0xff]
      %v299 = vld [vmem:[%s258 + $0x10] sm:$0xff]
      %v300 = vld [vmem:[%s258 + $0x18] sm:$0xff]
      %v301 = vld [vmem:[%s258 + $0x20] sm:$0xff]
      %v302 = vld [vmem:[%s258 + $0x28] sm:$0xff]
      %v303 = vld [vmem:[%s258 + $0x30] sm:$0xff]
      %v304 = vld [vmem:[%s258 + $0x38] sm:$0xff]
      %v305 = vld [vmem:[%s258 + $0x40] sm:$0xff]
      %v306 = vld [vmem:[%s258 + $0x48] sm:$0xff]
      %v307 = vld [vmem:[%s258 + $0x50] sm:$0xff]
      %v308 = vld [vmem:[%s258 + $0x58] sm:$0xff]
      %v309 = vld [vmem:[%s258 + $0x60] sm:$0xff]
      %v310 = vld [vmem:[%s258 + $0x68] sm:$0xff]
      %v311 = vld [vmem:[%s258 + $0x70] sm:$0xff]
      %v312 = vld [vmem:[%s258 + $0x78] sm:$0xff]
      %v313 = vpack.c.bf16 %v298, %v297
      %v314 = vpack.c.bf16 %v300, %v299
      %v315 = vpack.c.bf16 %v302, %v301
      %v316 = vpack.c.bf16 %v304, %v303
      %v317 = vpack.c.bf16 %v306, %v305
      %v318 = vpack.c.bf16 %v308, %v307
      %v319 = vpack.c.bf16 %v310, %v309
      %v320 = vpack.c.bf16 %v312, %v311
      %321 = vmatprep.subr.bf16.mxu0 0
      %322 = vmatpush1.bf16.msra.mxu0 %v313
      %323 = vmatprep.subr.bf16.mxu0 0
      %324 = vmatpush1.bf16.msra.mxu0 %v314
      %325 = vmatprep.subr.bf16.mxu0 0
      %326 = vmatpush1.bf16.msra.mxu0 %v315
      %327 = vmatprep.subr.bf16.mxu0 0
      %328 = vmatpush1.bf16.msra.mxu0 %v316
      %329 = vmatprep.subr.bf16.mxu0 0
      %330 = vmatpush1.bf16.msra.mxu0 %v317
      %331 = vmatprep.subr.bf16.mxu0 0
      %332 = vmatpush1.bf16.msra.mxu0 %v318
      %333 = vmatprep.subr.bf16.mxu0 0
      %334 = vmatpush1.bf16.msra.mxu0 %v319
      %335 = vmatprep.subr.bf16.mxu0 0
      %336 = vmatpush1.bf16.msra.mxu0 %v320
      %337 = vmatprep.subr.bf16.mxu0 0
      %338 = vmatpush1.bf16.msra.mxu0 0
      %339 = vmatprep.subr.bf16.mxu0 0
      %340 = vmatpush1.bf16.msra.mxu0 0
      %341 = vmatprep.subr.bf16.mxu0 0
      %342 = vmatpush1.bf16.msra.mxu0 0
      %343 = vmatprep.subr.bf16.mxu0 0
      %344 = vmatpush1.bf16.msra.mxu0 0
      %345 = vmatprep.subr.bf16.mxu0 0
      %346 = vmatpush1.bf16.msra.mxu0 0
      %347 = vmatprep.subr.bf16.mxu0 0
      %348 = vmatpush1.bf16.msra.mxu0 0
      %349 = vmatprep.subr.bf16.mxu0 0
      %350 = vmatpush1.bf16.msra.mxu0 0
      %351 = vmatprep.subr.bf16.mxu0 0
      %352 = vmatpush1.bf16.msra.mxu0 0
      %353 = vmatprep.mubr.bf16.mxu0 0
      %354 = vmatmul.mubr.bf16.gmra.mrb[0].mxu0 %v295
      %v355 = vpop.f32.mrb[0].mxu0
      %v356 = vadd.f32 0.0, %v355
      %v357 = vpop.f32.mrb[0].mxu0
      %v358 = vpop.f32.mrb[0].mxu0
      %v359 = vadd.f32 0.0, %v358
      %v360 = vpop.f32.mrb[0].mxu0
      %361 = vmatprep.mubr.bf16.mxu0 0
      %362 = vmatmul.mubr.bf16.gmra.mrb[0].mxu0 %v296
      %v363 = vpop.f32.mrb[0].mxu0
      %v364 = vadd.f32 0.0, %v363
      %v365 = vpop.f32.mrb[0].mxu0
      %v366 = vpop.f32.mrb[0].mxu0
      %v367 = vadd.f32 0.0, %v366
      %v368 = vpop.f32.mrb[0].mxu0
      %369 = vdwg.mxu0
      %v370 = vadd.f32 %v291, %v356
      %v371 = vadd.f32 %v292, %v359
      %v372 = vadd.f32 %v293, %v364
      %v373 = vadd.f32 %v294, %v367
      %374 = vst [vmem:[#allocation2] sm:$0xff] %v370
      %375 = vst [vmem:[#allocation2 + $0x8] sm:$0xff] %v371
      %376 = vst [vmem:[#allocation2 + $0x10] sm:$0xff] %v372
      %377 = vst [vmem:[#allocation2 + $0x18] sm:$0xff] %v373
      // Predicated region
      $region37: #{vivit_forward.21} parent=31 // pred_check
        %p378 = pneg %p279
      $region38: #{vivit_forward.21} parent=31 // pred_check_branch
        %380 = sbr.rel (%p378) target = $region40
      $region39: #{vivit_forward.21} parent=31 // pred_region
        %v381 = vld [vmem:[#allocation2] sm:$0xff]
        %v382 = vld [vmem:[#allocation2 + $0x8] sm:$0xff]
        %v383 = vld [vmem:[#allocation2 + $0x10] sm:$0xff]
        %v384 = vld [vmem:[#allocation2 + $0x18] sm:$0xff]
        %v385 = vld [vmem:[%s267] sm:$0xff]
        %v386 = vld [vmem:[%s267 + $0x8] sm:$0xff]
        %v387 = vld [vmem:[%s267 + $0x10] sm:$0xff]
        %v388 = vld [vmem:[%s267 + $0x18] sm:$0xff]
        %v389 = vadd.f32 %v381, %v385
        %v390 = vadd.f32 %v382, %v386
        %v391 = vadd.f32 %v383, %v387
        %v392 = vadd.f32 %v384, %v388
        %393 = vst [vmem:[%s276] sm:$0xff] %v389
        %394 = vst [vmem:[%s276 + $0x8] sm:$0xff] %v390
        %395 = vst [vmem:[%s276 + $0x10] sm:$0xff] %v391
        %396 = vst [vmem:[%s276 + $0x18] sm:$0xff] %v392
      $region40: #{vivit_forward.21} parent=31 // pred_fallthru
        _
      %s397 = smul.u32 4, %s19
      %p398 = scmp.lt.s32.totalorder %s397, 7
      %s399 = scalar_select %p398, %s397, 7
      %p400 = scmp.lt.s32.totalorder %s20, 0
      %s401 = scalar_select %p400, %s20, 0
      %s402 = sadd.s32 %s401, %s399
      %s403 = smul.addr %s402, 8
      %s404 = scalar_lea.vmem %s3, %s403
      // Predicated region
      $region41: #{vivit_forward.21} parent=31 // pred_check
        %p405 = pneg %p137
      $region42: #{vivit_forward.21} parent=31 // pred_check_branch
        %407 = sbr.rel (%p405) target = $region44
      $region43: #{vivit_forward.21} parent=31 // pred_region
        %s408 = smul.u32 4, %s19
      $region44: #{vivit_forward.21} parent=31 // pred_fallthru
        _
    $region32: #{vivit_forward.21} parent=5 // pred_fallthru
      _
    %p409 = scmp.le.s32.totalorder 2, %s9
    // Predicated region
    $region45: #{vivit_forward.21} parent=5 // pred_check
      %p410 = pneg %p409
    $region46: #{vivit_forward.21} parent=5 // pred_check_branch
      %412 = sbr.rel (%p410) target = $region48
    $region47: #{vivit_forward.21} parent=5 // pred_region
      %s413 = ssub.s32 %s9, 2
      // Predicated region
      $region49: #{vivit_forward.21} parent=47 // pred_check
        %p414 = pneg %p143
      $region50: #{vivit_forward.21} parent=47 // pred_check_branch
        %416 = sbr.rel (%p414) target = $region52
      $region51: #{vivit_forward.21} parent=47 // pred_region
        %s417 = smul.u32 4, %s22
        %p418 = scmp.lt.s32.totalorder %s417, 7
        %s419 = scalar_select %p418, %s417, 7
        %p420 = scmp.lt.s32.totalorder %s23, 0
        %s421 = scalar_select %p420, %s23, 0
        %s422 = sadd.s32 %s421, %s419
        %s423 = smul.addr %s422, 8
        %s424 = scalar_lea.vmem %s3, %s423
      $region52: #{vivit_forward.21} parent=47 // pred_fallthru
        _
    $region48: #{vivit_forward.21} parent=5 // pred_fallthru
      _
  $region6: #{vivit_forward.21} parent=0 // loop_footer
    %s13 = sadd.s32 1, %s9
  $region7: #{vivit_forward.21} parent=0 // loop_footer_branch
    %8 = sbr.rel target = $region3
  $region8: #{vivit_forward.21} parent=0 // loop_exit
    _

// kernel: vivit_forward.19
$region0: #{vivit_forward.19}
  #allocation0 [shape = 'u32[]', space=smem, size = 0x4, offset = 0x4, fixed_abs, tag = 'smem constant byte address 0x4 - core index']
  #allocation1 [shape = 'u32[144,128]{1,0:T(1,128)}', space=vmem, size = 0x12000, scoped, tag = 'internal scratch']
  %s0 = inlined_call_operand.vmem [shape: f32[32,2,768], index: 0, kind: input, shape index: {}, may-alias: {0,1,2}]
  %s1 = inlined_call_operand.vmem [shape: f32[32,2,768], index: 1, kind: input, shape index: {}, may-alias: {0,1,2}]
  %s2 = inlined_call_operand.vmem [shape: f32[32,2,768], index: 2, kind: input, shape index: {}, may-alias: {0,1,2}]
  %s3 = inlined_call_operand.vmem [shape: f32[32,2,128], index: 3, kind: output, shape index: {}]
  %s4 = sld [smem:[#allocation0]]
  $region168: #{vivit_forward.19} parent=0
    _
  %s6 = ssub.s32 1, %s4
  %s7 = scalar_select 0, %s6, %s4
  $region1: #{vivit_forward.19} parent=0
    #allocation2 [shape = 'u8[32768]{0}', space=vmem, size = 0x8000, scoped, tag = 'input window, operand 0']
    #allocation3 [shape = 'u8[32768]{0}', space=vmem, size = 0x8000, scoped, tag = 'input window, operand 1']
    #allocation4 [shape = 'u8[32768]{0}', space=vmem, size = 0x8000, scoped, tag = 'input window, operand 2']
    loop: start=0, step=1, limit=4
    $region2: #{vivit_forward.19} parent=1 // loop_pre_header
      _
    $region3: #{vivit_forward.19} parent=1 // loop_header
      %s9 = sphi 0, %s13
      %p10 = scmp.ge.s32.totalorder %s9, 4
      %s19 = sphi 0, %s21
      %s22 = sphi 0, %s19
      %s23 = sphi 0, %s22
      %s39 = sphi 0, %s23
      %s45 = sphi 0, %s47
      %s48 = sphi 0, %s45
      %s49 = sphi 0, %s48
      %s65 = sphi 0, %s49
      %s71 = sphi 0, %s73
      %s74 = sphi 0, %s71
      %s75 = sphi 0, %s74
      %s91 = sphi 0, %s75
      %s97 = sphi 0, %s99
      %s100 = sphi 0, %s97
      %s101 = sphi 0, %s100
      %s117 = sphi 0, %s101
    $region4: #{vivit_forward.19} parent=1 // loop_header_branch
      %12 = sbr.rel (%p10) target = $region8
    $region5: #{vivit_forward.19} parent=1 // loop_body
      %s14 = ssub.s32 %s9, 1
      %s15 = ssub.s32 %s9, 2
      %s16 = sadd.s32 %s9, 1
      %s17 = ssub.s32 %s9, %s16
      %p18 = scmp.eq.s32.totalorder %s17, 0
      %s20 = sadd.s32 %s19, 1
      %s21 = scalar_select %p18, %s19, %s20
      %p24 = pneg %p18
      %p25 = scmp.eq.s32.totalorder %s9, 1
      %p26 = por %p24, %p25
      %p27 = scmp.ne.s32.totalorder %s19, %s22
      %p28 = scmp.eq.s32.totalorder %s9, 0
      %p29 = por %p27, %p28
      %p30 = scmp.ne.s32.totalorder %s19, %s22
      %p31 = scmp.eq.s32.totalorder %s14, 1
      %p32 = por %p30, %p31
      %p33 = scmp.ne.s32.totalorder %s22, %s23
      %p34 = scmp.eq.s32.totalorder %s14, 0
      %p35 = por %p33, %p34
      %p36 = scmp.ne.s32.totalorder %s22, %s23
      %p37 = scmp.eq.s32.totalorder %s15, 1
      %p38 = por %p36, %p37
      %p40 = scmp.ne.s32.totalorder %s23, %s39
      %p41 = scmp.eq.s32.totalorder %s15, 0
      %p42 = por %p40, %p41
      %s43 = ssub.s32 %s9, %s16
      %p44 = scmp.eq.s32.totalorder %s43, 0
      %s46 = sadd.s32 %s45, 1
      %s47 = scalar_select %p44, %s45, %s46
      %p50 = pneg %p44
      %p51 = scmp.eq.s32.totalorder %s9, 1
      %p52 = por %p50, %p51
      %p53 = scmp.ne.s32.totalorder %s45, %s48
      %p54 = scmp.eq.s32.totalorder %s9, 0
      %p55 = por %p53, %p54
      %p56 = scmp.ne.s32.totalorder %s45, %s48
      %p57 = scmp.eq.s32.totalorder %s14, 1
      %p58 = por %p56, %p57
      %p59 = scmp.ne.s32.totalorder %s48, %s49
      %p60 = scmp.eq.s32.totalorder %s14, 0
      %p61 = por %p59, %p60
      %p62 = scmp.ne.s32.totalorder %s48, %s49
      %p63 = scmp.eq.s32.totalorder %s15, 1
      %p64 = por %p62, %p63
      %p66 = scmp.ne.s32.totalorder %s49, %s65
      %p67 = scmp.eq.s32.totalorder %s15, 0
      %p68 = por %p66, %p67
      %s69 = ssub.s32 %s9, %s16
      %p70 = scmp.eq.s32.totalorder %s69, 0
      %s72 = sadd.s32 %s71, 1
      %s73 = scalar_select %p70, %s71, %s72
      %p76 = pneg %p70
      %p77 = scmp.eq.s32.totalorder %s9, 1
      %p78 = por %p76, %p77
      %p79 = scmp.ne.s32.totalorder %s71, %s74
      %p80 = scmp.eq.s32.totalorder %s9, 0
      %p81 = por %p79, %p80
      %p82 = scmp.ne.s32.totalorder %s71, %s74
      %p83 = scmp.eq.s32.totalorder %s14, 1
      %p84 = por %p82, %p83
      %p85 = scmp.ne.s32.totalorder %s74, %s75
      %p86 = scmp.eq.s32.totalorder %s14, 0
      %p87 = por %p85, %p86
      %p88 = scmp.ne.s32.totalorder %s74, %s75
      %p89 = scmp.eq.s32.totalorder %s15, 1
      %p90 = por %p88, %p89
      %p92 = scmp.ne.s32.totalorder %s75, %s91
      %p93 = scmp.eq.s32.totalorder %s15, 0
      %p94 = por %p92, %p93
      %s95 = ssub.s32 %s9, %s16
      %p96 = scmp.eq.s32.totalorder %s95, 0
      %s98 = sadd.s32 %s97, 1
      %s99 = scalar_select %p96, %s97, %s98
      %p102 = pneg %p96
      %p103 = scmp.eq.s32.totalorder %s9, 1
      %p104 = por %p102, %p103
      %p105 = scmp.ne.s32.totalorder %s97, %s100
      %p106 = scmp.eq.s32.totalorder %s9, 0
      %p107 = por %p105, %p106
      %p108 = scmp.ne.s32.totalorder %s97, %s100
      %p109 = scmp.eq.s32.totalorder %s14, 1
      %p110 = por %p108, %p109
      %p111 = scmp.ne.s32.totalorder %s100, %s101
      %p112 = scmp.eq.s32.totalorder %s14, 0
      %p113 = por %p111, %p112
      %p114 = scmp.ne.s32.totalorder %s100, %s101
      %p115 = scmp.eq.s32.totalorder %s15, 1
      %p116 = por %p114, %p115
      %p118 = scmp.ne.s32.totalorder %s101, %s117
      %p119 = scmp.eq.s32.totalorder %s15, 0
      %p120 = por %p118, %p119
      %p121 = scmp.le.s32.totalorder 1, %s9
      %p122 = scmp.lt.s32.totalorder %s9, 3
      %p123 = pnand %p121, %p122
      %p124 = pneg %p123
      // Predicated region
      $region9: #{vivit_forward.19} parent=5 // pred_check
        _
      $region10: #{vivit_forward.19} parent=5 // pred_check_branch
        %126 = sbr.rel (%p123) target = $region12
      $region11: #{vivit_forward.19} parent=5 // pred_region
        %s127 = ssub.s32 %s9, 1
      $region12: #{vivit_forward.19} parent=5 // pred_fallthru
        _
      %p128 = scmp.lt.s32.totalorder %s9, 2
      // Predicated region
      $region13: #{vivit_forward.19} parent=5 // pred_check
        %p129 = pneg %p128
      $region14: #{vivit_forward.19} parent=5 // pred_check_branch
        %131 = sbr.rel (%p129) target = $region16
      $region15: #{vivit_forward.19} parent=5 // pred_region
        // Predicated region
        $region17: #{vivit_forward.19} parent=15 // pred_check
          %p132 = pneg %p29
        $region18: #{vivit_forward.19} parent=15 // pred_check_branch
          %134 = sbr.rel (%p132) target = $region20
        $region19: #{vivit_forward.19} parent=15 // pred_region
          %s135 = sand.u32 %s19, 1
          %s136 = sand.u32 %s19, 1
          %s137 = smul.addr %s136, 32
          %s138 = scalar_lea.vmem [#allocation2], %s137
          %s139 = smul.u32 16, %s9
          %s140 = smul.addr %s139, 6
          %s141 = sadd.s32 1, %s140
          %s142 = smul.addr %s141, 2
          %s143 = scalar_lea.vmem %s0, %s142
          // Predicated region
          $region21: #{vivit_forward.19} parent=19 // pred_check
            _
          $region22: #{vivit_forward.19} parent=19 // pred_check_branch
            %145 = sbr.rel (0) target = $region24
          $region23: #{vivit_forward.19} parent=19 // pred_region
            // Predicated region
            $region25: #{vivit_forward.19} parent=23 // pred_check
              _
            $region26: #{vivit_forward.19} parent=23 // pred_check_branch
              %147 = sbr.rel target = $region28
            $region27: #{vivit_forward.19} parent=23 // pred_region
              // Predicated region
              $region40: #{vivit_forward.19} parent=27 // pred_check
                _
              $region41: #{vivit_forward.19} parent=27 // pred_check_branch
                %192 = sbr.rel (0) target = $region43
              $region42: #{vivit_forward.19} parent=27 // pred_region
                loop: start=0, step=1, limit=1
                $region44: #{vivit_forward.19} parent=42 // loop_pre_header
                  _
                $region45: #{vivit_forward.19} parent=42 // loop_header
                  %s194 = sphi 0, %s198
                  %p195 = scmp.ge.s32.totalorder %s194, 1
                  %s199 = sphi %s143, %s143
                  %s200 = sphi %s138, %s138
                $region46: #{vivit_forward.19} parent=42 // loop_header_branch
                  %197 = sbr.rel (%p195) target = $region50
                $region47: #{vivit_forward.19} parent=42 // loop_body
                  _
                $region48: #{vivit_forward.19} parent=42 // loop_footer
                  %s198 = sadd.s32 1, %s194
                $region49: #{vivit_forward.19} parent=42 // loop_footer_branch
                  %193 = sbr.rel target = $region45
                $region50: #{vivit_forward.19} parent=42 // loop_exit
                  _
                loop: start=0, step=1, limit=1
                $region51: #{vivit_forward.19} parent=42 // loop_pre_header
                  _
                $region52: #{vivit_forward.19} parent=42 // loop_header
                  %s203 = sphi 0, %s207
                  %p204 = scmp.ge.s32.totalorder %s203, 1
                  %s208 = sphi %s143, %s143
                  %s209 = sphi %s138, %s138
                $region53: #{vivit_forward.19} parent=42 // loop_header_branch
                  %206 = sbr.rel (%p204) target = $region57
                $region54: #{vivit_forward.19} parent=42 // loop_body
                  %v210 = vld [vmem:[%s208] sm:$0x3]
                  %211 = vst [vmem:[%s209] sm:$0x3] %v210
                  %v212 = vld [vmem:[%s208 + $0xc] sm:$0x3]
                  %213 = vst [vmem:[%s209 + $0x2] sm:$0x3] %v212
                  %v214 = vld [vmem:[%s208 + $0x18] sm:$0x3]
                  %215 = vst [vmem:[%s209 + $0x4] sm:$0x3] %v214
                  %v216 = vld [vmem:[%s208 + $0x24] sm:$0x3]
                  %217 = vst [vmem:[%s209 + $0x6] sm:$0x3] %v216
                  %v218 = vld [vmem:[%s208 + $0x30] sm:$0x3]
                  %219 = vst [vmem:[%s209 + $0x8] sm:$0x3] %v218
                  %v220 = vld [vmem:[%s208 + $0x3c] sm:$0x3]
                  %221 = vst [vmem:[%s209 + $0xa] sm:$0x3] %v220
                  %v222 = vld [vmem:[%s208 + $0x48] sm:$0x3]
                  %223 = vst [vmem:[%s209 + $0xc] sm:$0x3] %v222
                  %v224 = vld [vmem:[%s208 + $0x54] sm:$0x3]
                  %225 = vst [vmem:[%s209 + $0xe] sm:$0x3] %v224
                  %v226 = vld [vmem:[%s208 + $0x60] sm:$0x3]
                  %227 = vst [vmem:[%s209 + $0x10] sm:$0x3] %v226
                  %v228 = vld [vmem:[%s208 + $0x6c] sm:$0x3]
                  %229 = vst [vmem:[%s209 + $0x12] sm:$0x3] %v228
                  %v230 = vld [vmem:[%s208 + $0x78] sm:$0x3]
                  %231 = vst [vmem:[%s209 + $0x14] sm:$0x3] %v230
                  %v232 = vld [vmem:[%s208 + $0x84] sm:$0x3]
                  %233 = vst [vmem:[%s209 + $0x16] sm:$0x3] %v232
                  %v234 = vld [vmem:[%s208 + $0x90] sm:$0x3]
                  %235 = vst [vmem:[%s209 + $0x18] sm:$0x3] %v234
                  %v236 = vld [vmem:[%s208 + $0x9c] sm:$0x3]
                  %237 = vst [vmem:[%s209 + $0x1a] sm:$0x3] %v236
                  %v238 = vld [vmem:[%s208 + $0xa8] sm:$0x3]
                  %239 = vst [vmem:[%s209 + $0x1c] sm:$0x3] %v238
                  %v240 = vld [vmem:[%s208 + $0xb4] sm:$0x3]
                  %241 = vst [vmem:[%s209 + $0x1e] sm:$0x3] %v240
                $region55: #{vivit_forward.19} parent=42 // loop_footer
                  %s207 = sadd.s32 1, %s203
                $region56: #{vivit_forward.19} parent=42 // loop_footer_branch
                  %202 = sbr.rel target = $region52
                $region57: #{vivit_forward.19} parent=42 // loop_exit
                  _
              $region43: #{vivit_forward.19} parent=27 // pred_fallthru
                _
            $region28: #{vivit_forward.19} parent=23 // pred_fallthru
              _
            // Predicated region
            $region29: #{vivit_forward.19} parent=23 // pred_check
              _
            $region30: #{vivit_forward.19} parent=23 // pred_check_branch
              %149 = sbr.rel (0) target = $region32
            $region31: #{vivit_forward.19} parent=23 // pred_region
              loop: start=0, step=1, limit=1
              $region33: #{vivit_forward.19} parent=31 // loop_pre_header
                _
              $region34: #{vivit_forward.19} parent=31 // loop_header
                %s152 = sphi 0, %s156
                %p153 = scmp.ge.s32.totalorder %s152, 1
                %s157 = sphi %s143, %s143
                %s158 = sphi %s138, %s138
              $region35: #{vivit_forward.19} parent=31 // loop_header_branch
                %155 = sbr.rel (%p153) target = $region39
              $region36: #{vivit_forward.19} parent=31 // loop_body
                %v159 = vld [vmem:[%s157] sm:$0x3]
                %160 = vst [vmem:[%s158] sm:$0x3] %v159
                %v161 = vld [vmem:[%s157 + $0xc] sm:$0x3]
                %162 = vst [vmem:[%s158 + $0x2] sm:$0x3] %v161
                %v163 = vld [vmem:[%s157 + $0x18] sm:$0x3]
                %164 = vst [vmem:[%s158 + $0x4] sm:$0x3] %v163
                %v165 = vld [vmem:[%s157 + $0x24] sm:$0x3]
                %166 = vst [vmem:[%s158 + $0x6] sm:$0x3] %v165
                %v167 = vld [vmem:[%s157 + $0x30] sm:$0x3]
                %168 = vst [vmem:[%s158 + $0x8] sm:$0x3] %v167
                %v169 = vld [vmem:[%s157 + $0x3c] sm:$0x3]
                %170 = vst [vmem:[%s158 + $0xa] sm:$0x3] %v169
                %v171 = vld [vmem:[%s157 + $0x48] sm:$0x3]
                %172 = vst [vmem:[%s158 + $0xc] sm:$0x3] %v171
                %v173 = vld [vmem:[%s157 + $0x54] sm:$0x3]
                %174 = vst [vmem:[%s158 + $0xe] sm:$0x3] %v173
                %v175 = vld [vmem:[%s157 + $0x60] sm:$0x3]
                %176 = vst [vmem:[%s158 + $0x10] sm:$0x3] %v175
                %v177 = vld [vmem:[%s157 + $0x6c] sm:$0x3]
                %178 = vst [vmem:[%s158 + $0x12] sm:$0x3] %v177
                %v179 = vld [vmem:[%s157 + $0x78] sm:$0x3]
                %180 = vst [vmem:[%s158 + $0x14] sm:$0x3] %v179
                %v181 = vld [vmem:[%s157 + $0x84] sm:$0x3]
                %182 = vst [vmem:[%s158 + $0x16] sm:$0x3] %v181
                %v183 = vld [vmem:[%s157 + $0x90] sm:$0x3]
                %184 = vst [vmem:[%s158 + $0x18] sm:$0x3] %v183
                %v185 = vld [vmem:[%s157 + $0x9c] sm:$0x3]
                %186 = vst [vmem:[%s158 + $0x1a] sm:$0x3] %v185
                %v187 = vld [vmem:[%s157 + $0xa8] sm:$0x3]
                %188 = vst [vmem:[%s158 + $0x1c] sm:$0x3] %v187
                %v189 = vld [vmem:[%s157 + $0xb4] sm:$0x3]
                %190 = vst [vmem:[%s158 + $0x1e] sm:$0x3] %v189
              $region37: #{vivit_forward.19} parent=31 // loop_footer
                %s156 = sadd.s32 1, %s152
              $region38: #{vivit_forward.19} parent=31 // loop_footer_branch
                %151 = sbr.rel target = $region34
              $region39: #{vivit_forward.19} parent=31 // loop_exit
                _
            $region32: #{vivit_forward.19} parent=23 // pred_fallthru
              _
          $region24: #{vivit_forward.19} parent=19 // pred_fallthru
            _
          %242 = vnop
        $region20: #{vivit_forward.19} parent=15 // pred_fallthru
          _
        // Predicated region
        $region58: #{vivit_forward.19} parent=15 // pred_check
          %p243 = pneg %p55
        $region59: #{vivit_forward.19} parent=15 // pred_check_branch
          %245 = sbr.rel (%p243) target = $region61
        $region60: #{vivit_forward.19} parent=15 // pred_region
          %s246 = sand.u32 %s45, 1
          %s247 = sand.u32 %s45, 1
          %s248 = smul.addr %s247, 32
          %s249 = scalar_lea.vmem [#allocation3], %s248
          %s250 = smul.u32 16, %s9
          %s251 = smul.addr %s250, 6
          %s252 = sadd.s32 3, %s251
          %s253 = smul.addr %s252, 2
          %s254 = scalar_lea.vmem %s1, %s253
          // Predicated region
          $region62: #{vivit_forward.19} parent=60 // pred_check
            _
          $region63: #{vivit_forward.19} parent=60 // pred_check_branch
            %256 = sbr.rel (0) target = $region65
          $region64: #{vivit_forward.19} parent=60 // pred_region
            // Predicated region
            $region66: #{vivit_forward.19} parent=64 // pred_check
              _
            $region67: #{vivit_forward.19} parent=64 // pred_check_branch
              %258 = sbr.rel target = $region69
            $region68: #{vivit_forward.19} parent=64 // pred_region
              // Predicated region
              $region81: #{vivit_forward.19} parent=68 // pred_check
                _
              $region82: #{vivit_forward.19} parent=68 // pred_check_branch
                %303 = sbr.rel (0) target = $region84
              $region83: #{vivit_forward.19} parent=68 // pred_region
                loop: start=0, step=1, limit=1
                $region85: #{vivit_forward.19} parent=83 // loop_pre_header
                  _
                $region86: #{vivit_forward.19} parent=83 // loop_header
                  %s305 = sphi 0, %s309
                  %p306 = scmp.ge.s32.totalorder %s305, 1
                  %s310 = sphi %s254, %s254
                  %s311 = sphi %s249, %s249
                $region87: #{vivit_forward.19} parent=83 // loop_header_branch
                  %308 = sbr.rel (%p306) target = $region91
                $region88: #{vivit_forward.19} parent=83 // loop_body
                  _
                $region89: #{vivit_forward.19} parent=83 // loop_footer
                  %s309 = sadd.s32 1, %s305
                $region90: #{vivit_forward.19} parent=83 // loop_footer_branch
                  %304 = sbr.rel target = $region86
                $region91: #{vivit_forward.19} parent=83 // loop_exit
                  _
                loop: start=0, step=1, limit=1
                $region92: #{vivit_forward.19} parent=83 // loop_pre_header
                  _
                $region93: #{vivit_forward.19} parent=83 // loop_header
                  %s314 = sphi 0, %s318
                  %p315 = scmp.ge.s32.totalorder %s314, 1
                  %s319 = sphi %s254, %s254
                  %s320 = sphi %s249, %s249
                $region94: #{vivit_forward.19} parent=83 // loop_header_branch
                  %317 = sbr.rel (%p315) target = $region98
                $region95: #{vivit_forward.19} parent=83 // loop_body
                  %v321 = vld [vmem:[%s319] sm:$0x3]
                  %322 = vst [vmem:[%s320] sm:$0x3] %v321
                  %v323 = vld [vmem:[%s319 + $0xc] sm:$0x3]
                  %324 = vst [vmem:[%s320 + $0x2] sm:$0x3] %v323
                  %v325 = vld [vmem:[%s319 + $0x18] sm:$0x3]
                  %326 = vst [vmem:[%s320 + $0x4] sm:$0x3] %v325
                  %v327 = vld [vmem:[%s319 + $0x24] sm:$0x3]
                  %328 = vst [vmem:[%s320 + $0x6] sm:$0x3] %v327
                  %v329 = vld [vmem:[%s319 + $0x30] sm:$0x3]
                  %330 = vst [vmem:[%s320 + $0x8] sm:$0x3] %v329
                  %v331 = vld [vmem:[%s319 + $0x3c] sm:$0x3]
                  %332 = vst [vmem:[%s320 + $0xa] sm:$0x3] %v331
                  %v333 = vld [vmem:[%s319 + $0x48] sm:$0x3]
                  %334 = vst [vmem:[%s320 + $0xc] sm:$0x3] %v333
                  %v335 = vld [vmem:[%s319 + $0x54] sm:$0x3]
                  %336 = vst [vmem:[%s320 + $0xe] sm:$0x3] %v335
                  %v337 = vld [vmem:[%s319 + $0x60] sm:$0x3]
                  %338 = vst [vmem:[%s320 + $0x10] sm:$0x3] %v337
                  %v339 = vld [vmem:[%s319 + $0x6c] sm:$0x3]
                  %340 = vst [vmem:[%s320 + $0x12] sm:$0x3] %v339
                  %v341 = vld [vmem:[%s319 + $0x78] sm:$0x3]
                  %342 = vst [vmem:[%s320 + $0x14] sm:$0x3] %v341
                  %v343 = vld [vmem:[%s319 + $0x84] sm:$0x3]
                  %344 = vst [vmem:[%s320 + $0x16] sm:$0x3] %v343
                  %v345 = vld [vmem:[%s319 + $0x90] sm:$0x3]
                  %346 = vst [vmem:[%s320 + $0x18] sm:$0x3] %v345
                  %v347 = vld [vmem:[%s319 + $0x9c] sm:$0x3]
                  %348 = vst [vmem:[%s320 + $0x1a] sm:$0x3] %v347
                  %v349 = vld [vmem:[%s319 + $0xa8] sm:$0x3]
                  %350 = vst [vmem:[%s320 + $0x1c] sm:$0x3] %v349
                  %v351 = vld [vmem:[%s319 + $0xb4] sm:$0x3]
                  %352 = vst [vmem:[%s320 + $0x1e] sm:$0x3] %v351
                $region96: #{vivit_forward.19} parent=83 // loop_footer
                  %s318 = sadd.s32 1, %s314
                $region97: #{vivit_forward.19} parent=83 // loop_footer_branch
                  %313 = sbr.rel target = $region93
                $region98: #{vivit_forward.19} parent=83 // loop_exit
                  _
              $region84: #{vivit_forward.19} parent=68 // pred_fallthru
                _
            $region69: #{vivit_forward.19} parent=64 // pred_fallthru
              _
            // Predicated region
            $region70: #{vivit_forward.19} parent=64 // pred_check
              _
            $region71: #{vivit_forward.19} parent=64 // pred_check_branch
              %260 = sbr.rel (0) target = $region73
            $region72: #{vivit_forward.19} parent=64 // pred_region
              loop: start=0, step=1, limit=1
              $region74: #{vivit_forward.19} parent=72 // loop_pre_header
                _
              $region75: #{vivit_forward.19} parent=72 // loop_header
                %s263 = sphi 0, %s267
                %p264 = scmp.ge.s32.totalorder %s263, 1
                %s268 = sphi %s254, %s254
                %s269 = sphi %s249, %s249
              $region76: #{vivit_forward.19} parent=72 // loop_header_branch
                %266 = sbr.rel (%p264) target = $region80
              $region77: #{vivit_forward.19} parent=72 // loop_body
                %v270 = vld [vmem:[%s268] sm:$0x3]
                %271 = vst [vmem:[%s269] sm:$0x3] %v270
                %v272 = vld [vmem:[%s268 + $0xc] sm:$0x3]
                %273 = vst [vmem:[%s269 + $0x2] sm:$0x3] %v272
                %v274 = vld [vmem:[%s268 + $0x18] sm:$0x3]
                %275 = vst [vmem:[%s269 + $0x4] sm:$0x3] %v274
                %v276 = vld [vmem:[%s268 + $0x24] sm:$0x3]
                %277 = vst [vmem:[%s269 + $0x6] sm:$0x3] %v276
                %v278 = vld [vmem:[%s268 + $0x30] sm:$0x3]
                %279 = vst [vmem:[%s269 + $0x8] sm:$0x3] %v278
                %v280 = vld [vmem:[%s268 + $0x3c] sm:$0x3]
                %281 = vst [vmem:[%s269 + $0xa] sm:$0x3] %v280
                %v282 = vld [vmem:[%s268 + $0x48] sm:$0x3]
                %283 = vst [vmem:[%s269 + $0xc] sm:$0x3] %v282
                %v284 = vld [vmem:[%s268 + $0x54] sm:$0x3]
                %285 = vst [vmem:[%s269 + $0xe] sm:$0x3] %v284
                %v286 = vld [vmem:[%s268 + $0x60] sm:$0x3]
                %287 = vst [vmem:[%s269 + $0x10] sm:$0x3] %v286
                %v288 = vld [vmem:[%s268 + $0x6c] sm:$0x3]
                %289 = vst [vmem:[%s269 + $0x12] sm:$0x3] %v288
                %v290 = vld [vmem:[%s268 + $0x78] sm:$0x3]
                %291 = vst [vmem:[%s269 + $0x14] sm:$0x3] %v290
                %v292 = vld [vmem:[%s268 + $0x84] sm:$0x3]
                %293 = vst [vmem:[%s269 + $0x16] sm:$0x3] %v292
                %v294 = vld [vmem:[%s268 + $0x90] sm:$0x3]
                %295 = vst [vmem:[%s269 + $0x18] sm:$0x3] %v294
                %v296 = vld [vmem:[%s268 + $0x9c] sm:$0x3]
                %297 = vst [vmem:[%s269 + $0x1a] sm:$0x3] %v296
                %v298 = vld [vmem:[%s268 + $0xa8] sm:$0x3]
                %299 = vst [vmem:[%s269 + $0x1c] sm:$0x3] %v298
                %v300 = vld [vmem:[%s268 + $0xb4] sm:$0x3]
                %301 = vst [vmem:[%s269 + $0x1e] sm:$0x3] %v300
              $region78: #{vivit_forward.19} parent=72 // loop_footer
                %s267 = sadd.s32 1, %s263
              $region79: #{vivit_forward.19} parent=72 // loop_footer_branch
                %262 = sbr.rel target = $region75
              $region80: #{vivit_forward.19} parent=72 // loop_exit
                _
            $region73: #{vivit_forward.19} parent=64 // pred_fallthru
              _
          $region65: #{vivit_forward.19} parent=60 // pred_fallthru
            _
          %353 = vnop
        $region61: #{vivit_forward.19} parent=15 // pred_fallthru
          _
        // Predicated region
        $region99: #{vivit_forward.19} parent=15 // pred_check
          %p354 = pneg %p81
        $region100: #{vivit_forward.19} parent=15 // pred_check_branch
          %356 = sbr.rel (%p354) target = $region102
        $region101: #{vivit_forward.19} parent=15 // pred_region
          %s357 = sand.u32 %s71, 1
          %s358 = sand.u32 %s71, 1
          %s359 = smul.addr %s358, 32
          %s360 = scalar_lea.vmem [#allocation4], %s359
          %s361 = smul.u32 16, %s9
          %s362 = smul.addr %s361, 6
          %s363 = sadd.s32 5, %s362
          %s364 = smul.addr %s363, 2
          %s365 = scalar_lea.vmem %s2, %s364
          // Predicated region
          $region103: #{vivit_forward.19} parent=101 // pred_check
            _
          $region104: #{vivit_forward.19} parent=101 // pred_check_branch
            %367 = sbr.rel (0) target = $region106
          $region105: #{vivit_forward.19} parent=101 // pred_region
            // Predicated region
            $region107: #{vivit_forward.19} parent=105 // pred_check
              _
            $region108: #{vivit_forward.19} parent=105 // pred_check_branch
              %369 = sbr.rel target = $region110
            $region109: #{vivit_forward.19} parent=105 // pred_region
              // Predicated region
              $region122: #{vivit_forward.19} parent=109 // pred_check
                _
              $region123: #{vivit_forward.19} parent=109 // pred_check_branch
                %414 = sbr.rel (0) target = $region125
              $region124: #{vivit_forward.19} parent=109 // pred_region
                loop: start=0, step=1, limit=1
                $region126: #{vivit_forward.19} parent=124 // loop_pre_header
                  _
                $region127: #{vivit_forward.19} parent=124 // loop_header
                  %s416 = sphi 0, %s420
                  %p417 = scmp.ge.s32.totalorder %s416, 1
                  %s421 = sphi %s365, %s365
                  %s422 = sphi %s360, %s360
                $region128: #{vivit_forward.19} parent=124 // loop_header_branch
                  %419 = sbr.rel (%p417) target = $region132
                $region129: #{vivit_forward.19} parent=124 // loop_body
                  _
                $region130: #{vivit_forward.19} parent=124 // loop_footer
                  %s420 = sadd.s32 1, %s416
                $region131: #{vivit_forward.19} parent=124 // loop_footer_branch
                  %415 = sbr.rel target = $region127
                $region132: #{vivit_forward.19} parent=124 // loop_exit
                  _
                loop: start=0, step=1, limit=1
                $region133: #{vivit_forward.19} parent=124 // loop_pre_header
                  _
                $region134: #{vivit_forward.19} parent=124 // loop_header
                  %s425 = sphi 0, %s429
                  %p426 = scmp.ge.s32.totalorder %s425, 1
                  %s430 = sphi %s365, %s365
                  %s431 = sphi %s360, %s360
                $region135: #{vivit_forward.19} parent=124 // loop_header_branch
                  %428 = sbr.rel (%p426) target = $region139
                $region136: #{vivit_forward.19} parent=124 // loop_body
                  %v432 = vld [vmem:[%s430] sm:$0x3]
                  %433 = vst [vmem:[%s431] sm:$0x3] %v432
                  %v434 = vld [vmem:[%s430 + $0xc] sm:$0x3]
                  %435 = vst [vmem:[%s431 + $0x2] sm:$0x3] %v434
                  %v436 = vld [vmem:[%s430 + $0x18] sm:$0x3]
                  %437 = vst [vmem:[%s431 + $0x4] sm:$0x3] %v436
                  %v438 = vld [vmem:[%s430 + $0x24] sm:$0x3]
                  %439 = vst [vmem:[%s431 + $0x6] sm:$0x3] %v438
                  %v440 = vld [vmem:[%s430 + $0x30] sm:$0x3]
                  %441 = vst [vmem:[%s431 + $0x8] sm:$0x3] %v440
                  %v442 = vld [vmem:[%s430 + $0x3c] sm:$0x3]
                  %443 = vst [vmem:[%s431 + $0xa] sm:$0x3] %v442
                  %v444 = vld [vmem:[%s430 + $0x48] sm:$0x3]
                  %445 = vst [vmem:[%s431 + $0xc] sm:$0x3] %v444
                  %v446 = vld [vmem:[%s430 + $0x54] sm:$0x3]
                  %447 = vst [vmem:[%s431 + $0xe] sm:$0x3] %v446
                  %v448 = vld [vmem:[%s430 + $0x60] sm:$0x3]
                  %449 = vst [vmem:[%s431 + $0x10] sm:$0x3] %v448
                  %v450 = vld [vmem:[%s430 + $0x6c] sm:$0x3]
                  %451 = vst [vmem:[%s431 + $0x12] sm:$0x3] %v450
                  %v452 = vld [vmem:[%s430 + $0x78] sm:$0x3]
                  %453 = vst [vmem:[%s431 + $0x14] sm:$0x3] %v452
                  %v454 = vld [vmem:[%s430 + $0x84] sm:$0x3]
                  %455 = vst [vmem:[%s431 + $0x16] sm:$0x3] %v454
                  %v456 = vld [vmem:[%s430 + $0x90] sm:$0x3]
                  %457 = vst [vmem:[%s431 + $0x18] sm:$0x3] %v456
                  %v458 = vld [vmem:[%s430 + $0x9c] sm:$0x3]
                  %459 = vst [vmem:[%s431 + $0x1a] sm:$0x3] %v458
                  %v460 = vld [vmem:[%s430 + $0xa8] sm:$0x3]
                  %461 = vst [vmem:[%s431 + $0x1c] sm:$0x3] %v460
                  %v462 = vld [vmem:[%s430 + $0xb4] sm:$0x3]
                  %463 = vst [vmem:[%s431 + $0x1e] sm:$0x3] %v462
                $region137: #{vivit_forward.19} parent=124 // loop_footer
                  %s429 = sadd.s32 1, %s425
                $region138: #{vivit_forward.19} parent=124 // loop_footer_branch
                  %424 = sbr.rel target = $region134
                $region139: #{vivit_forward.19} parent=124 // loop_exit
                  _
              $region125: #{vivit_forward.19} parent=109 // pred_fallthru
                _
            $region110: #{vivit_forward.19} parent=105 // pred_fallthru
              _
            // Predicated region
            $region111: #{vivit_forward.19} parent=105 // pred_check
              _
            $region112: #{vivit_forward.19} parent=105 // pred_check_branch
              %371 = sbr.rel (0) target = $region114
            $region113: #{vivit_forward.19} parent=105 // pred_region
              loop: start=0, step=1, limit=1
              $region115: #{vivit_forward.19} parent=113 // loop_pre_header
                _
              $region116: #{vivit_forward.19} parent=113 // loop_header
                %s374 = sphi 0, %s378
                %p375 = scmp.ge.s32.totalorder %s374, 1
                %s379 = sphi %s365, %s365
                %s380 = sphi %s360, %s360
              $region117: #{vivit_forward.19} parent=113 // loop_header_branch
                %377 = sbr.rel (%p375) target = $region121
              $region118: #{vivit_forward.19} parent=113 // loop_body
                %v381 = vld [vmem:[%s379] sm:$0x3]
                %382 = vst [vmem:[%s380] sm:$0x3] %v381
                %v383 = vld [vmem:[%s379 + $0xc] sm:$0x3]
                %384 = vst [vmem:[%s380 + $0x2] sm:$0x3] %v383
                %v385 = vld [vmem:[%s379 + $0x18] sm:$0x3]
                %386 = vst [vmem:[%s380 + $0x4] sm:$0x3] %v385
                %v387 = vld [vmem:[%s379 + $0x24] sm:$0x3]
                %388 = vst [vmem:[%s380 + $0x6] sm:$0x3] %v387
                %v389 = vld [vmem:[%s379 + $0x30] sm:$0x3]
                %390 = vst [vmem:[%s380 + $0x8] sm:$0x3] %v389
                %v391 = vld [vmem:[%s379 + $0x3c] sm:$0x3]
                %392 = vst [vmem:[%s380 + $0xa] sm:$0x3] %v391
                %v393 = vld [vmem:[%s379 + $0x48] sm:$0x3]
                %394 = vst [vmem:[%s380 + $0xc] sm:$0x3] %v393
                %v395 = vld [vmem:[%s379 + $0x54] sm:$0x3]
                %396 = vst [vmem:[%s380 + $0xe] sm:$0x3] %v395
                %v397 = vld [vmem:[%s379 + $0x60] sm:$0x3]
                %398 = vst [vmem:[%s380 + $0x10] sm:$0x3] %v397
                %v399 = vld [vmem:[%s379 + $0x6c] sm:$0x3]
                %400 = vst [vmem:[%s380 + $0x12] sm:$0x3] %v399
                %v401 = vld [vmem:[%s379 + $0x78] sm:$0x3]
                %402 = vst [vmem:[%s380 + $0x14] sm:$0x3] %v401
                %v403 = vld [vmem:[%s379 + $0x84] sm:$0x3]
                %404 = vst [vmem:[%s380 + $0x16] sm:$0x3] %v403
                %v405 = vld [vmem:[%s379 + $0x90] sm:$0x3]
                %406 = vst [vmem:[%s380 + $0x18] sm:$0x3] %v405
                %v407 = vld [vmem:[%s379 + $0x9c] sm:$0x3]
                %408 = vst [vmem:[%s380 + $0x1a] sm:$0x3] %v407
                %v409 = vld [vmem:[%s379 + $0xa8] sm:$0x3]
                %410 = vst [vmem:[%s380 + $0x1c] sm:$0x3] %v409
                %v411 = vld [vmem:[%s379 + $0xb4] sm:$0x3]
                %412 = vst [vmem:[%s380 + $0x1e] sm:$0x3] %v411
              $region119: #{vivit_forward.19} parent=113 // loop_footer
                %s378 = sadd.s32 1, %s374
              $region120: #{vivit_forward.19} parent=113 // loop_footer_branch
                %373 = sbr.rel target = $region116
              $region121: #{vivit_forward.19} parent=113 // loop_exit
                _
            $region114: #{vivit_forward.19} parent=105 // pred_fallthru
              _
          $region106: #{vivit_forward.19} parent=101 // pred_fallthru
            _
          %464 = vnop
        $region102: #{vivit_forward.19} parent=15 // pred_fallthru
          _
      $region16: #{vivit_forward.19} parent=5 // pred_fallthru
        _
      %p465 = scmp.le.s32.totalorder 1, %s9
      %p466 = scmp.lt.s32.totalorder %s9, 3
      %p467 = pnand %p465, %p466
      %p468 = pneg %p467
      // Predicated region
      $region140: #{vivit_forward.19} parent=5 // pred_check
        _
      $region141: #{vivit_forward.19} parent=5 // pred_check_branch
        %470 = sbr.rel (%p467) target = $region143
      $region142: #{vivit_forward.19} parent=5 // pred_region
        %s471 = ssub.s32 %s9, 1
        %s472 = sand.u32 %s22, 1
        %s473 = sand.u32 %s22, 1
        %s474 = smul.addr %s473, 32
        %s475 = scalar_lea.vmem [#allocation2], %s474
        // Predicated region
        $region144: #{vivit_forward.19} parent=142 // pred_check
          %p476 = pneg %p35
        $region145: #{vivit_forward.19} parent=142 // pred_check_branch
          %478 = sbr.rel (%p476) target = $region147
        $region146: #{vivit_forward.19} parent=142 // pred_region
          _
        $region147: #{vivit_forward.19} parent=142 // pred_fallthru
          _
        %s479 = sand.u32 %s48, 1
        %s480 = sand.u32 %s48, 1
        %s481 = smul.addr %s480, 32
        %s482 = scalar_lea.vmem [#allocation3], %s481
        // Predicated region
        $region148: #{vivit_forward.19} parent=142 // pred_check
          %p483 = pneg %p61
        $region149: #{vivit_forward.19} parent=142 // pred_check_branch
          %485 = sbr.rel (%p483) target = $region151
        $region150: #{vivit_forward.19} parent=142 // pred_region
          _
        $region151: #{vivit_forward.19} parent=142 // pred_fallthru
          _
        %s486 = sand.u32 %s74, 1
        %s487 = sand.u32 %s74, 1
        %s488 = smul.addr %s487, 32
        %s489 = scalar_lea.vmem [#allocation4], %s488
        // Predicated region
        $region152: #{vivit_forward.19} parent=142 // pred_check
          %p490 = pneg %p87
        $region153: #{vivit_forward.19} parent=142 // pred_check_branch
          %492 = sbr.rel (%p490) target = $region155
        $region154: #{vivit_forward.19} parent=142 // pred_region
          _
        $region155: #{vivit_forward.19} parent=142 // pred_fallthru
          _
        %s493 = sand.u32 %s22, 1
        %s494 = sand.u32 %s22, 1
        %s495 = smul.addr %s494, 32
        %s496 = scalar_lea.vmem [#allocation2], %s495
        %p497 = pneg %p35
        %p498 = pneg %p32
        %s499 = sand.u32 %s48, 1
        %s500 = sand.u32 %s48, 1
        %s501 = smul.addr %s500, 32
        %s502 = scalar_lea.vmem [#allocation3], %s501
        %p503 = pneg %p61
        %p504 = pneg %p58
        %s505 = sand.u32 %s74, 1
        %s506 = sand.u32 %s74, 1
        %s507 = smul.addr %s506, 32
        %s508 = scalar_lea.vmem [#allocation4], %s507
        %p509 = pneg %p87
        %p510 = pneg %p84
        %p511 = pneg %p113
        %p512 = pneg %p110
        %s513 = smul.u32 16, %s14
        %p514 = scmp.lt.s32.totalorder %s513, 31
        %s515 = scalar_select %p514, %s513, 31
        %s516 = smul.addr %s515, 2
        %s517 = scalar_lea.vmem %s3, %s516
        %s518 = smul.u32 16, %s14
        %s519 = smul.u32 16, %s14
        %s520 = smul.u32 16, %s14
        %s521 = smul.u32 16, %s14
        %p522 = scmp.lt.s32.totalorder %s521, 31
        %s523 = scalar_select %p522, %s521, 31
        %s524 = smul.addr %s523, 2
        %s525 = scalar_lea.vmem %s3, %s524
        %s526 = smul.u32 16, %s14
        %v528 = vld [vmem:[%s475] sm:$0x3]
        %v529 = vld [vmem:[%s475 + $0x2] sm:$0x3]
        %v530 = vld [vmem:[%s475 + $0x4] sm:$0x3]
        %v531 = vld [vmem:[%s475 + $0x6] sm:$0x3]
        %v532 = vld [vmem:[%s475 + $0x8] sm:$0x3]
        %v533 = vld [vmem:[%s475 + $0xa] sm:$0x3]
        %v534 = vld [vmem:[%s475 + $0xc] sm:$0x3]
        %v535 = vld [vmem:[%s475 + $0xe] sm:$0x3]
        %v536 = vld [vmem:[%s475 + $0x10] sm:$0x3]
        %v537 = vld [vmem:[%s475 + $0x12] sm:$0x3]
        %v538 = vld [vmem:[%s475 + $0x14] sm:$0x3]
        %v539 = vld [vmem:[%s475 + $0x16] sm:$0x3]
        %v540 = vld [vmem:[%s475 + $0x18] sm:$0x3]
        %v541 = vld [vmem:[%s475 + $0x1a] sm:$0x3]
        %v542 = vld [vmem:[%s475 + $0x1c] sm:$0x3]
        %v543 = vld [vmem:[%s475 + $0x1e] sm:$0x3]
        %v544 = vld [vmem:[%s482] sm:$0x3]
        %v545 = vld [vmem:[%s482 + $0x2] sm:$0x3]
        %v546 = vld [vmem:[%s482 + $0x4] sm:$0x3]
        %v547 = vld [vmem:[%s482 + $0x6] sm:$0x3]
        %v548 = vld [vmem:[%s482 + $0x8] sm:$0x3]
        %v549 = vld [vmem:[%s482 + $0xa] sm:$0x3]
        %v550 = vld [vmem:[%s482 + $0xc] sm:$0x3]
        %v551 = vld [vmem:[%s482 + $0xe] sm:$0x3]
        %v552 = vld [vmem:[%s482 + $0x10] sm:$0x3]
        %v553 = vld [vmem:[%s482 + $0x12] sm:$0x3]
        %v554 = vld [vmem:[%s482 + $0x14] sm:$0x3]
        %v555 = vld [vmem:[%s482 + $0x16] sm:$0x3]
        %v556 = vld [vmem:[%s482 + $0x18] sm:$0x3]
        %v557 = vld [vmem:[%s482 + $0x1a] sm:$0x3]
        %v558 = vld [vmem:[%s482 + $0x1c] sm:$0x3]
        %v559 = vld [vmem:[%s482 + $0x1e] sm:$0x3]
        %v560 = vld [vmem:[%s489] sm:$0x3]
        %v561 = vld [vmem:[%s489 + $0x2] sm:$0x3]
        %v562 = vld [vmem:[%s489 + $0x4] sm:$0x3]
        %v563 = vld [vmem:[%s489 + $0x6] sm:$0x3]
        %v564 = vld [vmem:[%s489 + $0x8] sm:$0x3]
        %v565 = vld [vmem:[%s489 + $0xa] sm:$0x3]
        %v566 = vld [vmem:[%s489 + $0xc] sm:$0x3]
        %v567 = vld [vmem:[%s489 + $0xe] sm:$0x3]
        %v568 = vld [vmem:[%s489 + $0x10] sm:$0x3]
        %v569 = vld [vmem:[%s489 + $0x12] sm:$0x3]
        %v570 = vld [vmem:[%s489 + $0x14] sm:$0x3]
        %v571 = vld [vmem:[%s489 + $0x16] sm:$0x3]
        %v572 = vld [vmem:[%s489 + $0x18] sm:$0x3]
        %v573 = vld [vmem:[%s489 + $0x1a] sm:$0x3]
        %v574 = vld [vmem:[%s489 + $0x1c] sm:$0x3]
        %v575 = vld [vmem:[%s489 + $0x1e] sm:$0x3]
        %v576 = vmul.f32 %v528, 0.125
        %v577 = vmul.f32 %v529, 0.125
        %v578 = vmul.f32 %v530, 0.125
        %v579 = vmul.f32 %v531, 0.125
        %v580 = vmul.f32 %v532, 0.125
        %v581 = vmul.f32 %v533, 0.125
        %v582 = vmul.f32 %v534, 0.125
        %v583 = vmul.f32 %v535, 0.125
        %v584 = vmul.f32 %v536, 0.125
        %v585 = vmul.f32 %v537, 0.125
        %v586 = vmul.f32 %v538, 0.125
        %v587 = vmul.f32 %v539, 0.125
        %v588 = vmul.f32 %v540, 0.125
        %v589 = vmul.f32 %v541, 0.125
        %v590 = vmul.f32 %v542, 0.125
        %v591 = vmul.f32 %v543, 0.125
        %v592 = vpack.c.bf16 %v576, %v576
        %v593 = vpack.c.bf16 %v577, %v577
        %v594 = vpack.c.bf16 %v578, %v578
        %v595 = vpack.c.bf16 %v579, %v579
        %v596 = vpack.c.bf16 %v580, %v580
        %v597 = vpack.c.bf16 %v581, %v581
        %v598 = vpack.c.bf16 %v582, %v582
        %v599 = vpack.c.bf16 %v583, %v583
        %v600 = vpack.c.bf16 %v584, %v584
        %v601 = vpack.c.bf16 %v585, %v585
        %v602 = vpack.c.bf16 %v586, %v586
        %v603 = vpack.c.bf16 %v587, %v587
        %v604 = vpack.c.bf16 %v588, %v588
        %v605 = vpack.c.bf16 %v589, %v589
        %v606 = vpack.c.bf16 %v590, %v590
        %v607 = vpack.c.bf16 %v591, %v591
        %v608 = vpack.c.bf16 %v544, %v544
        %v609 = vpack.c.bf16 %v545, %v545
        %v610 = vpack.c.bf16 %v546, %v546
        %v611 = vpack.c.bf16 %v547, %v547
        %v612 = vpack.c.bf16 %v548, %v548
        %v613 = vpack.c.bf16 %v549, %v549
        %v614 = vpack.c.bf16 %v550, %v550
        %v615 = vpack.c.bf16 %v551, %v551
        %v616 = vpack.c.bf16 %v552, %v552
        %v617 = vpack.c.bf16 %v553, %v553
        %v618 = vpack.c.bf16 %v554, %v554
        %v619 = vpack.c.bf16 %v555, %v555
        %v620 = vpack.c.bf16 %v556, %v556
        %v621 = vpack.c.bf16 %v557, %v557
        %v622 = vpack.c.bf16 %v558, %v558
        %v623 = vpack.c.bf16 %v559, %v559
        %v624 = vpack.c.bf16 %v560, %v560
        %v625 = vpack.c.bf16 %v561, %v561
        %v626 = vpack.c.bf16 %v562, %v562
        %v627 = vpack.c.bf16 %v563, %v563
        %v628 = vpack.c.bf16 %v564, %v564
        %v629 = vpack.c.bf16 %v565, %v565
        %v630 = vpack.c.bf16 %v566, %v566
        %v631 = vpack.c.bf16 %v567, %v567
        %v632 = vpack.c.bf16 %v568, %v568
        %v633 = vpack.c.bf16 %v569, %v569
        %v634 = vpack.c.bf16 %v570, %v570
        %v635 = vpack.c.bf16 %v571, %v571
        %v636 = vpack.c.bf16 %v572, %v572
        %v637 = vpack.c.bf16 %v573, %v573
        %v638 = vpack.c.bf16 %v574, %v574
        %v639 = vpack.c.bf16 %v575, %v575
        %vm640 = vcmask 523264
        %v642 = vsel %vm640, %v592, 0
        %v645 = vsel %vm640, %v608, 0
        %647 = vmatprep.subr.bf16.mxu0 0
        %648 = vmatpush1.bf16.xpose.msra.mxu0 %v645
        %649 = vmatprep.subr.bf16.mxu0 0
        %650 = vmatpush1.bf16.xpose.msra.mxu0 0
        %651 = vmatprep.subr.bf16.mxu0 0
        %652 = vmatpush1.bf16.xpose.msra.mxu0 0
        %653 = vmatprep.subr.bf16.mxu0 0
        %654 = vmatpush1.bf16.xpose.msra.mxu0 0
        %655 = vmatprep.subr.bf16.mxu0 0
        %656 = vmatpush1.bf16.xpose.msra.mxu0 0
        %657 = vmatprep.subr.bf16.mxu0 0
        %658 = vmatpush1.bf16.xpose.msra.mxu0 0
        %659 = vmatprep.subr.bf16.mxu0 0
        %660 = vmatpush1.bf16.xpose.msra.mxu0 0
        %661 = vmatprep.subr.bf16.mxu0 0
        %662 = vmatpush1.bf16.xpose.msra.mxu0 0
        %663 = vmatprep.subr.bf16.mxu0 0
        %664 = vmatpush1.bf16.xpose.msra.mxu0 0
        %665 = vmatprep.subr.bf16.mxu0 0
        %666 = vmatpush1.bf16.xpose.msra.mxu0 0
        %667 = vmatprep.subr.bf16.mxu0 0
        %668 = vmatpush1.bf16.xpose.msra.mxu0 0
        %669 = vmatprep.subr.bf16.mxu0 0
        %670 = vmatpush1.bf16.xpose.msra.mxu0 0
        %671 = vmatprep.subr.bf16.mxu0 0
        %672 = vmatpush1.bf16.xpose.msra.mxu0 0
        %673 = vmatprep.subr.bf16.mxu0 0
        %674 = vmatpush1.bf16.xpose.msra.mxu0 0
        %675 = vmatprep.subr.bf16.mxu0 0
        %676 = vmatpush1.bf16.xpose.msra.mxu0 0
        %677 = vmatprep.subr.bf16.mxu0 0
        %678 = vmatpush1.bf16.xpose.msra.mxu0 0
        %679 = vmatprep.mubr.bf16.mxu0 0
        %680 = vmatmul.mubr.bf16.gmra.mrb[0].mxu0 %v642
        %v681 = vpop.f32.mrb[0].mxu0
        %v682 = vadd.f32 0.0, %v681
        %v683 = vpop.f32.mrb[0].mxu0
        %v684 = vpop.f32.mrb[0].mxu0
        %v685 = vpop.f32.mrb[0].mxu0
        %686 = vdwg.mxu0
        %v688 = vsel %vm640, %v593, 0
        %v691 = vsel %vm640, %v609, 0
        %693 = vmatprep.subr.bf16.mxu0 0
        %694 = vmatpush1.bf16.xpose.msra.mxu0 %v691
        %695 = vmatprep.subr.bf16.mxu0 0
        %696 = vmatpush1.bf16.xpose.msra.mxu0 0
        %697 = vmatprep.subr.bf16.mxu0 0
        %698 = vmatpush1.bf16.xpose.msra.mxu0 0
        %699 = vmatprep.subr.bf16.mxu0 0
        %700 = vmatpush1.bf16.xpose.msra.mxu0 0
        %701 = vmatprep.subr.bf16.mxu0 0
        %702 = vmatpush1.bf16.xpose.msra.mxu0 0
        %703 = vmatprep.subr.bf16.mxu0 0
        %704 = vmatpush1.bf16.xpose.msra.mxu0 0
        %705 = vmatprep.subr.bf16.mxu0 0
        %706 = vmatpush1.bf16.xpose.msra.mxu0 0
        %707 = vmatprep.subr.bf16.mxu0 0
        %708 = vmatpush1.bf16.xpose.msra.mxu0 0
        %709 = vmatprep.subr.bf16.mxu0 0
        %710 = vmatpush1.bf16.xpose.msra.mxu0 0
        %711 = vmatprep.subr.bf16.mxu0 0
        %712 = vmatpush1.bf16.xpose.msra.mxu0 0
        %713 = vmatprep.subr.bf16.mxu0 0
        %714 = vmatpush1.bf16.xpose.msra.mxu0 0
        %715 = vmatprep.subr.bf16.mxu0 0
        %716 = vmatpush1.bf16.xpose.msra.mxu0 0
        %717 = vmatprep.subr.bf16.mxu0 0
        %718 = vmatpush1.bf16.xpose.msra.mxu0 0
        %719 = vmatprep.subr.bf16.mxu0 0
        %720 = vmatpush1.bf16.xpose.msra.mxu0 0
        %721 = vmatprep.subr.bf16.mxu0 0
        %722 = vmatpush1.bf16.xpose.msra.mxu0 0
        %723 = vmatprep.subr.bf16.mxu0 0
        %724 = vmatpush1.bf16.xpose.msra.mxu0 0
        %725 = vmatprep.mubr.bf16.mxu0 0
        %726 = vmatmul.mubr.bf16.gmra.mrb[0].mxu0 %v688
        %v727 = vpop.f32.mrb[0].mxu0
        %v728 = vadd.f32 0.0, %v727
        %v729 = vpop.f32.mrb[0].mxu0
        %v730 = vpop.f32.mrb[0].mxu0
        %v731 = vpop.f32.mrb[0].mxu0
        %732 = vdwg.mxu0
        %v734 = vsel %vm640, %v594, 0
        %v737 = vsel %vm640, %v610, 0
        %739 = vmatprep.subr.bf16.mxu0 0
        %740 = vmatpush1.bf16.xpose.msra.mxu0 %v737
        %741 = vmatprep.subr.bf16.mxu0 0
        %742 = vmatpush1.bf16.xpose.msra.mxu0 0
        %743 = vmatprep.subr.bf16.mxu0 0
        %744 = vmatpush1.bf16.xpose.msra.mxu0 0
        %745 = vmatprep.subr.bf16.mxu0 0
        %746 = vmatpush1.bf16.xpose.msra.mxu0 0
        %747 = vmatprep.subr.bf16.mxu0 0
        %748 = vmatpush1.bf16.xpose.msra.mxu0 0
        %749 = vmatprep.subr.bf16.mxu0 0
        %750 = vmatpush1.bf16.xpose.msra.mxu0 0
        %751 = vmatprep.subr.bf16.mxu0 0
        %752 = vmatpush1.bf16.xpose.msra.mxu0 0
        %753 = vmatprep.subr.bf16.mxu0 0
        %754 = vmatpush1.bf16.xpose.msra.mxu0 0
        %755 = vmatprep.subr.bf16.mxu0 0
        %756 = vmatpush1.bf16.xpose.msra.mxu0 0
        %757 = vmatprep.subr.bf16.mxu0 0
        %758 = vmatpush1.bf16.xpose.msra.mxu0 0
        %759 = vmatprep.subr.bf16.mxu0 0
        %760 = vmatpush1.bf16.xpose.msra.mxu0 0
        %761 = vmatprep.subr.bf16.mxu0 0
        %762 = vmatpush1.bf16.xpose.msra.mxu0 0
        %763 = vmatprep.subr.bf16.mxu0 0
        %764 = vmatpush1.bf16.xpose.msra.mxu0 0
        %765 = vmatprep.subr.bf16.mxu0 0
        %766 = vmatpush1.bf16.xpose.msra.mxu0 0
        %767 = vmatprep.subr.bf16.mxu0 0
        %768 = vmatpush1.bf16.xpose.msra.mxu0 0
        %769 = vmatprep.subr.bf16.mxu0 0
        %770 = vmatpush1.bf16.xpose.msra.mxu0 0
        %771 = vmatprep.mubr.bf16.mxu0 0
        %772 = vmatmul.mubr.bf16.gmra.mrb[0].mxu0 %v734
        %v773 = vpop.f32.mrb[0].mxu0
        %v774 = vadd.f32 0.0, %v773
        %v775 = vpop.f32.mrb[0].mxu0
        %v776 = vpop.f32.mrb[0].mxu0
        %v777 = vpop.f32.mrb[0].mxu0
        %778 = vdwg.mxu0
        %v780 = vsel %vm640, %v595, 0
        %v783 = vsel %vm640, %v611, 0
        %785 = vmatprep.subr.bf16.mxu0 0
        %786 = vmatpush1.bf16.xpose.msra.mxu0 %v783
        %787 = vmatprep.subr.bf16.mxu0 0
        %788 = vmatpush1.bf16.xpose.msra.mxu0 0
        %789 = vmatprep.subr.bf16.mxu0 0
        %790 = vmatpush1.bf16.xpose.msra.mxu0 0
        %791 = vmatprep.subr.bf16.mxu0 0
        %792 = vmatpush1.bf16.xpose.msra.mxu0 0
        %793 = vmatprep.subr.bf16.mxu0 0
        %794 = vmatpush1.bf16.xpose.msra.mxu0 0
        %795 = vmatprep.subr.bf16.mxu0 0
        %796 = vmatpush1.bf16.xpose.msra.mxu0 0
        %797 = vmatprep.subr.bf16.mxu0 0
        %798 = vmatpush1.bf16.xpose.msra.mxu0 0
        %799 = vmatprep.subr.bf16.mxu0 0
        %800 = vmatpush1.bf16.xpose.msra.mxu0 0
        %801 = vmatprep.subr.bf16.mxu0 0
        %802 = vmatpush1.bf16.xpose.msra.mxu0 0
        %803 = vmatprep.subr.bf16.mxu0 0
        %804 = vmatpush1.bf16.xpose.msra.mxu0 0
        %805 = vmatprep.subr.bf16.mxu0 0
        %806 = vmatpush1.bf16.xpose.msra.mxu0 0
        %807 = vmatprep.subr.bf16.mxu0 0
        %808 = vmatpush1.bf16.xpose.msra.mxu0 0
        %809 = vmatprep.subr.bf16.mxu0 0
        %810 = vmatpush1.bf16.xpose.msra.mxu0 0
        %811 = vmatprep.subr.bf16.mxu0 0
        %812 = vmatpush1.bf16.xpose.msra.mxu0 0
        %813 = vmatprep.subr.bf16.mxu0 0
        %814 = vmatpush1.bf16.xpose.msra.mxu0 0
        %815 = vmatprep.subr.bf16.mxu0 0
        %816 = vmatpush1.bf16.xpose.msra.mxu0 0
        %817 = vmatprep.mubr.bf16.mxu0 0
        %818 = vmatmul.mubr.bf16.gmra.mrb[0].mxu0 %v780
        %v819 = vpop.f32.mrb[0].mxu0
        %v820 = vadd.f32 0.0, %v819
        %v821 = vpop.f32.mrb[0].mxu0
        %v822 = vpop.f32.mrb[0].mxu0
        %v823 = vpop.f32.mrb[0].mxu0
        %824 = vdwg.mxu0
        %v826 = vsel %vm640, %v596, 0
        %v829 = vsel %vm640, %v612, 0
        %831 = vmatprep.subr.bf16.mxu0 0
        %832 = vmatpush1.bf16.xpose.msra.mxu0 %v829
        %833 = vmatprep.subr.bf16.mxu0 0
        %834 = vmatpush1.bf16.xpose.msra.mxu0 0
        %835 = vmatprep.subr.bf16.mxu0 0
        %836 = vmatpush1.bf16.xpose.msra.mxu0 0
        %837 = vmatprep.subr.bf16.mxu0 0
        %838 = vmatpush1.bf16.xpose.msra.mxu0 0
        %839 = vmatprep.subr.bf16.mxu0 0
        %840 = vmatpush1.bf16.xpose.msra.mxu0 0
        %841 = vmatprep.subr.bf16.mxu0 0
        %842 = vmatpush1.bf16.xpose.msra.mxu0 0
        %843 = vmatprep.subr.bf16.mxu0 0
        %844 = vmatpush1.bf16.xpose.msra.mxu0 0
        %845 = vmatprep.subr.bf16.mxu0 0
        %846 = vmatpush1.bf16.xpose.msra.mxu0 0
        %847 = vmatprep.subr.bf16.mxu0 0
        %848 = vmatpush1.bf16.xpose.msra.mxu0 0
        %849 = vmatprep.subr.bf16.mxu0 0
        %850 = vmatpush1.bf16.xpose.msra.mxu0 0
        %851 = vmatprep.subr.bf16.mxu0 0
        %852 = vmatpush1.bf16.xpose.msra.mxu0 0
        %853 = vmatprep.subr.bf16.mxu0 0
        %854 = vmatpush1.bf16.xpose.msra.mxu0 0
        %855 = vmatprep.subr.bf16.mxu0 0
        %856 = vmatpush1.bf16.xpose.msra.mxu0 0
        %857 = vmatprep.subr.bf16.mxu0 0
        %858 = vmatpush1.bf16.xpose.msra.mxu0 0
        %859 = vmatprep.subr.bf16.mxu0 0
        %860 = vmatpush1.bf16.xpose.msra.mxu0 0
        %861 = vmatprep.subr.bf16.mxu0 0
        %862 = vmatpush1.bf16.xpose.msra.mxu0 0
        %863 = vmatprep.mubr.bf16.mxu0 0
        %864 = vmatmul.mubr.bf16.gmra.mrb[0].mxu0 %v826
        %v865 = vpop.f32.mrb[0].mxu0
        %v866 = vadd.f32 0.0, %v865
        %v867 = vpop.f32.mrb[0].mxu0
        %v868 = vpop.f32.mrb[0].mxu0
        %v869 = vpop.f32.mrb[0].mxu0
        %870 = vdwg.mxu0
        %v872 = vsel %vm640, %v597, 0
        %v875 = vsel %vm640, %v613, 0
        %877 = vmatprep.subr.bf16.mxu0 0
        %878 = vmatpush1.bf16.xpose.msra.mxu0 %v875
        %879 = vmatprep.subr.bf16.mxu0 0
        %880 = vmatpush1.bf16.xpose.msra.mxu0 0
        %881 = vmatprep.subr.bf16.mxu0 0
        %882 = vmatpush1.bf16.xpose.msra.mxu0 0
        %883 = vmatprep.subr.bf16.mxu0 0
        %884 = vmatpush1.bf16.xpose.msra.mxu0 0
        %885 = vmatprep.subr.bf16.mxu0 0
        %886 = vmatpush1.bf16.xpose.msra.mxu0 0
        %887 = vmatprep.subr.bf16.mxu0 0
        %888 = vmatpush1.bf16.xpose.msra.mxu0 0
        %889 = vmatprep.subr.bf16.mxu0 0
        %890 = vmatpush1.bf16.xpose.msra.mxu0 0
        %891 = vmatprep.subr.bf16.mxu0 0
        %892 = vmatpush1.bf16.xpose.msra.mxu0 0
        %893 = vmatprep.subr.bf16.mxu0 0
        %894 = vmatpush1.bf16.xpose.msra.mxu0 0
        %895 = vmatprep.subr.bf16.mxu0 0
        %896 = vmatpush1.bf16.xpose.msra.mxu0 0
        %897 = vmatprep.subr.bf16.mxu0 0
        %898 = vmatpush1.bf16.xpose.msra.mxu0 0
        %899 = vmatprep.subr.bf16.mxu0 0
        %900 = vmatpush1.bf16.xpose.msra.mxu0 0
        %901 = vmatprep.subr.bf16.mxu0 0
        %902 = vmatpush1.bf16.xpose.msra.mxu0 0
        %903 = vmatprep.subr.bf16.mxu0 0
        %904 = vmatpush1.bf16.xpose.msra.mxu0 0
        %905 = vmatprep.subr.bf16.mxu0 0
        %906 = vmatpush1.bf16.xpose.msra.mxu0 0
        %907 = vmatprep.subr.bf16.mxu0 0
        %908 = vmatpush1.bf16.xpose.msra.mxu0 0
        %909 = vmatprep.mubr.bf16.mxu0 0
        %910 = vmatmul.mubr.bf16.gmra.mrb[0].mxu0 %v872
        %v911 = vpop.f32.mrb[0].mxu0
        %v912 = vadd.f32 0.0, %v911
        %v913 = vpop.f32.mrb[0].mxu0
        %v914 = vpop.f32.mrb[0].mxu0
        %v915 = vpop.f32.mrb[0].mxu0
        %916 = vdwg.mxu0
        %v918 = vsel %vm640, %v598, 0
        %v921 = vsel %vm640, %v614, 0
        %923 = vmatprep.subr.bf16.mxu0 0
        %924 = vmatpush1.bf16.xpose.msra.mxu0 %v921
        %925 = vmatprep.subr.bf16.mxu0 0
        %926 = vmatpush1.bf16.xpose.msra.mxu0 0
        %927 = vmatprep.subr.bf16.mxu0 0
        %928 = vmatpush1.bf16.xpose.msra.mxu0 0
        %929 = vmatprep.subr.bf16.mxu0 0
        %930 = vmatpush1.bf16.xpose.msra.mxu0 0
        %931 = vmatprep.subr.bf16.mxu0 0
        %932 = vmatpush1.bf16.xpose.msra.mxu0 0
        %933 = vmatprep.subr.bf16.mxu0 0
        %934 = vmatpush1.bf16.xpose.msra.mxu0 0
        %935 = vmatprep.subr.bf16.mxu0 0
        %936 = vmatpush1.bf16.xpose.msra.mxu0 0
        %937 = vmatprep.subr.bf16.mxu0 0
        %938 = vmatpush1.bf16.xpose.msra.mxu0 0
        %939 = vmatprep.subr.bf16.mxu0 0
        %940 = vmatpush1.bf16.xpose.msra.mxu0 0
        %941 = vmatprep.subr.bf16.mxu0 0
        %942 = vmatpush1.bf16.xpose.msra.mxu0 0
        %943 = vmatprep.subr.bf16.mxu0 0
        %944 = vmatpush1.bf16.xpose.msra.mxu0 0
        %945 = vmatprep.subr.bf16.mxu0 0
        %946 = vmatpush1.bf16.xpose.msra.mxu0 0
        %947 = vmatprep.subr.bf16.mxu0 0
        %948 = vmatpush1.bf16.xpose.msra.mxu0 0
        %949 = vmatprep.subr.bf16.mxu0 0
        %950 = vmatpush1.bf16.xpose.msra.mxu0 0
        %951 = vmatprep.subr.bf16.mxu0 0
        %952 = vmatpush1.bf16.xpose.msra.mxu0 0
        %953 = vmatprep.subr.bf16.mxu0 0
        %954 = vmatpush1.bf16.xpose.msra.mxu0 0
        %955 = vmatprep.mubr.bf16.mxu0 0
        %956 = vmatmul.mubr.bf16.gmra.mrb[0].mxu0 %v918
        %v957 = vpop.f32.mrb[0].mxu0
        %v958 = vadd.f32 0.0, %v957
        %v959 = vpop.f32.mrb[0].mxu0
        %v960 = vpop.f32.mrb[0].mxu0
        %v961 = vpop.f32.mrb[0].mxu0
        %962 = vdwg.mxu0
        %v964 = vsel %vm640, %v599, 0
        %v967 = vsel %vm640, %v615, 0
        %969 = vmatprep.subr.bf16.mxu0 0
        %970 = vmatpush1.bf16.xpose.msra.mxu0 %v967
        %971 = vmatprep.subr.bf16.mxu0 0
        %972 = vmatpush1.bf16.xpose.msra.mxu0 0
        %973 = vmatprep.subr.bf16.mxu0 0
        %974 = vmatpush1.bf16.xpose.msra.mxu0 0
        %975 = vmatprep.subr.bf16.mxu0 0
        %976 = vmatpush1.bf16.xpose.msra.mxu0 0
        %977 = vmatprep.subr.bf16.mxu0 0
        %978 = vmatpush1.bf16.xpose.msra.mxu0 0
        %979 = vmatprep.subr.bf16.mxu0 0
        %980 = vmatpush1.bf16.xpose.msra.mxu0 0
        %981 = vmatprep.subr.bf16.mxu0 0
        %982 = vmatpush1.bf16.xpose.msra.mxu0 0
        %983 = vmatprep.subr.bf16.mxu0 0
        %984 = vmatpush1.bf16.xpose.msra.mxu0 0
        %985 = vmatprep.subr.bf16.mxu0 0
        %986 = vmatpush1.bf16.xpose.msra.mxu0 0
        %987 = vmatprep.subr.bf16.mxu0 0
        %988 = vmatpush1.bf16.xpose.msra.mxu0 0
        %989 = vmatprep.subr.bf16.mxu0 0
        %990 = vmatpush1.bf16.xpose.msra.mxu0 0
        %991 = vmatprep.subr.bf16.mxu0 0
        %992 = vmatpush1.bf16.xpose.msra.mxu0 0
        %993 = vmatprep.subr.bf16.mxu0 0
        %994 = vmatpush1.bf16.xpose.msra.mxu0 0
        %995 = vmatprep.subr.bf16.mxu0 0
        %996 = vmatpush1.bf16.xpose.msra.mxu0 0
        %997 = vmatprep.subr.bf16.mxu0 0
        %998 = vmatpush1.bf16.xpose.msra.mxu0 0
        %999 = vmatprep.subr.bf16.mxu0 0
        %1000 = vmatpush1.bf16.xpose.msra.mxu0 0
        %1001 = vmatprep.mubr.bf16.mxu0 0
        %1002 = vmatmul.mubr.bf16.gmra.mrb[0].mxu0 %v964
        %v1003 = vpop.f32.mrb[0].mxu0
        %v1004 = vadd.f32 0.0, %v1003
        %v1005 = vpop.f32.mrb[0].mxu0
        %v1006 = vpop.f32.mrb[0].mxu0
        %v1007 = vpop.f32.mrb[0].mxu0
        %1008 = vdwg.mxu0
        %v1010 = vsel %vm640, %v600, 0
        %v1013 = vsel %vm640, %v616, 0
        %1015 = vmatprep.subr.bf16.mxu0 0
        %1016 = vmatpush1.bf16.xpose.msra.mxu0 %v1013
        %1017 = vmatprep.subr.bf16.mxu0 0
        %1018 = vmatpush1.bf16.xpose.msra.mxu0 0
        %1019 = vmatprep.subr.bf16.mxu0 0
        %1020 = vmatpush1.bf16.xpose.msra.mxu0 0
        %1021 = vmatprep.subr.bf16.mxu0 0
        %1022 = vmatpush1.bf16.xpose.msra.mxu0 0
        %1023 = vmatprep.subr.bf16.mxu0 0
        %1024 = vmatpush1.bf16.xpose.msra.mxu0 0
        %1025 = vmatprep.subr.bf16.mxu0 0
        %1026 = vmatpush1.bf16.xpose.msra.mxu0 0
        %1027 = vmatprep.subr.bf16.mxu0 0
        %1028 = vmatpush1.bf16.xpose.msra.mxu0 0
        %1029 = vmatprep.subr.bf16.mxu0 0
        %1030 = vmatpush1.bf16.xpose.msra.mxu0 0
        %1031 = vmatprep.subr.bf16.mxu0 0
        %1032 = vmatpush1.bf16.xpose.msra.mxu0 0
        %1033 = vmatprep.subr.bf16.mxu0 0
        %1034 = vmatpush1.bf16.xpose.msra.mxu0 0
        %1035 = vmatprep.subr.bf16.mxu0 0
        %1036 = vmatpush1.bf16.xpose.msra.mxu0 0
        %1037 = vmatprep.subr.bf16.mxu0 0
        %1038 = vmatpush1.bf16.xpose.msra.mxu0 0
        %1039 = vmatprep.subr.bf16.mxu0 0
        %1040 = vmatpush1.bf16.xpose.msra.mxu0 0
        %1041 = vmatprep.subr.bf16.mxu0 0
        %1042 = vmatpush1.bf16.xpose.msra.mxu0 0
        %1043 = vmatprep.subr.bf16.mxu0 0
        %1044 = vmatpush1.bf16.xpose.msra.mxu0 0
        %1045 = vmatprep.subr.bf16.mxu0 0
        %1046 = vmatpush1.bf16.xpose.msra.mxu0 0
        %1047 = vmatprep.mubr.bf16.mxu0 0
        %1048 = vmatmul.mubr.bf16.gmra.mrb[0].mxu0 %v1010
        %v1049 = vpop.f32.mrb[0].mxu0
        %v1050 = vadd.f32 0.0, %v1049
        %v1051 = vpop.f32.mrb[0].mxu0
        %v1052 = vpop.f32.mrb[0].mxu0
        %v1053 = vpop.f32.mrb[0].mxu0
        %1054 = vdwg.mxu0
        %v1056 = vsel %vm640, %v601, 0
        %v1059 = vsel %vm640, %v617, 0
        %1061 = vmatprep.subr.bf16.mxu0 0
        %1062 = vmatpush1.bf16.xpose.msra.mxu0 %v1059
        %1063 = vmatprep.subr.bf16.mxu0 0
        %1064 = vmatpush1.bf16.xpose.msra.mxu0 0
        %1065 = vmatprep.subr.bf16.mxu0 0
        %1066 = vmatpush1.bf16.xpose.msra.mxu0 0
        %1067 = vmatprep.subr.bf16.mxu0 0
        %1068 = vmatpush1.bf16.xpose.msra.mxu0 0
        %1069 = vmatprep.subr.bf16.mxu0 0
        %1070 = vmatpush1.bf16.xpose.msra.mxu0 0
        %1071 = vmatprep.subr.bf16.mxu0 0
        %1072 = vmatpush1.bf16.xpose.msra.mxu0 0
        %1073 = vmatprep.subr.bf16.mxu0 0
        %1074 = vmatpush1.bf16.xpose.msra.mxu0 0
        %1075 = vmatprep.subr.bf16.mxu0 0
        %1076 = vmatpush1.bf16.xpose.msra.mxu0 0
        %1077 = vmatprep.subr.bf16.mxu0 0
        %1078 = vmatpush1.bf16.xpose.msra.mxu0 0
        %1079 = vmatprep.subr.bf16.mxu0 0
        %1080 = vmatpush1.bf16.xpose.msra.mxu0 0
        %1081 = vmatprep.subr.bf16.mxu0 0
        %1082 = vmatpush1.bf16.xpose.msra.mxu0 0
        %1083 = vmatprep.subr.bf16.mxu0 0
        %1084 = vmatpush1.bf16.xpose.msra.mxu0 0
        %1085 = vmatprep.subr.bf16.mxu0 0
        %1086 = vmatpush1.bf16.xpose.msra.mxu0 0
        %1087 = vmatprep.subr.bf16.mxu0 0
        %1088 = vmatpush1.bf16.xpose.msra.mxu0 0
        %1089 = vmatprep.subr.bf16.mxu0 0
        %1090 = vmatpush1.bf16.xpose.msra.mxu0 0
        %1091 = vmatprep.subr.bf16.mxu0 0
        %1092 = vmatpush1.bf16.xpose.msra.mxu0 0
        %1093 = vmatprep.mubr.bf16.mxu0 0
        %1094 = vmatmul.mubr.bf16.gmra.mrb[0].mxu0 %v1056
        %v1095 = vpop.f32.mrb[0].mxu0
        %v1096 = vadd.f32 0.0, %v1095
        %v1097 = vpop.f32.mrb[0].mxu0
        %v1098 = vpop.f32.mrb[0].mxu0
        %v1099 = vpop.f32.mrb[0].mxu0
        %1100 = vdwg.mxu0
        %v1102 = vsel %vm640, %v602, 0
        %v1105 = vsel %vm640, %v618, 0
        %1107 = vmatprep.subr.bf16.mxu0 0
        %1108 = vmatpush1.bf16.xpose.msra.mxu0 %v1105
        %1109 = vmatprep.subr.bf16.mxu0 0
        %1110 = vmatpush1.bf16.xpose.msra.mxu0 0
        %1111 = vmatprep.subr.bf16.mxu0 0
        %1112 = vmatpush1.bf16.xpose.msra.mxu0 0
        %1113 = vmatprep.subr.bf16.mxu0 0
        %1114 = vmatpush1.bf16.xpose.msra.mxu0 0
        %1115 = vmatprep.subr.bf16.mxu0 0
        %1116 = vmatpush1.bf16.xpose.msra.mxu0 0
        %1117 = vmatprep.subr.bf16.mxu0 0
        %1118 = vmatpush1.bf16.xpose.msra.mxu0 0
        %1119 = vmatprep.subr.bf16.mxu0 0
        %1120 = vmatpush1.bf16.xpose.msra.mxu0 0
        %1121 = vmatprep.subr.bf16.mxu0 0
        %1122 = vmatpush1.bf16.xpose.msra.mxu0 0
        %1123 = vmatprep.subr.bf16.mxu0 0
        %1124 = vmatpush1.bf16.xpose.msra.mxu0 0
        %1125 = vmatprep.subr.bf16.mxu0 0
        %1126 = vmatpush1.bf16.xpose.msra.mxu0 0
        %1127 = vmatprep.subr.bf16.mxu0 0
        %1128 = vmatpush1.bf16.xpose.msra.mxu0 0
        %1129 = vmatprep.subr.bf16.mxu0 0
        %1130 = vmatpush1.bf16.xpose.msra.mxu0 0
        %1131 = vmatprep.subr.bf16.mxu0 0
        %1132 = vmatpush1.bf16.xpose.msra.mxu0 0
        %1133 = vmatprep.subr.bf16.mxu0 0
        %1134 = vmatpush1.bf16.xpose.msra.mxu0 0
        %1135 = vmatprep.subr.bf16.mxu0 0
        %1136 = vmatpush1.bf16.xpose.msra.mxu0 0
        %1137 = vmatprep.subr.bf16.mxu0 0
        %1138 = vmatpush1.bf16.xpose.msra.mxu0 0
        %1139 = vmatprep.mubr.bf16.mxu0 0
        %1140 = vmatmul.mubr.bf16.gmra.mrb[0].mxu0 %v1102
        %v1141 = vpop.f32.mrb[0].mxu0
        %v1142 = vadd.f32 0.0, %v1141
        %v1143 = vpop.f32.mrb[0].mxu0
        %v1144 = vpop.f32.mrb[0].mxu0
        %v1145 = vpop.f32.mrb[0].mxu0
        %1146 = vdwg.mxu0
        %v1148 = vsel %vm640, %v603, 0
        %v1151 = vsel %vm640, %v619, 0
        %1153 = vmatprep.subr.bf16.mxu0 0
        %1154 = vmatpush1.bf16.xpose.msra.mxu0 %v1151
        %1155 = vmatprep.subr.bf16.mxu0 0
        %1156 = vmatpush1.bf16.xpose.msra.mxu0 0
        %1157 = vmatprep.subr.bf16.mxu0 0
        %1158 = vmatpush1.bf16.xpose.msra.mxu0 0
        %1159 = vmatprep.subr.bf16.mxu0 0
        %1160 = vmatpush1.bf16.xpose.msra.mxu0 0
        %1161 = vmatprep.subr.bf16.mxu0 0
        %1162 = vmatpush1.bf16.xpose.msra.mxu0 0
        %1163 = vmatprep.subr.bf16.mxu0 0
        %1164 = vmatpush1.bf16.xpose.msra.mxu0 0
        %1165 = vmatprep.subr.bf16.mxu0 0
        %1166 = vmatpush1.bf16.xpose.msra.mxu0 0
        %1167 = vmatprep.subr.bf16.mxu0 0
        %1168 = vmatpush1.bf16.xpose.msra.mxu0 0
        %1169 = vmatprep.subr.bf16.mxu0 0
        %1170 = vmatpush1.bf16.xpose.msra.mxu0 0
        %1171 = vmatprep.subr.bf16.mxu0 0
        %1172 = vmatpush1.bf16.xpose.msra.mxu0 0
        %1173 = vmatprep.subr.bf16.mxu0 0
        %1174 = vmatpush1.bf16.xpose.msra.mxu0 0
        %1175 = vmatprep.subr.bf16.mxu0 0
        %1176 = vmatpush1.bf16.xpose.msra.mxu0 0
        %1177 = vmatprep.subr.bf16.mxu0 0
        %1178 = vmatpush1.bf16.xpose.msra.mxu0 0
        %1179 = vmatprep.subr.bf16.mxu0 0
        %1180 = vmatpush1.bf16.xpose.msra.mxu0 0
        %1181 = vmatprep.subr.bf16.mxu0 0
        %1182 = vmatpush1.bf16.xpose.msra.mxu0 0
        %1183 = vmatprep.subr.bf16.mxu0 0
        %1184 = vmatpush1.bf16.xpose.msra.mxu0 0
        %1185 = vmatprep.mubr.bf16.mxu0 0
        %1186 = vmatmul.mubr.bf16.gmra.mrb[0].mxu0 %v1148
        %v1187 = vpop.f32.mrb[0].mxu0
        %v1188 = vadd.f32 0.0, %v1187
        %v1189 = vpop.f32.mrb[0].mxu0
        %v1190 = vpop.f32.mrb[0].mxu0
        %v1191 = vpop.f32.mrb[0].mxu0
        %1192 = vdwg.mxu0
        %v1194 = vsel %vm640, %v604, 0
        %v1197 = vsel %vm640, %v620, 0
        %1199 = vmatprep.subr.bf16.mxu0 0
        %1200 = vmatpush1.bf16.xpose.msra.mxu0 %v1197
        %1201 = vmatprep.subr.bf16.mxu0 0
        %1202 = vmatpush1.bf16.xpose.msra.mxu0 0
        %1203 = vmatprep.subr.bf16.mxu0 0
        %1204 = vmatpush1.bf16.xpose.msra.mxu0 0
        %1205 = vmatprep.subr.bf16.mxu0 0
        %1206 = vmatpush1.bf16.xpose.msra.mxu0 0
        %1207 = vmatprep.subr.bf16.mxu0 0
        %1208 = vmatpush1.bf16.xpose.msra.mxu0 0
        %1209 = vmatprep.subr.bf16.mxu0 0
        %1210 = vmatpush1.bf16.xpose.msra.mxu0 0
        %1211 = vmatprep.subr.bf16.mxu0 0
        %1212 = vmatpush1.bf16.xpose.msra.mxu0 0
        %1213 = vmatprep.subr.bf16.mxu0 0
        %1214 = vmatpush1.bf16.xpose.msra.mxu0 0
        %1215 = vmatprep.subr.bf16.mxu0 0
        %1216 = vmatpush1.bf16.xpose.msra.mxu0 0
        %1217 = vmatprep.subr.bf16.mxu0 0
        %1218 = vmatpush1.bf16.xpose.msra.mxu0 0
        %1219 = vmatprep.subr.bf16.mxu0 0
        %1220 = vmatpush1.bf16.xpose.msra.mxu0 0
        %1221 = vmatprep.subr.bf16.mxu0 0
        %1222 = vmatpush1.bf16.xpose.msra.mxu0 0
        %1223 = vmatprep.subr.bf16.mxu0 0
        %1224 = vmatpush1.bf16.xpose.msra.mxu0 0
        %1225 = vmatprep.subr.bf16.mxu0 0
        %1226 = vmatpush1.bf16.xpose.msra.mxu0 0
        %1227 = vmatprep.subr.bf16.mxu0 0
        %1228 = vmatpush1.bf16.xpose.msra.mxu0 0
        %1229 = vmatprep.subr.bf16.mxu0 0
        %1230 = vmatpush1.bf16.xpose.msra.mxu0 0
        %1231 = vmatprep.mubr.bf16.mxu0 0
        %1232 = vmatmul.mubr.bf16.gmra.mrb[0].mxu0 %v1194
        %v1233 = vpop.f32.mrb[0].mxu0
        %v1234 = vadd.f32 0.0, %v1233
        %v1235 = vpop.f32.mrb[0].mxu0
        %v1236 = vpop.f32.mrb[0].mxu0
        %v1237 = vpop.f32.mrb[0].mxu0
        %1238 = vdwg.mxu0
        %v1240 = vsel %vm640, %v605, 0
        %v1243 = vsel %vm640, %v621, 0
        %1245 = vmatprep.subr.bf16.mxu0 0
        %1246 = vmatpush1.bf16.xpose.msra.mxu0 %v1243
        %1247 = vmatprep.subr.bf16.mxu0 0
        %1248 = vmatpush1.bf16.xpose.msra.mxu0 0
        %1249 = vmatprep.subr.bf16.mxu0 0
        %1250 = vmatpush1.bf16.xpose.msra.mxu0 0
        %1251 = vmatprep.subr.bf16.mxu0 0
        %1252 = vmatpush1.bf16.xpose.msra.mxu0 0
        %1253 = vmatprep.subr.bf16.mxu0 0
        %1254 = vmatpush1.bf16.xpose.msra.mxu0 0
        %1255 = vmatprep.subr.bf16.mxu0 0
        %1256 = vmatpush1.bf16.xpose.msra.mxu0 0
        %1257 = vmatprep.subr.bf16.mxu0 0
        %1258 = vmatpush1.bf16.xpose.msra.mxu0 0
        %1259 = vmatprep.subr.bf16.mxu0 0
        %1260 = vmatpush1.bf16.xpose.msra.mxu0 0
        %1261 = vmatprep.subr.bf16.mxu0 0
        %1262 = vmatpush1.bf16.xpose.msra.mxu0 0
        %1263 = vmatprep.subr.bf16.mxu0 0
        %1264 = vmatpush1.bf16.xpose.msra.mxu0 0
        %1265 = vmatprep.subr.bf16.mxu0 0
        %1266 = vmatpush1.bf16.xpose.msra.mxu0 0
        %1267 = vmatprep.subr.bf16.mxu0 0
        %1268 = vmatpush1.bf16.xpose.msra.mxu0 0
        %1269 = vmatprep.subr.bf16.mxu0 0
        %1270 = vmatpush1.bf16.xpose.msra.mxu0 0
        %1271 = vmatprep.subr.bf16.mxu0 0
        %1272 = vmatpush1.bf16.xpose.msra.mxu0 0
        %1273 = vmatprep.subr.bf16.mxu0 0
        %1274 = vmatpush1.bf16.xpose.msra.mxu0 0
        %1275 = vmatprep.subr.bf16.mxu0 0
        %1276 = vmatpush1.bf16.xpose.msra.mxu0 0
        %1277 = vmatprep.mubr.bf16.mxu0 0
        %1278 = vmatmul.mubr.bf16.gmra.mrb[0].mxu0 %v1240
        %v1279 = vpop.f32.mrb[0].mxu0
        %v1280 = vadd.f32 0.0, %v1279
        %v1281 = vpop.f32.mrb[0].mxu0
        %v1282 = vpop.f32.mrb[0].mxu0
        %v1283 = vpop.f32.mrb[0].mxu0
        %1284 = vdwg.mxu0
        %v1286 = vsel %vm640, %v606, 0
        %v1289 = vsel %vm640, %v622, 0
        %1291 = vmatprep.subr.bf16.mxu0 0
        %1292 = vmatpush1.bf16.xpose.msra.mxu0 %v1289
        %1293 = vmatprep.subr.bf16.mxu0 0
        %1294 = vmatpush1.bf16.xpose.msra.mxu0 0
        %1295 = vmatprep.subr.bf16.mxu0 0
        %1296 = vmatpush1.bf16.xpose.msra.mxu0 0
        %1297 = vmatprep.subr.bf16.mxu0 0
        %1298 = vmatpush1.bf16.xpose.msra.mxu0 0
        %1299 = vmatprep.subr.bf16.mxu0 0
        %1300 = vmatpush1.bf16.xpose.msra.mxu0 0
        %1301 = vmatprep.subr.bf16.mxu0 0
        %1302 = vmatpush1.bf16.xpose.msra.mxu0 0
        %1303 = vmatprep.subr.bf16.mxu0 0
        %1304 = vmatpush1.bf16.xpose.msra.mxu0 0
        %1305 = vmatprep.subr.bf16.mxu0 0
        %1306 = vmatpush1.bf16.xpose.msra.mxu0 0
        %1307 = vmatprep.subr.bf16.mxu0 0
        %1308 = vmatpush1.bf16.xpose.msra.mxu0 0
        %1309 = vmatprep.subr.bf16.mxu0 0
        %1310 = vmatpush1.bf16.xpose.msra.mxu0 0
        %1311 = vmatprep.subr.bf16.mxu0 0
        %1312 = vmatpush1.bf16.xpose.msra.mxu0 0
        %1313 = vmatprep.subr.bf16.mxu0 0
        %1314 = vmatpush1.bf16.xpose.msra.mxu0 0
        %1315 = vmatprep.subr.bf16.mxu0 0
        %1316 = vmatpush1.bf16.xpose.msra.mxu0 0
        %1317 = vmatprep.subr.bf16.mxu0 0
        %1318 = vmatpush1.bf16.xpose.msra.mxu0 0
        %1319 = vmatprep.subr.bf16.mxu0 0
        %1320 = vmatpush1.bf16.xpose.msra.mxu0 0
        %1321 = vmatprep.subr.bf16.mxu0 0
        %1322 = vmatpush1.bf16.xpose.msra.mxu0 0
        %1323 = vmatprep.mubr.bf16.mxu0 0
        %1324 = vmatmul.mubr.bf16.gmra.mrb[0].mxu0 %v1286
        %v1325 = vpop.f32.mrb[0].mxu0
        %v1326 = vadd.f32 0.0, %v1325
        %v1327 = vpop.f32.mrb[0].mxu0
        %v1328 = vpop.f32.mrb[0].mxu0
        %v1329 = vpop.f32.mrb[0].mxu0
        %1330 = vdwg.mxu0
        %v1332 = vsel %vm640, %v607, 0
        %v1335 = vsel %vm640, %v623, 0
        %1337 = vmatprep.subr.bf16.mxu0 0
        %1338 = vmatpush1.bf16.xpose.msra.mxu0 %v1335
        %1339 = vmatprep.subr.bf16.mxu0 0
        %1340 = vmatpush1.bf16.xpose.msra.mxu0 0
        %1341 = vmatprep.subr.bf16.mxu0 0
        %1342 = vmatpush1.bf16.xpose.msra.mxu0 0
        %1343 = vmatprep.subr.bf16.mxu0 0
        %1344 = vmatpush1.bf16.xpose.msra.mxu0 0
        %1345 = vmatprep.subr.bf16.mxu0 0
        %1346 = vmatpush1.bf16.xpose.msra.mxu0 0
        %1347 = vmatprep.subr.bf16.mxu0 0
        %1348 = vmatpush1.bf16.xpose.msra.mxu0 0
        %1349 = vmatprep.subr.bf16.mxu0 0
        %1350 = vmatpush1.bf16.xpose.msra.mxu0 0
        %1351 = vmatprep.subr.bf16.mxu0 0
        %1352 = vmatpush1.bf16.xpose.msra.mxu0 0
        %1353 = vmatprep.subr.bf16.mxu0 0
        %1354 = vmatpush1.bf16.xpose.msra.mxu0 0
        %1355 = vmatprep.subr.bf16.mxu0 0
        %1356 = vmatpush1.bf16.xpose.msra.mxu0 0
        %1357 = vmatprep.subr.bf16.mxu0 0
        %1358 = vmatpush1.bf16.xpose.msra.mxu0 0
        %1359 = vmatprep.subr.bf16.mxu0 0
        %1360 = vmatpush1.bf16.xpose.msra.mxu0 0
        %1361 = vmatprep.subr.bf16.mxu0 0
        %1362 = vmatpush1.bf16.xpose.msra.mxu0 0
        %1363 = vmatprep.subr.bf16.mxu0 0
        %1364 = vmatpush1.bf16.xpose.msra.mxu0 0
        %1365 = vmatprep.subr.bf16.mxu0 0
        %1366 = vmatpush1.bf16.xpose.msra.mxu0 0
        %1367 = vmatprep.subr.bf16.mxu0 0
        %1368 = vmatpush1.bf16.xpose.msra.mxu0 0
        %1369 = vmatprep.mubr.bf16.mxu0 0
        %1370 = vmatmul.mubr.bf16.gmra.mrb[0].mxu0 %v1332
        %v1371 = vpop.f32.mrb[0].mxu0
        %v1372 = vadd.f32 0.0, %v1371
        %v1373 = vpop.f32.mrb[0].mxu0
        %v1374 = vpop.f32.mrb[0].mxu0
        %v1375 = vpop.f32.mrb[0].mxu0
        %1376 = vdwg.mxu0
        %vm1377 = vcmask 9216
        %v1378 = vsel %vm1377, %v682, -inf
        %1379 = vmax.xlane.f32.xlu0 %v1378
        %v1380 = vpop.xlane.xlu0 %1379
        %v1381 = vsel %vm1377, %v728, -inf
        %1382 = vmax.xlane.f32.xlu0 %v1381
        %v1383 = vpop.xlane.xlu0 %1382
        %v1384 = vsel %vm1377, %v774, -inf
        %1385 = vmax.xlane.f32.xlu0 %v1384
        %v1386 = vpop.xlane.xlu0 %1385
        %v1387 = vsel %vm1377, %v820, -inf
        %1388 = vmax.xlane.f32.xlu0 %v1387
        %v1389 = vpop.xlane.xlu0 %1388
        %v1390 = vsel %vm1377, %v866, -inf
        %1391 = vmax.xlane.f32.xlu0 %v1390
        %v1392 = vpop.xlane.xlu0 %1391
        %v1393 = vsel %vm1377, %v912, -inf
        %1394 = vmax.xlane.f32.xlu0 %v1393
        %v1395 = vpop.xlane.xlu0 %1394
        %v1396 = vsel %vm1377, %v958, -inf
        %1397 = vmax.xlane.f32.xlu0 %v1396
        %v1398 = vpop.xlane.xlu0 %1397
        %v1399 = vsel %vm1377, %v1004, -inf
        %1400 = vmax.xlane.f32.xlu0 %v1399
        %v1401 = vpop.xlane.xlu0 %1400
        %v1402 = vsel %vm1377, %v1050, -inf
        %1403 = vmax.xlane.f32.xlu0 %v1402
        %v1404 = vpop.xlane.xlu0 %1403
        %v1405 = vsel %vm1377, %v1096, -inf
        %1406 = vmax.xlane.f32.xlu0 %v1405
        %v1407 = vpop.xlane.xlu0 %1406
        %v1408 = vsel %vm1377, %v1142, -inf
        %1409 = vmax.xlane.f32.xlu0 %v1408
        %v1410 = vpop.xlane.xlu0 %1409
        %v1411 = vsel %vm1377, %v1188, -inf
        %1412 = vmax.xlane.f32.xlu0 %v1411
        %v1413 = vpop.xlane.xlu0 %1412
        %v1414 = vsel %vm1377, %v1234, -inf
        %1415 = vmax.xlane.f32.xlu0 %v1414
        %v1416 = vpop.xlane.xlu0 %1415
        %v1417 = vsel %vm1377, %v1280, -inf
        %1418 = vmax.xlane.f32.xlu0 %v1417
        %v1419 = vpop.xlane.xlu0 %1418
        %v1420 = vsel %vm1377, %v1326, -inf
        %1421 = vmax.xlane.f32.xlu0 %v1420
        %v1422 = vpop.xlane.xlu0 %1421
        %v1423 = vsel %vm1377, %v1372, -inf
        %1424 = vmax.xlane.f32.xlu0 %v1423
        %v1425 = vpop.xlane.xlu0 %1424
        %v1426 = vsub.f32 %v682, %v1380
        %v1427 = vsub.f32 %v728, %v1383
        %v1428 = vsub.f32 %v774, %v1386
        %v1429 = vsub.f32 %v820, %v1389
        %v1430 = vsub.f32 %v866, %v1392
        %v1431 = vsub.f32 %v912, %v1395
        %v1432 = vsub.f32 %v958, %v1398
        %v1433 = vsub.f32 %v1004, %v1401
        %v1434 = vsub.f32 %v1050, %v1404
        %v1435 = vsub.f32 %v1096, %v1407
        %v1436 = vsub.f32 %v1142, %v1410
        %v1437 = vsub.f32 %v1188, %v1413
        %v1438 = vsub.f32 %v1234, %v1416
        %v1439 = vsub.f32 %v1280, %v1419
        %v1440 = vsub.f32 %v1326, %v1422
        %v1441 = vsub.f32 %v1372, %v1425
        %v1442 = vmul.f32 %v1426, 1.442695
        %v1443 = vpow.pop %v1442
        %v1444 = vmul.f32 %v1427, 1.442695
        %v1445 = vpow.pop %v1444
        %v1446 = vmul.f32 %v1428, 1.442695
        %v1447 = vpow.pop %v1446
        %v1448 = vmul.f32 %v1429, 1.442695
        %v1449 = vpow.pop %v1448
        %v1450 = vmul.f32 %v1430, 1.442695
        %v1451 = vpow.pop %v1450
        %v1452 = vmul.f32 %v1431, 1.442695
        %v1453 = vpow.pop %v1452
        %v1454 = vmul.f32 %v1432, 1.442695
        %v1455 = vpow.pop %v1454
        %v1456 = vmul.f32 %v1433, 1.442695
        %v1457 = vpow.pop %v1456
        %v1458 = vmul.f32 %v1434, 1.442695
        %v1459 = vpow.pop %v1458
        %v1460 = vmul.f32 %v1435, 1.442695
        %v1461 = vpow.pop %v1460
        %v1462 = vmul.f32 %v1436, 1.442695
        %v1463 = vpow.pop %v1462
        %v1464 = vmul.f32 %v1437, 1.442695
        %v1465 = vpow.pop %v1464
        %v1466 = vmul.f32 %v1438, 1.442695
        %v1467 = vpow.pop %v1466
        %v1468 = vmul.f32 %v1439, 1.442695
        %v1469 = vpow.pop %v1468
        %v1470 = vmul.f32 %v1440, 1.442695
        %v1471 = vpow.pop %v1470
        %v1472 = vmul.f32 %v1441, 1.442695
        %v1473 = vpow.pop %v1472
        %v1474 = vsel %vm1377, %v1443, 0.0
        %1475 = vadd.xlane.f32.xlu0 %v1474
        %v1476 = vpop.xlane.xlu0 %1475
        %v1477 = vsel %vm1377, %v1445, 0.0
        %1478 = vadd.xlane.f32.xlu0 %v1477
        %v1479 = vpop.xlane.xlu0 %1478
        %v1480 = vsel %vm1377, %v1447, 0.0
        %1481 = vadd.xlane.f32.xlu0 %v1480
        %v1482 = vpop.xlane.xlu0 %1481
        %v1483 = vsel %vm1377, %v1449, 0.0
        %1484 = vadd.xlane.f32.xlu0 %v1483
        %v1485 = vpop.xlane.xlu0 %1484
        %v1486 = vsel %vm1377, %v1451, 0.0
        %1487 = vadd.xlane.f32.xlu0 %v1486
        %v1488 = vpop.xlane.xlu0 %1487
        %v1489 = vsel %vm1377, %v1453, 0.0
        %1490 = vadd.xlane.f32.xlu0 %v1489
        %v1491 = vpop.xlane.xlu0 %1490
        %v1492 = vsel %vm1377, %v1455, 0.0
        %1493 = vadd.xlane.f32.xlu0 %v1492
        %v1494 = vpop.xlane.xlu0 %1493
        %v1495 = vsel %vm1377, %v1457, 0.0
        %1496 = vadd.xlane.f32.xlu0 %v1495
        %v1497 = vpop.xlane.xlu0 %1496
        %v1498 = vsel %vm1377, %v1459, 0.0
        %1499 = vadd.xlane.f32.xlu0 %v1498
        %v1500 = vpop.xlane.xlu0 %1499
        %v1501 = vsel %vm1377, %v1461, 0.0
        %1502 = vadd.xlane.f32.xlu0 %v1501
        %v1503 = vpop.xlane.xlu0 %1502
        %v1504 = vsel %vm1377, %v1463, 0.0
        %1505 = vadd.xlane.f32.xlu0 %v1504
        %v1506 = vpop.xlane.xlu0 %1505
        %v1507 = vsel %vm1377, %v1465, 0.0
        %1508 = vadd.xlane.f32.xlu0 %v1507
        %v1509 = vpop.xlane.xlu0 %1508
        %v1510 = vsel %vm1377, %v1467, 0.0
        %1511 = vadd.xlane.f32.xlu0 %v1510
        %v1512 = vpop.xlane.xlu0 %1511
        %v1513 = vsel %vm1377, %v1469, 0.0
        %1514 = vadd.xlane.f32.xlu0 %v1513
        %v1515 = vpop.xlane.xlu0 %1514
        %v1516 = vsel %vm1377, %v1471, 0.0
        %1517 = vadd.xlane.f32.xlu0 %v1516
        %v1518 = vpop.xlane.xlu0 %1517
        %v1519 = vsel %vm1377, %v1473, 0.0
        %1520 = vadd.xlane.f32.xlu0 %v1519
        %v1521 = vpop.xlane.xlu0 %1520
        %v1522 = vrcp.pop %v1476
        %v1523 = vrcp.pop %v1479
        %v1524 = vrcp.pop %v1482
        %v1525 = vrcp.pop %v1485
        %v1526 = vrcp.pop %v1488
        %v1527 = vrcp.pop %v1491
        %v1528 = vrcp.pop %v1494
        %v1529 = vrcp.pop %v1497
        %v1530 = vrcp.pop %v1500
        %v1531 = vrcp.pop %v1503
        %v1532 = vrcp.pop %v1506
        %v1533 = vrcp.pop %v1509
        %v1534 = vrcp.pop %v1512
        %v1535 = vrcp.pop %v1515
        %v1536 = vrcp.pop %v1518
        %v1537 = vrcp.pop %v1521
        %v1538 = vmul.f32 %v1443, %v1522
        %v1539 = vmul.f32 %v1445, %v1523
        %v1540 = vmul.f32 %v1447, %v1524
        %v1541 = vmul.f32 %v1449, %v1525
        %v1542 = vmul.f32 %v1451, %v1526
        %v1543 = vmul.f32 %v1453, %v1527
        %v1544 = vmul.f32 %v1455, %v1528
        %v1545 = vmul.f32 %v1457, %v1529
        %v1546 = vmul.f32 %v1459, %v1530
        %v1547 = vmul.f32 %v1461, %v1531
        %v1548 = vmul.f32 %v1463, %v1532
        %v1549 = vmul.f32 %v1465, %v1533
        %v1550 = vmul.f32 %v1467, %v1534
        %v1551 = vmul.f32 %v1469, %v1535
        %v1552 = vmul.f32 %v1471, %v1536
        %v1553 = vmul.f32 %v1473, %v1537
        %v1554 = vpack.c.bf16 %v1538, %v1538
        %v1555 = vpack.c.bf16 %v1539, %v1539
        %v1556 = vpack.c.bf16 %v1540, %v1540
        %v1557 = vpack.c.bf16 %v1541, %v1541
        %v1558 = vpack.c.bf16 %v1542, %v1542
        %v1559 = vpack.c.bf16 %v1543, %v1543
        %v1560 = vpack.c.bf16 %v1544, %v1544
        %v1561 = vpack.c.bf16 %v1545, %v1545
        %v1562 = vpack.c.bf16 %v1546, %v1546
        %v1563 = vpack.c.bf16 %v1547, %v1547
        %v1564 = vpack.c.bf16 %v1548, %v1548
        %v1565 = vpack.c.bf16 %v1549, %v1549
        %v1566 = vpack.c.bf16 %v1550, %v1550
        %v1567 = vpack.c.bf16 %v1551, %v1551
        %v1568 = vpack.c.bf16 %v1552, %v1552
        %v1569 = vpack.c.bf16 %v1553, %v1553
        %vm1570 = vcmask 15360
        %v1572 = vsel %vm1570, %v1554, 0
        %vm1574 = vcmask 1040384
        %v1576 = vsel %vm1574, %v624, 0
        %1578 = vmatprep.subr.bf16.mxu0 0
        %1579 = vmatpush1.bf16.msra.mxu0 %v1576
        %1580 = vmatprep.subr.bf16.mxu0 0
        %1581 = vmatpush1.bf16.msra.mxu0 0
        %1582 = vmatprep.subr.bf16.mxu0 0
        %1583 = vmatpush1.bf16.msra.mxu0 0
        %1584 = vmatprep.subr.bf16.mxu0 0
        %1585 = vmatpush1.bf16.msra.mxu0 0
        %1586 = vmatprep.subr.bf16.mxu0 0
        %1587 = vmatpush1.bf16.msra.mxu0 0
        %1588 = vmatprep.subr.bf16.mxu0 0
        %1589 = vmatpush1.bf16.msra.mxu0 0
        %1590 = vmatprep.subr.bf16.mxu0 0
        %1591 = vmatpush1.bf16.msra.mxu0 0
        %1592 = vmatprep.subr.bf16.mxu0 0
        %1593 = vmatpush1.bf16.msra.mxu0 0
        %1594 = vmatprep.subr.bf16.mxu0 0
        %1595 = vmatpush1.bf16.msra.mxu0 0
        %1596 = vmatprep.subr.bf16.mxu0 0
        %1597 = vmatpush1.bf16.msra.mxu0 0
        %1598 = vmatprep.subr.bf16.mxu0 0
        %1599 = vmatpush1.bf16.msra.mxu0 0
        %1600 = vmatprep.subr.bf16.mxu0 0
        %1601 = vmatpush1.bf16.msra.mxu0 0
        %1602 = vmatprep.subr.bf16.mxu0 0
        %1603 = vmatpush1.bf16.msra.mxu0 0
        %1604 = vmatprep.subr.bf16.mxu0 0
        %1605 = vmatpush1.bf16.msra.mxu0 0
        %1606 = vmatprep.subr.bf16.mxu0 0
        %1607 = vmatpush1.bf16.msra.mxu0 0
        %1608 = vmatprep.subr.bf16.mxu0 0
        %1609 = vmatpush1.bf16.msra.mxu0 0
        %1610 = vmatprep.mubr.bf16.mxu0 0
        %1611 = vmatmul.mubr.bf16.gmra.mrb[0].mxu0 %v1572
        %v1612 = vpop.f32.mrb[0].mxu0
        %v1613 = vadd.f32 0.0, %v1612
        %v1614 = vpop.f32.mrb[0].mxu0
        %v1615 = vpop.f32.mrb[0].mxu0
        %v1616 = vpop.f32.mrb[0].mxu0
        %1617 = vdwg.mxu0
        %v1619 = vsel %vm1570, %v1555, 0
        %v1622 = vsel %vm1574, %v625, 0
        %1624 = vmatprep.subr.bf16.mxu0 0
        %1625 = vmatpush1.bf16.msra.mxu0 %v1622
        %1626 = vmatprep.subr.bf16.mxu0 0
        %1627 = vmatpush1.bf16.msra.mxu0 0
        %1628 = vmatprep.subr.bf16.mxu0 0
        %1629 = vmatpush1.bf16.msra.mxu0 0
        %1630 = vmatprep.subr.bf16.mxu0 0
        %1631 = vmatpush1.bf16.msra.mxu0 0
        %1632 = vmatprep.subr.bf16.mxu0 0
        %1633 = vmatpush1.bf16.msra.mxu0 0
        %1634 = vmatprep.subr.bf16.mxu0 0
        %1635 = vmatpush1.bf16.msra.mxu0 0
        %1636 = vmatprep.subr.bf16.mxu0 0
        %1637 = vmatpush1.bf16.msra.mxu0 0
        %1638 = vmatprep.subr.bf16.mxu0 0
        %1639 = vmatpush1.bf16.msra.mxu0 0
        %1640 = vmatprep.subr.bf16.mxu0 0
        %1641 = vmatpush1.bf16.msra.mxu0 0
        %1642 = vmatprep.subr.bf16.mxu0 0
        %1643 = vmatpush1.bf16.msra.mxu0 0
        %1644 = vmatprep.subr.bf16.mxu0 0
        %1645 = vmatpush1.bf16.msra.mxu0 0
        %1646 = vmatprep.subr.bf16.mxu0 0
        %1647 = vmatpush1.bf16.msra.mxu0 0
        %1648 = vmatprep.subr.bf16.mxu0 0
        %1649 = vmatpush1.bf16.msra.mxu0 0
        %1650 = vmatprep.subr.bf16.mxu0 0
        %1651 = vmatpush1.bf16.msra.mxu0 0
        %1652 = vmatprep.subr.bf16.mxu0 0
        %1653 = vmatpush1.bf16.msra.mxu0 0
        %1654 = vmatprep.subr.bf16.mxu0 0
        %1655 = vmatpush1.bf16.msra.mxu0 0
        %1656 = vmatprep.mubr.bf16.mxu0 0
        %1657 = vmatmul.mubr.bf16.gmra.mrb[0].mxu0 %v1619
        %v1658 = vpop.f32.mrb[0].mxu0
        %v1659 = vadd.f32 0.0, %v1658
        %v1660 = vpop.f32.mrb[0].mxu0
        %v1661 = vpop.f32.mrb[0].mxu0
        %v1662 = vpop.f32.mrb[0].mxu0
        %1663 = vdwg.mxu0
        %v1665 = vsel %vm1570, %v1556, 0
        %v1668 = vsel %vm1574, %v626, 0
        %1670 = vmatprep.subr.bf16.mxu0 0
        %1671 = vmatpush1.bf16.msra.mxu0 %v1668
        %1672 = vmatprep.subr.bf16.mxu0 0
        %1673 = vmatpush1.bf16.msra.mxu0 0
        %1674 = vmatprep.subr.bf16.mxu0 0
        %1675 = vmatpush1.bf16.msra.mxu0 0
        %1676 = vmatprep.subr.bf16.mxu0 0
        %1677 = vmatpush1.bf16.msra.mxu0 0
        %1678 = vmatprep.subr.bf16.mxu0 0
        %1679 = vmatpush1.bf16.msra.mxu0 0
        %1680 = vmatprep.subr.bf16.mxu0 0
        %1681 = vmatpush1.bf16.msra.mxu0 0
        %1682 = vmatprep.subr.bf16.mxu0 0
        %1683 = vmatpush1.bf16.msra.mxu0 0
        %1684 = vmatprep.subr.bf16.mxu0 0
        %1685 = vmatpush1.bf16.msra.mxu0 0
        %1686 = vmatprep.subr.bf16.mxu0 0
        %1687 = vmatpush1.bf16.msra.mxu0 0
        %1688 = vmatprep.subr.bf16.mxu0 0
        %1689 = vmatpush1.bf16.msra.mxu0 0
        %1690 = vmatprep.subr.bf16.mxu0 0
        %1691 = vmatpush1.bf16.msra.mxu0 0
        %1692 = vmatprep.subr.bf16.mxu0 0
        %1693 = vmatpush1.bf16.msra.mxu0 0
        %1694 = vmatprep.subr.bf16.mxu0 0
        %1695 = vmatpush1.bf16.msra.mxu0 0
        %1696 = vmatprep.subr.bf16.mxu0 0
        %1697 = vmatpush1.bf16.msra.mxu0 0
        %1698 = vmatprep.subr.bf16.mxu0 0
        %1699 = vmatpush1.bf16.msra.mxu0 0
        %1700 = vmatprep.subr.bf16.mxu0 0
        %1701 = vmatpush1.bf16.msra.mxu0 0
        %1702 = vmatprep.mubr.bf16.mxu0 0
        %1703 = vmatmul.mubr.bf16.gmra.mrb[0].mxu0 %v1665
        %v1704 = vpop.f32.mrb[0].mxu0
        %v1705 = vadd.f32 0.0, %v1704
        %v1706 = vpop.f32.mrb[0].mxu0
        %v1707 = vpop.f32.mrb[0].mxu0
        %v1708 = vpop.f32.mrb[0].mxu0
        %1709 = vdwg.mxu0
        %v1711 = vsel %vm1570, %v1557, 0
        %v1714 = vsel %vm1574, %v627, 0
        %1716 = vmatprep.subr.bf16.mxu0 0
        %1717 = vmatpush1.bf16.msra.mxu0 %v1714
        %1718 = vmatprep.subr.bf16.mxu0 0
        %1719 = vmatpush1.bf16.msra.mxu0 0
        %1720 = vmatprep.subr.bf16.mxu0 0
        %1721 = vmatpush1.bf16.msra.mxu0 0
        %1722 = vmatprep.subr.bf16.mxu0 0
        %1723 = vmatpush1.bf16.msra.mxu0 0
        %1724 = vmatprep.subr.bf16.mxu0 0
        %1725 = vmatpush1.bf16.msra.mxu0 0
        %1726 = vmatprep.subr.bf16.mxu0 0
        %1727 = vmatpush1.bf16.msra.mxu0 0
        %1728 = vmatprep.subr.bf16.mxu0 0
        %1729 = vmatpush1.bf16.msra.mxu0 0
        %1730 = vmatprep.subr.bf16.mxu0 0
        %1731 = vmatpush1.bf16.msra.mxu0 0
        %1732 = vmatprep.subr.bf16.mxu0 0
        %1733 = vmatpush1.bf16.msra.mxu0 0
        %1734 = vmatprep.subr.bf16.mxu0 0
        %1735 = vmatpush1.bf16.msra.mxu0 0
        %1736 = vmatprep.subr.bf16.mxu0 0
        %1737 = vmatpush1.bf16.msra.mxu0 0
        %1738 = vmatprep.subr.bf16.mxu0 0
        %1739 = vmatpush1.bf16.msra.mxu0 0
        %1740 = vmatprep.subr.bf16.mxu0 0
        %1741 = vmatpush1.bf16.msra.mxu0 0
        %1742 = vmatprep.subr.bf16.mxu0 0
        %1743 = vmatpush1.bf16.msra.mxu0 0
        %1744 = vmatprep.subr.bf16.mxu0 0
        %1745 = vmatpush1.bf16.msra.mxu0 0
        %1746 = vmatprep.subr.bf16.mxu0 0
        %1747 = vmatpush1.bf16.msra.mxu0 0
        %1748 = vmatprep.mubr.bf16.mxu0 0
        %1749 = vmatmul.mubr.bf16.gmra.mrb[0].mxu0 %v1711
        %v1750 = vpop.f32.mrb[0].mxu0
        %v1751 = vadd.f32 0.0, %v1750
        %v1752 = vpop.f32.mrb[0].mxu0
        %v1753 = vpop.f32.mrb[0].mxu0
        %v1754 = vpop.f32.mrb[0].mxu0
        %1755 = vdwg.mxu0
        %v1757 = vsel %vm1570, %v1558, 0
        %v1760 = vsel %vm1574, %v628, 0
        %1762 = vmatprep.subr.bf16.mxu0 0
        %1763 = vmatpush1.bf16.msra.mxu0 %v1760
        %1764 = vmatprep.subr.bf16.mxu0 0
        %1765 = vmatpush1.bf16.msra.mxu0 0
        %1766 = vmatprep.subr.bf16.mxu0 0
        %1767 = vmatpush1.bf16.msra.mxu0 0
        %1768 = vmatprep.subr.bf16.mxu0 0
        %1769 = vmatpush1.bf16.msra.mxu0 0
        %1770 = vmatprep.subr.bf16.mxu0 0
        %1771 = vmatpush1.bf16.msra.mxu0 0
        %1772 = vmatprep.subr.bf16.mxu0 0
        %1773 = vmatpush1.bf16.msra.mxu0 0
        %1774 = vmatprep.subr.bf16.mxu0 0
        %1775 = vmatpush1.bf16.msra.mxu0 0
        %1776 = vmatprep.subr.bf16.mxu0 0
        %1777 = vmatpush1.bf16.msra.mxu0 0
        %1778 = vmatprep.subr.bf16.mxu0 0
        %1779 = vmatpush1.bf16.msra.mxu0 0
        %1780 = vmatprep.subr.bf16.mxu0 0
        %1781 = vmatpush1.bf16.msra.mxu0 0
        %1782 = vmatprep.subr.bf16.mxu0 0
        %1783 = vmatpush1.bf16.msra.mxu0 0
        %1784 = vmatprep.subr.bf16.mxu0 0
        %1785 = vmatpush1.bf16.msra.mxu0 0
        %1786 = vmatprep.subr.bf16.mxu0 0
        %1787 = vmatpush1.bf16.msra.mxu0 0
        %1788 = vmatprep.subr.bf16.mxu0 0
        %1789 = vmatpush1.bf16.msra.mxu0 0
        %1790 = vmatprep.subr.bf16.mxu0 0
        %1791 = vmatpush1.bf16.msra.mxu0 0
        %1792 = vmatprep.subr.bf16.mxu0 0
        %1793 = vmatpush1.bf16.msra.mxu0 0
        %1794 = vmatprep.mubr.bf16.mxu0 0
        %1795 = vmatmul.mubr.bf16.gmra.mrb[0].mxu0 %v1757
        %v1796 = vpop.f32.mrb[0].mxu0
        %v1797 = vadd.f32 0.0, %v1796
        %v1798 = vpop.f32.mrb[0].mxu0
        %v1799 = vpop.f32.mrb[0].mxu0
        %v1800 = vpop.f32.mrb[0].mxu0
        %1801 = vdwg.mxu0
        %v1803 = vsel %vm1570, %v1559, 0
        %v1806 = vsel %vm1574, %v629, 0
        %1808 = vmatprep.subr.bf16.mxu0 0
        %1809 = vmatpush1.bf16.msra.mxu0 %v1806
        %1810 = vmatprep.subr.bf16.mxu0 0
        %1811 = vmatpush1.bf16.msra.mxu0 0
        %1812 = vmatprep.subr.bf16.mxu0 0
        %1813 = vmatpush1.bf16.msra.mxu0 0
        %1814 = vmatprep.subr.bf16.mxu0 0
        %1815 = vmatpush1.bf16.msra.mxu0 0
        %1816 = vmatprep.subr.bf16.mxu0 0
        %1817 = vmatpush1.bf16.msra.mxu0 0
        %1818 = vmatprep.subr.bf16.mxu0 0
        %1819 = vmatpush1.bf16.msra.mxu0 0
        %1820 = vmatprep.subr.bf16.mxu0 0
        %1821 = vmatpush1.bf16.msra.mxu0 0
        %1822 = vmatprep.subr.bf16.mxu0 0
        %1823 = vmatpush1.bf16.msra.mxu0 0
        %1824 = vmatprep.subr.bf16.mxu0 0
        %1825 = vmatpush1.bf16.msra.mxu0 0
        %1826 = vmatprep.subr.bf16.mxu0 0
        %1827 = vmatpush1.bf16.msra.mxu0 0
        %1828 = vmatprep.subr.bf16.mxu0 0
        %1829 = vmatpush1.bf16.msra.mxu0 0
        %1830 = vmatprep.subr.bf16.mxu0 0
        %1831 = vmatpush1.bf16.msra.mxu0 0
        %1832 = vmatprep.subr.bf16.mxu0 0
        %1833 = vmatpush1.bf16.msra.mxu0 0
        %1834 = vmatprep.subr.bf16.mxu0 0
        %1835 = vmatpush1.bf16.msra.mxu0 0
        %1836 = vmatprep.subr.bf16.mxu0 0
        %1837 = vmatpush1.bf16.msra.mxu0 0
        %1838 = vmatprep.subr.bf16.mxu0 0
        %1839 = vmatpush1.bf16.msra.mxu0 0
        %1840 = vmatprep.mubr.bf16.mxu0 0
        %1841 = vmatmul.mubr.bf16.gmra.mrb[0].mxu0 %v1803
        %v1842 = vpop.f32.mrb[0].mxu0
        %v1843 = vadd.f32 0.0, %v1842
        %v1844 = vpop.f32.mrb[0].mxu0
        %v1845 = vpop.f32.mrb[0].mxu0
        %v1846 = vpop.f32.mrb[0].mxu0
        %1847 = vdwg.mxu0
        %v1849 = vsel %vm1570, %v1560, 0
        %v1852 = vsel %vm1574, %v630, 0
        %1854 = vmatprep.subr.bf16.mxu0 0
        %1855 = vmatpush1.bf16.msra.mxu0 %v1852
        %1856 = vmatprep.subr.bf16.mxu0 0
        %1857 = vmatpush1.bf16.msra.mxu0 0
        %1858 = vmatprep.subr.bf16.mxu0 0
        %1859 = vmatpush1.bf16.msra.mxu0 0
        %1860 = vmatprep.subr.bf16.mxu0 0
        %1861 = vmatpush1.bf16.msra.mxu0 0
        %1862 = vmatprep.subr.bf16.mxu0 0
        %1863 = vmatpush1.bf16.msra.mxu0 0
        %1864 = vmatprep.subr.bf16.mxu0 0
        %1865 = vmatpush1.bf16.msra.mxu0 0
        %1866 = vmatprep.subr.bf16.mxu0 0
        %1867 = vmatpush1.bf16.msra.mxu0 0
        %1868 = vmatprep.subr.bf16.mxu0 0
        %1869 = vmatpush1.bf16.msra.mxu0 0
        %1870 = vmatprep.subr.bf16.mxu0 0
        %1871 = vmatpush1.bf16.msra.mxu0 0
        %1872 = vmatprep.subr.bf16.mxu0 0
        %1873 = vmatpush1.bf16.msra.mxu0 0
        %1874 = vmatprep.subr.bf16.mxu0 0
        %1875 = vmatpush1.bf16.msra.mxu0 0
        %1876 = vmatprep.subr.bf16.mxu0 0
        %1877 = vmatpush1.bf16.msra.mxu0 0
        %1878 = vmatprep.subr.bf16.mxu0 0
        %1879 = vmatpush1.bf16.msra.mxu0 0
        %1880 = vmatprep.subr.bf16.mxu0 0
        %1881 = vmatpush1.bf16.msra.mxu0 0
        %1882 = vmatprep.subr.bf16.mxu0 0
        %1883 = vmatpush1.bf16.msra.mxu0 0
        %1884 = vmatprep.subr.bf16.mxu0 0
        %1885 = vmatpush1.bf16.msra.mxu0 0
        %1886 = vmatprep.mubr.bf16.mxu0 0
        %1887 = vmatmul.mubr.bf16.gmra.mrb[0].mxu0 %v1849
        %v1888 = vpop.f32.mrb[0].mxu0
        %v1889 = vadd.f32 0.0, %v1888
        %v1890 = vpop.f32.mrb[0].mxu0
        %v1891 = vpop.f32.mrb[0].mxu0
        %v1892 = vpop.f32.mrb[0].mxu0
        %1893 = vdwg.mxu0
        %v1895 = vsel %vm1570, %v1561, 0
        %v1898 = vsel %vm1574, %v631, 0
        %1900 = vmatprep.subr.bf16.mxu0 0
        %1901 = vmatpush1.bf16.msra.mxu0 %v1898
        %1902 = vmatprep.subr.bf16.mxu0 0
        %1903 = vmatpush1.bf16.msra.mxu0 0
        %1904 = vmatprep.subr.bf16.mxu0 0
        %1905 = vmatpush1.bf16.msra.mxu0 0
        %1906 = vmatprep.subr.bf16.mxu0 0
        %1907 = vmatpush1.bf16.msra.mxu0 0
        %1908 = vmatprep.subr.bf16.mxu0 0
        %1909 = vmatpush1.bf16.msra.mxu0 0
        %1910 = vmatprep.subr.bf16.mxu0 0
        %1911 = vmatpush1.bf16.msra.mxu0 0
        %1912 = vmatprep.subr.bf16.mxu0 0
        %1913 = vmatpush1.bf16.msra.mxu0 0
        %1914 = vmatprep.subr.bf16.mxu0 0
        %1915 = vmatpush1.bf16.msra.mxu0 0
        %1916 = vmatprep.subr.bf16.mxu0 0
        %1917 = vmatpush1.bf16.msra.mxu0 0
        %1918 = vmatprep.subr.bf16.mxu0 0
        %1919 = vmatpush1.bf16.msra.mxu0 0
        %1920 = vmatprep.subr.bf16.mxu0 0
        %1921 = vmatpush1.bf16.msra.mxu0 0
        %1922 = vmatprep.subr.bf16.mxu0 0
        %1923 = vmatpush1.bf16.msra.mxu0 0
        %1924 = vmatprep.subr.bf16.mxu0 0
        %1925 = vmatpush1.bf16.msra.mxu0 0
        %1926 = vmatprep.subr.bf16.mxu0 0
        %1927 = vmatpush1.bf16.msra.mxu0 0
        %1928 = vmatprep.subr.bf16.mxu0 0
        %1929 = vmatpush1.bf16.msra.mxu0 0
        %1930 = vmatprep.subr.bf16.mxu0 0
        %1931 = vmatpush1.bf16.msra.mxu0 0
        %1932 = vmatprep.mubr.bf16.mxu0 0
        %1933 = vmatmul.mubr.bf16.gmra.mrb[0].mxu0 %v1895
        %v1934 = vpop.f32.mrb[0].mxu0
        %v1935 = vadd.f32 0.0, %v1934
        %v1936 = vpop.f32.mrb[0].mxu0
        %v1937 = vpop.f32.mrb[0].mxu0
        %v1938 = vpop.f32.mrb[0].mxu0
        %1939 = vdwg.mxu0
        %v1941 = vsel %vm1570, %v1562, 0
        %v1944 = vsel %vm1574, %v632, 0
        %1946 = vmatprep.subr.bf16.mxu0 0
        %1947 = vmatpush1.bf16.msra.mxu0 %v1944
        %1948 = vmatprep.subr.bf16.mxu0 0
        %1949 = vmatpush1.bf16.msra.mxu0 0
        %1950 = vmatprep.subr.bf16.mxu0 0
        %1951 = vmatpush1.bf16.msra.mxu0 0
        %1952 = vmatprep.subr.bf16.mxu0 0
        %1953 = vmatpush1.bf16.msra.mxu0 0
        %1954 = vmatprep.subr.bf16.mxu0 0
        %1955 = vmatpush1.bf16.msra.mxu0 0
        %1956 = vmatprep.subr.bf16.mxu0 0
        %1957 = vmatpush1.bf16.msra.mxu0 0
        %1958 = vmatprep.subr.bf16.mxu0 0
        %1959 = vmatpush1.bf16.msra.mxu0 0
        %1960 = vmatprep.subr.bf16.mxu0 0
        %1961 = vmatpush1.bf16.msra.mxu0 0
        %1962 = vmatprep.subr.bf16.mxu0 0
        %1963 = vmatpush1.bf16.msra.mxu0 0
        %1964 = vmatprep.subr.bf16.mxu0 0
        %1965 = vmatpush1.bf16.msra.mxu0 0
        %1966 = vmatprep.subr.bf16.mxu0 0
        %1967 = vmatpush1.bf16.msra.mxu0 0
        %1968 = vmatprep.subr.bf16.mxu0 0
        %1969 = vmatpush1.bf16.msra.mxu0 0
        %1970 = vmatprep.subr.bf16.mxu0 0
        %1971 = vmatpush1.bf16.msra.mxu0 0
        %1972 = vmatprep.subr.bf16.mxu0 0
        %1973 = vmatpush1.bf16.msra.mxu0 0
        %1974 = vmatprep.subr.bf16.mxu0 0
        %1975 = vmatpush1.bf16.msra.mxu0 0
        %1976 = vmatprep.subr.bf16.mxu0 0
        %1977 = vmatpush1.bf16.msra.mxu0 0
        %1978 = vmatprep.mubr.bf16.mxu0 0
        %1979 = vmatmul.mubr.bf16.gmra.mrb[0].mxu0 %v1941
        %v1980 = vpop.f32.mrb[0].mxu0
        %v1981 = vadd.f32 0.0, %v1980
        %v1982 = vpop.f32.mrb[0].mxu0
        %v1983 = vpop.f32.mrb[0].mxu0
        %v1984 = vpop.f32.mrb[0].mxu0
        %1985 = vdwg.mxu0
        %v1987 = vsel %vm1570, %v1563, 0
        %v1990 = vsel %vm1574, %v633, 0
        %1992 = vmatprep.subr.bf16.mxu0 0
        %1993 = vmatpush1.bf16.msra.mxu0 %v1990
        %1994 = vmatprep.subr.bf16.mxu0 0
        %1995 = vmatpush1.bf16.msra.mxu0 0
        %1996 = vmatprep.subr.bf16.mxu0 0
        %1997 = vmatpush1.bf16.msra.mxu0 0
        %1998 = vmatprep.subr.bf16.mxu0 0
        %1999 = vmatpush1.bf16.msra.mxu0 0
        %2000 = vmatprep.subr.bf16.mxu0 0
        %2001 = vmatpush1.bf16.msra.mxu0 0
        %2002 = vmatprep.subr.bf16.mxu0 0
        %2003 = vmatpush1.bf16.msra.mxu0 0
        %2004 = vmatprep.subr.bf16.mxu0 0
        %2005 = vmatpush1.bf16.msra.mxu0 0
        %2006 = vmatprep.subr.bf16.mxu0 0
        %2007 = vmatpush1.bf16.msra.mxu0 0
        %2008 = vmatprep.subr.bf16.mxu0 0
        %2009 = vmatpush1.bf16.msra.mxu0 0
        %2010 = vmatprep.subr.bf16.mxu0 0
        %2011 = vmatpush1.bf16.msra.mxu0 0
        %2012 = vmatprep.subr.bf16.mxu0 0
        %2013 = vmatpush1.bf16.msra.mxu0 0
        %2014 = vmatprep.subr.bf16.mxu0 0
        %2015 = vmatpush1.bf16.msra.mxu0 0
        %2016 = vmatprep.subr.bf16.mxu0 0
        %2017 = vmatpush1.bf16.msra.mxu0 0
        %2018 = vmatprep.subr.bf16.mxu0 0
        %2019 = vmatpush1.bf16.msra.mxu0 0
        %2020 = vmatprep.subr.bf16.mxu0 0
        %2021 = vmatpush1.bf16.msra.mxu0 0
        %2022 = vmatprep.subr.bf16.mxu0 0
        %2023 = vmatpush1.bf16.msra.mxu0 0
        %2024 = vmatprep.mubr.bf16.mxu0 0
        %2025 = vmatmul.mubr.bf16.gmra.mrb[0].mxu0 %v1987
        %v2026 = vpop.f32.mrb[0].mxu0
        %v2027 = vadd.f32 0.0, %v2026
        %v2028 = vpop.f32.mrb[0].mxu0
        %v2029 = vpop.f32.mrb[0].mxu0
        %v2030 = vpop.f32.mrb[0].mxu0
        %2031 = vdwg.mxu0
        %v2033 = vsel %vm1570, %v1564, 0
        %v2036 = vsel %vm1574, %v634, 0
        %2038 = vmatprep.subr.bf16.mxu0 0
        %2039 = vmatpush1.bf16.msra.mxu0 %v2036
        %2040 = vmatprep.subr.bf16.mxu0 0
        %2041 = vmatpush1.bf16.msra.mxu0 0
        %2042 = vmatprep.subr.bf16.mxu0 0
        %2043 = vmatpush1.bf16.msra.mxu0 0
        %2044 = vmatprep.subr.bf16.mxu0 0
        %2045 = vmatpush1.bf16.msra.mxu0 0
        %2046 = vmatprep.subr.bf16.mxu0 0
        %2047 = vmatpush1.bf16.msra.mxu0 0
        %2048 = vmatprep.subr.bf16.mxu0 0
        %2049 = vmatpush1.bf16.msra.mxu0 0
        %2050 = vmatprep.subr.bf16.mxu0 0
        %2051 = vmatpush1.bf16.msra.mxu0 0
        %2052 = vmatprep.subr.bf16.mxu0 0
        %2053 = vmatpush1.bf16.msra.mxu0 0
        %2054 = vmatprep.subr.bf16.mxu0 0
        %2055 = vmatpush1.bf16.msra.mxu0 0
        %2056 = vmatprep.subr.bf16.mxu0 0
        %2057 = vmatpush1.bf16.msra.mxu0 0
        %2058 = vmatprep.subr.bf16.mxu0 0
        %2059 = vmatpush1.bf16.msra.mxu0 0
        %2060 = vmatprep.subr.bf16.mxu0 0
        %2061 = vmatpush1.bf16.msra.mxu0 0
        %2062 = vmatprep.subr.bf16.mxu0 0
        %2063 = vmatpush1.bf16.msra.mxu0 0
        %2064 = vmatprep.subr.bf16.mxu0 0
        %2065 = vmatpush1.bf16.msra.mxu0 0
        %2066 = vmatprep.subr.bf16.mxu0 0
        %2067 = vmatpush1.bf16.msra.mxu0 0
        %2068 = vmatprep.subr.bf16.mxu0 0
        %2069 = vmatpush1.bf16.msra.mxu0 0
        %2070 = vmatprep.mubr.bf16.mxu0 0
        %2071 = vmatmul.mubr.bf16.gmra.mrb[0].mxu0 %v2033
        %v2072 = vpop.f32.mrb[0].mxu0
        %v2073 = vadd.f32 0.0, %v2072
        %v2074 = vpop.f32.mrb[0].mxu0
        %v2075 = vpop.f32.mrb[0].mxu0
        %v2076 = vpop.f32.mrb[0].mxu0
        %2077 = vdwg.mxu0
        %v2079 = vsel %vm1570, %v1565, 0
        %v2082 = vsel %vm1574, %v635, 0
        %2084 = vmatprep.subr.bf16.mxu0 0
        %2085 = vmatpush1.bf16.msra.mxu0 %v2082
        %2086 = vmatprep.subr.bf16.mxu0 0
        %2087 = vmatpush1.bf16.msra.mxu0 0
        %2088 = vmatprep.subr.bf16.mxu0 0
        %2089 = vmatpush1.bf16.msra.mxu0 0
        %2090 = vmatprep.subr.bf16.mxu0 0
        %2091 = vmatpush1.bf16.msra.mxu0 0
        %2092 = vmatprep.subr.bf16.mxu0 0
        %2093 = vmatpush1.bf16.msra.mxu0 0
        %2094 = vmatprep.subr.bf16.mxu0 0
        %2095 = vmatpush1.bf16.msra.mxu0 0
        %2096 = vmatprep.subr.bf16.mxu0 0
        %2097 = vmatpush1.bf16.msra.mxu0 0
        %2098 = vmatprep.subr.bf16.mxu0 0
        %2099 = vmatpush1.bf16.msra.mxu0 0
        %2100 = vmatprep.subr.bf16.mxu0 0
        %2101 = vmatpush1.bf16.msra.mxu0 0
        %2102 = vmatprep.subr.bf16.mxu0 0
        %2103 = vmatpush1.bf16.msra.mxu0 0
        %2104 = vmatprep.subr.bf16.mxu0 0
        %2105 = vmatpush1.bf16.msra.mxu0 0
        %2106 = vmatprep.subr.bf16.mxu0 0
        %2107 = vmatpush1.bf16.msra.mxu0 0
        %2108 = vmatprep.subr.bf16.mxu0 0
        %2109 = vmatpush1.bf16.msra.mxu0 0
        %2110 = vmatprep.subr.bf16.mxu0 0
        %2111 = vmatpush1.bf16.msra.mxu0 0
        %2112 = vmatprep.subr.bf16.mxu0 0
        %2113 = vmatpush1.bf16.msra.mxu0 0
        %2114 = vmatprep.subr.bf16.mxu0 0
        %2115 = vmatpush1.bf16.msra.mxu0 0
        %2116 = vmatprep.mubr.bf16.mxu0 0
        %2117 = vmatmul.mubr.bf16.gmra.mrb[0].mxu0 %v2079
        %v2118 = vpop.f32.mrb[0].mxu0
        %v2119 = vadd.f32 0.0, %v2118
        %v2120 = vpop.f32.mrb[0].mxu0
        %v2121 = vpop.f32.mrb[0].mxu0
        %v2122 = vpop.f32.mrb[0].mxu0
        %2123 = vdwg.mxu0
        %v2125 = vsel %vm1570, %v1566, 0
        %v2128 = vsel %vm1574, %v636, 0
        %2130 = vmatprep.subr.bf16.mxu0 0
        %2131 = vmatpush1.bf16.msra.mxu0 %v2128
        %2132 = vmatprep.subr.bf16.mxu0 0
        %2133 = vmatpush1.bf16.msra.mxu0 0
        %2134 = vmatprep.subr.bf16.mxu0 0
        %2135 = vmatpush1.bf16.msra.mxu0 0
        %2136 = vmatprep.subr.bf16.mxu0 0
        %2137 = vmatpush1.bf16.msra.mxu0 0
        %2138 = vmatprep.subr.bf16.mxu0 0
        %2139 = vmatpush1.bf16.msra.mxu0 0
        %2140 = vmatprep.subr.bf16.mxu0 0
        %2141 = vmatpush1.bf16.msra.mxu0 0
        %2142 = vmatprep.subr.bf16.mxu0 0
        %2143 = vmatpush1.bf16.msra.mxu0 0
        %2144 = vmatprep.subr.bf16.mxu0 0
        %2145 = vmatpush1.bf16.msra.mxu0 0
        %2146 = vmatprep.subr.bf16.mxu0 0
        %2147 = vmatpush1.bf16.msra.mxu0 0
        %2148 = vmatprep.subr.bf16.mxu0 0
        %2149 = vmatpush1.bf16.msra.mxu0 0
        %2150 = vmatprep.subr.bf16.mxu0 0
        %2151 = vmatpush1.bf16.msra.mxu0 0
        %2152 = vmatprep.subr.bf16.mxu0 0
        %2153 = vmatpush1.bf16.msra.mxu0 0
        %2154 = vmatprep.subr.bf16.mxu0 0
        %2155 = vmatpush1.bf16.msra.mxu0 0
        %2156 = vmatprep.subr.bf16.mxu0 0
        %2157 = vmatpush1.bf16.msra.mxu0 0
        %2158 = vmatprep.subr.bf16.mxu0 0
        %2159 = vmatpush1.bf16.msra.mxu0 0
        %2160 = vmatprep.subr.bf16.mxu0 0
        %2161 = vmatpush1.bf16.msra.mxu0 0
        %2162 = vmatprep.mubr.bf16.mxu0 0
        %2163 = vmatmul.mubr.bf16.gmra.mrb[0].mxu0 %v2125
        %v2164 = vpop.f32.mrb[0].mxu0
        %v2165 = vadd.f32 0.0, %v2164
        %v2166 = vpop.f32.mrb[0].mxu0
        %v2167 = vpop.f32.mrb[0].mxu0
        %v2168 = vpop.f32.mrb[0].mxu0
        %2169 = vdwg.mxu0
        %v2171 = vsel %vm1570, %v1567, 0
        %v2174 = vsel %vm1574, %v637, 0
        %2176 = vmatprep.subr.bf16.mxu0 0
        %2177 = vmatpush1.bf16.msra.mxu0 %v2174
        %2178 = vmatprep.subr.bf16.mxu0 0
        %2179 = vmatpush1.bf16.msra.mxu0 0
        %2180 = vmatprep.subr.bf16.mxu0 0
        %2181 = vmatpush1.bf16.msra.mxu0 0
        %2182 = vmatprep.subr.bf16.mxu0 0
        %2183 = vmatpush1.bf16.msra.mxu0 0
        %2184 = vmatprep.subr.bf16.mxu0 0
        %2185 = vmatpush1.bf16.msra.mxu0 0
        %2186 = vmatprep.subr.bf16.mxu0 0
        %2187 = vmatpush1.bf16.msra.mxu0 0
        %2188 = vmatprep.subr.bf16.mxu0 0
        %2189 = vmatpush1.bf16.msra.mxu0 0
        %2190 = vmatprep.subr.bf16.mxu0 0
        %2191 = vmatpush1.bf16.msra.mxu0 0
        %2192 = vmatprep.subr.bf16.mxu0 0
        %2193 = vmatpush1.bf16.msra.mxu0 0
        %2194 = vmatprep.subr.bf16.mxu0 0
        %2195 = vmatpush1.bf16.msra.mxu0 0
        %2196 = vmatprep.subr.bf16.mxu0 0
        %2197 = vmatpush1.bf16.msra.mxu0 0
        %2198 = vmatprep.subr.bf16.mxu0 0
        %2199 = vmatpush1.bf16.msra.mxu0 0
        %2200 = vmatprep.subr.bf16.mxu0 0
        %2201 = vmatpush1.bf16.msra.mxu0 0
        %2202 = vmatprep.subr.bf16.mxu0 0
        %2203 = vmatpush1.bf16.msra.mxu0 0
        %2204 = vmatprep.subr.bf16.mxu0 0
        %2205 = vmatpush1.bf16.msra.mxu0 0
        %2206 = vmatprep.subr.bf16.mxu0 0
        %2207 = vmatpush1.bf16.msra.mxu0 0
        %2208 = vmatprep.mubr.bf16.mxu0 0
        %2209 = vmatmul.mubr.bf16.gmra.mrb[0].mxu0 %v2171
        %v2210 = vpop.f32.mrb[0].mxu0
        %v2211 = vadd.f32 0.0, %v2210
        %v2212 = vpop.f32.mrb[0].mxu0
        %v2213 = vpop.f32.mrb[0].mxu0
        %v2214 = vpop.f32.mrb[0].mxu0
        %2215 = vdwg.mxu0
        %v2217 = vsel %vm1570, %v1568, 0
        %v2220 = vsel %vm1574, %v638, 0
        %2222 = vmatprep.subr.bf16.mxu0 0
        %2223 = vmatpush1.bf16.msra.mxu0 %v2220
        %2224 = vmatprep.subr.bf16.mxu0 0
        %2225 = vmatpush1.bf16.msra.mxu0 0
        %2226 = vmatprep.subr.bf16.mxu0 0
        %2227 = vmatpush1.bf16.msra.mxu0 0
        %2228 = vmatprep.subr.bf16.mxu0 0
        %2229 = vmatpush1.bf16.msra.mxu0 0
        %2230 = vmatprep.subr.bf16.mxu0 0
        %2231 = vmatpush1.bf16.msra.mxu0 0
        %2232 = vmatprep.subr.bf16.mxu0 0
        %2233 = vmatpush1.bf16.msra.mxu0 0
        %2234 = vmatprep.subr.bf16.mxu0 0
        %2235 = vmatpush1.bf16.msra.mxu0 0
        %2236 = vmatprep.subr.bf16.mxu0 0
        %2237 = vmatpush1.bf16.msra.mxu0 0
        %2238 = vmatprep.subr.bf16.mxu0 0
        %2239 = vmatpush1.bf16.msra.mxu0 0
        %2240 = vmatprep.subr.bf16.mxu0 0
        %2241 = vmatpush1.bf16.msra.mxu0 0
        %2242 = vmatprep.subr.bf16.mxu0 0
        %2243 = vmatpush1.bf16.msra.mxu0 0
        %2244 = vmatprep.subr.bf16.mxu0 0
        %2245 = vmatpush1.bf16.msra.mxu0 0
        %2246 = vmatprep.subr.bf16.mxu0 0
        %2247 = vmatpush1.bf16.msra.mxu0 0
        %2248 = vmatprep.subr.bf16.mxu0 0
        %2249 = vmatpush1.bf16.msra.mxu0 0
        %2250 = vmatprep.subr.bf16.mxu0 0
        %2251 = vmatpush1.bf16.msra.mxu0 0
        %2252 = vmatprep.subr.bf16.mxu0 0
        %2253 = vmatpush1.bf16.msra.mxu0 0
        %2254 = vmatprep.mubr.bf16.mxu0 0
        %2255 = vmatmul.mubr.bf16.gmra.mrb[0].mxu0 %v2217
        %v2256 = vpop.f32.mrb[0].mxu0
        %v2257 = vadd.f32 0.0, %v2256
        %v2258 = vpop.f32.mrb[0].mxu0
        %v2259 = vpop.f32.mrb[0].mxu0
        %v2260 = vpop.f32.mrb[0].mxu0
        %2261 = vdwg.mxu0
        %v2263 = vsel %vm1570, %v1569, 0
        %v2266 = vsel %vm1574, %v639, 0
        %2268 = vmatprep.subr.bf16.mxu0 0
        %2269 = vmatpush1.bf16.msra.mxu0 %v2266
        %2270 = vmatprep.subr.bf16.mxu0 0
        %2271 = vmatpush1.bf16.msra.mxu0 0
        %2272 = vmatprep.subr.bf16.mxu0 0
        %2273 = vmatpush1.bf16.msra.mxu0 0
        %2274 = vmatprep.subr.bf16.mxu0 0
        %2275 = vmatpush1.bf16.msra.mxu0 0
        %2276 = vmatprep.subr.bf16.mxu0 0
        %2277 = vmatpush1.bf16.msra.mxu0 0
        %2278 = vmatprep.subr.bf16.mxu0 0
        %2279 = vmatpush1.bf16.msra.mxu0 0
        %2280 = vmatprep.subr.bf16.mxu0 0
        %2281 = vmatpush1.bf16.msra.mxu0 0
        %2282 = vmatprep.subr.bf16.mxu0 0
        %2283 = vmatpush1.bf16.msra.mxu0 0
        %2284 = vmatprep.subr.bf16.mxu0 0
        %2285 = vmatpush1.bf16.msra.mxu0 0
        %2286 = vmatprep.subr.bf16.mxu0 0
        %2287 = vmatpush1.bf16.msra.mxu0 0
        %2288 = vmatprep.subr.bf16.mxu0 0
        %2289 = vmatpush1.bf16.msra.mxu0 0
        %2290 = vmatprep.subr.bf16.mxu0 0
        %2291 = vmatpush1.bf16.msra.mxu0 0
        %2292 = vmatprep.subr.bf16.mxu0 0
        %2293 = vmatpush1.bf16.msra.mxu0 0
        %2294 = vmatprep.subr.bf16.mxu0 0
        %2295 = vmatpush1.bf16.msra.mxu0 0
        %2296 = vmatprep.subr.bf16.mxu0 0
        %2297 = vmatpush1.bf16.msra.mxu0 0
        %2298 = vmatprep.subr.bf16.mxu0 0
        %2299 = vmatpush1.bf16.msra.mxu0 0
        %2300 = vmatprep.mubr.bf16.mxu0 0
        %2301 = vmatmul.mubr.bf16.gmra.mrb[0].mxu0 %v2263
        %v2302 = vpop.f32.mrb[0].mxu0
        %v2303 = vadd.f32 0.0, %v2302
        %v2304 = vpop.f32.mrb[0].mxu0
        %v2305 = vpop.f32.mrb[0].mxu0
        %v2306 = vpop.f32.mrb[0].mxu0
        %2307 = vdwg.mxu0
        %vm2308 = vcmask 517120
        %2309 = vst.msk [vmem:[%s525] sm:$0x3] %vm2308, %v1613
        %2310 = vst.msk [vmem:[%s525 + $0x2] sm:$0x3] %vm2308, %v1659
        %2311 = vst.msk [vmem:[%s525 + $0x4] sm:$0x3] %vm2308, %v1705
        %2312 = vst.msk [vmem:[%s525 + $0x6] sm:$0x3] %vm2308, %v1751
        %2313 = vst.msk [vmem:[%s525 + $0x8] sm:$0x3] %vm2308, %v1797
        %2314 = vst.msk [vmem:[%s525 + $0xa] sm:$0x3] %vm2308, %v1843
        %2315 = vst.msk [vmem:[%s525 + $0xc] sm:$0x3] %vm2308, %v1889
        %2316 = vst.msk [vmem:[%s525 + $0xe] sm:$0x3] %vm2308, %v1935
        %2317 = vst.msk [vmem:[%s525 + $0x10] sm:$0x3] %vm2308, %v1981
        %2318 = vst.msk [vmem:[%s525 + $0x12] sm:$0x3] %vm2308, %v2027
        %2319 = vst.msk [vmem:[%s525 + $0x14] sm:$0x3] %vm2308, %v2073
        %2320 = vst.msk [vmem:[%s525 + $0x16] sm:$0x3] %vm2308, %v2119
        %2321 = vst.msk [vmem:[%s525 + $0x18] sm:$0x3] %vm2308, %v2165
        %2322 = vst.msk [vmem:[%s525 + $0x1a] sm:$0x3] %vm2308, %v2211
        %2323 = vst.msk [vmem:[%s525 + $0x1c] sm:$0x3] %vm2308, %v2257
        %2324 = vst.msk [vmem:[%s525 + $0x1e] sm:$0x3] %vm2308, %v2303
        %2326 = vrot.lane.b32.xlu0 %v592, 64
        %v2327 = vpop.permute.xlu0 %2326
        %2329 = vrot.lane.b32.xlu0 %v608, 64
        %v2330 = vpop.permute.xlu0 %2329
        %v2332 = vsel %vm640, %v2327, 0
        %v2335 = vsel %vm640, %v2330, 0
        %2337 = vmatprep.subr.bf16.mxu0 0
        %2338 = vmatpush1.bf16.xpose.msra.mxu0 %v2335
        %2339 = vmatprep.subr.bf16.mxu0 0
        %2340 = vmatpush1.bf16.xpose.msra.mxu0 0
        %2341 = vmatprep.subr.bf16.mxu0 0
        %2342 = vmatpush1.bf16.xpose.msra.mxu0 0
        %2343 = vmatprep.subr.bf16.mxu0 0
        %2344 = vmatpush1.bf16.xpose.msra.mxu0 0
        %2345 = vmatprep.subr.bf16.mxu0 0
        %2346 = vmatpush1.bf16.xpose.msra.mxu0 0
        %2347 = vmatprep.subr.bf16.mxu0 0
        %2348 = vmatpush1.bf16.xpose.msra.mxu0 0
        %2349 = vmatprep.subr.bf16.mxu0 0
        %2350 = vmatpush1.bf16.xpose.msra.mxu0 0
        %2351 = vmatprep.subr.bf16.mxu0 0
        %2352 = vmatpush1.bf16.xpose.msra.mxu0 0
        %2353 = vmatprep.subr.bf16.mxu0 0
        %2354 = vmatpush1.bf16.xpose.msra.mxu0 0
        %2355 = vmatprep.subr.bf16.mxu0 0
        %2356 = vmatpush1.bf16.xpose.msra.mxu0 0
        %2357 = vmatprep.subr.bf16.mxu0 0
        %2358 = vmatpush1.bf16.xpose.msra.mxu0 0
        %2359 = vmatprep.subr.bf16.mxu0 0
        %2360 = vmatpush1.bf16.xpose.msra.mxu0 0
        %2361 = vmatprep.subr.bf16.mxu0 0
        %2362 = vmatpush1.bf16.xpose.msra.mxu0 0
        %2363 = vmatprep.subr.bf16.mxu0 0
        %2364 = vmatpush1.bf16.xpose.msra.mxu0 0
        %2365 = vmatprep.subr.bf16.mxu0 0
        %2366 = vmatpush1.bf16.xpose.msra.mxu0 0
        %2367 = vmatprep.subr.bf16.mxu0 0
        %2368 = vmatpush1.bf16.xpose.msra.mxu0 0
        %2369 = vmatprep.mubr.bf16.mxu0 0
        %2370 = vmatmul.mubr.bf16.gmra.mrb[0].mxu0 %v2332
        %v2371 = vpop.f32.mrb[0].mxu0
        %v2372 = vadd.f32 0.0, %v2371
        %v2373 = vpop.f32.mrb[0].mxu0
        %v2374 = vpop.f32.mrb[0].mxu0
        %v2375 = vpop.f32.mrb[0].mxu0
        %2376 = vdwg.mxu0
        %2378 = vrot.lane.b32.xlu0 %v593, 64
        %v2379 = vpop.permute.xlu0 %2378
        %2381 = vrot.lane.b32.xlu0 %v609, 64
        %v2382 = vpop.permute.xlu0 %2381
        %v2384 = vsel %vm640, %v2379, 0
        %v2387 = vsel %vm640, %v2382, 0
        %2389 = vmatprep.subr.bf16.mxu0 0
        %2390 = vmatpush1.bf16.xpose.msra.mxu0 %v2387
        %2391 = vmatprep.subr.bf16.mxu0 0
        %2392 = vmatpush1.bf16.xpose.msra.mxu0 0
        %2393 = vmatprep.subr.bf16.mxu0 0
        %2394 = vmatpush1.bf16.xpose.msra.mxu0 0
        %2395 = vmatprep.subr.bf16.mxu0 0
        %2396 = vmatpush1.bf16.xpose.msra.mxu0 0
        %2397 = vmatprep.subr.bf16.mxu0 0
        %2398 = vmatpush1.bf16.xpose.msra.mxu0 0
        %2399 = vmatprep.subr.bf16.mxu0 0
        %2400 = vmatpush1.bf16.xpose.msra.mxu0 0
        %2401 = vmatprep.subr.bf16.mxu0 0
        %2402 = vmatpush1.bf16.xpose.msra.mxu0 0
        %2403 = vmatprep.subr.bf16.mxu0 0
        %2404 = vmatpush1.bf16.xpose.msra.mxu0 0
        %2405 = vmatprep.subr.bf16.mxu0 0
        %2406 = vmatpush1.bf16.xpose.msra.mxu0 0
        %2407 = vmatprep.subr.bf16.mxu0 0
        %2408 = vmatpush1.bf16.xpose.msra.mxu0 0
        %2409 = vmatprep.subr.bf16.mxu0 0
        %2410 = vmatpush1.bf16.xpose.msra.mxu0 0
        %2411 = vmatprep.subr.bf16.mxu0 0
        %2412 = vmatpush1.bf16.xpose.msra.mxu0 0
        %2413 = vmatprep.subr.bf16.mxu0 0
        %2414 = vmatpush1.bf16.xpose.msra.mxu0 0
        %2415 = vmatprep.subr.bf16.mxu0 0
        %2416 = vmatpush1.bf16.xpose.msra.mxu0 0
        %2417 = vmatprep.subr.bf16.mxu0 0
        %2418 = vmatpush1.bf16.xpose.msra.mxu0 0
        %2419 = vmatprep.subr.bf16.mxu0 0
        %2420 = vmatpush1.bf16.xpose.msra.mxu0 0
        %2421 = vmatprep.mubr.bf16.mxu0 0
        %2422 = vmatmul.mubr.bf16.gmra.mrb[0].mxu0 %v2384
        %v2423 = vpop.f32.mrb[0].mxu0
        %v2424 = vadd.f32 0.0, %v2423
        %v2425 = vpop.f32.mrb[0].mxu0
        %v2426 = vpop.f32.mrb[0].mxu0
        %v2427 = vpop.f32.mrb[0].mxu0
        %2428 = vdwg.mxu0
        %2430 = vrot.lane.b32.xlu0 %v594, 64
        %v2431 = vpop.permute.xlu0 %2430
        %2433 = vrot.lane.b32.xlu0 %v610, 64
        %v2434 = vpop.permute.xlu0 %2433
        %v2436 = vsel %vm640, %v2431, 0
        %v2439 = vsel %vm640, %v2434, 0
        %2441 = vmatprep.subr.bf16.mxu0 0
        %2442 = vmatpush1.bf16.xpose.msra.mxu0 %v2439
        %2443 = vmatprep.subr.bf16.mxu0 0
        %2444 = vmatpush1.bf16.xpose.msra.mxu0 0
        %2445 = vmatprep.subr.bf16.mxu0 0
        %2446 = vmatpush1.bf16.xpose.msra.mxu0 0
        %2447 = vmatprep.subr.bf16.mxu0 0
        %2448 = vmatpush1.bf16.xpose.msra.mxu0 0
        %2449 = vmatprep.subr.bf16.mxu0 0
        %2450 = vmatpush1.bf16.xpose.msra.mxu0 0
        %2451 = vmatprep.subr.bf16.mxu0 0
        %2452 = vmatpush1.bf16.xpose.msra.mxu0 0
        %2453 = vmatprep.subr.bf16.mxu0 0
        %2454 = vmatpush1.bf16.xpose.msra.mxu0 0
        %2455 = vmatprep.subr.bf16.mxu0 0
        %2456 = vmatpush1.bf16.xpose.msra.mxu0 0
        %2457 = vmatprep.subr.bf16.mxu0 0
        %2458 = vmatpush1.bf16.xpose.msra.mxu0 0
        %2459 = vmatprep.subr.bf16.mxu0 0
        %2460 = vmatpush1.bf16.xpose.msra.mxu0 0
        %2461 = vmatprep.subr.bf16.mxu0 0
        %2462 = vmatpush1.bf16.xpose.msra.mxu0 0
        %2463 = vmatprep.subr.bf16.mxu0 0
        %2464 = vmatpush1.bf16.xpose.msra.mxu0 0
        %2465 = vmatprep.subr.bf16.mxu0 0
        %2466 = vmatpush1.bf16.xpose.msra.mxu0 0
        %2467 = vmatprep.subr.bf16.mxu0 0
        %2468 = vmatpush1.bf16.xpose.msra.mxu0 0
        %2469 = vmatprep.subr.bf16.mxu0 0
        %2470 = vmatpush1.bf16.xpose.msra.mxu0 0
        %2471 = vmatprep.subr.bf16.mxu0 0
        %2472 = vmatpush1.bf16.xpose.msra.mxu0 0
        %2473 = vmatprep.mubr.bf16.mxu0 0
        %2474 = vmatmul.mubr.bf16.gmra.mrb[0].mxu0 %v2436
        %v2475 = vpop.f32.mrb[0].mxu0
        %v2476 = vadd.f32 0.0, %v2475
        %v2477 = vpop.f32.mrb[0].mxu0
        %v2478 = vpop.f32.mrb[0].mxu0
        %v2479 = vpop.f32.mrb[0].mxu0
        %2480 = vdwg.mxu0
        %2482 = vrot.lane.b32.xlu0 %v595, 64
        %v2483 = vpop.permute.xlu0 %2482
        %2485 = vrot.lane.b32.xlu0 %v611, 64
        %v2486 = vpop.permute.xlu0 %2485
        %v2488 = vsel %vm640, %v2483, 0
        %v2491 = vsel %vm640, %v2486, 0
        %2493 = vmatprep.subr.bf16.mxu0 0
        %2494 = vmatpush1.bf16.xpose.msra.mxu0 %v2491
        %2495 = vmatprep.subr.bf16.mxu0 0
        %2496 = vmatpush1.bf16.xpose.msra.mxu0 0
        %2497 = vmatprep.subr.bf16.mxu0 0
        %2498 = vmatpush1.bf16.xpose.msra.mxu0 0
        %2499 = vmatprep.subr.bf16.mxu0 0
        %2500 = vmatpush1.bf16.xpose.msra.mxu0 0
        %2501 = vmatprep.subr.bf16.mxu0 0
        %2502 = vmatpush1.bf16.xpose.msra.mxu0 0
        %2503 = vmatprep.subr.bf16.mxu0 0
        %2504 = vmatpush1.bf16.xpose.msra.mxu0 0
        %2505 = vmatprep.subr.bf16.mxu0 0
        %2506 = vmatpush1.bf16.xpose.msra.mxu0 0
        %2507 = vmatprep.subr.bf16.mxu0 0
        %2508 = vmatpush1.bf16.xpose.msra.mxu0 0
        %2509 = vmatprep.subr.bf16.mxu0 0
        %2510 = vmatpush1.bf16.xpose.msra.mxu0 0
        %2511 = vmatprep.subr.bf16.mxu0 0
        %2512 = vmatpush1.bf16.xpose.msra.mxu0 0
        %2513 = vmatprep.subr.bf16.mxu0 0
        %2514 = vmatpush1.bf16.xpose.msra.mxu0 0
        %2515 = vmatprep.subr.bf16.mxu0 0
        %2516 = vmatpush1.bf16.xpose.msra.mxu0 0
        %2517 = vmatprep.subr.bf16.mxu0 0
        %2518 = vmatpush1.bf16.xpose.msra.mxu0 0
        %2519 = vmatprep.subr.bf16.mxu0 0
        %2520 = vmatpush1.bf16.xpose.msra.mxu0 0
        %2521 = vmatprep.subr.bf16.mxu0 0
        %2522 = vmatpush1.bf16.xpose.msra.mxu0 0
        %2523 = vmatprep.subr.bf16.mxu0 0
        %2524 = vmatpush1.bf16.xpose.msra.mxu0 0
        %2525 = vmatprep.mubr.bf16.mxu0 0
        %2526 = vmatmul.mubr.bf16.gmra.mrb[0].mxu0 %v2488
        %v2527 = vpop.f32.mrb[0].mxu0
        %v2528 = vadd.f32 0.0, %v2527
        %v2529 = vpop.f32.mrb[0].mxu0
        %v2530 = vpop.f32.mrb[0].mxu0
        %v2531 = vpop.f32.mrb[0].mxu0
        %2532 = vdwg.mxu0
        %2534 = vrot.lane.b32.xlu0 %v596, 64
        %v2535 = vpop.permute.xlu0 %2534
        %2537 = vrot.lane.b32.xlu0 %v612, 64
        %v2538 = vpop.permute.xlu0 %2537
        %v2540 = vsel %vm640, %v2535, 0
        %v2543 = vsel %vm640, %v2538, 0
        %2545 = vmatprep.subr.bf16.mxu0 0
        %2546 = vmatpush1.bf16.xpose.msra.mxu0 %v2543
        %2547 = vmatprep.subr.bf16.mxu0 0
        %2548 = vmatpush1.bf16.xpose.msra.mxu0 0
        %2549 = vmatprep.subr.bf16.mxu0 0
        %2550 = vmatpush1.bf16.xpose.msra.mxu0 0
        %2551 = vmatprep.subr.bf16.mxu0 0
        %2552 = vmatpush1.bf16.xpose.msra.mxu0 0
        %2553 = vmatprep.subr.bf16.mxu0 0
        %2554 = vmatpush1.bf16.xpose.msra.mxu0 0
        %2555 = vmatprep.subr.bf16.mxu0 0
        %2556 = vmatpush1.bf16.xpose.msra.mxu0 0
        %2557 = vmatprep.subr.bf16.mxu0 0
        %2558 = vmatpush1.bf16.xpose.msra.mxu0 0
        %2559 = vmatprep.subr.bf16.mxu0 0
        %2560 = vmatpush1.bf16.xpose.msra.mxu0 0
        %2561 = vmatprep.subr.bf16.mxu0 0
        %2562 = vmatpush1.bf16.xpose.msra.mxu0 0
        %2563 = vmatprep.subr.bf16.mxu0 0
        %2564 = vmatpush1.bf16.xpose.msra.mxu0 0
        %2565 = vmatprep.subr.bf16.mxu0 0
        %2566 = vmatpush1.bf16.xpose.msra.mxu0 0
        %2567 = vmatprep.subr.bf16.mxu0 0
        %2568 = vmatpush1.bf16.xpose.msra.mxu0 0
        %2569 = vmatprep.subr.bf16.mxu0 0
        %2570 = vmatpush1.bf16.xpose.msra.mxu0 0
        %2571 = vmatprep.subr.bf16.mxu0 0
        %2572 = vmatpush1.bf16.xpose.msra.mxu0 0
        %2573 = vmatprep.subr.bf16.mxu0 0
        %2574 = vmatpush1.bf16.xpose.msra.mxu0 0
        %2575 = vmatprep.subr.bf16.mxu0 0
        %2576 = vmatpush1.bf16.xpose.msra.mxu0 0
        %2577 = vmatprep.mubr.bf16.mxu0 0
        %2578 = vmatmul.mubr.bf16.gmra.mrb[0].mxu0 %v2540
        %v2579 = vpop.f32.mrb[0].mxu0
        %v2580 = vadd.f32 0.0, %v2579
        %v2581 = vpop.f32.mrb[0].mxu0
        %v2582 = vpop.f32.mrb[0].mxu0
        %v2583 = vpop.f32.mrb[0].mxu0
        %2584 = vdwg.mxu0
        %2586 = vrot.lane.b32.xlu0 %v597, 64
        %v2587 = vpop.permute.xlu0 %2586
        %2589 = vrot.lane.b32.xlu0 %v613, 64
        %v2590 = vpop.permute.xlu0 %2589
        %v2592 = vsel %vm640, %v2587, 0
        %v2595 = vsel %vm640, %v2590, 0
        %2597 = vmatprep.subr.bf16.mxu0 0
        %2598 = vmatpush1.bf16.xpose.msra.mxu0 %v2595
        %2599 = vmatprep.subr.bf16.mxu0 0
        %2600 = vmatpush1.bf16.xpose.msra.mxu0 0
        %2601 = vmatprep.subr.bf16.mxu0 0
        %2602 = vmatpush1.bf16.xpose.msra.mxu0 0
        %2603 = vmatprep.subr.bf16.mxu0 0
        %2604 = vmatpush1.bf16.xpose.msra.mxu0 0
        %2605 = vmatprep.subr.bf16.mxu0 0
        %2606 = vmatpush1.bf16.xpose.msra.mxu0 0
        %2607 = vmatprep.subr.bf16.mxu0 0
        %2608 = vmatpush1.bf16.xpose.msra.mxu0 0
        %2609 = vmatprep.subr.bf16.mxu0 0
        %2610 = vmatpush1.bf16.xpose.msra.mxu0 0
        %2611 = vmatprep.subr.bf16.mxu0 0
        %2612 = vmatpush1.bf16.xpose.msra.mxu0 0
        %2613 = vmatprep.subr.bf16.mxu0 0
        %2614 = vmatpush1.bf16.xpose.msra.mxu0 0
        %2615 = vmatprep.subr.bf16.mxu0 0
        %2616 = vmatpush1.bf16.xpose.msra.mxu0 0
        %2617 = vmatprep.subr.bf16.mxu0 0
        %2618 = vmatpush1.bf16.xpose.msra.mxu0 0
        %2619 = vmatprep.subr.bf16.mxu0 0
        %2620 = vmatpush1.bf16.xpose.msra.mxu0 0
        %2621 = vmatprep.subr.bf16.mxu0 0
        %2622 = vmatpush1.bf16.xpose.msra.mxu0 0
        %2623 = vmatprep.subr.bf16.mxu0 0
        %2624 = vmatpush1.bf16.xpose.msra.mxu0 0
        %2625 = vmatprep.subr.bf16.mxu0 0
        %2626 = vmatpush1.bf16.xpose.msra.mxu0 0
        %2627 = vmatprep.subr.bf16.mxu0 0
        %2628 = vmatpush1.bf16.xpose.msra.mxu0 0
        %2629 = vmatprep.mubr.bf16.mxu0 0
        %2630 = vmatmul.mubr.bf16.gmra.mrb[0].mxu0 %v2592
        %v2631 = vpop.f32.mrb[0].mxu0
        %v2632 = vadd.f32 0.0, %v2631
        %v2633 = vpop.f32.mrb[0].mxu0
        %v2634 = vpop.f32.mrb[0].mxu0
        %v2635 = vpop.f32.mrb[0].mxu0
        %2636 = vdwg.mxu0
        %2638 = vrot.lane.b32.xlu0 %v598, 64
        %v2639 = vpop.permute.xlu0 %2638
        %2641 = vrot.lane.b32.xlu0 %v614, 64
        %v2642 = vpop.permute.xlu0 %2641
        %v2644 = vsel %vm640, %v2639, 0
        %v2647 = vsel %vm640, %v2642, 0
        %2649 = vmatprep.subr.bf16.mxu0 0
        %2650 = vmatpush1.bf16.xpose.msra.mxu0 %v2647
        %2651 = vmatprep.subr.bf16.mxu0 0
        %2652 = vmatpush1.bf16.xpose.msra.mxu0 0
        %2653 = vmatprep.subr.bf16.mxu0 0
        %2654 = vmatpush1.bf16.xpose.msra.mxu0 0
        %2655 = vmatprep.subr.bf16.mxu0 0
        %2656 = vmatpush1.bf16.xpose.msra.mxu0 0
        %2657 = vmatprep.subr.bf16.mxu0 0
        %2658 = vmatpush1.bf16.xpose.msra.mxu0 0
        %2659 = vmatprep.subr.bf16.mxu0 0
        %2660 = vmatpush1.bf16.xpose.msra.mxu0 0
        %2661 = vmatprep.subr.bf16.mxu0 0
        %2662 = vmatpush1.bf16.xpose.msra.mxu0 0
        %2663 = vmatprep.subr.bf16.mxu0 0
        %2664 = vmatpush1.bf16.xpose.msra.mxu0 0
        %2665 = vmatprep.subr.bf16.mxu0 0
        %2666 = vmatpush1.bf16.xpose.msra.mxu0 0
        %2667 = vmatprep.subr.bf16.mxu0 0
        %2668 = vmatpush1.bf16.xpose.msra.mxu0 0
        %2669 = vmatprep.subr.bf16.mxu0 0
        %2670 = vmatpush1.bf16.xpose.msra.mxu0 0
        %2671 = vmatprep.subr.bf16.mxu0 0
        %2672 = vmatpush1.bf16.xpose.msra.mxu0 0
        %2673 = vmatprep.subr.bf16.mxu0 0
        %2674 = vmatpush1.bf16.xpose.msra.mxu0 0
        %2675 = vmatprep.subr.bf16.mxu0 0
        %2676 = vmatpush1.bf16.xpose.msra.mxu0 0
        %2677 = vmatprep.subr.bf16.mxu0 0
        %2678 = vmatpush1.bf16.xpose.msra.mxu0 0
        %2679 = vmatprep.subr.bf16.mxu0 0
        %2680 = vmatpush1.bf16.xpose.msra.mxu0 0
        %2681 = vmatprep.mubr.bf16.mxu0 0
        %2682 = vmatmul.mubr.bf16.gmra.mrb[0].mxu0 %v2644
        %v2683 = vpop.f32.mrb[0].mxu0
        %v2684 = vadd.f32 0.0, %v2683
        %v2685 = vpop.f32.mrb[0].mxu0
        %v2686 = vpop.f32.mrb[0].mxu0
        %v2687 = vpop.f32.mrb[0].mxu0
        %2688 = vdwg.mxu0
        %2690 = vrot.lane.b32.xlu0 %v599, 64
        %v2691 = vpop.permute.xlu0 %2690
        %2693 = vrot.lane.b32.xlu0 %v615, 64
        %v2694 = vpop.permute.xlu0 %2693
        %v2696 = vsel %vm640, %v2691, 0
        %v2699 = vsel %vm640, %v2694, 0
        %2701 = vmatprep.subr.bf16.mxu0 0
        %2702 = vmatpush1.bf16.xpose.msra.mxu0 %v2699
        %2703 = vmatprep.subr.bf16.mxu0 0
        %2704 = vmatpush1.bf16.xpose.msra.mxu0 0
        %2705 = vmatprep.subr.bf16.mxu0 0
        %2706 = vmatpush1.bf16.xpose.msra.mxu0 0
        %2707 = vmatprep.subr.bf16.mxu0 0
        %2708 = vmatpush1.bf16.xpose.msra.mxu0 0
        %2709 = vmatprep.subr.bf16.mxu0 0
        %2710 = vmatpush1.bf16.xpose.msra.mxu0 0
        %2711 = vmatprep.subr.bf16.mxu0 0
        %2712 = vmatpush1.bf16.xpose.msra.mxu0 0
        %2713 = vmatprep.subr.bf16.mxu0 0
        %2714 = vmatpush1.bf16.xpose.msra.mxu0 0
        %2715 = vmatprep.subr.bf16.mxu0 0
        %2716 = vmatpush1.bf16.xpose.msra.mxu0 0
        %2717 = vmatprep.subr.bf16.mxu0 0
        %2718 = vmatpush1.bf16.xpose.msra.mxu0 0
        %2719 = vmatprep.subr.bf16.mxu0 0
        %2720 = vmatpush1.bf16.xpose.msra.mxu0 0
        %2721 = vmatprep.subr.bf16.mxu0 0
        %2722 = vmatpush1.bf16.xpose.msra.mxu0 0
        %2723 = vmatprep.subr.bf16.mxu0 0
        %2724 = vmatpush1.bf16.xpose.msra.mxu0 0
        %2725 = vmatprep.subr.bf16.mxu0 0
        %2726 = vmatpush1.bf16.xpose.msra.mxu0 0
        %2727 = vmatprep.subr.bf16.mxu0 0
        %2728 = vmatpush1.bf16.xpose.msra.mxu0 0
        %2729 = vmatprep.subr.bf16.mxu0 0
        %2730 = vmatpush1.bf16.xpose.msra.mxu0 0
        %2731 = vmatprep.subr.bf16.mxu0 0
        %2732 = vmatpush1.bf16.xpose.msra.mxu0 0
        %2733 = vmatprep.mubr.bf16.mxu0 0
        %2734 = vmatmul.mubr.bf16.gmra.mrb[0].mxu0 %v2696
        %v2735 = vpop.f32.mrb[0].mxu0
        %v2736 = vadd.f32 0.0, %v2735
        %v2737 = vpop.f32.mrb[0].mxu0
        %v2738 = vpop.f32.mrb[0].mxu0
        %v2739 = vpop.f32.mrb[0].mxu0
        %2740 = vdwg.mxu0
        %2742 = vrot.lane.b32.xlu0 %v600, 64
        %v2743 = vpop.permute.xlu0 %2742
        %2745 = vrot.lane.b32.xlu0 %v616, 64
        %v2746 = vpop.permute.xlu0 %2745
        %v2748 = vsel %vm640, %v2743, 0
        %v2751 = vsel %vm640, %v2746, 0
        %2753 = vmatprep.subr.bf16.mxu0 0
        %2754 = vmatpush1.bf16.xpose.msra.mxu0 %v2751
        %2755 = vmatprep.subr.bf16.mxu0 0
        %2756 = vmatpush1.bf16.xpose.msra.mxu0 0
        %2757 = vmatprep.subr.bf16.mxu0 0
        %2758 = vmatpush1.bf16.xpose.msra.mxu0 0
        %2759 = vmatprep.subr.bf16.mxu0 0
        %2760 = vmatpush1.bf16.xpose.msra.mxu0 0
        %2761 = vmatprep.subr.bf16.mxu0 0
        %2762 = vmatpush1.bf16.xpose.msra.mxu0 0
        %2763 = vmatprep.subr.bf16.mxu0 0
        %2764 = vmatpush1.bf16.xpose.msra.mxu0 0
        %2765 = vmatprep.subr.bf16.mxu0 0
        %2766 = vmatpush1.bf16.xpose.msra.mxu0 0
        %2767 = vmatprep.subr.bf16.mxu0 0
        %2768 = vmatpush1.bf16.xpose.msra.mxu0 0
        %2769 = vmatprep.subr.bf16.mxu0 0
        %2770 = vmatpush1.bf16.xpose.msra.mxu0 0
        %2771 = vmatprep.subr.bf16.mxu0 0
        %2772 = vmatpush1.bf16.xpose.msra.mxu0 0
        %2773 = vmatprep.subr.bf16.mxu0 0
        %2774 = vmatpush1.bf16.xpose.msra.mxu0 0
        %2775 = vmatprep.subr.bf16.mxu0 0
        %2776 = vmatpush1.bf16.xpose.msra.mxu0 0
        %2777 = vmatprep.subr.bf16.mxu0 0
        %2778 = vmatpush1.bf16.xpose.msra.mxu0 0
        %2779 = vmatprep.subr.bf16.mxu0 0
        %2780 = vmatpush1.bf16.xpose.msra.mxu0 0
        %2781 = vmatprep.subr.bf16.mxu0 0
        %2782 = vmatpush1.bf16.xpose.msra.mxu0 0
        %2783 = vmatprep.subr.bf16.mxu0 0
        %2784 = vmatpush1.bf16.xpose.msra.mxu0 0
        %2785 = vmatprep.mubr.bf16.mxu0 0
        %2786 = vmatmul.mubr.bf16.gmra.mrb[0].mxu0 %v2748
        %v2787 = vpop.f32.mrb[0].mxu0
        %v2788 = vadd.f32 0.0, %v2787
        %v2789 = vpop.f32.mrb[0].mxu0
        %v2790 = vpop.f32.mrb[0].mxu0
        %v2791 = vpop.f32.mrb[0].mxu0
        %2792 = vdwg.mxu0
        %2794 = vrot.lane.b32.xlu0 %v601, 64
        %v2795 = vpop.permute.xlu0 %2794
        %2797 = vrot.lane.b32.xlu0 %v617, 64
        %v2798 = vpop.permute.xlu0 %2797
        %v2800 = vsel %vm640, %v2795, 0
        %v2803 = vsel %vm640, %v2798, 0
        %2805 = vmatprep.subr.bf16.mxu0 0
        %2806 = vmatpush1.bf16.xpose.msra.mxu0 %v2803
        %2807 = vmatprep.subr.bf16.mxu0 0
        %2808 = vmatpush1.bf16.xpose.msra.mxu0 0
        %2809 = vmatprep.subr.bf16.mxu0 0
        %2810 = vmatpush1.bf16.xpose.msra.mxu0 0
        %2811 = vmatprep.subr.bf16.mxu0 0
        %2812 = vmatpush1.bf16.xpose.msra.mxu0 0
        %2813 = vmatprep.subr.bf16.mxu0 0
        %2814 = vmatpush1.bf16.xpose.msra.mxu0 0
        %2815 = vmatprep.subr.bf16.mxu0 0
        %2816 = vmatpush1.bf16.xpose.msra.mxu0 0
        %2817 = vmatprep.subr.bf16.mxu0 0
        %2818 = vmatpush1.bf16.xpose.msra.mxu0 0
        %2819 = vmatprep.subr.bf16.mxu0 0
        %2820 = vmatpush1.bf16.xpose.msra.mxu0 0
        %2821 = vmatprep.subr.bf16.mxu0 0
        %2822 = vmatpush1.bf16.xpose.msra.mxu0 0
        %2823 = vmatprep.subr.bf16.mxu0 0
        %2824 = vmatpush1.bf16.xpose.msra.mxu0 0
        %2825 = vmatprep.subr.bf16.mxu0 0
        %2826 = vmatpush1.bf16.xpose.msra.mxu0 0
        %2827 = vmatprep.subr.bf16.mxu0 0
        %2828 = vmatpush1.bf16.xpose.msra.mxu0 0
        %2829 = vmatprep.subr.bf16.mxu0 0
        %2830 = vmatpush1.bf16.xpose.msra.mxu0 0
        %2831 = vmatprep.subr.bf16.mxu0 0
        %2832 = vmatpush1.bf16.xpose.msra.mxu0 0
        %2833 = vmatprep.subr.bf16.mxu0 0
        %2834 = vmatpush1.bf16.xpose.msra.mxu0 0
        %2835 = vmatprep.subr.bf16.mxu0 0
        %2836 = vmatpush1.bf16.xpose.msra.mxu0 0
        %2837 = vmatprep.mubr.bf16.mxu0 0
        %2838 = vmatmul.mubr.bf16.gmra.mrb[0].mxu0 %v2800
        %v2839 = vpop.f32.mrb[0].mxu0
        %v2840 = vadd.f32 0.0, %v2839
        %v2841 = vpop.f32.mrb[0].mxu0
        %v2842 = vpop.f32.mrb[0].mxu0
        %v2843 = vpop.f32.mrb[0].mxu0
        %2844 = vdwg.mxu0
        %2846 = vrot.lane.b32.xlu0 %v602, 64
        %v2847 = vpop.permute.xlu0 %2846
        %2849 = vrot.lane.b32.xlu0 %v618, 64
        %v2850 = vpop.permute.xlu0 %2849
        %v2852 = vsel %vm640, %v2847, 0
        %v2855 = vsel %vm640, %v2850, 0
        %2857 = vmatprep.subr.bf16.mxu0 0
        %2858 = vmatpush1.bf16.xpose.msra.mxu0 %v2855
        %2859 = vmatprep.subr.bf16.mxu0 0
        %2860 = vmatpush1.bf16.xpose.msra.mxu0 0
        %2861 = vmatprep.subr.bf16.mxu0 0
        %2862 = vmatpush1.bf16.xpose.msra.mxu0 0
        %2863 = vmatprep.subr.bf16.mxu0 0
        %2864 = vmatpush1.bf16.xpose.msra.mxu0 0
        %2865 = vmatprep.subr.bf16.mxu0 0
        %2866 = vmatpush1.bf16.xpose.msra.mxu0 0
        %2867 = vmatprep.subr.bf16.mxu0 0
        %2868 = vmatpush1.bf16.xpose.msra.mxu0 0
        %2869 = vmatprep.subr.bf16.mxu0 0
        %2870 = vmatpush1.bf16.xpose.msra.mxu0 0
        %2871 = vmatprep.subr.bf16.mxu0 0
        %2872 = vmatpush1.bf16.xpose.msra.mxu0 0
        %2873 = vmatprep.subr.bf16.mxu0 0
        %2874 = vmatpush1.bf16.xpose.msra.mxu0 0
        %2875 = vmatprep.subr.bf16.mxu0 0
        %2876 = vmatpush1.bf16.xpose.msra.mxu0 0
        %2877 = vmatprep.subr.bf16.mxu0 0
        %2878 = vmatpush1.bf16.xpose.msra.mxu0 0
        %2879 = vmatprep.subr.bf16.mxu0 0
        %2880 = vmatpush1.bf16.xpose.msra.mxu0 0
        %2881 = vmatprep.subr.bf16.mxu0 0
        %2882 = vmatpush1.bf16.xpose.msra.mxu0 0
        %2883 = vmatprep.subr.bf16.mxu0 0
        %2884 = vmatpush1.bf16.xpose.msra.mxu0 0
        %2885 = vmatprep.subr.bf16.mxu0 0
        %2886 = vmatpush1.bf16.xpose.msra.mxu0 0
        %2887 = vmatprep.subr.bf16.mxu0 0
        %2888 = vmatpush1.bf16.xpose.msra.mxu0 0
        %2889 = vmatprep.mubr.bf16.mxu0 0
        %2890 = vmatmul.mubr.bf16.gmra.mrb[0].mxu0 %v2852
        %v2891 = vpop.f32.mrb[0].mxu0
        %v2892 = vadd.f32 0.0, %v2891
        %v2893 = vpop.f32.mrb[0].mxu0
        %v2894 = vpop.f32.mrb[0].mxu0
        %v2895 = vpop.f32.mrb[0].mxu0
        %2896 = vdwg.mxu0
        %2898 = vrot.lane.b32.xlu0 %v603, 64
        %v2899 = vpop.permute.xlu0 %2898
        %2901 = vrot.lane.b32.xlu0 %v619, 64
        %v2902 = vpop.permute.xlu0 %2901
        %v2904 = vsel %vm640, %v2899, 0
        %v2907 = vsel %vm640, %v2902, 0
        %2909 = vmatprep.subr.bf16.mxu0 0
        %2910 = vmatpush1.bf16.xpose.msra.mxu0 %v2907
        %2911 = vmatprep.subr.bf16.mxu0 0
        %2912 = vmatpush1.bf16.xpose.msra.mxu0 0
        %2913 = vmatprep.subr.bf16.mxu0 0
        %2914 = vmatpush1.bf16.xpose.msra.mxu0 0
        %2915 = vmatprep.subr.bf16.mxu0 0
        %2916 = vmatpush1.bf16.xpose.msra.mxu0 0
        %2917 = vmatprep.subr.bf16.mxu0 0
        %2918 = vmatpush1.bf16.xpose.msra.mxu0 0
        %2919 = vmatprep.subr.bf16.mxu0 0
        %2920 = vmatpush1.bf16.xpose.msra.mxu0 0
        %2921 = vmatprep.subr.bf16.mxu0 0
        %2922 = vmatpush1.bf16.xpose.msra.mxu0 0
        %2923 = vmatprep.subr.bf16.mxu0 0
        %2924 = vmatpush1.bf16.xpose.msra.mxu0 0
        %2925 = vmatprep.subr.bf16.mxu0 0
        %2926 = vmatpush1.bf16.xpose.msra.mxu0 0
        %2927 = vmatprep.subr.bf16.mxu0 0
        %2928 = vmatpush1.bf16.xpose.msra.mxu0 0
        %2929 = vmatprep.subr.bf16.mxu0 0
        %2930 = vmatpush1.bf16.xpose.msra.mxu0 0
        %2931 = vmatprep.subr.bf16.mxu0 0
        %2932 = vmatpush1.bf16.xpose.msra.mxu0 0
        %2933 = vmatprep.subr.bf16.mxu0 0
        %2934 = vmatpush1.bf16.xpose.msra.mxu0 0
        %2935 = vmatprep.subr.bf16.mxu0 0
        %2936 = vmatpush1.bf16.xpose.msra.mxu0 0
        %2937 = vmatprep.subr.bf16.mxu0 0
        %2938 = vmatpush1.bf16.xpose.msra.mxu0 0
        %2939 = vmatprep.subr.bf16.mxu0 0
        %2940 = vmatpush1.bf16.xpose.msra.mxu0 0
        %2941 = vmatprep.mubr.bf16.mxu0 0
        %2942 = vmatmul.mubr.bf16.gmra.mrb[0].mxu0 %v2904
        %v2943 = vpop.f32.mrb[0].mxu0
        %v2944 = vadd.f32 0.0, %v2943
        %v2945 = vpop.f32.mrb[0].mxu0
        %v2946 = vpop.f32.mrb[0].mxu0
        %v2947 = vpop.f32.mrb[0].mxu0
        %2948 = vdwg.mxu0
        %2950 = vrot.lane.b32.xlu0 %v604, 64
        %v2951 = vpop.permute.xlu0 %2950
        %2953 = vrot.lane.b32.xlu0 %v620, 64
        %v2954 = vpop.permute.xlu0 %2953
        %v2956 = vsel %vm640, %v2951, 0
        %v2959 = vsel %vm640, %v2954, 0
        %2961 = vmatprep.subr.bf16.mxu0 0
        %2962 = vmatpush1.bf16.xpose.msra.mxu0 %v2959
        %2963 = vmatprep.subr.bf16.mxu0 0
        %2964 = vmatpush1.bf16.xpose.msra.mxu0 0
        %2965 = vmatprep.subr.bf16.mxu0 0
        %2966 = vmatpush1.bf16.xpose.msra.mxu0 0
        %2967 = vmatprep.subr.bf16.mxu0 0
        %2968 = vmatpush1.bf16.xpose.msra.mxu0 0
        %2969 = vmatprep.subr.bf16.mxu0 0
        %2970 = vmatpush1.bf16.xpose.msra.mxu0 0
        %2971 = vmatprep.subr.bf16.mxu0 0
        %2972 = vmatpush1.bf16.xpose.msra.mxu0 0
        %2973 = vmatprep.subr.bf16.mxu0 0
        %2974 = vmatpush1.bf16.xpose.msra.mxu0 0
        %2975 = vmatprep.subr.bf16.mxu0 0
        %2976 = vmatpush1.bf16.xpose.msra.mxu0 0
        %2977 = vmatprep.subr.bf16.mxu0 0
        %2978 = vmatpush1.bf16.xpose.msra.mxu0 0
        %2979 = vmatprep.subr.bf16.mxu0 0
        %2980 = vmatpush1.bf16.xpose.msra.mxu0 0
        %2981 = vmatprep.subr.bf16.mxu0 0
        %2982 = vmatpush1.bf16.xpose.msra.mxu0 0
        %2983 = vmatprep.subr.bf16.mxu0 0
        %2984 = vmatpush1.bf16.xpose.msra.mxu0 0
        %2985 = vmatprep.subr.bf16.mxu0 0
        %2986 = vmatpush1.bf16.xpose.msra.mxu0 0
        %2987 = vmatprep.subr.bf16.mxu0 0
        %2988 = vmatpush1.bf16.xpose.msra.mxu0 0
        %2989 = vmatprep.subr.bf16.mxu0 0
        %2990 = vmatpush1.bf16.xpose.msra.mxu0 0
        %2991 = vmatprep.subr.bf16.mxu0 0
        %2992 = vmatpush1.bf16.xpose.msra.mxu0 0
        %2993 = vmatprep.mubr.bf16.mxu0 0
        %2994 = vmatmul.mubr.bf16.gmra.mrb[0].mxu0 %v2956
        %v2995 = vpop.f32.mrb[0].mxu0
        %v2996 = vadd.f32 0.0, %v2995
        %v2997 = vpop.f32.mrb[0].mxu0
        %v2998 = vpop.f32.mrb[0].mxu0
        %v2999 = vpop.f32.mrb[0].mxu0
        %3000 = vdwg.mxu0
        %3002 = vrot.lane.b32.xlu0 %v605, 64
        %v3003 = vpop.permute.xlu0 %3002
        %3005 = vrot.lane.b32.xlu0 %v621, 64
        %v3006 = vpop.permute.xlu0 %3005
        %v3008 = vsel %vm640, %v3003, 0
        %v3011 = vsel %vm640, %v3006, 0
        %3013 = vmatprep.subr.bf16.mxu0 0
        %3014 = vmatpush1.bf16.xpose.msra.mxu0 %v3011
        %3015 = vmatprep.subr.bf16.mxu0 0
        %3016 = vmatpush1.bf16.xpose.msra.mxu0 0
        %3017 = vmatprep.subr.bf16.mxu0 0
        %3018 = vmatpush1.bf16.xpose.msra.mxu0 0
        %3019 = vmatprep.subr.bf16.mxu0 0
        %3020 = vmatpush1.bf16.xpose.msra.mxu0 0
        %3021 = vmatprep.subr.bf16.mxu0 0
        %3022 = vmatpush1.bf16.xpose.msra.mxu0 0
        %3023 = vmatprep.subr.bf16.mxu0 0
        %3024 = vmatpush1.bf16.xpose.msra.mxu0 0
        %3025 = vmatprep.subr.bf16.mxu0 0
        %3026 = vmatpush1.bf16.xpose.msra.mxu0 0
        %3027 = vmatprep.subr.bf16.mxu0 0
        %3028 = vmatpush1.bf16.xpose.msra.mxu0 0
        %3029 = vmatprep.subr.bf16.mxu0 0
        %3030 = vmatpush1.bf16.xpose.msra.mxu0 0
        %3031 = vmatprep.subr.bf16.mxu0 0
        %3032 = vmatpush1.bf16.xpose.msra.mxu0 0
        %3033 = vmatprep.subr.bf16.mxu0 0
        %3034 = vmatpush1.bf16.xpose.msra.mxu0 0
        %3035 = vmatprep.subr.bf16.mxu0 0
        %3036 = vmatpush1.bf16.xpose.msra.mxu0 0
        %3037 = vmatprep.subr.bf16.mxu0 0
        %3038 = vmatpush1.bf16.xpose.msra.mxu0 0
        %3039 = vmatprep.subr.bf16.mxu0 0
        %3040 = vmatpush1.bf16.xpose.msra.mxu0 0
        %3041 = vmatprep.subr.bf16.mxu0 0
        %3042 = vmatpush1.bf16.xpose.msra.mxu0 0
        %3043 = vmatprep.subr.bf16.mxu0 0
        %3044 = vmatpush1.bf16.xpose.msra.mxu0 0
        %3045 = vmatprep.mubr.bf16.mxu0 0
        %3046 = vmatmul.mubr.bf16.gmra.mrb[0].mxu0 %v3008
        %v3047 = vpop.f32.mrb[0].mxu0
        %v3048 = vadd.f32 0.0, %v3047
        %v3049 = vpop.f32.mrb[0].mxu0
        %v3050 = vpop.f32.mrb[0].mxu0
        %v3051 = vpop.f32.mrb[0].mxu0
        %3052 = vdwg.mxu0
        %3054 = vrot.lane.b32.xlu0 %v606, 64
        %v3055 = vpop.permute.xlu0 %3054
        %3057 = vrot.lane.b32.xlu0 %v622, 64
        %v3058 = vpop.permute.xlu0 %3057
        %v3060 = vsel %vm640, %v3055, 0
        %v3063 = vsel %vm640, %v3058, 0
        %3065 = vmatprep.subr.bf16.mxu0 0
        %3066 = vmatpush1.bf16.xpose.msra.mxu0 %v3063
        %3067 = vmatprep.subr.bf16.mxu0 0
        %3068 = vmatpush1.bf16.xpose.msra.mxu0 0
        %3069 = vmatprep.subr.bf16.mxu0 0
        %3070 = vmatpush1.bf16.xpose.msra.mxu0 0
        %3071 = vmatprep.subr.bf16.mxu0 0
        %3072 = vmatpush1.bf16.xpose.msra.mxu0 0
        %3073 = vmatprep.subr.bf16.mxu0 0
        %3074 = vmatpush1.bf16.xpose.msra.mxu0 0
        %3075 = vmatprep.subr.bf16.mxu0 0
        %3076 = vmatpush1.bf16.xpose.msra.mxu0 0
        %3077 = vmatprep.subr.bf16.mxu0 0
        %3078 = vmatpush1.bf16.xpose.msra.mxu0 0
        %3079 = vmatprep.subr.bf16.mxu0 0
        %3080 = vmatpush1.bf16.xpose.msra.mxu0 0
        %3081 = vmatprep.subr.bf16.mxu0 0
        %3082 = vmatpush1.bf16.xpose.msra.mxu0 0
        %3083 = vmatprep.subr.bf16.mxu0 0
        %3084 = vmatpush1.bf16.xpose.msra.mxu0 0
        %3085 = vmatprep.subr.bf16.mxu0 0
        %3086 = vmatpush1.bf16.xpose.msra.mxu0 0
        %3087 = vmatprep.subr.bf16.mxu0 0
        %3088 = vmatpush1.bf16.xpose.msra.mxu0 0
        %3089 = vmatprep.subr.bf16.mxu0 0
        %3090 = vmatpush1.bf16.xpose.msra.mxu0 0
        %3091 = vmatprep.subr.bf16.mxu0 0
        %3092 = vmatpush1.bf16.xpose.msra.mxu0 0
        %3093 = vmatprep.subr.bf16.mxu0 0
        %3094 = vmatpush1.bf16.xpose.msra.mxu0 0
        %3095 = vmatprep.subr.bf16.mxu0 0
        %3096 = vmatpush1.bf16.xpose.msra.mxu0 0
        %3097 = vmatprep.mubr.bf16.mxu0 0
        %3098 = vmatmul.mubr.bf16.gmra.mrb[0].mxu0 %v3060
        %v3099 = vpop.f32.mrb[0].mxu0
        %v3100 = vadd.f32 0.0, %v3099
        %v3101 = vpop.f32.mrb[0].mxu0
        %v3102 = vpop.f32.mrb[0].mxu0
        %v3103 = vpop.f32.mrb[0].mxu0
        %3104 = vdwg.mxu0
        %3106 = vrot.lane.b32.xlu0 %v607, 64
        %v3107 = vpop.permute.xlu0 %3106
        %3109 = vrot.lane.b32.xlu0 %v623, 64
        %v3110 = vpop.permute.xlu0 %3109
        %v3112 = vsel %vm640, %v3107, 0
        %v3115 = vsel %vm640, %v3110, 0
        %3117 = vmatprep.subr.bf16.mxu0 0
        %3118 = vmatpush1.bf16.xpose.msra.mxu0 %v3115
        %3119 = vmatprep.subr.bf16.mxu0 0
        %3120 = vmatpush1.bf16.xpose.msra.mxu0 0
        %3121 = vmatprep.subr.bf16.mxu0 0
        %3122 = vmatpush1.bf16.xpose.msra.mxu0 0
        %3123 = vmatprep.subr.bf16.mxu0 0
        %3124 = vmatpush1.bf16.xpose.msra.mxu0 0
        %3125 = vmatprep.subr.bf16.mxu0 0
        %3126 = vmatpush1.bf16.xpose.msra.mxu0 0
        %3127 = vmatprep.subr.bf16.mxu0 0
        %3128 = vmatpush1.bf16.xpose.msra.mxu0 0
        %3129 = vmatprep.subr.bf16.mxu0 0
        %3130 = vmatpush1.bf16.xpose.msra.mxu0 0
        %3131 = vmatprep.subr.bf16.mxu0 0
        %3132 = vmatpush1.bf16.xpose.msra.mxu0 0
        %3133 = vmatprep.subr.bf16.mxu0 0
        %3134 = vmatpush1.bf16.xpose.msra.mxu0 0
        %3135 = vmatprep.subr.bf16.mxu0 0
        %3136 = vmatpush1.bf16.xpose.msra.mxu0 0
        %3137 = vmatprep.subr.bf16.mxu0 0
        %3138 = vmatpush1.bf16.xpose.msra.mxu0 0
        %3139 = vmatprep.subr.bf16.mxu0 0
        %3140 = vmatpush1.bf16.xpose.msra.mxu0 0
        %3141 = vmatprep.subr.bf16.mxu0 0
        %3142 = vmatpush1.bf16.xpose.msra.mxu0 0
        %3143 = vmatprep.subr.bf16.mxu0 0
        %3144 = vmatpush1.bf16.xpose.msra.mxu0 0
        %3145 = vmatprep.subr.bf16.mxu0 0
        %3146 = vmatpush1.bf16.xpose.msra.mxu0 0
        %3147 = vmatprep.subr.bf16.mxu0 0
        %3148 = vmatpush1.bf16.xpose.msra.mxu0 0
        %3149 = vmatprep.mubr.bf16.mxu0 0
        %3150 = vmatmul.mubr.bf16.gmra.mrb[0].mxu0 %v3112
        %v3151 = vpop.f32.mrb[0].mxu0
        %v3152 = vadd.f32 0.0, %v3151
        %v3153 = vpop.f32.mrb[0].mxu0
        %v3154 = vpop.f32.mrb[0].mxu0
        %v3155 = vpop.f32.mrb[0].mxu0
        %3156 = vdwg.mxu0
        %v3157 = vsel %vm1377, %v2372, -inf
        %3158 = vmax.xlane.f32.xlu0 %v3157
        %v3159 = vpop.xlane.xlu0 %3158
        %v3160 = vsel %vm1377, %v2424, -inf
        %3161 = vmax.xlane.f32.xlu0 %v3160
        %v3162 = vpop.xlane.xlu0 %3161
        %v3163 = vsel %vm1377, %v2476, -inf
        %3164 = vmax.xlane.f32.xlu0 %v3163
        %v3165 = vpop.xlane.xlu0 %3164
        %v3166 = vsel %vm1377, %v2528, -inf
        %3167 = vmax.xlane.f32.xlu0 %v3166
        %v3168 = vpop.xlane.xlu0 %3167
        %v3169 = vsel %vm1377, %v2580, -inf
        %3170 = vmax.xlane.f32.xlu0 %v3169
        %v3171 = vpop.xlane.xlu0 %3170
        %v3172 = vsel %vm1377, %v2632, -inf
        %3173 = vmax.xlane.f32.xlu0 %v3172
        %v3174 = vpop.xlane.xlu0 %3173
        %v3175 = vsel %vm1377, %v2684, -inf
        %3176 = vmax.xlane.f32.xlu0 %v3175
        %v3177 = vpop.xlane.xlu0 %3176
        %v3178 = vsel %vm1377, %v2736, -inf
        %3179 = vmax.xlane.f32.xlu0 %v3178
        %v3180 = vpop.xlane.xlu0 %3179
        %v3181 = vsel %vm1377, %v2788, -inf
        %3182 = vmax.xlane.f32.xlu0 %v3181
        %v3183 = vpop.xlane.xlu0 %3182
        %v3184 = vsel %vm1377, %v2840, -inf
        %3185 = vmax.xlane.f32.xlu0 %v3184
        %v3186 = vpop.xlane.xlu0 %3185
        %v3187 = vsel %vm1377, %v2892, -inf
        %3188 = vmax.xlane.f32.xlu0 %v3187
        %v3189 = vpop.xlane.xlu0 %3188
        %v3190 = vsel %vm1377, %v2944, -inf
        %3191 = vmax.xlane.f32.xlu0 %v3190
        %v3192 = vpop.xlane.xlu0 %3191
        %v3193 = vsel %vm1377, %v2996, -inf
        %3194 = vmax.xlane.f32.xlu0 %v3193
        %v3195 = vpop.xlane.xlu0 %3194
        %v3196 = vsel %vm1377, %v3048, -inf
        %3197 = vmax.xlane.f32.xlu0 %v3196
        %v3198 = vpop.xlane.xlu0 %3197
        %v3199 = vsel %vm1377, %v3100, -inf
        %3200 = vmax.xlane.f32.xlu0 %v3199
        %v3201 = vpop.xlane.xlu0 %3200
        %v3202 = vsel %vm1377, %v3152, -inf
        %3203 = vmax.xlane.f32.xlu0 %v3202
        %v3204 = vpop.xlane.xlu0 %3203
        %v3205 = vsub.f32 %v2372, %v3159
        %v3206 = vsub.f32 %v2424, %v3162
        %v3207 = vsub.f32 %v2476, %v3165
        %v3208 = vsub.f32 %v2528, %v3168
        %v3209 = vsub.f32 %v2580, %v3171
        %v3210 = vsub.f32 %v2632, %v3174
        %v3211 = vsub.f32 %v2684, %v3177
        %v3212 = vsub.f32 %v2736, %v3180
        %v3213 = vsub.f32 %v2788, %v3183
        %v3214 = vsub.f32 %v2840, %v3186
        %v3215 = vsub.f32 %v2892, %v3189
        %v3216 = vsub.f32 %v2944, %v3192
        %v3217 = vsub.f32 %v2996, %v3195
        %v3218 = vsub.f32 %v3048, %v3198
        %v3219 = vsub.f32 %v3100, %v3201
        %v3220 = vsub.f32 %v3152, %v3204
        %v3221 = vmul.f32 %v3205, 1.442695
        %v3222 = vpow.pop %v3221
        %v3223 = vmul.f32 %v3206, 1.442695
        %v3224 = vpow.pop %v3223
        %v3225 = vmul.f32 %v3207, 1.442695
        %v3226 = vpow.pop %v3225
        %v3227 = vmul.f32 %v3208, 1.442695
        %v3228 = vpow.pop %v3227
        %v3229 = vmul.f32 %v3209, 1.442695
        %v3230 = vpow.pop %v3229
        %v3231 = vmul.f32 %v3210, 1.442695
        %v3232 = vpow.pop %v3231
        %v3233 = vmul.f32 %v3211, 1.442695
        %v3234 = vpow.pop %v3233
        %v3235 = vmul.f32 %v3212, 1.442695
        %v3236 = vpow.pop %v3235
        %v3237 = vmul.f32 %v3213, 1.442695
        %v3238 = vpow.pop %v3237
        %v3239 = vmul.f32 %v3214, 1.442695
        %v3240 = vpow.pop %v3239
        %v3241 = vmul.f32 %v3215, 1.442695
        %v3242 = vpow.pop %v3241
        %v3243 = vmul.f32 %v3216, 1.442695
        %v3244 = vpow.pop %v3243
        %v3245 = vmul.f32 %v3217, 1.442695
        %v3246 = vpow.pop %v3245
        %v3247 = vmul.f32 %v3218, 1.442695
        %v3248 = vpow.pop %v3247
        %v3249 = vmul.f32 %v3219, 1.442695
        %v3250 = vpow.pop %v3249
        %v3251 = vmul.f32 %v3220, 1.442695
        %v3252 = vpow.pop %v3251
        %v3253 = vsel %vm1377, %v3222, 0.0
        %3254 = vadd.xlane.f32.xlu0 %v3253
        %v3255 = vpop.xlane.xlu0 %3254
        %v3256 = vsel %vm1377, %v3224, 0.0
        %3257 = vadd.xlane.f32.xlu0 %v3256
        %v3258 = vpop.xlane.xlu0 %3257
        %v3259 = vsel %vm1377, %v3226, 0.0
        %3260 = vadd.xlane.f32.xlu0 %v3259
        %v3261 = vpop.xlane.xlu0 %3260
        %v3262 = vsel %vm1377, %v3228, 0.0
        %3263 = vadd.xlane.f32.xlu0 %v3262
        %v3264 = vpop.xlane.xlu0 %3263
        %v3265 = vsel %vm1377, %v3230, 0.0
        %3266 = vadd.xlane.f32.xlu0 %v3265
        %v3267 = vpop.xlane.xlu0 %3266
        %v3268 = vsel %vm1377, %v3232, 0.0
        %3269 = vadd.xlane.f32.xlu0 %v3268
        %v3270 = vpop.xlane.xlu0 %3269
        %v3271 = vsel %vm1377, %v3234, 0.0
        %3272 = vadd.xlane.f32.xlu0 %v3271
        %v3273 = vpop.xlane.xlu0 %3272
        %v3274 = vsel %vm1377, %v3236, 0.0
        %3275 = vadd.xlane.f32.xlu0 %v3274
        %v3276 = vpop.xlane.xlu0 %3275
        %v3277 = vsel %vm1377, %v3238, 0.0
        %3278 = vadd.xlane.f32.xlu0 %v3277
        %v3279 = vpop.xlane.xlu0 %3278
        %v3280 = vsel %vm1377, %v3240, 0.0
        %3281 = vadd.xlane.f32.xlu0 %v3280
        %v3282 = vpop.xlane.xlu0 %3281
        %v3283 = vsel %vm1377, %v3242, 0.0
        %3284 = vadd.xlane.f32.xlu0 %v3283
        %v3285 = vpop.xlane.xlu0 %3284
        %v3286 = vsel %vm1377, %v3244, 0.0
        %3287 = vadd.xlane.f32.xlu0 %v3286
        %v3288 = vpop.xlane.xlu0 %3287
        %v3289 = vsel %vm1377, %v3246, 0.0
        %3290 = vadd.xlane.f32.xlu0 %v3289
        %v3291 = vpop.xlane.xlu0 %3290
        %v3292 = vsel %vm1377, %v3248, 0.0
        %3293 = vadd.xlane.f32.xlu0 %v3292
        %v3294 = vpop.xlane.xlu0 %3293
        %v3295 = vsel %vm1377, %v3250, 0.0
        %3296 = vadd.xlane.f32.xlu0 %v3295
        %v3297 = vpop.xlane.xlu0 %3296
        %v3298 = vsel %vm1377, %v3252, 0.0
        %3299 = vadd.xlane.f32.xlu0 %v3298
        %v3300 = vpop.xlane.xlu0 %3299
        %v3301 = vrcp.pop %v3255
        %v3302 = vrcp.pop %v3258
        %v3303 = vrcp.pop %v3261
        %v3304 = vrcp.pop %v3264
        %v3305 = vrcp.pop %v3267
        %v3306 = vrcp.pop %v3270
        %v3307 = vrcp.pop %v3273
        %v3308 = vrcp.pop %v3276
        %v3309 = vrcp.pop %v3279
        %v3310 = vrcp.pop %v3282
        %v3311 = vrcp.pop %v3285
        %v3312 = vrcp.pop %v3288
        %v3313 = vrcp.pop %v3291
        %v3314 = vrcp.pop %v3294
        %v3315 = vrcp.pop %v3297
        %v3316 = vrcp.pop %v3300
        %v3317 = vmul.f32 %v3222, %v3301
        %v3318 = vmul.f32 %v3224, %v3302
        %v3319 = vmul.f32 %v3226, %v3303
        %v3320 = vmul.f32 %v3228, %v3304
        %v3321 = vmul.f32 %v3230, %v3305
        %v3322 = vmul.f32 %v3232, %v3306
        %v3323 = vmul.f32 %v3234, %v3307
        %v3324 = vmul.f32 %v3236, %v3308
        %v3325 = vmul.f32 %v3238, %v3309
        %v3326 = vmul.f32 %v3240, %v3310
        %v3327 = vmul.f32 %v3242, %v3311
        %v3328 = vmul.f32 %v3244, %v3312
        %v3329 = vmul.f32 %v3246, %v3313
        %v3330 = vmul.f32 %v3248, %v3314
        %v3331 = vmul.f32 %v3250, %v3315
        %v3332 = vmul.f32 %v3252, %v3316
        %v3333 = vpack.c.bf16 %v3317, %v3317
        %v3334 = vpack.c.bf16 %v3318, %v3318
        %v3335 = vpack.c.bf16 %v3319, %v3319
        %v3336 = vpack.c.bf16 %v3320, %v3320
        %v3337 = vpack.c.bf16 %v3321, %v3321
        %v3338 = vpack.c.bf16 %v3322, %v3322
        %v3339 = vpack.c.bf16 %v3323, %v3323
        %v3340 = vpack.c.bf16 %v3324, %v3324
        %v3341 = vpack.c.bf16 %v3325, %v3325
        %v3342 = vpack.c.bf16 %v3326, %v3326
        %v3343 = vpack.c.bf16 %v3327, %v3327
        %v3344 = vpack.c.bf16 %v3328, %v3328
        %v3345 = vpack.c.bf16 %v3329, %v3329
        %v3346 = vpack.c.bf16 %v3330, %v3330
        %v3347 = vpack.c.bf16 %v3331, %v3331
        %v3348 = vpack.c.bf16 %v3332, %v3332
        %3350 = vrot.lane.b32.xlu0 %v624, 64
        %v3351 = vpop.permute.xlu0 %3350
        %v3353 = vsel %vm1570, %v3333, 0
        %v3356 = vsel %vm1574, %v3351, 0
        %3358 = vmatprep.subr.bf16.mxu0 0
        %3359 = vmatpush1.bf16.msra.mxu0 %v3356
        %3360 = vmatprep.subr.bf16.mxu0 0
        %3361 = vmatpush1.bf16.msra.mxu0 0
        %3362 = vmatprep.subr.bf16.mxu0 0
        %3363 = vmatpush1.bf16.msra.mxu0 0
        %3364 = vmatprep.subr.bf16.mxu0 0
        %3365 = vmatpush1.bf16.msra.mxu0 0
        %3366 = vmatprep.subr.bf16.mxu0 0
        %3367 = vmatpush1.bf16.msra.mxu0 0
        %3368 = vmatprep.subr.bf16.mxu0 0
        %3369 = vmatpush1.bf16.msra.mxu0 0
        %3370 = vmatprep.subr.bf16.mxu0 0
        %3371 = vmatpush1.bf16.msra.mxu0 0
        %3372 = vmatprep.subr.bf16.mxu0 0
        %3373 = vmatpush1.bf16.msra.mxu0 0
        %3374 = vmatprep.subr.bf16.mxu0 0
        %3375 = vmatpush1.bf16.msra.mxu0 0
        %3376 = vmatprep.subr.bf16.mxu0 0
        %3377 = vmatpush1.bf16.msra.mxu0 0
        %3378 = vmatprep.subr.bf16.mxu0 0
        %3379 = vmatpush1.bf16.msra.mxu0 0
        %3380 = vmatprep.subr.bf16.mxu0 0
        %3381 = vmatpush1.bf16.msra.mxu0 0
        %3382 = vmatprep.subr.bf16.mxu0 0
        %3383 = vmatpush1.bf16.msra.mxu0 0
        %3384 = vmatprep.subr.bf16.mxu0 0
        %3385 = vmatpush1.bf16.msra.mxu0 0
        %3386 = vmatprep.subr.bf16.mxu0 0
        %3387 = vmatpush1.bf16.msra.mxu0 0
        %3388 = vmatprep.subr.bf16.mxu0 0
        %3389 = vmatpush1.bf16.msra.mxu0 0
        %3390 = vmatprep.mubr.bf16.mxu0 0
        %3391 = vmatmul.mubr.bf16.gmra.mrb[0].mxu0 %v3353
        %v3392 = vpop.f32.mrb[0].mxu0
        %v3393 = vadd.f32 0.0, %v3392
        %v3394 = vpop.f32.mrb[0].mxu0
        %v3395 = vpop.f32.mrb[0].mxu0
        %v3396 = vpop.f32.mrb[0].mxu0
        %3397 = vdwg.mxu0
        %3399 = vrot.lane.b32.xlu0 %v625, 64
        %v3400 = vpop.permute.xlu0 %3399
        %v3402 = vsel %vm1570, %v3334, 0
        %v3405 = vsel %vm1574, %v3400, 0
        %3407 = vmatprep.subr.bf16.mxu0 0
        %3408 = vmatpush1.bf16.msra.mxu0 %v3405
        %3409 = vmatprep.subr.bf16.mxu0 0
        %3410 = vmatpush1.bf16.msra.mxu0 0
        %3411 = vmatprep.subr.bf16.mxu0 0
        %3412 = vmatpush1.bf16.msra.mxu0 0
        %3413 = vmatprep.subr.bf16.mxu0 0
        %3414 = vmatpush1.bf16.msra.mxu0 0
        %3415 = vmatprep.subr.bf16.mxu0 0
        %3416 = vmatpush1.bf16.msra.mxu0 0
        %3417 = vmatprep.subr.bf16.mxu0 0
        %3418 = vmatpush1.bf16.msra.mxu0 0
        %3419 = vmatprep.subr.bf16.mxu0 0
        %3420 = vmatpush1.bf16.msra.mxu0 0
        %3421 = vmatprep.subr.bf16.mxu0 0
        %3422 = vmatpush1.bf16.msra.mxu0 0
        %3423 = vmatprep.subr.bf16.mxu0 0
        %3424 = vmatpush1.bf16.msra.mxu0 0
        %3425 = vmatprep.subr.bf16.mxu0 0
        %3426 = vmatpush1.bf16.msra.mxu0 0
        %3427 = vmatprep.subr.bf16.mxu0 0
        %3428 = vmatpush1.bf16.msra.mxu0 0
        %3429 = vmatprep.subr.bf16.mxu0 0
        %3430 = vmatpush1.bf16.msra.mxu0 0
        %3431 = vmatprep.subr.bf16.mxu0 0
        %3432 = vmatpush1.bf16.msra.mxu0 0
        %3433 = vmatprep.subr.bf16.mxu0 0
        %3434 = vmatpush1.bf16.msra.mxu0 0
        %3435 = vmatprep.subr.bf16.mxu0 0
        %3436 = vmatpush1.bf16.msra.mxu0 0
        %3437 = vmatprep.subr.bf16.mxu0 0
        %3438 = vmatpush1.bf16.msra.mxu0 0
        %3439 = vmatprep.mubr.bf16.mxu0 0
        %3440 = vmatmul.mubr.bf16.gmra.mrb[0].mxu0 %v3402
        %v3441 = vpop.f32.mrb[0].mxu0
        %v3442 = vadd.f32 0.0, %v3441
        %v3443 = vpop.f32.mrb[0].mxu0
        %v3444 = vpop.f32.mrb[0].mxu0
        %v3445 = vpop.f32.mrb[0].mxu0
        %3446 = vdwg.mxu0
        %3448 = vrot.lane.b32.xlu0 %v626, 64
        %v3449 = vpop.permute.xlu0 %3448
        %v3451 = vsel %vm1570, %v3335, 0
        %v3454 = vsel %vm1574, %v3449, 0
        %3456 = vmatprep.subr.bf16.mxu0 0
        %3457 = vmatpush1.bf16.msra.mxu0 %v3454
        %3458 = vmatprep.subr.bf16.mxu0 0
        %3459 = vmatpush1.bf16.msra.mxu0 0
        %3460 = vmatprep.subr.bf16.mxu0 0
        %3461 = vmatpush1.bf16.msra.mxu0 0
        %3462 = vmatprep.subr.bf16.mxu0 0
        %3463 = vmatpush1.bf16.msra.mxu0 0
        %3464 = vmatprep.subr.bf16.mxu0 0
        %3465 = vmatpush1.bf16.msra.mxu0 0
        %3466 = vmatprep.subr.bf16.mxu0 0
        %3467 = vmatpush1.bf16.msra.mxu0 0
        %3468 = vmatprep.subr.bf16.mxu0 0
        %3469 = vmatpush1.bf16.msra.mxu0 0
        %3470 = vmatprep.subr.bf16.mxu0 0
        %3471 = vmatpush1.bf16.msra.mxu0 0
        %3472 = vmatprep.subr.bf16.mxu0 0
        %3473 = vmatpush1.bf16.msra.mxu0 0
        %3474 = vmatprep.subr.bf16.mxu0 0
        %3475 = vmatpush1.bf16.msra.mxu0 0
        %3476 = vmatprep.subr.bf16.mxu0 0
        %3477 = vmatpush1.bf16.msra.mxu0 0
        %3478 = vmatprep.subr.bf16.mxu0 0
        %3479 = vmatpush1.bf16.msra.mxu0 0
        %3480 = vmatprep.subr.bf16.mxu0 0
        %3481 = vmatpush1.bf16.msra.mxu0 0
        %3482 = vmatprep.subr.bf16.mxu0 0
        %3483 = vmatpush1.bf16.msra.mxu0 0
        %3484 = vmatprep.subr.bf16.mxu0 0
        %3485 = vmatpush1.bf16.msra.mxu0 0
        %3486 = vmatprep.subr.bf16.mxu0 0
        %3487 = vmatpush1.bf16.msra.mxu0 0
        %3488 = vmatprep.mubr.bf16.mxu0 0
        %3489 = vmatmul.mubr.bf16.gmra.mrb[0].mxu0 %v3451
        %v3490 = vpop.f32.mrb[0].mxu0
        %v3491 = vadd.f32 0.0, %v3490
        %v3492 = vpop.f32.mrb[0].mxu0
        %v3493 = vpop.f32.mrb[0].mxu0
        %v3494 = vpop.f32.mrb[0].mxu0
        %3495 = vdwg.mxu0
        %3497 = vrot.lane.b32.xlu0 %v627, 64
        %v3498 = vpop.permute.xlu0 %3497
        %v3500 = vsel %vm1570, %v3336, 0
        %v3503 = vsel %vm1574, %v3498, 0
        %3505 = vmatprep.subr.bf16.mxu0 0
        %3506 = vmatpush1.bf16.msra.mxu0 %v3503
        %3507 = vmatprep.subr.bf16.mxu0 0
        %3508 = vmatpush1.bf16.msra.mxu0 0
        %3509 = vmatprep.subr.bf16.mxu0 0
        %3510 = vmatpush1.bf16.msra.mxu0 0
        %3511 = vmatprep.subr.bf16.mxu0 0
        %3512 = vmatpush1.bf16.msra.mxu0 0
        %3513 = vmatprep.subr.bf16.mxu0 0
        %3514 = vmatpush1.bf16.msra.mxu0 0
        %3515 = vmatprep.subr.bf16.mxu0 0
        %3516 = vmatpush1.bf16.msra.mxu0 0
        %3517 = vmatprep.subr.bf16.mxu0 0
        %3518 = vmatpush1.bf16.msra.mxu0 0
        %3519 = vmatprep.subr.bf16.mxu0 0
        %3520 = vmatpush1.bf16.msra.mxu0 0
        %3521 = vmatprep.subr.bf16.mxu0 0
        %3522 = vmatpush1.bf16.msra.mxu0 0
        %3523 = vmatprep.subr.bf16.mxu0 0
        %3524 = vmatpush1.bf16.msra.mxu0 0
        %3525 = vmatprep.subr.bf16.mxu0 0
        %3526 = vmatpush1.bf16.msra.mxu0 0
        %3527 = vmatprep.subr.bf16.mxu0 0
        %3528 = vmatpush1.bf16.msra.mxu0 0
        %3529 = vmatprep.subr.bf16.mxu0 0
        %3530 = vmatpush1.bf16.msra.mxu0 0
        %3531 = vmatprep.subr.bf16.mxu0 0
        %3532 = vmatpush1.bf16.msra.mxu0 0
        %3533 = vmatprep.subr.bf16.mxu0 0
        %3534 = vmatpush1.bf16.msra.mxu0 0
        %3535 = vmatprep.subr.bf16.mxu0 0
        %3536 = vmatpush1.bf16.msra.mxu0 0
        %3537 = vmatprep.mubr.bf16.mxu0 0
        %3538 = vmatmul.mubr.bf16.gmra.mrb[0].mxu0 %v3500
        %v3539 = vpop.f32.mrb[0].mxu0
        %v3540 = vadd.f32 0.0, %v3539
        %v3541 = vpop.f32.mrb[0].mxu0
        %v3542 = vpop.f32.mrb[0].mxu0
        %v3543 = vpop.f32.mrb[0].mxu0
        %3544 = vdwg.mxu0
        %3546 = vrot.lane.b32.xlu0 %v628, 64
        %v3547 = vpop.permute.xlu0 %3546
        %v3549 = vsel %vm1570, %v3337, 0
        %v3552 = vsel %vm1574, %v3547, 0
        %3554 = vmatprep.subr.bf16.mxu0 0
        %3555 = vmatpush1.bf16.msra.mxu0 %v3552
        %3556 = vmatprep.subr.bf16.mxu0 0
        %3557 = vmatpush1.bf16.msra.mxu0 0
        %3558 = vmatprep.subr.bf16.mxu0 0
        %3559 = vmatpush1.bf16.msra.mxu0 0
        %3560 = vmatprep.subr.bf16.mxu0 0
        %3561 = vmatpush1.bf16.msra.mxu0 0
        %3562 = vmatprep.subr.bf16.mxu0 0
        %3563 = vmatpush1.bf16.msra.mxu0 0
        %3564 = vmatprep.subr.bf16.mxu0 0
        %3565 = vmatpush1.bf16.msra.mxu0 0
        %3566 = vmatprep.subr.bf16.mxu0 0
        %3567 = vmatpush1.bf16.msra.mxu0 0
        %3568 = vmatprep.subr.bf16.mxu0 0
        %3569 = vmatpush1.bf16.msra.mxu0 0
        %3570 = vmatprep.subr.bf16.mxu0 0
        %3571 = vmatpush1.bf16.msra.mxu0 0
        %3572 = vmatprep.subr.bf16.mxu0 0
        %3573 = vmatpush1.bf16.msra.mxu0 0
        %3574 = vmatprep.subr.bf16.mxu0 0
        %3575 = vmatpush1.bf16.msra.mxu0 0
        %3576 = vmatprep.subr.bf16.mxu0 0
        %3577 = vmatpush1.bf16.msra.mxu0 0
        %3578 = vmatprep.subr.bf16.mxu0 0
        %3579 = vmatpush1.bf16.msra.mxu0 0
        %3580 = vmatprep.subr.bf16.mxu0 0
        %3581 = vmatpush1.bf16.msra.mxu0 0
        %3582 = vmatprep.subr.bf16.mxu0 0
        %3583 = vmatpush1.bf16.msra.mxu0 0
        %3584 = vmatprep.subr.bf16.mxu0 0
        %3585 = vmatpush1.bf16.msra.mxu0 0
        %3586 = vmatprep.mubr.bf16.mxu0 0
        %3587 = vmatmul.mubr.bf16.gmra.mrb[0].mxu0 %v3549
        %v3588 = vpop.f32.mrb[0].mxu0
        %v3589 = vadd.f32 0.0, %v3588
        %v3590 = vpop.f32.mrb[0].mxu0
        %v3591 = vpop.f32.mrb[0].mxu0
        %v3592 = vpop.f32.mrb[0].mxu0
        %3593 = vdwg.mxu0
        %3595 = vrot.lane.b32.xlu0 %v629, 64
        %v3596 = vpop.permute.xlu0 %3595
        %v3598 = vsel %vm1570, %v3338, 0
        %v3601 = vsel %vm1574, %v3596, 0
        %3603 = vmatprep.subr.bf16.mxu0 0
        %3604 = vmatpush1.bf16.msra.mxu0 %v3601
        %3605 = vmatprep.subr.bf16.mxu0 0
        %3606 = vmatpush1.bf16.msra.mxu0 0
        %3607 = vmatprep.subr.bf16.mxu0 0
        %3608 = vmatpush1.bf16.msra.mxu0 0
        %3609 = vmatprep.subr.bf16.mxu0 0
        %3610 = vmatpush1.bf16.msra.mxu0 0
        %3611 = vmatprep.subr.bf16.mxu0 0
        %3612 = vmatpush1.bf16.msra.mxu0 0
        %3613 = vmatprep.subr.bf16.mxu0 0
        %3614 = vmatpush1.bf16.msra.mxu0 0
        %3615 = vmatprep.subr.bf16.mxu0 0
        %3616 = vmatpush1.bf16.msra.mxu0 0
        %3617 = vmatprep.subr.bf16.mxu0 0
        %3618 = vmatpush1.bf16.msra.mxu0 0
        %3619 = vmatprep.subr.bf16.mxu0 0
        %3620 = vmatpush1.bf16.msra.mxu0 0
        %3621 = vmatprep.subr.bf16.mxu0 0
        %3622 = vmatpush1.bf16.msra.mxu0 0
        %3623 = vmatprep.subr.bf16.mxu0 0
        %3624 = vmatpush1.bf16.msra.mxu0 0
        %3625 = vmatprep.subr.bf16.mxu0 0
        %3626 = vmatpush1.bf16.msra.mxu0 0
        %3627 = vmatprep.subr.bf16.mxu0 0
        %3628 = vmatpush1.bf16.msra.mxu0 0
        %3629 = vmatprep.subr.bf16.mxu0 0
        %3630 = vmatpush1.bf16.msra.mxu0 0
        %3631 = vmatprep.subr.bf16.mxu0 0
        %3632 = vmatpush1.bf16.msra.mxu0 0
        %3633 = vmatprep.subr.bf16.mxu0 0
        %3634 = vmatpush1.bf16.msra.mxu0 0
        %3635 = vmatprep.mubr.bf16.mxu0 0
        %3636 = vmatmul.mubr.bf16.gmra.mrb[0].mxu0 %v3598
        %v3637 = vpop.f32.mrb[0].mxu0
        %v3638 = vadd.f32 0.0, %v3637
        %v3639 = vpop.f32.mrb[0].mxu0
        %v3640 = vpop.f32.mrb[0].mxu0
        %v3641 = vpop.f32.mrb[0].mxu0
        %3642 = vdwg.mxu0
        %3644 = vrot.lane.b32.xlu0 %v630, 64
        %v3645 = vpop.permute.xlu0 %3644
        %v3647 = vsel %vm1570, %v3339, 0
        %v3650 = vsel %vm1574, %v3645, 0
        %3652 = vmatprep.subr.bf16.mxu0 0
        %3653 = vmatpush1.bf16.msra.mxu0 %v3650
        %3654 = vmatprep.subr.bf16.mxu0 0
        %3655 = vmatpush1.bf16.msra.mxu0 0
        %3656 = vmatprep.subr.bf16.mxu0 0
        %3657 = vmatpush1.bf16.msra.mxu0 0
        %3658 = vmatprep.subr.bf16.mxu0 0
        %3659 = vmatpush1.bf16.msra.mxu0 0
        %3660 = vmatprep.subr.bf16.mxu0 0
        %3661 = vmatpush1.bf16.msra.mxu0 0
        %3662 = vmatprep.subr.bf16.mxu0 0
        %3663 = vmatpush1.bf16.msra.mxu0 0
        %3664 = vmatprep.subr.bf16.mxu0 0
        %3665 = vmatpush1.bf16.msra.mxu0 0
        %3666 = vmatprep.subr.bf16.mxu0 0
        %3667 = vmatpush1.bf16.msra.mxu0 0
        %3668 = vmatprep.subr.bf16.mxu0 0
        %3669 = vmatpush1.bf16.msra.mxu0 0
        %3670 = vmatprep.subr.bf16.mxu0 0
        %3671 = vmatpush1.bf16.msra.mxu0 0
        %3672 = vmatprep.subr.bf16.mxu0 0
        %3673 = vmatpush1.bf16.msra.mxu0 0
        %3674 = vmatprep.subr.bf16.mxu0 0
        %3675 = vmatpush1.bf16.msra.mxu0 0
        %3676 = vmatprep.subr.bf16.mxu0 0
        %3677 = vmatpush1.bf16.msra.mxu0 0
        %3678 = vmatprep.subr.bf16.mxu0 0
        %3679 = vmatpush1.bf16.msra.mxu0 0
        %3680 = vmatprep.subr.bf16.mxu0 0
        %3681 = vmatpush1.bf16.msra.mxu0 0
        %3682 = vmatprep.subr.bf16.mxu0 0
        %3683 = vmatpush1.bf16.msra.mxu0 0
        %3684 = vmatprep.mubr.bf16.mxu0 0
        %3685 = vmatmul.mubr.bf16.gmra.mrb[0].mxu0 %v3647
        %v3686 = vpop.f32.mrb[0].mxu0
        %v3687 = vadd.f32 0.0, %v3686
        %v3688 = vpop.f32.mrb[0].mxu0
        %v3689 = vpop.f32.mrb[0].mxu0
        %v3690 = vpop.f32.mrb[0].mxu0
        %3691 = vdwg.mxu0
        %3693 = vrot.lane.b32.xlu0 %v631, 64
        %v3694 = vpop.permute.xlu0 %3693
        %v3696 = vsel %vm1570, %v3340, 0
        %v3699 = vsel %vm1574, %v3694, 0
        %3701 = vmatprep.subr.bf16.mxu0 0
        %3702 = vmatpush1.bf16.msra.mxu0 %v3699
        %3703 = vmatprep.subr.bf16.mxu0 0
        %3704 = vmatpush1.bf16.msra.mxu0 0
        %3705 = vmatprep.subr.bf16.mxu0 0
        %3706 = vmatpush1.bf16.msra.mxu0 0
        %3707 = vmatprep.subr.bf16.mxu0 0
        %3708 = vmatpush1.bf16.msra.mxu0 0
        %3709 = vmatprep.subr.bf16.mxu0 0
        %3710 = vmatpush1.bf16.msra.mxu0 0
        %3711 = vmatprep.subr.bf16.mxu0 0
        %3712 = vmatpush1.bf16.msra.mxu0 0
        %3713 = vmatprep.subr.bf16.mxu0 0
        %3714 = vmatpush1.bf16.msra.mxu0 0
        %3715 = vmatprep.subr.bf16.mxu0 0
        %3716 = vmatpush1.bf16.msra.mxu0 0
        %3717 = vmatprep.subr.bf16.mxu0 0
        %3718 = vmatpush1.bf16.msra.mxu0 0
        %3719 = vmatprep.subr.bf16.mxu0 0
        %3720 = vmatpush1.bf16.msra.mxu0 0
        %3721 = vmatprep.subr.bf16.mxu0 0
        %3722 = vmatpush1.bf16.msra.mxu0 0
        %3723 = vmatprep.subr.bf16.mxu0 0
        %3724 = vmatpush1.bf16.msra.mxu0 0
        %3725 = vmatprep.subr.bf16.mxu0 0
        %3726 = vmatpush1.bf16.msra.mxu0 0
        %3727 = vmatprep.subr.bf16.mxu0 0
        %3728 = vmatpush1.bf16.msra.mxu0 0
        %3729 = vmatprep.subr.bf16.mxu0 0
        %3730 = vmatpush1.bf16.msra.mxu0 0
        %3731 = vmatprep.subr.bf16.mxu0 0
        %3732 = vmatpush1.bf16.msra.mxu0 0
        %3733 = vmatprep.mubr.bf16.mxu0 0
        %3734 = vmatmul.mubr.bf16.gmra.mrb[0].mxu0 %v3696
        %v3735 = vpop.f32.mrb[0].mxu0
        %v3736 = vadd.f32 0.0, %v3735
        %v3737 = vpop.f32.mrb[0].mxu0
        %v3738 = vpop.f32.mrb[0].mxu0
        %v3739 = vpop.f32.mrb[0].mxu0
        %3740 = vdwg.mxu0
        %3742 = vrot.lane.b32.xlu0 %v632, 64
        %v3743 = vpop.permute.xlu0 %3742
        %v3745 = vsel %vm1570, %v3341, 0
        %v3748 = vsel %vm1574, %v3743, 0
        %3750 = vmatprep.subr.bf16.mxu0 0
        %3751 = vmatpush1.bf16.msra.mxu0 %v3748
        %3752 = vmatprep.subr.bf16.mxu0 0
        %3753 = vmatpush1.bf16.msra.mxu0 0
        %3754 = vmatprep.subr.bf16.mxu0 0
        %3755 = vmatpush1.bf16.msra.mxu0 0
        %3756 = vmatprep.subr.bf16.mxu0 0
        %3757 = vmatpush1.bf16.msra.mxu0 0
        %3758 = vmatprep.subr.bf16.mxu0 0
        %3759 = vmatpush1.bf16.msra.mxu0 0
        %3760 = vmatprep.subr.bf16.mxu0 0
        %3761 = vmatpush1.bf16.msra.mxu0 0
        %3762 = vmatprep.subr.bf16.mxu0 0
        %3763 = vmatpush1.bf16.msra.mxu0 0
        %3764 = vmatprep.subr.bf16.mxu0 0
        %3765 = vmatpush1.bf16.msra.mxu0 0
        %3766 = vmatprep.subr.bf16.mxu0 0
        %3767 = vmatpush1.bf16.msra.mxu0 0
        %3768 = vmatprep.subr.bf16.mxu0 0
        %3769 = vmatpush1.bf16.msra.mxu0 0
        %3770 = vmatprep.subr.bf16.mxu0 0
        %3771 = vmatpush1.bf16.msra.mxu0 0
        %3772 = vmatprep.subr.bf16.mxu0 0
        %3773 = vmatpush1.bf16.msra.mxu0 0
        %3774 = vmatprep.subr.bf16.mxu0 0
        %3775 = vmatpush1.bf16.msra.mxu0 0
        %3776 = vmatprep.subr.bf16.mxu0 0
        %3777 = vmatpush1.bf16.msra.mxu0 0
        %3778 = vmatprep.subr.bf16.mxu0 0
        %3779 = vmatpush1.bf16.msra.mxu0 0
        %3780 = vmatprep.subr.bf16.mxu0 0
        %3781 = vmatpush1.bf16.msra.mxu0 0
        %3782 = vmatprep.mubr.bf16.mxu0 0
        %3783 = vmatmul.mubr.bf16.gmra.mrb[0].mxu0 %v3745
        %v3784 = vpop.f32.mrb[0].mxu0
        %v3785 = vadd.f32 0.0, %v3784
        %v3786 = vpop.f32.mrb[0].mxu0
        %v3787 = vpop.f32.mrb[0].mxu0
        %v3788 = vpop.f32.mrb[0].mxu0
        %3789 = vdwg.mxu0
        %3791 = vrot.lane.b32.xlu0 %v633, 64
        %v3792 = vpop.permute.xlu0 %3791
        %v3794 = vsel %vm1570, %v3342, 0
        %v3797 = vsel %vm1574, %v3792, 0
        %3799 = vmatprep.subr.bf16.mxu0 0
        %3800 = vmatpush1.bf16.msra.mxu0 %v3797
        %3801 = vmatprep.subr.bf16.mxu0 0
        %3802 = vmatpush1.bf16.msra.mxu0 0
        %3803 = vmatprep.subr.bf16.mxu0 0
        %3804 = vmatpush1.bf16.msra.mxu0 0
        %3805 = vmatprep.subr.bf16.mxu0 0
        %3806 = vmatpush1.bf16.msra.mxu0 0
        %3807 = vmatprep.subr.bf16.mxu0 0
        %3808 = vmatpush1.bf16.msra.mxu0 0
        %3809 = vmatprep.subr.bf16.mxu0 0
        %3810 = vmatpush1.bf16.msra.mxu0 0
        %3811 = vmatprep.subr.bf16.mxu0 0
        %3812 = vmatpush1.bf16.msra.mxu0 0
        %3813 = vmatprep.subr.bf16.mxu0 0
        %3814 = vmatpush1.bf16.msra.mxu0 0
        %3815 = vmatprep.subr.bf16.mxu0 0
        %3816 = vmatpush1.bf16.msra.mxu0 0
        %3817 = vmatprep.subr.bf16.mxu0 0
        %3818 = vmatpush1.bf16.msra.mxu0 0
        %3819 = vmatprep.subr.bf16.mxu0 0
        %3820 = vmatpush1.bf16.msra.mxu0 0
        %3821 = vmatprep.subr.bf16.mxu0 0
        %3822 = vmatpush1.bf16.msra.mxu0 0
        %3823 = vmatprep.subr.bf16.mxu0 0
        %3824 = vmatpush1.bf16.msra.mxu0 0
        %3825 = vmatprep.subr.bf16.mxu0 0
        %3826 = vmatpush1.bf16.msra.mxu0 0
        %3827 = vmatprep.subr.bf16.mxu0 0
        %3828 = vmatpush1.bf16.msra.mxu0 0
        %3829 = vmatprep.subr.bf16.mxu0 0
        %3830 = vmatpush1.bf16.msra.mxu0 0
        %3831 = vmatprep.mubr.bf16.mxu0 0
        %3832 = vmatmul.mubr.bf16.gmra.mrb[0].mxu0 %v3794
        %v3833 = vpop.f32.mrb[0].mxu0
        %v3834 = vadd.f32 0.0, %v3833
        %v3835 = vpop.f32.mrb[0].mxu0
        %v3836 = vpop.f32.mrb[0].mxu0
        %v3837 = vpop.f32.mrb[0].mxu0
        %3838 = vdwg.mxu0
        %3840 = vrot.lane.b32.xlu0 %v634, 64
        %v3841 = vpop.permute.xlu0 %3840
        %v3843 = vsel %vm1570, %v3343, 0
        %v3846 = vsel %vm1574, %v3841, 0
        %3848 = vmatprep.subr.bf16.mxu0 0
        %3849 = vmatpush1.bf16.msra.mxu0 %v3846
        %3850 = vmatprep.subr.bf16.mxu0 0
        %3851 = vmatpush1.bf16.msra.mxu0 0
        %3852 = vmatprep.subr.bf16.mxu0 0
        %3853 = vmatpush1.bf16.msra.mxu0 0
        %3854 = vmatprep.subr.bf16.mxu0 0
        %3855 = vmatpush1.bf16.msra.mxu0 0
        %3856 = vmatprep.subr.bf16.mxu0 0
        %3857 = vmatpush1.bf16.msra.mxu0 0
        %3858 = vmatprep.subr.bf16.mxu0 0
        %3859 = vmatpush1.bf16.msra.mxu0 0
        %3860 = vmatprep.subr.bf16.mxu0 0
        %3861 = vmatpush1.bf16.msra.mxu0 0
        %3862 = vmatprep.subr.bf16.mxu0 0
        %3863 = vmatpush1.bf16.msra.mxu0 0
        %3864 = vmatprep.subr.bf16.mxu0 0
        %3865 = vmatpush1.bf16.msra.mxu0 0
        %3866 = vmatprep.subr.bf16.mxu0 0
        %3867 = vmatpush1.bf16.msra.mxu0 0
        %3868 = vmatprep.subr.bf16.mxu0 0
        %3869 = vmatpush1.bf16.msra.mxu0 0
        %3870 = vmatprep.subr.bf16.mxu0 0
        %3871 = vmatpush1.bf16.msra.mxu0 0
        %3872 = vmatprep.subr.bf16.mxu0 0
        %3873 = vmatpush1.bf16.msra.mxu0 0
        %3874 = vmatprep.subr.bf16.mxu0 0
        %3875 = vmatpush1.bf16.msra.mxu0 0
        %3876 = vmatprep.subr.bf16.mxu0 0
        %3877 = vmatpush1.bf16.msra.mxu0 0
        %3878 = vmatprep.subr.bf16.mxu0 0
        %3879 = vmatpush1.bf16.msra.mxu0 0
        %3880 = vmatprep.mubr.bf16.mxu0 0
        %3881 = vmatmul.mubr.bf16.gmra.mrb[0].mxu0 %v3843
        %v3882 = vpop.f32.mrb[0].mxu0
        %v3883 = vadd.f32 0.0, %v3882
        %v3884 = vpop.f32.mrb[0].mxu0
        %v3885 = vpop.f32.mrb[0].mxu0
        %v3886 = vpop.f32.mrb[0].mxu0
        %3887 = vdwg.mxu0
        %3889 = vrot.lane.b32.xlu0 %v635, 64
        %v3890 = vpop.permute.xlu0 %3889
        %v3892 = vsel %vm1570, %v3344, 0
        %v3895 = vsel %vm1574, %v3890, 0
        %3897 = vmatprep.subr.bf16.mxu0 0
        %3898 = vmatpush1.bf16.msra.mxu0 %v3895
        %3899 = vmatprep.subr.bf16.mxu0 0
        %3900 = vmatpush1.bf16.msra.mxu0 0
        %3901 = vmatprep.subr.bf16.mxu0 0
        %3902 = vmatpush1.bf16.msra.mxu0 0
        %3903 = vmatprep.subr.bf16.mxu0 0
        %3904 = vmatpush1.bf16.msra.mxu0 0
        %3905 = vmatprep.subr.bf16.mxu0 0
        %3906 = vmatpush1.bf16.msra.mxu0 0
        %3907 = vmatprep.subr.bf16.mxu0 0
        %3908 = vmatpush1.bf16.msra.mxu0 0
        %3909 = vmatprep.subr.bf16.mxu0 0
        %3910 = vmatpush1.bf16.msra.mxu0 0
        %3911 = vmatprep.subr.bf16.mxu0 0
        %3912 = vmatpush1.bf16.msra.mxu0 0
        %3913 = vmatprep.subr.bf16.mxu0 0
        %3914 = vmatpush1.bf16.msra.mxu0 0
        %3915 = vmatprep.subr.bf16.mxu0 0
        %3916 = vmatpush1.bf16.msra.mxu0 0
        %3917 = vmatprep.subr.bf16.mxu0 0
        %3918 = vmatpush1.bf16.msra.mxu0 0
        %3919 = vmatprep.subr.bf16.mxu0 0
        %3920 = vmatpush1.bf16.msra.mxu0 0
        %3921 = vmatprep.subr.bf16.mxu0 0
        %3922 = vmatpush1.bf16.msra.mxu0 0
        %3923 = vmatprep.subr.bf16.mxu0 0
        %3924 = vmatpush1.bf16.msra.mxu0 0
        %3925 = vmatprep.subr.bf16.mxu0 0
        %3926 = vmatpush1.bf16.msra.mxu0 0
        %3927 = vmatprep.subr.bf16.mxu0 0
        %3928 = vmatpush1.bf16.msra.mxu0 0
        %3929 = vmatprep.mubr.bf16.mxu0 0
        %3930 = vmatmul.mubr.bf16.gmra.mrb[0].mxu0 %v3892
        %v3931 = vpop.f32.mrb[0].mxu0
        %v3932 = vadd.f32 0.0, %v3931
        %v3933 = vpop.f32.mrb[0].mxu0
        %v3934 = vpop.f32.mrb[0].mxu0
        %v3935 = vpop.f32.mrb[0].mxu0
        %3936 = vdwg.mxu0
        %3938 = vrot.lane.b32.xlu0 %v636, 64
        %v3939 = vpop.permute.xlu0 %3938
        %v3941 = vsel %vm1570, %v3345, 0
        %v3944 = vsel %vm1574, %v3939, 0
        %3946 = vmatprep.subr.bf16.mxu0 0
        %3947 = vmatpush1.bf16.msra.mxu0 %v3944
        %3948 = vmatprep.subr.bf16.mxu0 0
        %3949 = vmatpush1.bf16.msra.mxu0 0
        %3950 = vmatprep.subr.bf16.mxu0 0
        %3951 = vmatpush1.bf16.msra.mxu0 0
        %3952 = vmatprep.subr.bf16.mxu0 0
        %3953 = vmatpush1.bf16.msra.mxu0 0
        %3954 = vmatprep.subr.bf16.mxu0 0
        %3955 = vmatpush1.bf16.msra.mxu0 0
        %3956 = vmatprep.subr.bf16.mxu0 0
        %3957 = vmatpush1.bf16.msra.mxu0 0
        %3958 = vmatprep.subr.bf16.mxu0 0
        %3959 = vmatpush1.bf16.msra.mxu0 0
        %3960 = vmatprep.subr.bf16.mxu0 0
        %3961 = vmatpush1.bf16.msra.mxu0 0
        %3962 = vmatprep.subr.bf16.mxu0 0
        %3963 = vmatpush1.bf16.msra.mxu0 0
        %3964 = vmatprep.subr.bf16.mxu0 0
        %3965 = vmatpush1.bf16.msra.mxu0 0
        %3966 = vmatprep.subr.bf16.mxu0 0
        %3967 = vmatpush1.bf16.msra.mxu0 0
        %3968 = vmatprep.subr.bf16.mxu0 0
        %3969 = vmatpush1.bf16.msra.mxu0 0
        %3970 = vmatprep.subr.bf16.mxu0 0
        %3971 = vmatpush1.bf16.msra.mxu0 0
        %3972 = vmatprep.subr.bf16.mxu0 0
        %3973 = vmatpush1.bf16.msra.mxu0 0
        %3974 = vmatprep.subr.bf16.mxu0 0
        %3975 = vmatpush1.bf16.msra.mxu0 0
        %3976 = vmatprep.subr.bf16.mxu0 0
        %3977 = vmatpush1.bf16.msra.mxu0 0
        %3978 = vmatprep.mubr.bf16.mxu0 0
        %3979 = vmatmul.mubr.bf16.gmra.mrb[0].mxu0 %v3941
        %v3980 = vpop.f32.mrb[0].mxu0
        %v3981 = vadd.f32 0.0, %v3980
        %v3982 = vpop.f32.mrb[0].mxu0
        %v3983 = vpop.f32.mrb[0].mxu0
        %v3984 = vpop.f32.mrb[0].mxu0
        %3985 = vdwg.mxu0
        %3987 = vrot.lane.b32.xlu0 %v637, 64
        %v3988 = vpop.permute.xlu0 %3987
        %v3990 = vsel %vm1570, %v3346, 0
        %v3993 = vsel %vm1574, %v3988, 0
        %3995 = vmatprep.subr.bf16.mxu0 0
        %3996 = vmatpush1.bf16.msra.mxu0 %v3993
        %3997 = vmatprep.subr.bf16.mxu0 0
        %3998 = vmatpush1.bf16.msra.mxu0 0
        %3999 = vmatprep.subr.bf16.mxu0 0
        %4000 = vmatpush1.bf16.msra.mxu0 0
        %4001 = vmatprep.subr.bf16.mxu0 0
        %4002 = vmatpush1.bf16.msra.mxu0 0
        %4003 = vmatprep.subr.bf16.mxu0 0
        %4004 = vmatpush1.bf16.msra.mxu0 0
        %4005 = vmatprep.subr.bf16.mxu0 0
        %4006 = vmatpush1.bf16.msra.mxu0 0
        %4007 = vmatprep.subr.bf16.mxu0 0
        %4008 = vmatpush1.bf16.msra.mxu0 0
        %4009 = vmatprep.subr.bf16.mxu0 0
        %4010 = vmatpush1.bf16.msra.mxu0 0
        %4011 = vmatprep.subr.bf16.mxu0 0
        %4012 = vmatpush1.bf16.msra.mxu0 0
        %4013 = vmatprep.subr.bf16.mxu0 0
        %4014 = vmatpush1.bf16.msra.mxu0 0
        %4015 = vmatprep.subr.bf16.mxu0 0
        %4016 = vmatpush1.bf16.msra.mxu0 0
        %4017 = vmatprep.subr.bf16.mxu0 0
        %4018 = vmatpush1.bf16.msra.mxu0 0
        %4019 = vmatprep.subr.bf16.mxu0 0
        %4020 = vmatpush1.bf16.msra.mxu0 0
        %4021 = vmatprep.subr.bf16.mxu0 0
        %4022 = vmatpush1.bf16.msra.mxu0 0
        %4023 = vmatprep.subr.bf16.mxu0 0
        %4024 = vmatpush1.bf16.msra.mxu0 0
        %4025 = vmatprep.subr.bf16.mxu0 0
        %4026 = vmatpush1.bf16.msra.mxu0 0
        %4027 = vmatprep.mubr.bf16.mxu0 0
        %4028 = vmatmul.mubr.bf16.gmra.mrb[0].mxu0 %v3990
        %v4029 = vpop.f32.mrb[0].mxu0
        %v4030 = vadd.f32 0.0, %v4029
        %v4031 = vpop.f32.mrb[0].mxu0
        %v4032 = vpop.f32.mrb[0].mxu0
        %v4033 = vpop.f32.mrb[0].mxu0
        %4034 = vdwg.mxu0
        %4036 = vrot.lane.b32.xlu0 %v638, 64
        %v4037 = vpop.permute.xlu0 %4036
        %v4039 = vsel %vm1570, %v3347, 0
        %v4042 = vsel %vm1574, %v4037, 0
        %4044 = vmatprep.subr.bf16.mxu0 0
        %4045 = vmatpush1.bf16.msra.mxu0 %v4042
        %4046 = vmatprep.subr.bf16.mxu0 0
        %4047 = vmatpush1.bf16.msra.mxu0 0
        %4048 = vmatprep.subr.bf16.mxu0 0
        %4049 = vmatpush1.bf16.msra.mxu0 0
        %4050 = vmatprep.subr.bf16.mxu0 0
        %4051 = vmatpush1.bf16.msra.mxu0 0
        %4052 = vmatprep.subr.bf16.mxu0 0
        %4053 = vmatpush1.bf16.msra.mxu0 0
        %4054 = vmatprep.subr.bf16.mxu0 0
        %4055 = vmatpush1.bf16.msra.mxu0 0
        %4056 = vmatprep.subr.bf16.mxu0 0
        %4057 = vmatpush1.bf16.msra.mxu0 0
        %4058 = vmatprep.subr.bf16.mxu0 0
        %4059 = vmatpush1.bf16.msra.mxu0 0
        %4060 = vmatprep.subr.bf16.mxu0 0
        %4061 = vmatpush1.bf16.msra.mxu0 0
        %4062 = vmatprep.subr.bf16.mxu0 0
        %4063 = vmatpush1.bf16.msra.mxu0 0
        %4064 = vmatprep.subr.bf16.mxu0 0
        %4065 = vmatpush1.bf16.msra.mxu0 0
        %4066 = vmatprep.subr.bf16.mxu0 0
        %4067 = vmatpush1.bf16.msra.mxu0 0
        %4068 = vmatprep.subr.bf16.mxu0 0
        %4069 = vmatpush1.bf16.msra.mxu0 0
        %4070 = vmatprep.subr.bf16.mxu0 0
        %4071 = vmatpush1.bf16.msra.mxu0 0
        %4072 = vmatprep.subr.bf16.mxu0 0
        %4073 = vmatpush1.bf16.msra.mxu0 0
        %4074 = vmatprep.subr.bf16.mxu0 0
        %4075 = vmatpush1.bf16.msra.mxu0 0
        %4076 = vmatprep.mubr.bf16.mxu0 0
        %4077 = vmatmul.mubr.bf16.gmra.mrb[0].mxu0 %v4039
        %v4078 = vpop.f32.mrb[0].mxu0
        %v4079 = vadd.f32 0.0, %v4078
        %v4080 = vpop.f32.mrb[0].mxu0
        %v4081 = vpop.f32.mrb[0].mxu0
        %v4082 = vpop.f32.mrb[0].mxu0
        %4083 = vdwg.mxu0
        %4085 = vrot.lane.b32.xlu0 %v639, 64
        %v4086 = vpop.permute.xlu0 %4085
        %v4088 = vsel %vm1570, %v3348, 0
        %v4091 = vsel %vm1574, %v4086, 0
        %4093 = vmatprep.subr.bf16.mxu0 0
        %4094 = vmatpush1.bf16.msra.mxu0 %v4091
        %4095 = vmatprep.subr.bf16.mxu0 0
        %4096 = vmatpush1.bf16.msra.mxu0 0
        %4097 = vmatprep.subr.bf16.mxu0 0
        %4098 = vmatpush1.bf16.msra.mxu0 0
        %4099 = vmatprep.subr.bf16.mxu0 0
        %4100 = vmatpush1.bf16.msra.mxu0 0
        %4101 = vmatprep.subr.bf16.mxu0 0
        %4102 = vmatpush1.bf16.msra.mxu0 0
        %4103 = vmatprep.subr.bf16.mxu0 0
        %4104 = vmatpush1.bf16.msra.mxu0 0
        %4105 = vmatprep.subr.bf16.mxu0 0
        %4106 = vmatpush1.bf16.msra.mxu0 0
        %4107 = vmatprep.subr.bf16.mxu0 0
        %4108 = vmatpush1.bf16.msra.mxu0 0
        %4109 = vmatprep.subr.bf16.mxu0 0
        %4110 = vmatpush1.bf16.msra.mxu0 0
        %4111 = vmatprep.subr.bf16.mxu0 0
        %4112 = vmatpush1.bf16.msra.mxu0 0
        %4113 = vmatprep.subr.bf16.mxu0 0
        %4114 = vmatpush1.bf16.msra.mxu0 0
        %4115 = vmatprep.subr.bf16.mxu0 0
        %4116 = vmatpush1.bf16.msra.mxu0 0
        %4117 = vmatprep.subr.bf16.mxu0 0
        %4118 = vmatpush1.bf16.msra.mxu0 0
        %4119 = vmatprep.subr.bf16.mxu0 0
        %4120 = vmatpush1.bf16.msra.mxu0 0
        %4121 = vmatprep.subr.bf16.mxu0 0
        %4122 = vmatpush1.bf16.msra.mxu0 0
        %4123 = vmatprep.subr.bf16.mxu0 0
        %4124 = vmatpush1.bf16.msra.mxu0 0
        %4125 = vmatprep.mubr.bf16.mxu0 0
        %4126 = vmatmul.mubr.bf16.gmra.mrb[0].mxu0 %v4088
        %v4127 = vpop.f32.mrb[0].mxu0
        %v4128 = vadd.f32 0.0, %v4127
        %v4129 = vpop.f32.mrb[0].mxu0
        %v4130 = vpop.f32.mrb[0].mxu0
        %v4131 = vpop.f32.mrb[0].mxu0
        %4132 = vdwg.mxu0
        %4149 = vrot.lane.b32.xlu0 %v3393, 64
        %v4150 = vpop.permute.xlu0 %4149
        %4151 = vrot.lane.b32.xlu0 %v3442, 64
        %v4152 = vpop.permute.xlu0 %4151
        %4153 = vrot.lane.b32.xlu0 %v3491, 64
        %v4154 = vpop.permute.xlu0 %4153
        %4155 = vrot.lane.b32.xlu0 %v3540, 64
        %v4156 = vpop.permute.xlu0 %4155
        %4157 = vrot.lane.b32.xlu0 %v3589, 64
        %v4158 = vpop.permute.xlu0 %4157
        %4159 = vrot.lane.b32.xlu0 %v3638, 64
        %v4160 = vpop.permute.xlu0 %4159
        %4161 = vrot.lane.b32.xlu0 %v3687, 64
        %v4162 = vpop.permute.xlu0 %4161
        %4163 = vrot.lane.b32.xlu0 %v3736, 64
        %v4164 = vpop.permute.xlu0 %4163
        %4165 = vrot.lane.b32.xlu0 %v3785, 64
        %v4166 = vpop.permute.xlu0 %4165
        %4167 = vrot.lane.b32.xlu0 %v3834, 64
        %v4168 = vpop.permute.xlu0 %4167
        %4169 = vrot.lane.b32.xlu0 %v3883, 64
        %v4170 = vpop.permute.xlu0 %4169
        %4171 = vrot.lane.b32.xlu0 %v3932, 64
        %v4172 = vpop.permute.xlu0 %4171
        %4173 = vrot.lane.b32.xlu0 %v3981, 64
        %v4174 = vpop.permute.xlu0 %4173
        %4175 = vrot.lane.b32.xlu0 %v4030, 64
        %v4176 = vpop.permute.xlu0 %4175
        %4177 = vrot.lane.b32.xlu0 %v4079, 64
        %v4178 = vpop.permute.xlu0 %4177
        %4179 = vrot.lane.b32.xlu0 %v4128, 64
        %v4180 = vpop.permute.xlu0 %4179
        %vm4197 = vcmask 1041920
        %4198 = vst.msk [vmem:[%s525] sm:$0x3] %vm4197, %v4150
        %4199 = vst.msk [vmem:[%s525 + $0x2] sm:$0x3] %vm4197, %v4152
        %4200 = vst.msk [vmem:[%s525 + $0x4] sm:$0x3] %vm4197, %v4154
        %4201 = vst.msk [vmem:[%s525 + $0x6] sm:$0x3] %vm4197, %v4156
        %4202 = vst.msk [vmem:[%s525 + $0x8] sm:$0x3] %vm4197, %v4158
        %4203 = vst.msk [vmem:[%s525 + $0xa] sm:$0x3] %vm4197, %v4160
        %4204 = vst.msk [vmem:[%s525 + $0xc] sm:$0x3] %vm4197, %v4162
        %4205 = vst.msk [vmem:[%s525 + $0xe] sm:$0x3] %vm4197, %v4164
        %4206 = vst.msk [vmem:[%s525 + $0x10] sm:$0x3] %vm4197, %v4166
        %4207 = vst.msk [vmem:[%s525 + $0x12] sm:$0x3] %vm4197, %v4168
        %4208 = vst.msk [vmem:[%s525 + $0x14] sm:$0x3] %vm4197, %v4170
        %4209 = vst.msk [vmem:[%s525 + $0x16] sm:$0x3] %vm4197, %v4172
        %4210 = vst.msk [vmem:[%s525 + $0x18] sm:$0x3] %vm4197, %v4174
        %4211 = vst.msk [vmem:[%s525 + $0x1a] sm:$0x3] %vm4197, %v4176
        %4212 = vst.msk [vmem:[%s525 + $0x1c] sm:$0x3] %vm4197, %v4178
        %4213 = vst.msk [vmem:[%s525 + $0x1e] sm:$0x3] %vm4197, %v4180
        %s4214 = smul.u32 16, %s14
        %p4215 = scmp.lt.s32.totalorder %s4214, 31
        %s4216 = scalar_select %p4215, %s4214, 31
        %s4217 = smul.addr %s4216, 2
        %s4218 = scalar_lea.vmem %s3, %s4217
        // Predicated region
        $region156: #{vivit_forward.19} parent=142 // pred_check
          %p4219 = pneg %p110
        $region157: #{vivit_forward.19} parent=142 // pred_check_branch
          %4221 = sbr.rel (%p4219) target = $region159
        $region158: #{vivit_forward.19} parent=142 // pred_region
          %s4222 = smul.u32 16, %s14
        $region159: #{vivit_forward.19} parent=142 // pred_fallthru
          _
      $region143: #{vivit_forward.19} parent=5 // pred_fallthru
        _
      %p4223 = scmp.le.s32.totalorder 2, %s9
      // Predicated region
      $region160: #{vivit_forward.19} parent=5 // pred_check
        %p4224 = pneg %p4223
      $region161: #{vivit_forward.19} parent=5 // pred_check_branch
        %4226 = sbr.rel (%p4224) target = $region163
      $region162: #{vivit_forward.19} parent=5 // pred_region
        %s4227 = ssub.s32 %s9, 2
        // Predicated region
        $region164: #{vivit_forward.19} parent=162 // pred_check
          %p4228 = pneg %p116
        $region165: #{vivit_forward.19} parent=162 // pred_check_branch
          %4230 = sbr.rel (%p4228) target = $region167
        $region166: #{vivit_forward.19} parent=162 // pred_region
          %s4231 = smul.u32 16, %s15
          %p4232 = scmp.lt.s32.totalorder %s4231, 31
          %s4233 = scalar_select %p4232, %s4231, 31
          %s4234 = smul.addr %s4233, 2
          %s4235 = scalar_lea.vmem %s3, %s4234
        $region167: #{vivit_forward.19} parent=162 // pred_fallthru
          _
      $region163: #{vivit_forward.19} parent=5 // pred_fallthru
        _
    $region6: #{vivit_forward.19} parent=1 // loop_footer
      %s13 = sadd.s32 1, %s9
    $region7: #{vivit_forward.19} parent=1 // loop_footer_branch
      %8 = sbr.rel target = $region3
    $region8: #{vivit_forward.19} parent=1 // loop_exit
      _

// kernel: vivit_forward.22
$region0: #{vivit_forward.22}
  #allocation0 [shape = 'u32[]', space=smem, size = 0x4, offset = 0x4, fixed_abs, tag = 'smem constant byte address 0x4 - core index']
  #allocation1 [shape = 'u32[144,128]{1,0:T(1,128)}', space=vmem, size = 0x12000, scoped, tag = 'internal scratch']
  #allocation2 [shape = 'f32[32,256]{1,0:T(8,128)}', space=vmem, size = 0x8000, scoped, tag = 'scratch operand']
  #allocation3 [shape = 'f32[32,128]{1,0:T(8,128)}', space=vmem, size = 0x4000, scoped, tag = 'scratch operand']
  %s0 = inlined_call_operand.vmem [shape: f32[64,128], index: 0, kind: input, shape index: {}]
  %s1 = inlined_call_operand.vmem [shape: f32[128,256], index: 1, kind: input, shape index: {}]
  %s2 = inlined_call_operand.vmem [shape: f32[1,256], index: 2, kind: input, shape index: {}]
  %s3 = inlined_call_operand.vmem [shape: f32[1,128], index: 3, kind: input, shape index: {}]
  %s4 = inlined_call_operand.vmem [shape: f32[1,128], index: 4, kind: input, shape index: {}]
  %s5 = inlined_call_operand.vmem [shape: f32[64,256], index: 5, kind: output, shape index: {}]
  %s6 = sld [smem:[#allocation0]]
  $region65: #{vivit_forward.22} parent=0
    _
  %s8 = ssub.s32 1, %s6
  %s9 = scalar_select 0, %s8, %s6
  loop: start=0, step=1, limit=4
  $region2: #{vivit_forward.22} parent=0 // loop_pre_header
    _
  $region3: #{vivit_forward.22} parent=0 // loop_header
    %s11 = sphi 0, %s15
    %p12 = scmp.ge.s32.totalorder %s11, 4
    %s18 = sphi 0, %s37
    %s19 = sphi 0, %s33
    %s20 = sphi 0, %s29
    %s21 = sphi 0, %s18
    %s22 = sphi 0, %s19
    %s23 = sphi 0, %s20
    %s24 = sphi 0, %s21
    %s25 = sphi 0, %s22
    %s26 = sphi 0, %s23
    %s42 = sphi 0, %s44
    %s45 = sphi 0, %s42
    %s46 = sphi 0, %s45
    %s62 = sphi 0, %s46
    %s70 = sphi 0, %s72
    %s73 = sphi 0, %s70
    %s74 = sphi 0, %s73
    %s90 = sphi 0, %s74
    %s96 = sphi 0, %s98
    %s99 = sphi 0, %s96
    %s100 = sphi 0, %s99
    %s116 = sphi 0, %s100
    %s120 = sphi 0, %s120
    %s122 = sphi 0, %s120
    %s123 = sphi 0, %s122
    %s137 = sphi 0, %s123
    %s141 = sphi 0, %s141
    %s143 = sphi 0, %s141
    %s144 = sphi 0, %s143
    %s158 = sphi 0, %s144
    %s166 = sphi 0, %s168
    %s169 = sphi 0, %s166
    %s170 = sphi 0, %s169
    %s186 = sphi 0, %s170
  $region4: #{vivit_forward.22} parent=0 // loop_header_branch
    %14 = sbr.rel (%p12) target = $region8
  $region5: #{vivit_forward.22} parent=0 // loop_body
    %s16 = ssub.s32 %s11, 1
    %s17 = ssub.s32 %s11, 2
    %s27 = sadd.s32 1, %s20
    %p28 = scmp.ge.s32.totalorder %s27, 1
    %s29 = scalar_select %p28, 0, %s27
    %s30 = sadd.s32 1, %s19
    %s31 = scalar_select %p28, %s30, %s19
    %p32 = scmp.ge.s32.totalorder %s31, 1
    %s33 = scalar_select %p32, 0, %s31
    %s34 = sadd.s32 1, %s18
    %s35 = scalar_select %p32, %s34, %s18
    %p36 = scmp.ge.s32.totalorder %s35, 2
    %s37 = scalar_select %p36, 0, %s35
    %s38 = ssub.s32 %s18, %s37
    %s39 = ssub.s32 %s20, %s29
    %s40 = sor.u32 %s38, %s39
    %p41 = scmp.eq.s32.totalorder %s40, 0
    %s43 = sadd.s32 %s42, 1
    %s44 = scalar_select %p41, %s42, %s43
    %p47 = pneg %p41
    %p48 = scmp.eq.s32.totalorder %s11, 1
    %p49 = por %p47, %p48
    %p50 = scmp.ne.s32.totalorder %s42, %s45
    %p51 = scmp.eq.s32.totalorder %s11, 0
    %p52 = por %p50, %p51
    %p53 = scmp.ne.s32.totalorder %s42, %s45
    %p54 = scmp.eq.s32.totalorder %s16, 1
    %p55 = por %p53, %p54
    %p56 = scmp.ne.s32.totalorder %s45, %s46
    %p57 = scmp.eq.s32.totalorder %s16, 0
    %p58 = por %p56, %p57
    %p59 = scmp.ne.s32.totalorder %s45, %s46
    %p60 = scmp.eq.s32.totalorder %s17, 1
    %p61 = por %p59, %p60
    %p63 = scmp.ne.s32.totalorder %s46, %s62
    %p64 = scmp.eq.s32.totalorder %s17, 0
    %p65 = por %p63, %p64
    %s66 = ssub.s32 %s20, %s29
    %s67 = ssub.s32 %s19, %s33
    %s68 = sor.u32 %s66, %s67
    %p69 = scmp.eq.s32.totalorder %s68, 0
    %s71 = sadd.s32 %s70, 1
    %s72 = scalar_select %p69, %s70, %s71
    %p75 = pneg %p69
    %p76 = scmp.eq.s32.totalorder %s11, 1
    %p77 = por %p75, %p76
    %p78 = scmp.ne.s32.totalorder %s70, %s73
    %p79 = scmp.eq.s32.totalorder %s11, 0
    %p80 = por %p78, %p79
    %p81 = scmp.ne.s32.totalorder %s70, %s73
    %p82 = scmp.eq.s32.totalorder %s16, 1
    %p83 = por %p81, %p82
    %p84 = scmp.ne.s32.totalorder %s73, %s74
    %p85 = scmp.eq.s32.totalorder %s16, 0
    %p86 = por %p84, %p85
    %p87 = scmp.ne.s32.totalorder %s73, %s74
    %p88 = scmp.eq.s32.totalorder %s17, 1
    %p89 = por %p87, %p88
    %p91 = scmp.ne.s32.totalorder %s74, %s90
    %p92 = scmp.eq.s32.totalorder %s17, 0
    %p93 = por %p91, %p92
    %s94 = ssub.s32 %s19, %s33
    %p95 = scmp.eq.s32.totalorder %s94, 0
    %s97 = sadd.s32 %s96, 1
    %s98 = scalar_select %p95, %s96, %s97
    %p101 = pneg %p95
    %p102 = scmp.eq.s32.totalorder %s11, 1
    %p103 = por %p101, %p102
    %p104 = scmp.ne.s32.totalorder %s96, %s99
    %p105 = scmp.eq.s32.totalorder %s11, 0
    %p106 = por %p104, %p105
    %p107 = scmp.ne.s32.totalorder %s96, %s99
    %p108 = scmp.eq.s32.totalorder %s16, 1
    %p109 = por %p107, %p108
    %p110 = scmp.ne.s32.totalorder %s99, %s100
    %p111 = scmp.eq.s32.totalorder %s16, 0
    %p112 = por %p110, %p111
    %p113 = scmp.ne.s32.totalorder %s99, %s100
    %p114 = scmp.eq.s32.totalorder %s17, 1
    %p115 = por %p113, %p114
    %p117 = scmp.ne.s32.totalorder %s100, %s116
    %p118 = scmp.eq.s32.totalorder %s17, 0
    %p119 = por %p117, %p118
    %s121 = sadd.s32 %s120, 1
    %p124 = scmp.eq.s32.totalorder %s11, 1
    %p125 = scmp.ne.s32.totalorder %s120, %s122
    %p126 = scmp.eq.s32.totalorder %s11, 0
    %p127 = por %p125, %p126
    %p128 = scmp.ne.s32.totalorder %s120, %s122
    %p129 = scmp.eq.s32.totalorder %s16, 1
    %p130 = por %p128, %p129
    %p131 = scmp.ne.s32.totalorder %s122, %s123
    %p132 = scmp.eq.s32.totalorder %s16, 0
    %p133 = por %p131, %p132
    %p134 = scmp.ne.s32.totalorder %s122, %s123
    %p135 = scmp.eq.s32.totalorder %s17, 1
    %p136 = por %p134, %p135
    %p138 = scmp.ne.s32.totalorder %s123, %s137
    %p139 = scmp.eq.s32.totalorder %s17, 0
    %p140 = por %p138, %p139
    %s142 = sadd.s32 %s141, 1
    %p145 = scmp.eq.s32.totalorder %s11, 1
    %p146 = scmp.ne.s32.totalorder %s141, %s143
    %p147 = scmp.eq.s32.totalorder %s11, 0
    %p148 = por %p146, %p147
    %p149 = scmp.ne.s32.totalorder %s141, %s143
    %p150 = scmp.eq.s32.totalorder %s16, 1
    %p151 = por %p149, %p150
    %p152 = scmp.ne.s32.totalorder %s143, %s144
    %p153 = scmp.eq.s32.totalorder %s16, 0
    %p154 = por %p152, %p153
    %p155 = scmp.ne.s32.totalorder %s143, %s144
    %p156 = scmp.eq.s32.totalorder %s17, 1
    %p157 = por %p155, %p156
    %p159 = scmp.ne.s32.totalorder %s144, %s158
    %p160 = scmp.eq.s32.totalorder %s17, 0
    %p161 = por %p159, %p160
    %s162 = ssub.s32 %s18, %s37
    %s163 = ssub.s32 %s19, %s33
    %s164 = sor.u32 %s162, %s163
    %p165 = scmp.eq.s32.totalorder %s164, 0
    %s167 = sadd.s32 %s166, 1
    %s168 = scalar_select %p165, %s166, %s167
    %p171 = pneg %p165
    %p172 = scmp.eq.s32.totalorder %s11, 1
    %p173 = por %p171, %p172
    %p174 = scmp.ne.s32.totalorder %s166, %s169
    %p175 = scmp.eq.s32.totalorder %s11, 0
    %p176 = por %p174, %p175
    %p177 = scmp.ne.s32.totalorder %s166, %s169
    %p178 = scmp.eq.s32.totalorder %s16, 1
    %p179 = por %p177, %p178
    %p180 = scmp.ne.s32.totalorder %s169, %s170
    %p181 = scmp.eq.s32.totalorder %s16, 0
    %p182 = por %p180, %p181
    %p183 = scmp.ne.s32.totalorder %s169, %s170
    %p184 = scmp.eq.s32.totalorder %s17, 1
    %p185 = por %p183, %p184
    %p187 = scmp.ne.s32.totalorder %s170, %s186
    %p188 = scmp.eq.s32.totalorder %s17, 0
    %p189 = por %p187, %p188
    %p190 = scmp.le.s32.totalorder 1, %s11
    %p191 = scmp.lt.s32.totalorder %s11, 3
    %p192 = pnand %p190, %p191
    %p193 = pneg %p192
    // Predicated region
    $region9: #{vivit_forward.22} parent=5 // pred_check
      _
    $region10: #{vivit_forward.22} parent=5 // pred_check_branch
      %195 = sbr.rel (%p192) target = $region12
    $region11: #{vivit_forward.22} parent=5 // pred_region
      %s196 = ssub.s32 %s11, 1
      // Predicated region
      $region13: #{vivit_forward.22} parent=11 // pred_check
        %p197 = pneg %p86
      $region14: #{vivit_forward.22} parent=11 // pred_check_branch
        %199 = sbr.rel (%p197) target = $region16
      $region15: #{vivit_forward.22} parent=11 // pred_region
        %s200 = smul.u32 16, %s23
        %s201 = smul.u32 2, %s22
        %p202 = scmp.lt.s32.totalorder %s200, 15
        %s203 = scalar_select %p202, %s200, 15
        %p204 = scmp.lt.s32.totalorder %s201, 1
        %s205 = scalar_select %p204, %s201, 1
        %s206 = smul.addr %s203, 2
        %s207 = sadd.s32 %s205, %s206
        %s208 = smul.addr %s207, 8
        %s209 = scalar_lea.vmem %s1, %s208
        %s210 = smul.u32 16, %s23
        %s211 = smul.u32 2, %s22
      $region16: #{vivit_forward.22} parent=11 // pred_fallthru
        _
      // Predicated region
      $region17: #{vivit_forward.22} parent=11 // pred_check
        %p212 = pneg %p112
      $region18: #{vivit_forward.22} parent=11 // pred_check_branch
        %214 = sbr.rel (%p212) target = $region20
      $region19: #{vivit_forward.22} parent=11 // pred_region
        %s215 = smul.u32 2, %s22
        %p216 = scmp.lt.s32.totalorder %s215, 1
        %s217 = scalar_select %p216, %s215, 1
        %s218 = scalar_lea.vmem %s2, %s217
        %s219 = smul.u32 2, %s22
      $region20: #{vivit_forward.22} parent=11 // pred_fallthru
        _
      // Predicated region
      $region21: #{vivit_forward.22} parent=11 // pred_check
        %p220 = pneg %p133
      $region22: #{vivit_forward.22} parent=11 // pred_check_branch
        %222 = sbr.rel (%p220) target = $region24
      $region23: #{vivit_forward.22} parent=11 // pred_region
        _
      $region24: #{vivit_forward.22} parent=11 // pred_fallthru
        _
      // Predicated region
      $region25: #{vivit_forward.22} parent=11 // pred_check
        %p223 = pneg %p154
      $region26: #{vivit_forward.22} parent=11 // pred_check_branch
        %225 = sbr.rel (%p223) target = $region28
      $region27: #{vivit_forward.22} parent=11 // pred_region
        _
      $region28: #{vivit_forward.22} parent=11 // pred_fallthru
        _
    $region12: #{vivit_forward.22} parent=5 // pred_fallthru
      _
    %p226 = scmp.lt.s32.totalorder %s11, 2
    // Predicated region
    $region29: #{vivit_forward.22} parent=5 // pred_check
      %p227 = pneg %p226
    $region30: #{vivit_forward.22} parent=5 // pred_check_branch
      %229 = sbr.rel (%p227) target = $region32
    $region31: #{vivit_forward.22} parent=5 // pred_region
      // Predicated region
      $region33: #{vivit_forward.22} parent=31 // pred_check
        %p230 = pneg %p52
      $region34: #{vivit_forward.22} parent=31 // pred_check_branch
        %232 = sbr.rel (%p230) target = $region36
      $region35: #{vivit_forward.22} parent=31 // pred_region
        %s233 = smul.u32 4, %s18
        %p234 = scmp.lt.s32.totalorder %s233, 7
        %s235 = scalar_select %p234, %s233, 7
        %p236 = scmp.lt.s32.totalorder %s20, 0
        %s237 = scalar_select %p236, %s20, 0
        %s238 = sadd.s32 %s237, %s235
        %s239 = smul.addr %s238, 8
        %s240 = scalar_lea.vmem %s0, %s239
        %s241 = smul.u32 4, %s18
      $region36: #{vivit_forward.22} parent=31 // pred_fallthru
        _
    $region32: #{vivit_forward.22} parent=5 // pred_fallthru
      _
    %p242 = scmp.le.s32.totalorder 1, %s11
    %p243 = scmp.lt.s32.totalorder %s11, 3
    %p244 = pnand %p242, %p243
    %p245 = pneg %p244
    // Predicated region
    $region37: #{vivit_forward.22} parent=5 // pred_check
      _
    $region38: #{vivit_forward.22} parent=5 // pred_check_branch
      %247 = sbr.rel (%p244) target = $region40
    $region39: #{vivit_forward.22} parent=5 // pred_region
      %s248 = ssub.s32 %s11, 1
      %s249 = smul.u32 4, %s21
      %p250 = scmp.lt.s32.totalorder %s249, 7
      %s251 = scalar_select %p250, %s249, 7
      %p252 = scmp.lt.s32.totalorder %s23, 0
      %s253 = scalar_select %p252, %s23, 0
      %s254 = sadd.s32 %s253, %s251
      %s255 = smul.addr %s254, 8
      %s256 = scalar_lea.vmem %s0, %s255
      %p257 = pneg %p58
      %p258 = pneg %p55
      %s259 = smul.u32 16, %s23
      %s260 = smul.u32 2, %s22
      %p261 = scmp.lt.s32.totalorder %s259, 15
      %s262 = scalar_select %p261, %s259, 15
      %p263 = scmp.lt.s32.totalorder %s260, 1
      %s264 = scalar_select %p263, %s260, 1
      %s265 = smul.addr %s262, 2
      %s266 = sadd.s32 %s264, %s265
      %s267 = smul.addr %s266, 8
      %s268 = scalar_lea.vmem %s1, %s267
      %p269 = pneg %p86
      %p270 = pneg %p83
      %s271 = smul.u32 2, %s22
      %p272 = scmp.lt.s32.totalorder %s271, 1
      %s273 = scalar_select %p272, %s271, 1
      %s274 = scalar_lea.vmem %s2, %s273
      %p275 = pneg %p112
      %p276 = pneg %p109
      %p277 = pneg %p133
      %p278 = pneg %p130
      %p279 = pneg %p154
      %p280 = pneg %p151
      %p281 = pneg %p182
      %p282 = pneg %p179
      %s283 = smul.u32 4, %s21
      %s284 = smul.u32 2, %s22
      %p285 = scmp.lt.s32.totalorder %s283, 7
      %s286 = scalar_select %p285, %s283, 7
      %p287 = scmp.lt.s32.totalorder %s284, 1
      %s288 = scalar_select %p287, %s284, 1
      %s289 = smul.addr %s286, 2
      %s290 = sadd.s32 %s288, %s289
      %s291 = smul.addr %s290, 8
      %s292 = scalar_lea.vmem %s5, %s291
      %s293 = smul.u32 4, %s21
      %p294 = scmp.lt.s32.totalorder %s293, 7
      %s295 = scalar_select %p294, %s293, 7
      %p296 = scmp.lt.s32.totalorder %s23, 0
      %s297 = scalar_select %p296, %s23, 0
      %s298 = sadd.s32 %s297, %s295
      %s299 = smul.addr %s298, 8
      %s300 = scalar_lea.vmem %s0, %s299
      %s301 = smul.u32 4, %s21
      %s302 = smul.u32 16, %s23
      %s303 = smul.u32 2, %s22
      %p304 = scmp.lt.s32.totalorder %s302, 15
      %s305 = scalar_select %p304, %s302, 15
      %p306 = scmp.lt.s32.totalorder %s303, 1
      %s307 = scalar_select %p306, %s303, 1
      %s308 = smul.addr %s305, 2
      %s309 = sadd.s32 %s307, %s308
      %s310 = smul.addr %s309, 8
      %s311 = scalar_lea.vmem %s1, %s310
      %s312 = smul.u32 16, %s23
      %s313 = smul.u32 2, %s22
      %s314 = smul.u32 2, %s22
      %p315 = scmp.lt.s32.totalorder %s314, 1
      %s316 = scalar_select %p315, %s314, 1
      %s317 = scalar_lea.vmem %s2, %s316
      %s318 = smul.u32 2, %s22
      %s319 = smul.u32 4, %s21
      %s320 = smul.u32 2, %s22
      %p321 = scmp.lt.s32.totalorder %s319, 7
      %s322 = scalar_select %p321, %s319, 7
      %p323 = scmp.lt.s32.totalorder %s320, 1
      %s324 = scalar_select %p323, %s320, 1
      %s325 = smul.addr %s322, 2
      %s326 = sadd.s32 %s324, %s325
      %s327 = smul.addr %s326, 8
      %s328 = scalar_lea.vmem %s5, %s327
      %s329 = smul.u32 4, %s21
      %s330 = smul.u32 2, %s22
      %p332 = scmp.eq.s32.totalorder %s23, 0
      // Predicated region
      $region41: #{vivit_forward.22} parent=39 // pred_check
        %p333 = pneg %p332
      $region42: #{vivit_forward.22} parent=39 // pred_check_branch
        %335 = sbr.rel (%p333) target = $region44
      $region43: #{vivit_forward.22} parent=39 // pred_region
        %336 = vst [vmem:[#allocation2] sm:$0xff] 0.0
        %337 = vst [vmem:[#allocation2 + $0x8] sm:$0xff] 0.0
        %338 = vst [vmem:[#allocation2 + $0x10] sm:$0xff] 0.0
        %339 = vst [vmem:[#allocation2 + $0x18] sm:$0xff] 0.0
        %340 = vst [vmem:[#allocation2 + $0x20] sm:$0xff] 0.0
        %341 = vst [vmem:[#allocation2 + $0x28] sm:$0xff] 0.0
        %342 = vst [vmem:[#allocation2 + $0x30] sm:$0xff] 0.0
        %343 = vst [vmem:[#allocation2 + $0x38] sm:$0xff] 0.0
      $region44: #{vivit_forward.22} parent=39 // pred_fallthru
        _
      %p344 = scmp.eq.s32.totalorder %s22, 0
      // Predicated region
      $region45: #{vivit_forward.22} parent=39 // pred_check
        %p345 = pneg %p344
      $region46: #{vivit_forward.22} parent=39 // pred_check_branch
        %347 = sbr.rel (%p345) target = $region48
      $region47: #{vivit_forward.22} parent=39 // pred_region
        %v348 = vld [vmem:[%s300] sm:$0xff]
        %v349 = vld [vmem:[%s300 + $0x8] sm:$0xff]
        %v350 = vld [vmem:[%s300 + $0x10] sm:$0xff]
        %v351 = vld [vmem:[%s300 + $0x18] sm:$0xff]
        %352 = vadd.xlane.f32.xlu0 %v348
        %v353 = vpop.xlane.xlu0 %352
        %354 = vadd.xlane.f32.xlu0 %v349
        %v355 = vpop.xlane.xlu0 %354
        %356 = vadd.xlane.f32.xlu0 %v350
        %v357 = vpop.xlane.xlu0 %356
        %358 = vadd.xlane.f32.xlu0 %v351
        %v359 = vpop.xlane.xlu0 %358
        %v360 = vrcp.pop 128.0
        %v361 = vmul.f32 %v353, %v360
        %v362 = vmul.f32 %v355, %v360
        %v363 = vmul.f32 %v357, %v360
        %v364 = vmul.f32 %v359, %v360
        %v365 = vsub.f32 %v348, %v361
        %v366 = vsub.f32 %v349, %v362
        %v367 = vsub.f32 %v350, %v363
        %v368 = vsub.f32 %v351, %v364
        %v369 = vmul.f32 %v365, %v365
        %v370 = vmul.f32 %v366, %v366
        %v371 = vmul.f32 %v367, %v367
        %v372 = vmul.f32 %v368, %v368
        %373 = vadd.xlane.f32.xlu0 %v369
        %v374 = vpop.xlane.xlu0 %373
        %375 = vadd.xlane.f32.xlu0 %v370
        %v376 = vpop.xlane.xlu0 %375
        %377 = vadd.xlane.f32.xlu0 %v371
        %v378 = vpop.xlane.xlu0 %377
        %379 = vadd.xlane.f32.xlu0 %v372
        %v380 = vpop.xlane.xlu0 %379
        %v381 = vmul.f32 %v374, %v360
        %v382 = vmul.f32 %v376, %v360
        %v383 = vmul.f32 %v378, %v360
        %v384 = vmul.f32 %v380, %v360
        %v385 = vadd.f32 %v381, 1e-05
        %v386 = vadd.f32 %v382, 1e-05
        %v387 = vadd.f32 %v383, 1e-05
        %v388 = vadd.f32 %v384, 1e-05
        %v389 = vrsqrt.pop %v385
        %v390 = vrsqrt.pop %v386
        %v391 = vrsqrt.pop %v387
        %v392 = vrsqrt.pop %v388
        %v393 = vmul.f32 %v365, %v389
        %v394 = vmul.f32 %v366, %v390
        %v395 = vmul.f32 %v367, %v391
        %v396 = vmul.f32 %v368, %v392
        %v397 = vld [vmem:[%s3] sm:$0x1]
        %v399 = vlaneseq
        %v400 = vshrl.u32 %v399, 7
        %v401 = vsub.s32 0, %v400
        %v402 = vrot.slane %v397, %v401
        %v404 = vmul.f32 %v393, %v402
        %v405 = vmul.f32 %v394, %v402
        %v406 = vmul.f32 %v395, %v402
        %v407 = vmul.f32 %v396, %v402
        %v408 = vld [vmem:[%s4] sm:$0x1]
        %v410 = vlaneseq
        %v411 = vshrl.u32 %v410, 7
        %v412 = vsub.s32 0, %v411
        %v413 = vrot.slane %v408, %v412
        %v415 = vadd.f32 %v404, %v413
        %v416 = vadd.f32 %v405, %v413
        %v417 = vadd.f32 %v406, %v413
        %v418 = vadd.f32 %v407, %v413
        %419 = vst [vmem:[#allocation3] sm:$0xff] %v415
        %420 = vst [vmem:[#allocation3 + $0x8] sm:$0xff] %v416
        %421 = vst [vmem:[#allocation3 + $0x10] sm:$0xff] %v417
        %422 = vst [vmem:[#allocation3 + $0x18] sm:$0xff] %v418
      $region48: #{vivit_forward.22} parent=39 // pred_fallthru
        _
      %v423 = vld [vmem:[#allocation3] sm:$0xff]
      %v424 = vld [vmem:[#allocation3 + $0x8] sm:$0xff]
      %v425 = vld [vmem:[#allocation3 + $0x10] sm:$0xff]
      %v426 = vld [vmem:[#allocation3 + $0x18] sm:$0xff]
      %v427 = vld [vmem:[#allocation2] sm:$0xff]
      %v428 = vld [vmem:[#allocation2 + $0x8] sm:$0xff]
      %v429 = vld [vmem:[#allocation2 + $0x10] sm:$0xff]
      %v430 = vld [vmem:[#allocation2 + $0x18] sm:$0xff]
      %v431 = vld [vmem:[#allocation2 + $0x20] sm:$0xff]
      %v432 = vld [vmem:[#allocation2 + $0x28] sm:$0xff]
      %v433 = vld [vmem:[#allocation2 + $0x30] sm:$0xff]
      %v434 = vld [vmem:[#allocation2 + $0x38] sm:$0xff]
      %v435 = vpack.c.bf16 %v424, %v423
      %v436 = vpack.c.bf16 %v426, %v425
      %v437 = vld [vmem:[%s311] sm:$0xff]
      %v438 = vld [vmem:[%s311 + $0x8] sm:$0xff]
      %v439 = vld [vmem:[%s311 + $0x10] sm:$0xff]
      %v440 = vld [vmem:[%s311 + $0x18] sm:$0xff]
      %v441 = vld [vmem:[%s311 + $0x20] sm:$0xff]
      %v442 = vld [vmem:[%s311 + $0x28] sm:$0xff]
      %v443 = vld [vmem:[%s311 + $0x30] sm:$0xff]
      %v444 = vld [vmem:[%s311 + $0x38] sm:$0xff]
      %v445 = vld [vmem:[%s311 + $0x40] sm:$0xff]
      %v446 = vld [vmem:[%s311 + $0x48] sm:$0xff]
      %v447 = vld [vmem:[%s311 + $0x50] sm:$0xff]
      %v448 = vld [vmem:[%s311 + $0x58] sm:$0xff]
      %v449 = vld [vmem:[%s311 + $0x60] sm:$0xff]
      %v450 = vld [vmem:[%s311 + $0x68] sm:$0xff]
      %v451 = vld [vmem:[%s311 + $0x70] sm:$0xff]
      %v452 = vld [vmem:[%s311 + $0x78] sm:$0xff]
      %v453 = vld [vmem:[%s311 + $0x80] sm:$0xff]
      %v454 = vld [vmem:[%s311 + $0x88] sm:$0xff]
      %v455 = vld [vmem:[%s311 + $0x90] sm:$0xff]
      %v456 = vld [vmem:[%s311 + $0x98] sm:$0xff]
      %v457 = vld [vmem:[%s311 + $0xa0] sm:$0xff]
      %v458 = vld [vmem:[%s311 + $0xa8] sm:$0xff]
      %v459 = vld [vmem:[%s311 + $0xb0] sm:$0xff]
      %v460 = vld [vmem:[%s311 + $0xb8] sm:$0xff]
      %v461 = vld [vmem:[%s311 + $0xc0] sm:$0xff]
      %v462 = vld [vmem:[%s311 + $0xc8] sm:$0xff]
      %v463 = vld [vmem:[%s311 + $0xd0] sm:$0xff]
      %v464 = vld [vmem:[%s311 + $0xd8] sm:$0xff]
      %v465 = vld [vmem:[%s311 + $0xe0] sm:$0xff]
      %v466 = vld [vmem:[%s311 + $0xe8] sm:$0xff]
      %v467 = vld [vmem:[%s311 + $0xf0] sm:$0xff]
      %v468 = vld [vmem:[%s311 + $0xf8] sm:$0xff]
      %v469 = vpack.c.bf16 %v439, %v437
      %v470 = vpack.c.bf16 %v440, %v438
      %v471 = vpack.c.bf16 %v443, %v441
      %v472 = vpack.c.bf16 %v444, %v442
      %v473 = vpack.c.bf16 %v447, %v445
      %v474 = vpack.c.bf16 %v448, %v446
      %v475 = vpack.c.bf16 %v451, %v449
      %v476 = vpack.c.bf16 %v452, %v450
      %v477 = vpack.c.bf16 %v455, %v453
      %v478 = vpack.c.bf16 %v456, %v454
      %v479 = vpack.c.bf16 %v459, %v457
      %v480 = vpack.c.bf16 %v460, %v458
      %v481 = vpack.c.bf16 %v463, %v461
      %v482 = vpack.c.bf16 %v464, %v462
      %v483 = vpack.c.bf16 %v467, %v465
      %v484 = vpack.c.bf16 %v468, %v466
      %485 = vmatprep.subr.bf16.mxu0 %v470
      %486 = vmatpush1.bf16.msra.mxu0 %v469
      %487 = vmatprep.subr.bf16.mxu0 %v472
      %488 = vmatpush1.bf16.msra.mxu0 %v471
      %489 = vmatprep.subr.bf16.mxu0 %v474
      %490 = vmatpush1.bf16.msra.mxu0 %v473
      %491 = vmatprep.subr.bf16.mxu0 %v476
      %492 = vmatpush1.bf16.msra.mxu0 %v475
      %493 = vmatprep.subr.bf16.mxu0 %v478
      %494 = vmatpush1.bf16.msra.mxu0 %v477
      %495 = vmatprep.subr.bf16.mxu0 %v480
      %496 = vmatpush1.bf16.msra.mxu0 %v479
      %497 = vmatprep.subr.bf16.mxu0 %v482
      %498 = vmatpush1.bf16.msra.mxu0 %v481
      %499 = vmatprep.subr.bf16.mxu0 %v484
      %500 = vmatpush1.bf16.msra.mxu0 %v483
      %501 = vmatprep.subr.bf16.mxu0 0
      %502 = vmatpush1.bf16.msra.mxu0 0
      %503 = vmatprep.subr.bf16.mxu0 0
      %504 = vmatpush1.bf16.msra.mxu0 0
      %505 = vmatprep.subr.bf16.mxu0 0
      %506 = vmatpush1.bf16.msra.mxu0 0
      %507 = vmatprep.subr.bf16.mxu0 0
      %508 = vmatpush1.bf16.msra.mxu0 0
      %509 = vmatprep.subr.bf16.mxu0 0
      %510 = vmatpush1.bf16.msra.mxu0 0
      %511 = vmatprep.subr.bf16.mxu0 0
      %512 = vmatpush1.bf16.msra.mxu0 0
      %513 = vmatprep.subr.bf16.mxu0 0
      %514 = vmatpush1.bf16.msra.mxu0 0
      %515 = vmatprep.subr.bf16.mxu0 0
      %516 = vmatpush1.bf16.msra.mxu0 0
      %517 = vmatprep.mubr.bf16.mxu0 0
      %518 = vmatmul.mubr.bf16.gmra.mrb[0].mxu0 %v435
      %v519 = vpop.f32.mrb[0].mxu0
      %v520 = vadd.f32 0.0, %v519
      %v521 = vpop.f32.mrb[0].mxu0
      %v522 = vadd.f32 0.0, %v521
      %v523 = vpop.f32.mrb[0].mxu0
      %v524 = vadd.f32 0.0, %v523
      %v525 = vpop.f32.mrb[0].mxu0
      %v526 = vadd.f32 0.0, %v525
      %527 = vmatprep.mubr.bf16.mxu0 0
      %528 = vmatmul.mubr.bf16.gmra.mrb[0].mxu0 %v436
      %v529 = vpop.f32.mrb[0].mxu0
      %v530 = vadd.f32 0.0, %v529
      %v531 = vpop.f32.mrb[0].mxu0
      %v532 = vadd.f32 0.0, %v531
      %v533 = vpop.f32.mrb[0].mxu0
      %v534 = vadd.f32 0.0, %v533
      %v535 = vpop.f32.mrb[0].mxu0
      %v536 = vadd.f32 0.0, %v535
      %537 = vdwg.mxu0
      %v538 = vadd.f32 %v427, %v520
      %v539 = vadd.f32 %v428, %v522
      %v540 = vadd.f32 %v429, %v524
      %v541 = vadd.f32 %v430, %v526
      %v542 = vadd.f32 %v431, %v530
      %v543 = vadd.f32 %v432, %v532
      %v544 = vadd.f32 %v433, %v534
      %v545 = vadd.f32 %v434, %v536
      %546 = vst [vmem:[#allocation2] sm:$0xff] %v538
      %547 = vst [vmem:[#allocation2 + $0x8] sm:$0xff] %v539
      %548 = vst [vmem:[#allocation2 + $0x10] sm:$0xff] %v540
      %549 = vst [vmem:[#allocation2 + $0x18] sm:$0xff] %v541
      %550 = vst [vmem:[#allocation2 + $0x20] sm:$0xff] %v542
      %551 = vst [vmem:[#allocation2 + $0x28] sm:$0xff] %v543
      %552 = vst [vmem:[#allocation2 + $0x30] sm:$0xff] %v544
      %553 = vst [vmem:[#allocation2 + $0x38] sm:$0xff] %v545
      // Predicated region
      $region49: #{vivit_forward.22} parent=39 // pred_check
        %p554 = pneg %p332
      $region50: #{vivit_forward.22} parent=39 // pred_check_branch
        %556 = sbr.rel (%p554) target = $region52
      $region51: #{vivit_forward.22} parent=39 // pred_region
        %v557 = vld [vmem:[#allocation2] sm:$0xff]
        %v558 = vld [vmem:[#allocation2 + $0x8] sm:$0xff]
        %v559 = vld [vmem:[#allocation2 + $0x10] sm:$0xff]
        %v560 = vld [vmem:[#allocation2 + $0x18] sm:$0xff]
        %v561 = vld [vmem:[#allocation2 + $0x20] sm:$0xff]
        %v562 = vld [vmem:[#allocation2 + $0x28] sm:$0xff]
        %v563 = vld [vmem:[#allocation2 + $0x30] sm:$0xff]
        %v564 = vld [vmem:[#allocation2 + $0x38] sm:$0xff]
        %v565 = vld [vmem:[%s317] sm:$0x3]
        %v567 = vlaneseq
        %v568 = vshrl.u32 %v567, 7
        %v569 = vsub.s32 0, %v568
        %v570 = vrot.slane %v565, %v569
        %v571 = vlaneseq
        %v572 = vshrl.u32 %v571, 7
        %v573 = vsub.s32 1, %v572
        %v574 = vrot.slane %v565, %v573
        %v577 = vadd.f32 %v557, %v570
        %v578 = vadd.f32 %v558, %v574
        %v579 = vadd.f32 %v559, %v570
        %v580 = vadd.f32 %v560, %v574
        %v581 = vadd.f32 %v561, %v570
        %v582 = vadd.f32 %v562, %v574
        %v583 = vadd.f32 %v563, %v570
        %v584 = vadd.f32 %v564, %v574
        %v585 = vmul.f32 %v577, 0.70710677
        %v586 = vmul.f32 %v578, 0.70710677
        %v587 = vmul.f32 %v579, 0.70710677
        %v588 = vmul.f32 %v580, 0.70710677
        %v589 = vmul.f32 %v581, 0.70710677
        %v590 = vmul.f32 %v582, 0.70710677
        %v591 = vmul.f32 %v583, 0.70710677
        %v592 = vmul.f32 %v584, 0.70710677
        %v593 = vand.u32 2147483647, %v585
        %v594 = vand.u32 2147483647, %v586
        %v595 = vand.u32 2147483647, %v587
        %v596 = vand.u32 2147483647, %v588
        %v597 = vand.u32 2147483647, %v589
        %v598 = vand.u32 2147483647, %v590
        %v599 = vand.u32 2147483647, %v591
        %v600 = vand.u32 2147483647, %v592
        %v601 = vmul.f32 %v593, 0.3275911
        %v602 = vmul.f32 %v594, 0.3275911
        %v603 = vmul.f32 %v595, 0.3275911
        %v604 = vmul.f32 %v596, 0.3275911
        %v605 = vmul.f32 %v597, 0.3275911
        %v606 = vmul.f32 %v598, 0.3275911
        %v607 = vmul.f32 %v599, 0.3275911
        %v608 = vmul.f32 %v600, 0.3275911
        %v609 = vadd.f32 %v601, 1.0
        %v610 = vadd.f32 %v602, 1.0
        %v611 = vadd.f32 %v603, 1.0
        %v612 = vadd.f32 %v604, 1.0
        %v613 = vadd.f32 %v605, 1.0
        %v614 = vadd.f32 %v606, 1.0
        %v615 = vadd.f32 %v607, 1.0
        %v616 = vadd.f32 %v608, 1.0
        %v617 = vrcp.pop %v609
        %v618 = vmul.f32 1.0, %v617
        %v619 = vrcp.pop %v610
        %v620 = vmul.f32 1.0, %v619
        %v621 = vrcp.pop %v611
        %v622 = vmul.f32 1.0, %v621
        %v623 = vrcp.pop %v612
        %v624 = vmul.f32 1.0, %v623
        %v625 = vrcp.pop %v613
        %v626 = vmul.f32 1.0, %v625
        %v627 = vrcp.pop %v614
        %v628 = vmul.f32 1.0, %v627
        %v629 = vrcp.pop %v615
        %v630 = vmul.f32 1.0, %v629
        %v631 = vrcp.pop %v616
        %v632 = vmul.f32 1.0, %v631
        %v633 = vmul.f32 %v618, 1.0614054
        %v634 = vmul.f32 %v620, 1.0614054
        %v635 = vmul.f32 %v622, 1.0614054
        %v636 = vmul.f32 %v624, 1.0614054
        %v637 = vmul.f32 %v626, 1.0614054
        %v638 = vmul.f32 %v628, 1.0614054
        %v639 = vmul.f32 %v630, 1.0614054
        %v640 = vmul.f32 %v632, 1.0614054
        %v641 = vsub.f32 %v633, 1.4531521
        %v642 = vsub.f32 %v634, 1.4531521
        %v643 = vsub.f32 %v635, 1.4531521
        %v644 = vsub.f32 %v636, 1.4531521
        %v645 = vsub.f32 %v637, 1.4531521
        %v646 = vsub.f32 %v638, 1.4531521
        %v647 = vsub.f32 %v639, 1.4531521
        %v648 = vsub.f32 %v640, 1.4531521
        %v649 = vmul.f32 %v641, %v618
        %v650 = vmul.f32 %v642, %v620
        %v651 = vmul.f32 %v643, %v622
        %v652 = vmul.f32 %v644, %v624
        %v653 = vmul.f32 %v645, %v626
        %v654 = vmul.f32 %v646, %v628
        %v655 = vmul.f32 %v647, %v630
        %v656 = vmul.f32 %v648, %v632
        %v657 = vadd.f32 %v649, 1.4214138
        %v658 = vadd.f32 %v650, 1.4214138
        %v659 = vadd.f32 %v651, 1.4214138
        %v660 = vadd.f32 %v652, 1.4214138
        %v661 = vadd.f32 %v653, 1.4214138
        %v662 = vadd.f32 %v654, 1.4214138
        %v663 = vadd.f32 %v655, 1.4214138
        %v664 = vadd.f32 %v656, 1.4214138
        %v665 = vmul.f32 %v657, %v618
        %v666 = vmul.f32 %v658, %v620
        %v667 = vmul.f32 %v659, %v622
        %v668 = vmul.f32 %v660, %v624
        %v669 = vmul.f32 %v661, %v626
        %v670 = vmul.f32 %v662, %v628
        %v671 = vmul.f32 %v663, %v630
        %v672 = vmul.f32 %v664, %v632
        %v673 = vsub.f32 %v665, 0.28449672
        %v674 = vsub.f32 %v666, 0.28449672
        %v675 = vsub.f32 %v667, 0.28449672
        %v676 = vsub.f32 %v668, 0.28449672
        %v677 = vsub.f32 %v669, 0.28449672
        %v678 = vsub.f32 %v670, 0.28449672
        %v679 = vsub.f32 %v671, 0.28449672
        %v680 = vsub.f32 %v672, 0.28449672
        %v681 = vmul.f32 %v673, %v618
        %v682 = vmul.f32 %v674, %v620
        %v683 = vmul.f32 %v675, %v622
        %v684 = vmul.f32 %v676, %v624
        %v685 = vmul.f32 %v677, %v626
        %v686 = vmul.f32 %v678, %v628
        %v687 = vmul.f32 %v679, %v630
        %v688 = vmul.f32 %v680, %v632
        %v689 = vadd.f32 %v681, 0.2548296
        %v690 = vadd.f32 %v682, 0.2548296
        %v691 = vadd.f32 %v683, 0.2548296
        %v692 = vadd.f32 %v684, 0.2548296
        %v693 = vadd.f32 %v685, 0.2548296
        %v694 = vadd.f32 %v686, 0.2548296
        %v695 = vadd.f32 %v687, 0.2548296
        %v696 = vadd.f32 %v688, 0.2548296
        %v697 = vmul.f32 %v689, %v618
        %v698 = vmul.f32 %v690, %v620
        %v699 = vmul.f32 %v691, %v622
        %v700 = vmul.f32 %v692, %v624
        %v701 = vmul.f32 %v693, %v626
        %v702 = vmul.f32 %v694, %v628
        %v703 = vmul.f32 %v695, %v630
        %v704 = vmul.f32 %v696, %v632
        %v705 = vsub.f32 0.0, %v593
        %v706 = vsub.f32 0.0, %v594
        %v707 = vsub.f32 0.0, %v595
        %v708 = vsub.f32 0.0, %v596
        %v709 = vsub.f32 0.0, %v597
        %v710 = vsub.f32 0.0, %v598
        %v711 = vsub.f32 0.0, %v599
        %v712 = vsub.f32 0.0, %v600
        %v713 = vmul.f32 %v705, %v593
        %v714 = vmul.f32 %v706, %v594
        %v715 = vmul.f32 %v707, %v595
        %v716 = vmul.f32 %v708, %v596
        %v717 = vmul.f32 %v709, %v597
        %v718 = vmul.f32 %v710, %v598
        %v719 = vmul.f32 %v711, %v599
        %v720 = vmul.f32 %v712, %v600
        %v721 = vmul.f32 %v713, 1.442695
        %v722 = vpow.pop %v721
        %v723 = vmul.f32 %v714, 1.442695
        %v724 = vpow.pop %v723
        %v725 = vmul.f32 %v715, 1.442695
        %v726 = vpow.pop %v725
        %v727 = vmul.f32 %v716, 1.442695
        %v728 = vpow.pop %v727
        %v729 = vmul.f32 %v717, 1.442695
        %v730 = vpow.pop %v729
        %v731 = vmul.f32 %v718, 1.442695
        %v732 = vpow.pop %v731
        %v733 = vmul.f32 %v719, 1.442695
        %v734 = vpow.pop %v733
        %v735 = vmul.f32 %v720, 1.442695
        %v736 = vpow.pop %v735
        %v737 = vmul.f32 %v697, %v722
        %v738 = vmul.f32 %v698, %v724
        %v739 = vmul.f32 %v699, %v726
        %v740 = vmul.f32 %v700, %v728
        %v741 = vmul.f32 %v701, %v730
        %v742 = vmul.f32 %v702, %v732
        %v743 = vmul.f32 %v703, %v734
        %v744 = vmul.f32 %v704, %v736
        %v745 = vsub.f32 1.0, %v737
        %v746 = vsub.f32 1.0, %v738
        %v747 = vsub.f32 1.0, %v739
        %v748 = vsub.f32 1.0, %v740
        %v749 = vsub.f32 1.0, %v741
        %v750 = vsub.f32 1.0, %v742
        %v751 = vsub.f32 1.0, %v743
        %v752 = vsub.f32 1.0, %v744
        %vm753 = vcmp.lt.f32.partialorder %v585, 0.0
        %vm754 = vcmp.lt.f32.partialorder %v586, 0.0
        %vm755 = vcmp.lt.f32.partialorder %v587, 0.0
        %vm756 = vcmp.lt.f32.partialorder %v588, 0.0
        %vm757 = vcmp.lt.f32.partialorder %v589, 0.0
        %vm758 = vcmp.lt.f32.partialorder %v590, 0.0
        %vm759 = vcmp.lt.f32.partialorder %v591, 0.0
        %vm760 = vcmp.lt.f32.partialorder %v592, 0.0
        %v761 = vsub.f32 0.0, %v745
        %v762 = vsub.f32 0.0, %v746
        %v763 = vsub.f32 0.0, %v747
        %v764 = vsub.f32 0.0, %v748
        %v765 = vsub.f32 0.0, %v749
        %v766 = vsub.f32 0.0, %v750
        %v767 = vsub.f32 0.0, %v751
        %v768 = vsub.f32 0.0, %v752
        %v769 = vsel %vm753, %v761, %v745
        %v770 = vsel %vm754, %v762, %v746
        %v771 = vsel %vm755, %v763, %v747
        %v772 = vsel %vm756, %v764, %v748
        %v773 = vsel %vm757, %v765, %v749
        %v774 = vsel %vm758, %v766, %v750
        %v775 = vsel %vm759, %v767, %v751
        %v776 = vsel %vm760, %v768, %v752
        %v777 = vmul.f32 %v577, 0.5
        %v778 = vmul.f32 %v578, 0.5
        %v779 = vmul.f32 %v579, 0.5
        %v780 = vmul.f32 %v580, 0.5
        %v781 = vmul.f32 %v581, 0.5
        %v782 = vmul.f32 %v582, 0.5
        %v783 = vmul.f32 %v583, 0.5
        %v784 = vmul.f32 %v584, 0.5
        %v785 = vadd.f32 %v769, 1.0
        %v786 = vadd.f32 %v770, 1.0
        %v787 = vadd.f32 %v771, 1.0
        %v788 = vadd.f32 %v772, 1.0
        %v789 = vadd.f32 %v773, 1.0
        %v790 = vadd.f32 %v774, 1.0
        %v791 = vadd.f32 %v775, 1.0
        %v792 = vadd.f32 %v776, 1.0
        %v793 = vmul.f32 %v777, %v785
        %v794 = vmul.f32 %v778, %v786
        %v795 = vmul.f32 %v779, %v787
        %v796 = vmul.f32 %v780, %v788
        %v797 = vmul.f32 %v781, %v789
        %v798 = vmul.f32 %v782, %v790
        %v799 = vmul.f32 %v783, %v791
        %v800 = vmul.f32 %v784, %v792
        %801 = vst [vmem:[%s328] sm:$0xff] %v793
        %802 = vst [vmem:[%s328 + $0x8] sm:$0xff] %v794
        %803 = vst [vmem:[%s328 + $0x10] sm:$0xff] %v795
        %804 = vst [vmem:[%s328 + $0x18] sm:$0xff] %v796
        %805 = vst [vmem:[%s328 + $0x20] sm:$0xff] %v797
        %806 = vst [vmem:[%s328 + $0x28] sm:$0xff] %v798
        %807 = vst [vmem:[%s328 + $0x30] sm:$0xff] %v799
        %808 = vst [vmem:[%s328 + $0x38] sm:$0xff] %v800
      $region52: #{vivit_forward.22} parent=39 // pred_fallthru
        _
      %s809 = smul.u32 4, %s21
      %s810 = smul.u32 2, %s22
      %p811 = scmp.lt.s32.totalorder %s809, 7
      %s812 = scalar_select %p811, %s809, 7
      %p813 = scmp.lt.s32.totalorder %s810, 1
      %s814 = scalar_select %p813, %s810, 1
      %s815 = smul.addr %s812, 2
      %s816 = sadd.s32 %s814, %s815
      %s817 = smul.addr %s816, 8
      %s818 = scalar_lea.vmem %s5, %s817
      // Predicated region
      $region53: #{vivit_forward.22} parent=39 // pred_check
        %p819 = pneg %p179
      $region54: #{vivit_forward.22} parent=39 // pred_check_branch
        %821 = sbr.rel (%p819) target = $region56
      $region55: #{vivit_forward.22} parent=39 // pred_region
        %s822 = smul.u32 4, %s21
        %s823 = smul.u32 2, %s22
      $region56: #{vivit_forward.22} parent=39 // pred_fallthru
        _
    $region40: #{vivit_forward.22} parent=5 // pred_fallthru
      _
    %p824 = scmp.le.s32.totalorder 2, %s11
    // Predicated region
    $region57: #{vivit_forward.22} parent=5 // pred_check
      %p825 = pneg %p824
    $region58: #{vivit_forward.22} parent=5 // pred_check_branch
      %827 = sbr.rel (%p825) target = $region60
    $region59: #{vivit_forward.22} parent=5 // pred_region
      %s828 = ssub.s32 %s11, 2
      // Predicated region
      $region61: #{vivit_forward.22} parent=59 // pred_check
        %p829 = pneg %p185
      $region62: #{vivit_forward.22} parent=59 // pred_check_branch
        %831 = sbr.rel (%p829) target = $region64
      $region63: #{vivit_forward.22} parent=59 // pred_region
        %s832 = smul.u32 4, %s24
        %s833 = smul.u32 2, %s25
        %p834 = scmp.lt.s32.totalorder %s832, 7
        %s835 = scalar_select %p834, %s832, 7
        %p836 = scmp.lt.s32.totalorder %s833, 1
        %s837 = scalar_select %p836, %s833, 1
        %s838 = smul.addr %s835, 2
        %s839 = sadd.s32 %s837, %s838
        %s840 = smul.addr %s839, 8
        %s841 = scalar_lea.vmem %s5, %s840
      $region64: #{vivit_forward.22} parent=59 // pred_fallthru
        _
    $region60: #{vivit_forward.22} parent=5 // pred_fallthru
      _
  $region6: #{vivit_forward.22} parent=0 // loop_footer
    %s15 = sadd.s32 1, %s11
  $region7: #{vivit_forward.22} parent=0 // loop_footer_branch
    %10 = sbr.rel target = $region3
  $region8: #{vivit_forward.22} parent=0 // loop_exit
    _

// kernel: vivit_forward.23
$region0: #{vivit_forward.23}
  #allocation0 [shape = 'u32[]', space=smem, size = 0x4, offset = 0x4, fixed_abs, tag = 'smem constant byte address 0x4 - core index']
  #allocation1 [shape = 'u32[144,128]{1,0:T(1,128)}', space=vmem, size = 0x12000, scoped, tag = 'internal scratch']
  #allocation2 [shape = 'f32[32,128]{1,0:T(8,128)}', space=vmem, size = 0x4000, scoped, tag = 'scratch operand']
  %s0 = inlined_call_operand.vmem [shape: f32[64,256], index: 0, kind: input, shape index: {}]
  %s1 = inlined_call_operand.vmem [shape: f32[256,128], index: 1, kind: input, shape index: {}]
  %s2 = inlined_call_operand.vmem [shape: f32[1,128], index: 2, kind: input, shape index: {}]
  %s3 = inlined_call_operand.vmem [shape: f32[64,128], index: 3, kind: input, shape index: {}]
  %s4 = inlined_call_operand.vmem [shape: f32[64,128], index: 4, kind: output, shape index: {}]
  %s5 = sld [smem:[#allocation0]]
  $region57: #{vivit_forward.23} parent=0
    _
  %s7 = ssub.s32 1, %s5
  %s8 = scalar_select 0, %s7, %s5
  loop: start=0, step=1, limit=4
  $region2: #{vivit_forward.23} parent=0 // loop_pre_header
    _
  $region3: #{vivit_forward.23} parent=0 // loop_header
    %s10 = sphi 0, %s14
    %p11 = scmp.ge.s32.totalorder %s10, 4
    %s17 = sphi 0, %s36
    %s18 = sphi 0, %s32
    %s19 = sphi 0, %s28
    %s20 = sphi 0, %s17
    %s21 = sphi 0, %s18
    %s22 = sphi 0, %s19
    %s23 = sphi 0, %s20
    %s24 = sphi 0, %s21
    %s25 = sphi 0, %s22
    %s41 = sphi 0, %s43
    %s44 = sphi 0, %s41
    %s45 = sphi 0, %s44
    %s61 = sphi 0, %s45
    %s69 = sphi 0, %s71
    %s72 = sphi 0, %s69
    %s73 = sphi 0, %s72
    %s89 = sphi 0, %s73
    %s95 = sphi 0, %s97
    %s98 = sphi 0, %s95
    %s99 = sphi 0, %s98
    %s115 = sphi 0, %s99
    %s123 = sphi 0, %s125
    %s126 = sphi 0, %s123
    %s127 = sphi 0, %s126
    %s143 = sphi 0, %s127
    %s151 = sphi 0, %s153
    %s154 = sphi 0, %s151
    %s155 = sphi 0, %s154
    %s171 = sphi 0, %s155
  $region4: #{vivit_forward.23} parent=0 // loop_header_branch
    %13 = sbr.rel (%p11) target = $region8
  $region5: #{vivit_forward.23} parent=0 // loop_body
    %s15 = ssub.s32 %s10, 1
    %s16 = ssub.s32 %s10, 2
    %s26 = sadd.s32 1, %s19
    %p27 = scmp.ge.s32.totalorder %s26, 1
    %s28 = scalar_select %p27, 0, %s26
    %s29 = sadd.s32 1, %s18
    %s30 = scalar_select %p27, %s29, %s18
    %p31 = scmp.ge.s32.totalorder %s30, 1
    %s32 = scalar_select %p31, 0, %s30
    %s33 = sadd.s32 1, %s17
    %s34 = scalar_select %p31, %s33, %s17
    %p35 = scmp.ge.s32.totalorder %s34, 2
    %s36 = scalar_select %p35, 0, %s34
    %s37 = ssub.s32 %s17, %s36
    %s38 = ssub.s32 %s19, %s28
    %s39 = sor.u32 %s37, %s38
    %p40 = scmp.eq.s32.totalorder %s39, 0
    %s42 = sadd.s32 %s41, 1
    %s43 = scalar_select %p40, %s41, %s42
    %p46 = pneg %p40
    %p47 = scmp.eq.s32.totalorder %s10, 1
    %p48 = por %p46, %p47
    %p49 = scmp.ne.s32.totalorder %s41, %s44
    %p50 = scmp.eq.s32.totalorder %s10, 0
    %p51 = por %p49, %p50
    %p52 = scmp.ne.s32.totalorder %s41, %s44
    %p53 = scmp.eq.s32.totalorder %s15, 1
    %p54 = por %p52, %p53
    %p55 = scmp.ne.s32.totalorder %s44, %s45
    %p56 = scmp.eq.s32.totalorder %s15, 0
    %p57 = por %p55, %p56
    %p58 = scmp.ne.s32.totalorder %s44, %s45
    %p59 = scmp.eq.s32.totalorder %s16, 1
    %p60 = por %p58, %p59
    %p62 = scmp.ne.s32.totalorder %s45, %s61
    %p63 = scmp.eq.s32.totalorder %s16, 0
    %p64 = por %p62, %p63
    %s65 = ssub.s32 %s19, %s28
    %s66 = ssub.s32 %s18, %s32
    %s67 = sor.u32 %s65, %s66
    %p68 = scmp.eq.s32.totalorder %s67, 0
    %s70 = sadd.s32 %s69, 1
    %s71 = scalar_select %p68, %s69, %s70
    %p74 = pneg %p68
    %p75 = scmp.eq.s32.totalorder %s10, 1
    %p76 = por %p74, %p75
    %p77 = scmp.ne.s32.totalorder %s69, %s72
    %p78 = scmp.eq.s32.totalorder %s10, 0
    %p79 = por %p77, %p78
    %p80 = scmp.ne.s32.totalorder %s69, %s72
    %p81 = scmp.eq.s32.totalorder %s15, 1
    %p82 = por %p80, %p81
    %p83 = scmp.ne.s32.totalorder %s72, %s73
    %p84 = scmp.eq.s32.totalorder %s15, 0
    %p85 = por %p83, %p84
    %p86 = scmp.ne.s32.totalorder %s72, %s73
    %p87 = scmp.eq.s32.totalorder %s16, 1
    %p88 = por %p86, %p87
    %p90 = scmp.ne.s32.totalorder %s73, %s89
    %p91 = scmp.eq.s32.totalorder %s16, 0
    %p92 = por %p90, %p91
    %s93 = ssub.s32 %s18, %s32
    %p94 = scmp.eq.s32.totalorder %s93, 0
    %s96 = sadd.s32 %s95, 1
    %s97 = scalar_select %p94, %s95, %s96
    %p100 = pneg %p94
    %p101 = scmp.eq.s32.totalorder %s10, 1
    %p102 = por %p100, %p101
    %p103 = scmp.ne.s32.totalorder %s95, %s98
    %p104 = scmp.eq.s32.totalorder %s10, 0
    %p105 = por %p103, %p104
    %p106 = scmp.ne.s32.totalorder %s95, %s98
    %p107 = scmp.eq.s32.totalorder %s15, 1
    %p108 = por %p106, %p107
    %p109 = scmp.ne.s32.totalorder %s98, %s99
    %p110 = scmp.eq.s32.totalorder %s15, 0
    %p111 = por %p109, %p110
    %p112 = scmp.ne.s32.totalorder %s98, %s99
    %p113 = scmp.eq.s32.totalorder %s16, 1
    %p114 = por %p112, %p113
    %p116 = scmp.ne.s32.totalorder %s99, %s115
    %p117 = scmp.eq.s32.totalorder %s16, 0
    %p118 = por %p116, %p117
    %s119 = ssub.s32 %s17, %s36
    %s120 = ssub.s32 %s18, %s32
    %s121 = sor.u32 %s119, %s120
    %p122 = scmp.eq.s32.totalorder %s121, 0
    %s124 = sadd.s32 %s123, 1
    %s125 = scalar_select %p122, %s123, %s124
    %p128 = pneg %p122
    %p129 = scmp.eq.s32.totalorder %s10, 1
    %p130 = por %p128, %p129
    %p131 = scmp.ne.s32.totalorder %s123, %s126
    %p132 = scmp.eq.s32.totalorder %s10, 0
    %p133 = por %p131, %p132
    %p134 = scmp.ne.s32.totalorder %s123, %s126
    %p135 = scmp.eq.s32.totalorder %s15, 1
    %p136 = por %p134, %p135
    %p137 = scmp.ne.s32.totalorder %s126, %s127
    %p138 = scmp.eq.s32.totalorder %s15, 0
    %p139 = por %p137, %p138
    %p140 = scmp.ne.s32.totalorder %s126, %s127
    %p141 = scmp.eq.s32.totalorder %s16, 1
    %p142 = por %p140, %p141
    %p144 = scmp.ne.s32.totalorder %s127, %s143
    %p145 = scmp.eq.s32.totalorder %s16, 0
    %p146 = por %p144, %p145
    %s147 = ssub.s32 %s17, %s36
    %s148 = ssub.s32 %s18, %s32
    %s149 = sor.u32 %s147, %s148
    %p150 = scmp.eq.s32.totalorder %s149, 0
    %s152 = sadd.s32 %s151, 1
    %s153 = scalar_select %p150, %s151, %s152
    %p156 = pneg %p150
    %p157 = scmp.eq.s32.totalorder %s10, 1
    %p158 = por %p156, %p157
    %p159 = scmp.ne.s32.totalorder %s151, %s154
    %p160 = scmp.eq.s32.totalorder %s10, 0
    %p161 = por %p159, %p160
    %p162 = scmp.ne.s32.totalorder %s151, %s154
    %p163 = scmp.eq.s32.totalorder %s15, 1
    %p164 = por %p162, %p163
    %p165 = scmp.ne.s32.totalorder %s154, %s155
    %p166 = scmp.eq.s32.totalorder %s15, 0
    %p167 = por %p165, %p166
    %p168 = scmp.ne.s32.totalorder %s154, %s155
    %p169 = scmp.eq.s32.totalorder %s16, 1
    %p170 = por %p168, %p169
    %p172 = scmp.ne.s32.totalorder %s155, %s171
    %p173 = scmp.eq.s32.totalorder %s16, 0
    %p174 = por %p172, %p173
    %p175 = scmp.le.s32.totalorder 1, %s10
    %p176 = scmp.lt.s32.totalorder %s10, 3
    %p177 = pnand %p175, %p176
    %p178 = pneg %p177
    // Predicated region
    $region9: #{vivit_forward.23} parent=5 // pred_check
      _
    $region10: #{vivit_forward.23} parent=5 // pred_check_branch
      %180 = sbr.rel (%p177) target = $region12
    $region11: #{vivit_forward.23} parent=5 // pred_region
      %s181 = ssub.s32 %s10, 1
      // Predicated region
      $region13: #{vivit_forward.23} parent=11 // pred_check
        %p182 = pneg %p85
      $region14: #{vivit_forward.23} parent=11 // pred_check_branch
        %184 = sbr.rel (%p182) target = $region16
      $region15: #{vivit_forward.23} parent=11 // pred_region
        %s185 = smul.u32 32, %s22
        %p186 = scmp.lt.s32.totalorder %s185, 31
        %s187 = scalar_select %p186, %s185, 31
        %p188 = scmp.lt.s32.totalorder %s21, 0
        %s189 = scalar_select %p188, %s21, 0
        %s190 = sadd.s32 %s189, %s187
        %s191 = smul.addr %s190, 8
        %s192 = scalar_lea.vmem %s1, %s191
        %s193 = smul.u32 32, %s22
      $region16: #{vivit_forward.23} parent=11 // pred_fallthru
        _
      // Predicated region
      $region17: #{vivit_forward.23} parent=11 // pred_check
        %p194 = pneg %p111
      $region18: #{vivit_forward.23} parent=11 // pred_check_branch
        %196 = sbr.rel (%p194) target = $region20
      $region19: #{vivit_forward.23} parent=11 // pred_region
        %p197 = scmp.lt.s32.totalorder %s21, 0
        %s198 = scalar_select %p197, %s21, 0
        %s199 = scalar_lea.vmem %s2, %s198
      $region20: #{vivit_forward.23} parent=11 // pred_fallthru
        _
    $region12: #{vivit_forward.23} parent=5 // pred_fallthru
      _
    %p200 = scmp.lt.s32.totalorder %s10, 2
    // Predicated region
    $region21: #{vivit_forward.23} parent=5 // pred_check
      %p201 = pneg %p200
    $region22: #{vivit_forward.23} parent=5 // pred_check_branch
      %203 = sbr.rel (%p201) target = $region24
    $region23: #{vivit_forward.23} parent=5 // pred_region
      // Predicated region
      $region25: #{vivit_forward.23} parent=23 // pred_check
        %p204 = pneg %p51
      $region26: #{vivit_forward.23} parent=23 // pred_check_branch
        %206 = sbr.rel (%p204) target = $region28
      $region27: #{vivit_forward.23} parent=23 // pred_region
        %s207 = smul.u32 4, %s17
        %s208 = smul.u32 2, %s19
        %p209 = scmp.lt.s32.totalorder %s207, 7
        %s210 = scalar_select %p209, %s207, 7
        %p211 = scmp.lt.s32.totalorder %s208, 1
        %s212 = scalar_select %p211, %s208, 1
        %s213 = smul.addr %s210, 2
        %s214 = sadd.s32 %s212, %s213
        %s215 = smul.addr %s214, 8
        %s216 = scalar_lea.vmem %s0, %s215
        %s217 = smul.u32 4, %s17
        %s218 = smul.u32 2, %s19
      $region28: #{vivit_forward.23} parent=23 // pred_fallthru
        _
      // Predicated region
      $region29: #{vivit_forward.23} parent=23 // pred_check
        %p219 = pneg %p133
      $region30: #{vivit_forward.23} parent=23 // pred_check_branch
        %221 = sbr.rel (%p219) target = $region32
      $region31: #{vivit_forward.23} parent=23 // pred_region
        %s222 = smul.u32 4, %s17
        %p223 = scmp.lt.s32.totalorder %s222, 7
        %s224 = scalar_select %p223, %s222, 7
        %p225 = scmp.lt.s32.totalorder %s18, 0
        %s226 = scalar_select %p225, %s18, 0
        %s227 = sadd.s32 %s226, %s224
        %s228 = smul.addr %s227, 8
        %s229 = scalar_lea.vmem %s3, %s228
        %s230 = smul.u32 4, %s17
      $region32: #{vivit_forward.23} parent=23 // pred_fallthru
        _
    $region24: #{vivit_forward.23} parent=5 // pred_fallthru
      _
    %p231 = scmp.le.s32.totalorder 1, %s10
    %p232 = scmp.lt.s32.totalorder %s10, 3
    %p233 = pnand %p231, %p232
    %p234 = pneg %p233
    // Predicated region
    $region33: #{vivit_forward.23} parent=5 // pred_check
      _
    $region34: #{vivit_forward.23} parent=5 // pred_check_branch
      %236 = sbr.rel (%p233) target = $region36
    $region35: #{vivit_forward.23} parent=5 // pred_region
      %s237 = ssub.s32 %s10, 1
      %s238 = smul.u32 4, %s20
      %s239 = smul.u32 2, %s22
      %p240 = scmp.lt.s32.totalorder %s238, 7
      %s241 = scalar_select %p240, %s238, 7
      %p242 = scmp.lt.s32.totalorder %s239, 1
      %s243 = scalar_select %p242, %s239, 1
      %s244 = smul.addr %s241, 2
      %s245 = sadd.s32 %s243, %s244
      %s246 = smul.addr %s245, 8
      %s247 = scalar_lea.vmem %s0, %s246
      %p248 = pneg %p57
      %p249 = pneg %p54
      %s250 = smul.u32 32, %s22
      %p251 = scmp.lt.s32.totalorder %s250, 31
      %s252 = scalar_select %p251, %s250, 31
      %p253 = scmp.lt.s32.totalorder %s21, 0
      %s254 = scalar_select %p253, %s21, 0
      %s255 = sadd.s32 %s254, %s252
      %s256 = smul.addr %s255, 8
      %s257 = scalar_lea.vmem %s1, %s256
      %p258 = pneg %p85
      %p259 = pneg %p82
      %p260 = scmp.lt.s32.totalorder %s21, 0
      %s261 = scalar_select %p260, %s21, 0
      %s262 = scalar_lea.vmem %s2, %s261
      %p263 = pneg %p111
      %p264 = pneg %p108
      %s265 = smul.u32 4, %s20
      %p266 = scmp.lt.s32.totalorder %s265, 7
      %s267 = scalar_select %p266, %s265, 7
      %p268 = scmp.lt.s32.totalorder %s21, 0
      %s269 = scalar_select %p268, %s21, 0
      %s270 = sadd.s32 %s269, %s267
      %s271 = smul.addr %s270, 8
      %s272 = scalar_lea.vmem %s3, %s271
      %p273 = pneg %p139
      %p274 = pneg %p136
      %p275 = pneg %p167
      %p276 = pneg %p164
      %s277 = smul.u32 4, %s20
      %p278 = scmp.lt.s32.totalorder %s277, 7
      %s279 = scalar_select %p278, %s277, 7
      %p280 = scmp.lt.s32.totalorder %s21, 0
      %s281 = scalar_select %p280, %s21, 0
      %s282 = sadd.s32 %s281, %s279
      %s283 = smul.addr %s282, 8
      %s284 = scalar_lea.vmem %s4, %s283
      %s285 = smul.u32 4, %s20
      %s286 = smul.u32 2, %s22
      %p287 = scmp.lt.s32.totalorder %s285, 7
      %s288 = scalar_select %p287, %s285, 7
      %p289 = scmp.lt.s32.totalorder %s286, 1
      %s290 = scalar_select %p289, %s286, 1
      %s291 = smul.addr %s288, 2
      %s292 = sadd.s32 %s290, %s291
      %s293 = smul.addr %s292, 8
      %s294 = scalar_lea.vmem %s0, %s293
      %s295 = smul.u32 4, %s20
      %s296 = smul.u32 2, %s22
      %s297 = smul.u32 32, %s22
      %p298 = scmp.lt.s32.totalorder %s297, 31
      %s299 = scalar_select %p298, %s297, 31
      %p300 = scmp.lt.s32.totalorder %s21, 0
      %s301 = scalar_select %p300, %s21, 0
      %s302 = sadd.s32 %s301, %s299
      %s303 = smul.addr %s302, 8
      %s304 = scalar_lea.vmem %s1, %s303
      %s305 = smul.u32 32, %s22
      %p306 = scmp.lt.s32.totalorder %s21, 0
      %s307 = scalar_select %p306, %s21, 0
      %s308 = scalar_lea.vmem %s2, %s307
      %s309 = smul.u32 4, %s20
      %p310 = scmp.lt.s32.totalorder %s309, 7
      %s311 = scalar_select %p310, %s309, 7
      %p312 = scmp.lt.s32.totalorder %s21, 0
      %s313 = scalar_select %p312, %s21, 0
      %s314 = sadd.s32 %s313, %s311
      %s315 = smul.addr %s314, 8
      %s316 = scalar_lea.vmem %s3, %s315
      %s317 = smul.u32 4, %s20
      %s318 = smul.u32 4, %s20
      %p319 = scmp.lt.s32.totalorder %s318, 7
      %s320 = scalar_select %p319, %s318, 7
      %p321 = scmp.lt.s32.totalorder %s21, 0
      %s322 = scalar_select %p321, %s21, 0
      %s323 = sadd.s32 %s322, %s320
      %s324 = smul.addr %s323, 8
      %s325 = scalar_lea.vmem %s4, %s324
      %s326 = smul.u32 4, %s20
      %p328 = scmp.eq.s32.totalorder %s22, 0
      // Predicated region
      $region37: #{vivit_forward.23} parent=35 // pred_check
        %p329 = pneg %p328
      $region38: #{vivit_forward.23} parent=35 // pred_check_branch
        %331 = sbr.rel (%p329) target = $region40
      $region39: #{vivit_forward.23} parent=35 // pred_region
        %332 = vst [vmem:[#allocation2] sm:$0xff] 0.0
        %333 = vst [vmem:[#allocation2 + $0x8] sm:$0xff] 0.0
        %334 = vst [vmem:[#allocation2 + $0x10] sm:$0xff] 0.0
        %335 = vst [vmem:[#allocation2 + $0x18] sm:$0xff] 0.0
      $region40: #{vivit_forward.23} parent=35 // pred_fallthru
        _
      %v336 = vld [vmem:[%s294] sm:$0xff]
      %v337 = vld [vmem:[%s294 + $0x8] sm:$0xff]
      %v338 = vld [vmem:[%s294 + $0x10] sm:$0xff]
      %v339 = vld [vmem:[%s294 + $0x18] sm:$0xff]
      %v340 = vld [vmem:[%s294 + $0x20] sm:$0xff]
      %v341 = vld [vmem:[%s294 + $0x28] sm:$0xff]
      %v342 = vld [vmem:[%s294 + $0x30] sm:$0xff]
      %v343 = vld [vmem:[%s294 + $0x38] sm:$0xff]
      %v344 = vld [vmem:[#allocation2] sm:$0xff]
      %v345 = vld [vmem:[#allocation2 + $0x8] sm:$0xff]
      %v346 = vld [vmem:[#allocation2 + $0x10] sm:$0xff]
      %v347 = vld [vmem:[#allocation2 + $0x18] sm:$0xff]
      %v348 = vpack.c.bf16 %v338, %v336
      %v349 = vpack.c.bf16 %v339, %v337
      %v350 = vpack.c.bf16 %v342, %v340
      %v351 = vpack.c.bf16 %v343, %v341
      %v352 = vld [vmem:[%s304] sm:$0xff]
      %v353 = vld [vmem:[%s304 + $0x8] sm:$0xff]
      %v354 = vld [vmem:[%s304 + $0x10] sm:$0xff]
      %v355 = vld [vmem:[%s304 + $0x18] sm:$0xff]
      %v356 = vld [vmem:[%s304 + $0x20] sm:$0xff]
      %v357 = vld [vmem:[%s304 + $0x28] sm:$0xff]
      %v358 = vld [vmem:[%s304 + $0x30] sm:$0xff]
      %v359 = vld [vmem:[%s304 + $0x38] sm:$0xff]
      %v360 = vld [vmem:[%s304 + $0x40] sm:$0xff]
      %v361 = vld [vmem:[%s304 + $0x48] sm:$0xff]
      %v362 = vld [vmem:[%s304 + $0x50] sm:$0xff]
      %v363 = vld [vmem:[%s304 + $0x58] sm:$0xff]
      %v364 = vld [vmem:[%s304 + $0x60] sm:$0xff]
      %v365 = vld [vmem:[%s304 + $0x68] sm:$0xff]
      %v366 = vld [vmem:[%s304 + $0x70] sm:$0xff]
      %v367 = vld [vmem:[%s304 + $0x78] sm:$0xff]
      %v368 = vld [vmem:[%s304 + $0x80] sm:$0xff]
      %v369 = vld [vmem:[%s304 + $0x88] sm:$0xff]
      %v370 = vld [vmem:[%s304 + $0x90] sm:$0xff]
      %v371 = vld [vmem:[%s304 + $0x98] sm:$0xff]
      %v372 = vld [vmem:[%s304 + $0xa0] sm:$0xff]
      %v373 = vld [vmem:[%s304 + $0xa8] sm:$0xff]
      %v374 = vld [vmem:[%s304 + $0xb0] sm:$0xff]
      %v375 = vld [vmem:[%s304 + $0xb8] sm:$0xff]
      %v376 = vld [vmem:[%s304 + $0xc0] sm:$0xff]
      %v377 = vld [vmem:[%s304 + $0xc8] sm:$0xff]
      %v378 = vld [vmem:[%s304 + $0xd0] sm:$0xff]
      %v379 = vld [vmem:[%s304 + $0xd8] sm:$0xff]
      %v380 = vld [vmem:[%s304 + $0xe0] sm:$0xff]
      %v381 = vld [vmem:[%s304 + $0xe8] sm:$0xff]
      %v382 = vld [vmem:[%s304 + $0xf0] sm:$0xff]
      %v383 = vld [vmem:[%s304 + $0xf8] sm:$0xff]
      %v384 = vpack.c.bf16 %v353, %v352
      %v385 = vpack.c.bf16 %v355, %v354
      %v386 = vpack.c.bf16 %v357, %v356
      %v387 = vpack.c.bf16 %v359, %v358
      %v388 = vpack.c.bf16 %v361, %v360
      %v389 = vpack.c.bf16 %v363, %v362
      %v390 = vpack.c.bf16 %v365, %v364
      %v391 = vpack.c.bf16 %v367, %v366
      %v392 = vpack.c.bf16 %v369, %v368
      %v393 = vpack.c.bf16 %v371, %v370
      %v394 = vpack.c.bf16 %v373, %v372
      %v395 = vpack.c.bf16 %v375, %v374
      %v396 = vpack.c.bf16 %v377, %v376
      %v397 = vpack.c.bf16 %v379, %v378
      %v398 = vpack.c.bf16 %v381, %v380
      %v399 = vpack.c.bf16 %v383, %v382
      %400 = vmatprep.subr.bf16.mxu0 0
      %401 = vmatpush1.bf16.msra.mxu0 %v384
      %402 = vmatprep.subr.bf16.mxu0 0
      %403 = vmatpush1.bf16.msra.mxu0 %v385
      %404 = vmatprep.subr.bf16.mxu0 0
      %405 = vmatpush1.bf16.msra.mxu0 %v386
      %406 = vmatprep.subr.bf16.mxu0 0
      %407 = vmatpush1.bf16.msra.mxu0 %v387
      %408 = vmatprep.subr.bf16.mxu0 0
      %409 = vmatpush1.bf16.msra.mxu0 %v388
      %410 = vmatprep.subr.bf16.mxu0 0
      %411 = vmatpush1.bf16.msra.mxu0 %v389
      %412 = vmatprep.subr.bf16.mxu0 0
      %413 = vmatpush1.bf16.msra.mxu0 %v390
      %414 = vmatprep.subr.bf16.mxu0 0
      %415 = vmatpush1.bf16.msra.mxu0 %v391
      %416 = vmatprep.subr.bf16.mxu0 0
      %417 = vmatpush1.bf16.msra.mxu0 %v392
      %418 = vmatprep.subr.bf16.mxu0 0
      %419 = vmatpush1.bf16.msra.mxu0 %v393
      %420 = vmatprep.subr.bf16.mxu0 0
      %421 = vmatpush1.bf16.msra.mxu0 %v394
      %422 = vmatprep.subr.bf16.mxu0 0
      %423 = vmatpush1.bf16.msra.mxu0 %v395
      %424 = vmatprep.subr.bf16.mxu0 0
      %425 = vmatpush1.bf16.msra.mxu0 %v396
      %426 = vmatprep.subr.bf16.mxu0 0
      %427 = vmatpush1.bf16.msra.mxu0 %v397
      %428 = vmatprep.subr.bf16.mxu0 0
      %429 = vmatpush1.bf16.msra.mxu0 %v398
      %430 = vmatprep.subr.bf16.mxu0 0
      %431 = vmatpush1.bf16.msra.mxu0 %v399
      %432 = vmatprep.mubr.bf16.mxu0 %v349
      %433 = vmatmul.mubr.bf16.gmra.mrb[0].mxu0 %v348
      %v434 = vpop.f32.mrb[0].mxu0
      %v435 = vadd.f32 0.0, %v434
      %v436 = vpop.f32.mrb[0].mxu0
      %v437 = vpop.f32.mrb[0].mxu0
      %v438 = vadd.f32 0.0, %v437
      %v439 = vpop.f32.mrb[0].mxu0
      %440 = vmatprep.mubr.bf16.mxu0 %v351
      %441 = vmatmul.mubr.bf16.gmra.mrb[0].mxu0 %v350
      %v442 = vpop.f32.mrb[0].mxu0
      %v443 = vadd.f32 0.0, %v442
      %v444 = vpop.f32.mrb[0].mxu0
      %v445 = vpop.f32.mrb[0].mxu0
      %v446 = vadd.f32 0.0, %v445
      %v447 = vpop.f32.mrb[0].mxu0
      %448 = vdwg.mxu0
      %v449 = vadd.f32 %v344, %v435
      %v450 = vadd.f32 %v345, %v438
      %v451 = vadd.f32 %v346, %v443
      %v452 = vadd.f32 %v347, %v446
      %453 = vst [vmem:[#allocation2] sm:$0xff] %v449
      %454 = vst [vmem:[#allocation2 + $0x8] sm:$0xff] %v450
      %455 = vst [vmem:[#allocation2 + $0x10] sm:$0xff] %v451
      %456 = vst [vmem:[#allocation2 + $0x18] sm:$0xff] %v452
      // Predicated region
      $region41: #{vivit_forward.23} parent=35 // pred_check
        %p457 = pneg %p328
      $region42: #{vivit_forward.23} parent=35 // pred_check_branch
        %459 = sbr.rel (%p457) target = $region44
      $region43: #{vivit_forward.23} parent=35 // pred_region
        %v460 = vld [vmem:[#allocation2] sm:$0xff]
        %v461 = vld [vmem:[#allocation2 + $0x8] sm:$0xff]
        %v462 = vld [vmem:[#allocation2 + $0x10] sm:$0xff]
        %v463 = vld [vmem:[#allocation2 + $0x18] sm:$0xff]
        %v464 = vld [vmem:[%s308] sm:$0x1]
        %v466 = vlaneseq
        %v467 = vshrl.u32 %v466, 7
        %v468 = vsub.s32 0, %v467
        %v469 = vrot.slane %v464, %v468
        %v471 = vadd.f32 %v460, %v469
        %v472 = vadd.f32 %v461, %v469
        %v473 = vadd.f32 %v462, %v469
        %v474 = vadd.f32 %v463, %v469
        %v475 = vld [vmem:[%s316] sm:$0xff]
        %v476 = vld [vmem:[%s316 + $0x8] sm:$0xff]
        %v477 = vld [vmem:[%s316 + $0x10] sm:$0xff]
        %v478 = vld [vmem:[%s316 + $0x18] sm:$0xff]
        %v479 = vadd.f32 %v471, %v475
        %v480 = vadd.f32 %v472, %v476
        %v481 = vadd.f32 %v473, %v477
        %v482 = vadd.f32 %v474, %v478
        %483 = vst [vmem:[%s325] sm:$0xff] %v479
        %484 = vst [vmem:[%s325 + $0x8] sm:$0xff] %v480
        %485 = vst [vmem:[%s325 + $0x10] sm:$0xff] %v481
        %486 = vst [vmem:[%s325 + $0x18] sm:$0xff] %v482
      $region44: #{vivit_forward.23} parent=35 // pred_fallthru
        _
      %s487 = smul.u32 4, %s20
      %p488 = scmp.lt.s32.totalorder %s487, 7
      %s489 = scalar_select %p488, %s487, 7
      %p490 = scmp.lt.s32.totalorder %s21, 0
      %s491 = scalar_select %p490, %s21, 0
      %s492 = sadd.s32 %s491, %s489
      %s493 = smul.addr %s492, 8
      %s494 = scalar_lea.vmem %s4, %s493
      // Predicated region
      $region45: #{vivit_forward.23} parent=35 // pred_check
        %p495 = pneg %p164
      $region46: #{vivit_forward.23} parent=35 // pred_check_branch
        %497 = sbr.rel (%p495) target = $region48
      $region47: #{vivit_forward.23} parent=35 // pred_region
        %s498 = smul.u32 4, %s20
      $region48: #{vivit_forward.23} parent=35 // pred_fallthru
        _
    $region36: #{vivit_forward.23} parent=5 // pred_fallthru
      _
    %p499 = scmp.le.s32.totalorder 2, %s10
    // Predicated region
    $region49: #{vivit_forward.23} parent=5 // pred_check
      %p500 = pneg %p499
    $region50: #{vivit_forward.23} parent=5 // pred_check_branch
      %502 = sbr.rel (%p500) target = $region52
    $region51: #{vivit_forward.23} parent=5 // pred_region
      %s503 = ssub.s32 %s10, 2
      // Predicated region
      $region53: #{vivit_forward.23} parent=51 // pred_check
        %p504 = pneg %p170
      $region54: #{vivit_forward.23} parent=51 // pred_check_branch
        %506 = sbr.rel (%p504) target = $region56
      $region55: #{vivit_forward.23} parent=51 // pred_region
        %s507 = smul.u32 4, %s23
        %p508 = scmp.lt.s32.totalorder %s507, 7
        %s509 = scalar_select %p508, %s507, 7
        %p510 = scmp.lt.s32.totalorder %s24, 0
        %s511 = scalar_select %p510, %s24, 0
        %s512 = sadd.s32 %s511, %s509
        %s513 = smul.addr %s512, 8
        %s514 = scalar_lea.vmem %s4, %s513
      $region56: #{vivit_forward.23} parent=51 // pred_fallthru
        _
    $region52: #{vivit_forward.23} parent=5 // pred_fallthru
      _
  $region6: #{vivit_forward.23} parent=0 // loop_footer
    %s14 = sadd.s32 1, %s10
  $region7: #{vivit_forward.23} parent=0 // loop_footer_branch
    %9 = sbr.rel target = $region3
  $region8: #{vivit_forward.23} parent=0 // loop_exit
    _

// kernel: vivit_forward.31
$region0: #{vivit_forward.31}
  #allocation0 [shape = 'u32[]', space=smem, size = 0x4, offset = 0x4, fixed_abs, tag = 'smem constant byte address 0x4 - core index']
  #allocation1 [shape = 'u32[144,128]{1,0:T(1,128)}', space=vmem, size = 0x12000, scoped, tag = 'internal scratch']
  #allocation2 [shape = 'f32[2,10]{1,0:T(2,128)}', space=vmem, size = 0x400, scoped, tag = 'scratch operand']
  #allocation3 [shape = 'f32[2,128]{1,0:T(2,128)}', space=vmem, size = 0x400, scoped, tag = 'scratch operand']
  %s0 = inlined_call_operand.vmem [shape: f32[2,128], index: 0, kind: input, shape index: {}]
  %s1 = inlined_call_operand.vmem [shape: f32[128,10], index: 1, kind: input, shape index: {}]
  %s2 = inlined_call_operand.vmem [shape: f32[1,10], index: 2, kind: input, shape index: {}]
  %s3 = inlined_call_operand.vmem [shape: f32[1,128], index: 3, kind: input, shape index: {}]
  %s4 = inlined_call_operand.vmem [shape: f32[1,128], index: 4, kind: input, shape index: {}]
  %s5 = inlined_call_operand.hbm [shape: f32[2,10], index: 5, kind: output, shape index: {}]
  %s6 = sld [smem:[#allocation0]]
  $region42: #{vivit_forward.31} parent=0
    _
  %s8 = ssub.s32 1, %s6
  %s9 = scalar_select 0, %s8, %s6
  $region1: #{vivit_forward.31} parent=0
    #allocation4 [shape = 'u8[1024]{0}', space=vmem, size = 0x400, scoped, tag = 'output window, operand 0, single buffered']
    #allocation5 [shape = 's32[1]{0}', space=sflag, size = 0x4, scoped, tag = 'scoped memory for vivit_forward.31']
    %10 = vsyncpa [#allocation5], 0
    // Predicated region
    $region2: #{vivit_forward.31} parent=1 // pred_check
      _
    $region3: #{vivit_forward.31} parent=1 // pred_check_branch
      %12 = sbr.rel (0) target = $region5
    $region4: #{vivit_forward.31} parent=1 // pred_region
      _
    $region5: #{vivit_forward.31} parent=1 // pred_fallthru
      _
    // Predicated region
    $region6: #{vivit_forward.31} parent=1 // pred_check
      _
    $region7: #{vivit_forward.31} parent=1 // pred_check_branch
      %14 = sbr.rel (0) target = $region9
    $region8: #{vivit_forward.31} parent=1 // pred_region
      _
    $region9: #{vivit_forward.31} parent=1 // pred_fallthru
      _
    // Predicated region
    $region10: #{vivit_forward.31} parent=1 // pred_check
      _
    $region11: #{vivit_forward.31} parent=1 // pred_check_branch
      %16 = sbr.rel (0) target = $region13
    $region12: #{vivit_forward.31} parent=1 // pred_region
      _
    $region13: #{vivit_forward.31} parent=1 // pred_fallthru
      _
    // Predicated region
    $region14: #{vivit_forward.31} parent=1 // pred_check
      _
    $region15: #{vivit_forward.31} parent=1 // pred_check_branch
      %18 = sbr.rel (0) target = $region17
    $region16: #{vivit_forward.31} parent=1 // pred_region
      _
    $region17: #{vivit_forward.31} parent=1 // pred_fallthru
      _
    // Predicated region
    $region18: #{vivit_forward.31} parent=1 // pred_check
      _
    $region19: #{vivit_forward.31} parent=1 // pred_check_branch
      %20 = sbr.rel (0) target = $region21
    $region20: #{vivit_forward.31} parent=1 // pred_region
      _
    $region21: #{vivit_forward.31} parent=1 // pred_fallthru
      _
    %p22 = scmp.eq.s32.totalorder 0, 0
    // Predicated region
    $region22: #{vivit_forward.31} parent=1 // pred_check
      %p23 = pneg %p22
    $region23: #{vivit_forward.31} parent=1 // pred_check_branch
      %25 = sbr.rel (%p23) target = $region25
    $region24: #{vivit_forward.31} parent=1 // pred_region
      %vm26 = vcmask 74752
      %27 = vst.msk [vmem:[#allocation2] sm:$0x3] %vm26, 0.0
    $region25: #{vivit_forward.31} parent=1 // pred_fallthru
      _
    %p28 = scmp.eq.s32.totalorder 0, 0
    // Predicated region
    $region26: #{vivit_forward.31} parent=1 // pred_check
      %p29 = pneg %p28
    $region27: #{vivit_forward.31} parent=1 // pred_check_branch
      %31 = sbr.rel (%p29) target = $region29
    $region28: #{vivit_forward.31} parent=1 // pred_region
      %v32 = vld [vmem:[%s0] sm:$0x3]
      %vm33 = vcmask 1041408
      %v34 = vsel %vm33, %v32, 0.0
      %35 = vadd.xlane.f32.xlu0 %v34
      %v36 = vpop.xlane.xlu0 %35
      %v37 = vrcp.pop 128.0
      %v38 = vmul.f32 %v36, %v37
      %v39 = vsub.f32 %v32, %v38
      %v40 = vmul.f32 %v39, %v39
      %v41 = vsel %vm33, %v40, 0.0
      %42 = vadd.xlane.f32.xlu0 %v41
      %v43 = vpop.xlane.xlu0 %42
      %v44 = vmul.f32 %v43, %v37
      %v45 = vadd.f32 %v44, 1e-05
      %v46 = vrsqrt.pop %v45
      %v47 = vmul.f32 %v39, %v46
      %v48 = vld [vmem:[%s3] sm:$0x1]
      %v50 = vlaneseq
      %v51 = vshrl.u32 %v50, 7
      %v52 = vsub.s32 0, %v51
      %v53 = vrot.slane %v48, %v52
      %v55 = vmul.f32 %v47, %v53
      %v56 = vld [vmem:[%s4] sm:$0x1]
      %v58 = vlaneseq
      %v59 = vshrl.u32 %v58, 7
      %v60 = vsub.s32 0, %v59
      %v61 = vrot.slane %v56, %v60
      %v63 = vadd.f32 %v55, %v61
      %64 = vst [vmem:[#allocation3] sm:$0x3] %v63
    $region29: #{vivit_forward.31} parent=1 // pred_fallthru
      _
    %v65 = vld [vmem:[#allocation3] sm:$0x3]
    %v66 = vld [vmem:[#allocation2] sm:$0x3]
    %v67 = vpack.c.bf16 %v65, %v65
    %v68 = vld [vmem:[%s1] sm:$0xff]
    %v69 = vld [vmem:[%s1 + $0x8] sm:$0xff]
    %v70 = vld [vmem:[%s1 + $0x10] sm:$0xff]
    %v71 = vld [vmem:[%s1 + $0x18] sm:$0xff]
    %v72 = vld [vmem:[%s1 + $0x20] sm:$0xff]
    %v73 = vld [vmem:[%s1 + $0x28] sm:$0xff]
    %v74 = vld [vmem:[%s1 + $0x30] sm:$0xff]
    %v75 = vld [vmem:[%s1 + $0x38] sm:$0xff]
    %v76 = vld [vmem:[%s1 + $0x40] sm:$0xff]
    %v77 = vld [vmem:[%s1 + $0x48] sm:$0xff]
    %v78 = vld [vmem:[%s1 + $0x50] sm:$0xff]
    %v79 = vld [vmem:[%s1 + $0x58] sm:$0xff]
    %v80 = vld [vmem:[%s1 + $0x60] sm:$0xff]
    %v81 = vld [vmem:[%s1 + $0x68] sm:$0xff]
    %v82 = vld [vmem:[%s1 + $0x70] sm:$0xff]
    %v83 = vld [vmem:[%s1 + $0x78] sm:$0xff]
    %v84 = vpack.c.bf16 %v69, %v68
    %v85 = vpack.c.bf16 %v71, %v70
    %v86 = vpack.c.bf16 %v73, %v72
    %v87 = vpack.c.bf16 %v75, %v74
    %v88 = vpack.c.bf16 %v77, %v76
    %v89 = vpack.c.bf16 %v79, %v78
    %v90 = vpack.c.bf16 %v81, %v80
    %v91 = vpack.c.bf16 %v83, %v82
    %92 = vmatprep.subr.bf16.mxu0 0
    %93 = vmatpush1.bf16.msra.mxu0 %v84
    %94 = vmatprep.subr.bf16.mxu0 0
    %95 = vmatpush1.bf16.msra.mxu0 %v85
    %96 = vmatprep.subr.bf16.mxu0 0
    %97 = vmatpush1.bf16.msra.mxu0 %v86
    %98 = vmatprep.subr.bf16.mxu0 0
    %99 = vmatpush1.bf16.msra.mxu0 %v87
    %100 = vmatprep.subr.bf16.mxu0 0
    %101 = vmatpush1.bf16.msra.mxu0 %v88
    %102 = vmatprep.subr.bf16.mxu0 0
    %103 = vmatpush1.bf16.msra.mxu0 %v89
    %104 = vmatprep.subr.bf16.mxu0 0
    %105 = vmatpush1.bf16.msra.mxu0 %v90
    %106 = vmatprep.subr.bf16.mxu0 0
    %107 = vmatpush1.bf16.msra.mxu0 %v91
    %108 = vmatprep.subr.bf16.mxu0 0
    %109 = vmatpush1.bf16.msra.mxu0 0
    %110 = vmatprep.subr.bf16.mxu0 0
    %111 = vmatpush1.bf16.msra.mxu0 0
    %112 = vmatprep.subr.bf16.mxu0 0
    %113 = vmatpush1.bf16.msra.mxu0 0
    %114 = vmatprep.subr.bf16.mxu0 0
    %115 = vmatpush1.bf16.msra.mxu0 0
    %116 = vmatprep.subr.bf16.mxu0 0
    %117 = vmatpush1.bf16.msra.mxu0 0
    %118 = vmatprep.subr.bf16.mxu0 0
    %119 = vmatpush1.bf16.msra.mxu0 0
    %120 = vmatprep.subr.bf16.mxu0 0
    %121 = vmatpush1.bf16.msra.mxu0 0
    %122 = vmatprep.subr.bf16.mxu0 0
    %123 = vmatpush1.bf16.msra.mxu0 0
    %124 = vmatprep.mubr.bf16.mxu0 0
    %125 = vmatmul.mubr.bf16.gmra.mrb[0].mxu0 %v67
    %v126 = vpop.f32.mrb[0].mxu0
    %v127 = vadd.f32 0.0, %v126
    %v128 = vpop.f32.mrb[0].mxu0
    %v129 = vpop.f32.mrb[0].mxu0
    %v130 = vpop.f32.mrb[0].mxu0
    %131 = vdwg.mxu0
    %v132 = vadd.f32 %v66, %v127
    %vm133 = vcmask 74752
    %134 = vst.msk [vmem:[#allocation2] sm:$0x3] %vm133, %v132
    // Predicated region
    $region30: #{vivit_forward.31} parent=1 // pred_check
      %p135 = pneg %p22
    $region31: #{vivit_forward.31} parent=1 // pred_check_branch
      %137 = sbr.rel (%p135) target = $region33
    $region32: #{vivit_forward.31} parent=1 // pred_region
      %v138 = vld [vmem:[#allocation2] sm:$0x3]
      %v139 = vld [vmem:[%s2] sm:$0x1]
      %v141 = vlaneseq
      %v142 = vshrl.u32 %v141, 7
      %v143 = vsub.s32 0, %v142
      %v144 = vrot.slane %v139, %v143
      %v146 = vadd.f32 %v138, %v144
      %147 = vst.msk [vmem:[#allocation4] sm:$0x3] %vm133, %v146
    $region33: #{vivit_forward.31} parent=1 // pred_fallthru
      _
    // Predicated region
    $region34: #{vivit_forward.31} parent=1 // pred_check
      _
    $region35: #{vivit_forward.31} parent=1 // pred_check_branch
      %149 = sbr.rel (0) target = $region37
    $region36: #{vivit_forward.31} parent=1 // pred_region
      %s151 = ssub.s32 32, 32
      %152 = vsyncadd [#allocation5], %s151
      %s154 = sshll.u32 [#allocation4], 4
      %s155 = int_to_ptr.vmem [resolvable:$true] %s154
      %157 = dma.vmem_to_hbm [thread:$0]  %s155, 32, %s5, [#allocation5]
    $region37: #{vivit_forward.31} parent=1 // pred_fallthru
      _
    // Predicated region
    $region38: #{vivit_forward.31} parent=1 // pred_check
      _
    $region39: #{vivit_forward.31} parent=1 // pred_check_branch
      %159 = sbr.rel (0) target = $region41
    $region40: #{vivit_forward.31} parent=1 // pred_region
      %160 = dma.done [#allocation5], 32
    $region41: #{vivit_forward.31} parent=1 // pred_fallthru
      _
    %161 = vsyncpa [#allocation5], 1

</llo_original>
